<compile_context>
chip_gen: v5e
topology: v5e:2x2
jax: 0.10.0
libtpu: 0.0.40
codegen_flags: <defaults>
</compile_context>

<pallas_src>
import math
from functools import partial

import jax
import jax.numpy as jnp
from jax.experimental import pallas as pl
from jax.experimental.pallas import tpu as pltpu

_LN_EPS = 1e-5


# --------------------------------------------------------------------------
# generation-aware limits / tiling helpers
# --------------------------------------------------------------------------
def _vmem_limit_bytes():
    try:
        cap = int(pltpu.get_tpu_info().vmem_capacity_bytes)
    except Exception:
        cap = 64 * 1024 * 1024          # conservative (v7x physical)
    return min((cap * 3) // 4, 100 * 1024 * 1024)


_VMEM_LIMIT = _vmem_limit_bytes()


def _row_tile(M):
    """Row tile for the FFN: big for MXU efficiency, but keep >=2 blocks on the
    parallel axis when possible so both v7x TensorCores get work."""
    if M >= 512:
        return 256
    if M >= 256:
        return 128
    return max(8, ((M + 7) // 8) * 8)


def _pad_rows(x2, tm):
    M = x2.shape[0]
    Mp = pl.cdiv(M, tm) * tm
    if Mp != M:
        x2 = jnp.pad(x2, ((0, Mp - M), (0, 0)))
    return x2, Mp


def _choose_th(D, H, itemsize, vmem_limit):
    """Largest hidden tile whose double-buffered W1/W2 tiles fit the VMEM budget."""
    budget = vmem_limit // 3
    for th in (H, 4096, 2048, 1024, 512, 256, 128):
        if th <= H and H % th == 0 and 2 * (2 * D * th) * itemsize <= budget:
            return th
    return H


def _softmax_rows_f32(s):
    """Row softmax in f32; reciprocal on the EUP (free slot)."""
    m = jnp.max(s, axis=-1, keepdims=True)
    p = jnp.exp(s - m)
    l = jnp.sum(p, axis=-1, keepdims=True)
    return p * pl.reciprocal(l, approx=True)


def _layernorm_f32(y, g, b, eps):
    mu = jnp.mean(y, axis=-1, keepdims=True)
    c = y - mu
    var = jnp.mean(c * c, axis=-1, keepdims=True)
    return c * jax.lax.rsqrt(var + eps) * g + b


# --------------------------------------------------------------------------
# fused causal self-attention block:
#   qvk = x @ Wqvk + b ; per-head causal attention ; concat ; +x ; LayerNorm
# --------------------------------------------------------------------------
def causal_attn_ln_kernel(x_ref, wqvk_ref, bqvk_ref, g_ref, b_ref, o_ref, *,
                          head_num, scale, eps):
    x = x_ref[0]                                            # (N, D)
    D = x.shape[-1]
    dh = D // head_num

    qvk = jnp.dot(x, wqvk_ref[...], preferred_element_type=jnp.float32)
    qvk = (qvk + bqvk_ref[...].astype(jnp.float32)).astype(x.dtype)   # (N, 3D)

    heads = []
    for h in range(head_num):                               # chunk order = q, v, k
        q = qvk[:, h * dh:(h + 1) * dh]
        v = qvk[:, D + h * dh:D + (h + 1) * dh]
        k = qvk[:, 2 * D + h * dh:2 * D + (h + 1) * dh]
        s = jax.lax.dot_general(q, k, (((1,), (1,)), ((), ())),
                                preferred_element_type=jnp.float32) * scale
        row = jax.lax.broadcasted_iota(jnp.int32, s.shape, 0)
        col = jax.lax.broadcasted_iota(jnp.int32, s.shape, 1)
        s = jnp.where(col <= row, s, jnp.float32(-1e9))
        p = _softmax_rows_f32(s)
        heads.append(jnp.dot(p.astype(v.dtype), v,
                             preferred_element_type=jnp.float32))
    attn = jnp.concatenate(heads, axis=-1)                  # (N, D) f32

    y = attn + x.astype(jnp.float32)                        # residual add
    o_ref[0] = _layernorm_f32(y, g_ref[...], b_ref[...], eps).astype(o_ref.dtype)


def causal_self_attention_block(x, w_qvk, b_qvk, gamma, beta, head_num):
    B, N, D = x.shape
    assert D % head_num == 0
    dh = D // head_num
    scale = 1.0 / math.sqrt(dh)
    itm = x.dtype.itemsize
    cost = pl.CostEstimate(
        flops=int(2 * B * N * D * 3 * D + 4 * B * N * N * D),
        transcendentals=int(B * head_num * N * N),
        bytes_accessed=int(2 * B * N * D * itm + 3 * D * D * itm + 3 * D * itm
                           + 2 * D * 4),
    )
    return pl.pallas_call(
        partial(causal_attn_ln_kernel, head_num=head_num, scale=scale, eps=_LN_EPS),
        out_shape=jax.ShapeDtypeStruct((B, N, D), x.dtype),
        grid_spec=pltpu.PrefetchScalarGridSpec(
            num_scalar_prefetch=0,
            grid=(B,),
            in_specs=[
                pl.BlockSpec((1, N, D), lambda b: (b, 0, 0)),
                pl.BlockSpec((D, 3 * D), lambda b: (0, 0)),
                pl.BlockSpec((1, 3 * D), lambda b: (0, 0)),
                pl.BlockSpec((1, D), lambda b: (0, 0)),
                pl.BlockSpec((1, D), lambda b: (0, 0)),
            ],
            out_specs=pl.BlockSpec((1, N, D), lambda b: (b, 0, 0)),
        ),
        compiler_params=pltpu.CompilerParams(
            dimension_semantics=("parallel",),
            vmem_limit_bytes=_VMEM_LIMIT,
        ),
        cost_estimate=cost,
    )(x, w_qvk, b_qvk.reshape(1, 3 * D),
      gamma.reshape(1, D).astype(jnp.float32),
      beta.reshape(1, D).astype(jnp.float32))


# --------------------------------------------------------------------------
# fused source-attention block:
#   q = x @ Wq + bq ; kv = memory @ Wkv + bkv ; per-head attention ; +x ; LN
# --------------------------------------------------------------------------
def src_attn_ln_kernel(x_ref, mem_ref, wq_ref, bq_ref, wkv_ref, bkv_ref,
                       g_ref, b_ref, o_ref, *, head_num, scale, eps):
    x = x_ref[0]                                            # (Nq, D)
    mem = mem_ref[0]                                        # (Nk, D)
    D = x.shape[-1]
    dh = D // head_num

    q_all = jnp.dot(x, wq_ref[...], preferred_element_type=jnp.float32)
    q_all = (q_all + bq_ref[...].astype(jnp.float32)).astype(x.dtype)     # (Nq, D)
    kv = jnp.dot(mem, wkv_ref[...], preferred_element_type=jnp.float32)
    kv = (kv + bkv_ref[...].astype(jnp.float32)).astype(mem.dtype)        # (Nk, 2D)

    heads = []
    for h in range(head_num):                               # chunk order = k, v
        q = q_all[:, h * dh:(h + 1) * dh]
        k = kv[:, h * dh:(h + 1) * dh]
        v = kv[:, D + h * dh:D + (h + 1) * dh]
        s = jax.lax.dot_general(q, k, (((1,), (1,)), ((), ())),
                                preferred_element_type=jnp.float32) * scale
        p = _softmax_rows_f32(s)
        heads.append(jnp.dot(p.astype(v.dtype), v,
                             preferred_element_type=jnp.float32))
    attn = jnp.concatenate(heads, axis=-1)                  # (Nq, D) f32

    y = attn + x.astype(jnp.float32)                        # residual add
    o_ref[0] = _layernorm_f32(y, g_ref[...], b_ref[...], eps).astype(o_ref.dtype)


def source_attention_block(x, memory, w_q, b_q, w_kv, b_kv, gamma, beta, head_num):
    B, Nq, D = x.shape
    Nk = memory.shape[1]
    assert D % head_num == 0
    dh = D // head_num
    scale = 1.0 / math.sqrt(dh)
    itm = x.dtype.itemsize
    cost = pl.CostEstimate(
        flops=int(2 * B * Nq * D * D + 2 * B * Nk * D * 2 * D + 4 * B * Nq * Nk * D),
        transcendentals=int(B * head_num * Nq * Nk),
        bytes_accessed=int((2 * B * Nq * D + B * Nk * D) * itm
                           + 3 * D * D * itm + 3 * D * itm + 2 * D * 4),
    )
    return pl.pallas_call(
        partial(src_attn_ln_kernel, head_num=head_num, scale=scale, eps=_LN_EPS),
        out_shape=jax.ShapeDtypeStruct((B, Nq, D), x.dtype),
        grid_spec=pltpu.PrefetchScalarGridSpec(
            num_scalar_prefetch=0,
            grid=(B,),
            in_specs=[
                pl.BlockSpec((1, Nq, D), lambda b: (b, 0, 0)),
                pl.BlockSpec((1, Nk, D), lambda b: (b, 0, 0)),
                pl.BlockSpec((D, D), lambda b: (0, 0)),
                pl.BlockSpec((1, D), lambda b: (0, 0)),
                pl.BlockSpec((D, 2 * D), lambda b: (0, 0)),
                pl.BlockSpec((1, 2 * D), lambda b: (0, 0)),
                pl.BlockSpec((1, D), lambda b: (0, 0)),
                pl.BlockSpec((1, D), lambda b: (0, 0)),
            ],
            out_specs=pl.BlockSpec((1, Nq, D), lambda b: (b, 0, 0)),
        ),
        compiler_params=pltpu.CompilerParams(
            dimension_semantics=("parallel",),
            vmem_limit_bytes=_VMEM_LIMIT,
        ),
        cost_estimate=cost,
    )(x, memory, w_q, b_q.reshape(1, D), w_kv, b_kv.reshape(1, 2 * D),
      gamma.reshape(1, D).astype(jnp.float32),
      beta.reshape(1, D).astype(jnp.float32))


# --------------------------------------------------------------------------
# fused feed-forward + residual + LayerNorm:
#   LN( ReLU(x @ W1 + b1) @ W2 + b2 + x )   with H tiled as a reduction
# --------------------------------------------------------------------------
def ffn_ln_kernel(x_ref, w1_ref, b1_ref, w2_ref, b2_ref, g_ref, be_ref,
                  o_ref, acc_ref, *, eps):
    @pl.when(pl.program_id(1) == 0)
    def _():
        acc_ref[...] = jnp.zeros_like(acc_ref)

    h = jnp.dot(x_ref[...], w1_ref[...], preferred_element_type=jnp.float32)
    h = jnp.maximum(h + b1_ref[...].astype(jnp.float32), 0.0)   # bias + ReLU fused
    acc_ref[...] += jnp.dot(h.astype(w2_ref.dtype), w2_ref[...],
                            preferred_element_type=jnp.float32)

    @pl.when(pl.program_id(1) == pl.num_programs(1) - 1)
    def _():
        y = acc_ref[...] + b2_ref[...].astype(jnp.float32) \
            + x_ref[...].astype(jnp.float32)                    # residual add
        o_ref[...] = _layernorm_f32(y, g_ref[...], be_ref[...], eps).astype(o_ref.dtype)


def feed_forward_ln(x, w1, b1, w2, b2, gamma, beta, *, th=None):
    B, N, D = x.shape
    H = w1.shape[1]
    M = B * N
    tm = _row_tile(M)
    x2, Mp = _pad_rows(x.reshape(M, D), tm)
    if th is None:
        th = _choose_th(D, H, w1.dtype.itemsize, _VMEM_LIMIT)
    if H % th != 0:
        th = H
    itm = x.dtype.itemsize
    cost = pl.CostEstimate(
        flops=int(4 * Mp * D * H),
        transcendentals=0,
        bytes_accessed=int(2 * Mp * D * itm
                           + (2 * D * H + H + D) * w1.dtype.itemsize * (Mp // tm)
                           + 2 * D * 4),
    )
    out2 = pl.pallas_call(
        partial(ffn_ln_kernel, eps=_LN_EPS),
        out_shape=jax.ShapeDtypeStruct((Mp, D), x.dtype),
        grid_spec=pltpu.PrefetchScalarGridSpec(
            num_scalar_prefetch=0,
            grid=(Mp // tm, H // th),
            in_specs=[
                pl.BlockSpec((tm, D), lambda i, hh: (i, 0)),   # x (resident over hh)
                pl.BlockSpec((D, th), lambda i, hh: (0, hh)),  # W1 hidden tile
                pl.BlockSpec((1, th), lambda i, hh: (0, hh)),  # b1 hidden tile
                pl.BlockSpec((th, D), lambda i, hh: (hh, 0)),  # W2 hidden tile
                pl.BlockSpec((1, D), lambda i, hh: (0, 0)),    # b2
                pl.BlockSpec((1, D), lambda i, hh: (0, 0)),    # gamma
                pl.BlockSpec((1, D), lambda i, hh: (0, 0)),    # beta
            ],
            out_specs=pl.BlockSpec((tm, D), lambda i, hh: (i, 0)),
            scratch_shapes=[pltpu.VMEM((tm, D), jnp.float32)],
        ),
        compiler_params=pltpu.CompilerParams(
            dimension_semantics=("parallel", "arbitrary"),
            vmem_limit_bytes=_VMEM_LIMIT,
        ),
        cost_estimate=cost,
    )(x2, w1, b1.reshape(1, H), w2, b2.reshape(1, D),
      gamma.reshape(1, D).astype(jnp.float32),
      beta.reshape(1, D).astype(jnp.float32))
    return out2[:M].reshape(B, N, D)


# --------------------------------------------------------------------------
# decoder layer / decoder forward
# --------------------------------------------------------------------------
def decoder_layer_forward(x, memory, p):
    h = p["head_num"]
    out = causal_self_attention_block(x, p["w_qvk"], p["b_qvk"],
                                      p["ln1_g"], p["ln1_b"], h)
    out = source_attention_block(out, memory, p["w_q"], p["b_q"],
                                 p["w_kv"], p["b_kv"],
                                 p["ln2_g"], p["ln2_b"], h)
    out = feed_forward_ln(out, p["w_ff1"], p["b_ff1"], p["w_ff2"], p["b_ff2"],
                          p["ln3_g"], p["ln3_b"])
    return out


def decoder_forward(x, memory, params):
    for p in params["layers"]:
        x = decoder_layer_forward(x, memory, p)
    return x


# --------------------------------------------------------------------------
# parameter init (PyTorch-style uniform +/- 1/sqrt(fan_in); weights stored as
# (in, out)).  Matmul params stored in `dtype` (bf16 for the fast path), LN
# params kept in f32.
# --------------------------------------------------------------------------
def _init_linear(key, din, dout, dtype):
    kw, kb = jax.random.split(key)
    bound = 1.0 / math.sqrt(din)
    w = jax.random.uniform(kw, (din, dout), jnp.float32, -bound, bound).astype(dtype)
    b = jax.random.uniform(kb, (dout,), jnp.float32, -bound, bound).astype(dtype)
    return w, b


def init_decoder_params(key, depth, dim, head_num, ff_hidnum, dtype=jnp.float32):
    layers = []
    for _ in range(depth):
        key, k0, k1, k2, k3, k4 = jax.random.split(key, 6)
        w_qvk, b_qvk = _init_linear(k0, dim, dim * 3, dtype)
        w_kv, b_kv = _init_linear(k1, dim, dim * 2, dtype)
        w_q, b_q = _init_linear(k2, dim, dim, dtype)
        w_ff1, b_ff1 = _init_linear(k3, dim, ff_hidnum, dtype)
        w_ff2, b_ff2 = _init_linear(k4, ff_hidnum, dim, dtype)
        layers.append(dict(
            head_num=head_num,
            w_qvk=w_qvk, b_qvk=b_qvk,
            w_kv=w_kv, b_kv=b_kv,
            w_q=w_q, b_q=b_q,
            w_ff1=w_ff1, b_ff1=b_ff1,
            w_ff2=w_ff2, b_ff2=b_ff2,
            ln1_g=jnp.ones((dim,), jnp.float32), ln1_b=jnp.zeros((dim,), jnp.float32),
            ln2_g=jnp.ones((dim,), jnp.float32), ln2_b=jnp.zeros((dim,), jnp.float32),
            ln3_g=jnp.ones((dim,), jnp.float32), ln3_b=jnp.zeros((dim,), jnp.float32),
        ))
    return {"layers": layers}


# --------------------------------------------------------------------------
# pure-JAX f32 reference (mirrors the PyTorch forward, dropout = identity)
# --------------------------------------------------------------------------
def _f32(a):
    return a.astype(jnp.float32)


def _ref_attention(q, k, v, causal):
    dh = k.shape[-1]
    s = jnp.einsum('bhqd,bhkd->bhqk', q, k) / math.sqrt(dh)
    if causal:
        nq, nk = s.shape[-2:]
        mask = jnp.tril(jnp.ones((nq, nk), jnp.float32))
        s = jnp.where(mask == 0, -1e9, s)
    return jnp.einsum('bhqk,bhkd->bhqd', jax.nn.softmax(s, axis=-1), v)


def _ref_split(x, head_num, split_num):
    B, n, pd = x.shape
    d = pd // split_num
    return [x[..., s * d:(s + 1) * d]
            .reshape(B, n, head_num, d // head_num).transpose(0, 2, 1, 3)
            for s in range(split_num)]


def _ref_concat(x):
    B, h, n, dh = x.shape
    return x.transpose(0, 2, 1, 3).reshape(B, n, dh * h)


def _ref_ln(x, g, b, eps=_LN_EPS):
    mu = x.mean(-1, keepdims=True)
    var = ((x - mu) ** 2).mean(-1, keepdims=True)
    return (x - mu) / jnp.sqrt(var + eps) * g + b


def ref_decoder(x, memory, params):
    x = _f32(x)
    memory = _f32(memory)
    for p in params["layers"]:
        h = p["head_num"]
        res = x
        q, v, k = _ref_split(x @ _f32(p["w_qvk"]) + _f32(p["b_qvk"]), h, 3)
        out = _ref_concat(_ref_attention(q, k, v, True))
        out = _ref_ln(out + res, p["ln1_g"], p["ln1_b"])
        res = out
        k2, v2 = _ref_split(memory @ _f32(p["w_kv"]) + _f32(p["b_kv"]), h, 2)
        q2 = _ref_split(out @ _f32(p["w_q"]) + _f32(p["b_q"]), h, 1)[0]
        out2 = _ref_concat(_ref_attention(q2, k2, v2, False))
        out = _ref_ln(out2 + res, p["ln2_g"], p["ln2_b"])
        res = out
        ff = jnp.maximum(out @ _f32(p["w_ff1"]) + _f32(p["b_ff1"]), 0.0) \
            @ _f32(p["w_ff2"]) + _f32(p["b_ff2"])
        x = _ref_ln(ff + res, p["ln3_g"], p["ln3_b"])
    return x


# --------------------------------------------------------------------------
if __name__ == "__main__":
    # dh = dim // head_num = 128 -> lane-dense per-head tiles inside the kernels
    depth, dim, head_num, ff_hidnum = 2, 512, 4, 1024
    B, N = 2, 128

    key = jax.random.PRNGKey(0)
    kx, km, kp = jax.random.split(key, 3)
    x32 = jax.random.normal(kx, (B, N, dim), jnp.float32)
    m32 = jax.random.normal(km, (B, N, dim), jnp.float32)

    # ---- f32 path: structural correctness check against the pure-JAX reference
    params32 = init_decoder_params(kp, depth, dim, head_num, ff_hidnum, jnp.float32)
    out32 = jax.block_until_ready(decoder_forward(x32, m32, params32))
    assert out32.shape == (B, N, dim), f"bad shape {out32.shape}"
    ref32 = ref_decoder(x32, m32, params32)
    err32 = float(jnp.max(jnp.abs(out32 - ref32)))
    assert err32 < 5e-2, f"f32 mismatch vs reference, max abs diff = {err32:e}"

    # ---- standalone check of the H-tiled FFN reduction path (forced th=128)
    p0 = params32["layers"][0]
    ff_ref = jnp.maximum(x32 @ p0["w_ff1"] + p0["b_ff1"], 0.0) @ p0["w_ff2"] + p0["b_ff2"]
    ff_ref = _ref_ln(ff_ref + x32, p0["ln3_g"], p0["ln3_b"])
    ff_out = jax.block_until_ready(
        feed_forward_ln(x32, p0["w_ff1"], p0["b_ff1"], p0["w_ff2"], p0["b_ff2"],
                        p0["ln3_g"], p0["ln3_b"], th=128))
    err_ff = float(jnp.max(jnp.abs(ff_out - ff_ref)))
    assert err_ff < 5e-2, f"FFN reduction-path mismatch, max abs diff = {err_ff:e}"

    # ---- bf16 production path: bf16 MXU matmuls with f32 accumulation
    params_bf = init_decoder_params(kp, depth, dim, head_num, ff_hidnum, jnp.bfloat16)
    x_bf = x32.astype(jnp.bfloat16)
    m_bf = m32.astype(jnp.bfloat16)
    out_bf = jax.block_until_ready(decoder_forward(x_bf, m_bf, params_bf))
    assert out_bf.shape == (B, N, dim)
    assert out_bf.dtype == jnp.bfloat16
    ref_bf = ref_decoder(x_bf, m_bf, params_bf)
    err_bf = float(jnp.max(jnp.abs(out_bf.astype(jnp.float32) - ref_bf)))
    assert err_bf < 3e-1, f"bf16 mismatch vs f32 reference, max abs diff = {err_bf:e}"

    print("KERNEL_OK")
</pallas_src>

<mosaic_0001>
module attributes {stable_mosaic.version = 11 : i64} {
  func.func @causal_attn_ln_kernel(%arg0: i32, %arg1: memref<1x128x512xf32, #tpu.memory_space<vmem>>, %arg2: memref<512x1536xf32, #tpu.memory_space<vmem>>, %arg3: memref<1x1536xf32, #tpu.memory_space<vmem>>, %arg4: memref<1x512xf32, #tpu.memory_space<vmem>>, %arg5: memref<1x512xf32, #tpu.memory_space<vmem>>, %arg6: memref<1x128x512xf32, #tpu.memory_space<vmem>>) attributes {dimension_semantics = [#tpu.dimension_semantics<parallel>], iteration_bounds = array<i64: 2>, scalar_prefetch = 0 : i64, scratch_operands = 0 : i64, tpu.core_type = #tpu.core_type<tc>, window_params = [{transform_indices = @transform_0, window_bounds = array<i64: 1, 128, 512>}, {pipeline_mode = #tpu.pipeline_mode<synchronous>, transform_indices = @transform_1, window_bounds = array<i64: 512, 1536>}, {pipeline_mode = #tpu.pipeline_mode<synchronous>, transform_indices = @transform_2, window_bounds = array<i64: 1, 1536>}, {pipeline_mode = #tpu.pipeline_mode<synchronous>, transform_indices = @transform_3, window_bounds = array<i64: 1, 512>}, {pipeline_mode = #tpu.pipeline_mode<synchronous>, transform_indices = @transform_4, window_bounds = array<i64: 1, 512>}, {transform_indices = @transform_5, window_bounds = array<i64: 1, 128, 512>}]} {
    %c0 = arith.constant 0 : index
    %c0_0 = arith.constant 0 : index
    %c0_1 = arith.constant 0 : index
    %0 = vector.load %arg1[%c0, %c0_0, %c0_1] : memref<1x128x512xf32, #tpu.memory_space<vmem>>, vector<1x128x512xf32>
    %1 = vector.shape_cast %0 : vector<1x128x512xf32> to vector<128x512xf32>
    %c0_2 = arith.constant 0 : index
    %c0_3 = arith.constant 0 : index
    %2 = vector.load %arg2[%c0_2, %c0_3] : memref<512x1536xf32, #tpu.memory_space<vmem>>, vector<512x1536xf32>
    %cst = arith.constant dense<0.000000e+00> : vector<128x1536xf32>
    %3 = tpu.matmul %1, %2, %cst {dimension_numbers = #tpu.dot_dimension_numbers<[1], [0], [0], [1], [0, 0, 1, 1], [], []>} : vector<128x512xf32>, vector<512x1536xf32>, vector<128x1536xf32> -> vector<128x1536xf32>
    %c0_4 = arith.constant 0 : index
    %c0_5 = arith.constant 0 : index
    %4 = vector.load %arg3[%c0_4, %c0_5] : memref<1x1536xf32, #tpu.memory_space<vmem>>, vector<1x1536xf32>
    %5 = vector.broadcast %4 : vector<1x1536xf32> to vector<128x1536xf32>
    %6 = arith.addf %3, %5 : vector<128x1536xf32>
    %7 = vector.extract_strided_slice %6 {offsets = [0, 0], sizes = [128, 128], strides = [1, 1]} : vector<128x1536xf32> to vector<128x128xf32>
    %8 = vector.extract_strided_slice %6 {offsets = [0, 512], sizes = [128, 128], strides = [1, 1]} : vector<128x1536xf32> to vector<128x128xf32>
    %9 = vector.extract_strided_slice %6 {offsets = [0, 1024], sizes = [128, 128], strides = [1, 1]} : vector<128x1536xf32> to vector<128x128xf32>
    %cst_6 = arith.constant dense<0.000000e+00> : vector<128x128xf32>
    %10 = tpu.matmul %7, %9, %cst_6 {dimension_numbers = #tpu.dot_dimension_numbers<[1], [1], [0], [0], [0, 0, 1, 0], [], []>} : vector<128x128xf32>, vector<128x128xf32>, vector<128x128xf32> -> vector<128x128xf32>
    %cst_7 = arith.constant 0.0883883461 : f32
    %11 = vector.broadcast %cst_7 : f32 to vector<128x128xf32>
    %12 = arith.mulf %10, %11 : vector<128x128xf32>
    %13 = tpu.iota {dimensions = array<i32: 0>} : vector<128x128xi32>
    %14 = tpu.iota {dimensions = array<i32: 1>} : vector<128x128xi32>
    %15 = arith.cmpi sle, %14, %13 : vector<128x128xi32>
    %cst_8 = arith.constant -1.000000e+09 : f32
    %16 = vector.broadcast %cst_8 : f32 to vector<128x128xf32>
    %17 = arith.select %15, %12, %16 : vector<128x128xi1>, vector<128x128xf32>
    %cst_9 = arith.constant dense<0xFF800000> : vector<128xf32>
    %18 = vector.multi_reduction <maximumf>, %17, %cst_9 [1] : vector<128x128xf32> to vector<128xf32>
    %19 = vector.shape_cast %18 : vector<128xf32> to vector<128x1xf32>
    %20 = vector.broadcast %19 : vector<128x1xf32> to vector<128x128xf32>
    %21 = arith.subf %17, %20 : vector<128x128xf32>
    %22 = math.exp %21 : vector<128x128xf32>
    %cst_10 = arith.constant dense<0.000000e+00> : vector<128xf32>
    %23 = vector.multi_reduction <add>, %22, %cst_10 [1] : vector<128x128xf32> to vector<128xf32>
    %24 = vector.shape_cast %23 : vector<128xf32> to vector<128x1xf32>
    %25 = tpu.reciprocal %24 {approx = true} : vector<128x1xf32> -> vector<128x1xf32>
    %26 = vector.broadcast %25 : vector<128x1xf32> to vector<128x128xf32>
    %27 = arith.mulf %22, %26 : vector<128x128xf32>
    %cst_11 = arith.constant dense<0.000000e+00> : vector<128x128xf32>
    %28 = tpu.matmul %27, %8, %cst_11 {dimension_numbers = #tpu.dot_dimension_numbers<[1], [0], [0], [1], [0, 0, 1, 1], [], []>} : vector<128x128xf32>, vector<128x128xf32>, vector<128x128xf32> -> vector<128x128xf32>
    %29 = vector.extract_strided_slice %6 {offsets = [0, 128], sizes = [128, 128], strides = [1, 1]} : vector<128x1536xf32> to vector<128x128xf32>
    %30 = vector.extract_strided_slice %6 {offsets = [0, 640], sizes = [128, 128], strides = [1, 1]} : vector<128x1536xf32> to vector<128x128xf32>
    %31 = vector.extract_strided_slice %6 {offsets = [0, 1152], sizes = [128, 128], strides = [1, 1]} : vector<128x1536xf32> to vector<128x128xf32>
    %cst_12 = arith.constant dense<0.000000e+00> : vector<128x128xf32>
    %32 = tpu.matmul %29, %31, %cst_12 {dimension_numbers = #tpu.dot_dimension_numbers<[1], [1], [0], [0], [0, 0, 1, 0], [], []>} : vector<128x128xf32>, vector<128x128xf32>, vector<128x128xf32> -> vector<128x128xf32>
    %cst_13 = arith.constant 0.0883883461 : f32
    %33 = vector.broadcast %cst_13 : f32 to vector<128x128xf32>
    %34 = arith.mulf %32, %33 : vector<128x128xf32>
    %35 = tpu.iota {dimensions = array<i32: 0>} : vector<128x128xi32>
    %36 = tpu.iota {dimensions = array<i32: 1>} : vector<128x128xi32>
    %37 = arith.cmpi sle, %36, %35 : vector<128x128xi32>
    %cst_14 = arith.constant -1.000000e+09 : f32
    %38 = vector.broadcast %cst_14 : f32 to vector<128x128xf32>
    %39 = arith.select %37, %34, %38 : vector<128x128xi1>, vector<128x128xf32>
    %cst_15 = arith.constant dense<0xFF800000> : vector<128xf32>
    %40 = vector.multi_reduction <maximumf>, %39, %cst_15 [1] : vector<128x128xf32> to vector<128xf32>
    %41 = vector.shape_cast %40 : vector<128xf32> to vector<128x1xf32>
    %42 = vector.broadcast %41 : vector<128x1xf32> to vector<128x128xf32>
    %43 = arith.subf %39, %42 : vector<128x128xf32>
    %44 = math.exp %43 : vector<128x128xf32>
    %cst_16 = arith.constant dense<0.000000e+00> : vector<128xf32>
    %45 = vector.multi_reduction <add>, %44, %cst_16 [1] : vector<128x128xf32> to vector<128xf32>
    %46 = vector.shape_cast %45 : vector<128xf32> to vector<128x1xf32>
    %47 = tpu.reciprocal %46 {approx = true} : vector<128x1xf32> -> vector<128x1xf32>
    %48 = vector.broadcast %47 : vector<128x1xf32> to vector<128x128xf32>
    %49 = arith.mulf %44, %48 : vector<128x128xf32>
    %cst_17 = arith.constant dense<0.000000e+00> : vector<128x128xf32>
    %50 = tpu.matmul %49, %30, %cst_17 {dimension_numbers = #tpu.dot_dimension_numbers<[1], [0], [0], [1], [0, 0, 1, 1], [], []>} : vector<128x128xf32>, vector<128x128xf32>, vector<128x128xf32> -> vector<128x128xf32>
    %51 = vector.extract_strided_slice %6 {offsets = [0, 256], sizes = [128, 128], strides = [1, 1]} : vector<128x1536xf32> to vector<128x128xf32>
    %52 = vector.extract_strided_slice %6 {offsets = [0, 768], sizes = [128, 128], strides = [1, 1]} : vector<128x1536xf32> to vector<128x128xf32>
    %53 = vector.extract_strided_slice %6 {offsets = [0, 1280], sizes = [128, 128], strides = [1, 1]} : vector<128x1536xf32> to vector<128x128xf32>
    %cst_18 = arith.constant dense<0.000000e+00> : vector<128x128xf32>
    %54 = tpu.matmul %51, %53, %cst_18 {dimension_numbers = #tpu.dot_dimension_numbers<[1], [1], [0], [0], [0, 0, 1, 0], [], []>} : vector<128x128xf32>, vector<128x128xf32>, vector<128x128xf32> -> vector<128x128xf32>
    %cst_19 = arith.constant 0.0883883461 : f32
    %55 = vector.broadcast %cst_19 : f32 to vector<128x128xf32>
    %56 = arith.mulf %54, %55 : vector<128x128xf32>
    %57 = tpu.iota {dimensions = array<i32: 0>} : vector<128x128xi32>
    %58 = tpu.iota {dimensions = array<i32: 1>} : vector<128x128xi32>
    %59 = arith.cmpi sle, %58, %57 : vector<128x128xi32>
    %cst_20 = arith.constant -1.000000e+09 : f32
    %60 = vector.broadcast %cst_20 : f32 to vector<128x128xf32>
    %61 = arith.select %59, %56, %60 : vector<128x128xi1>, vector<128x128xf32>
    %cst_21 = arith.constant dense<0xFF800000> : vector<128xf32>
    %62 = vector.multi_reduction <maximumf>, %61, %cst_21 [1] : vector<128x128xf32> to vector<128xf32>
    %63 = vector.shape_cast %62 : vector<128xf32> to vector<128x1xf32>
    %64 = vector.broadcast %63 : vector<128x1xf32> to vector<128x128xf32>
    %65 = arith.subf %61, %64 : vector<128x128xf32>
    %66 = math.exp %65 : vector<128x128xf32>
    %cst_22 = arith.constant dense<0.000000e+00> : vector<128xf32>
    %67 = vector.multi_reduction <add>, %66, %cst_22 [1] : vector<128x128xf32> to vector<128xf32>
    %68 = vector.shape_cast %67 : vector<128xf32> to vector<128x1xf32>
    %69 = tpu.reciprocal %68 {approx = true} : vector<128x1xf32> -> vector<128x1xf32>
    %70 = vector.broadcast %69 : vector<128x1xf32> to vector<128x128xf32>
    %71 = arith.mulf %66, %70 : vector<128x128xf32>
    %cst_23 = arith.constant dense<0.000000e+00> : vector<128x128xf32>
    %72 = tpu.matmul %71, %52, %cst_23 {dimension_numbers = #tpu.dot_dimension_numbers<[1], [0], [0], [1], [0, 0, 1, 1], [], []>} : vector<128x128xf32>, vector<128x128xf32>, vector<128x128xf32> -> vector<128x128xf32>
    %73 = vector.extract_strided_slice %6 {offsets = [0, 384], sizes = [128, 128], strides = [1, 1]} : vector<128x1536xf32> to vector<128x128xf32>
    %74 = vector.extract_strided_slice %6 {offsets = [0, 896], sizes = [128, 128], strides = [1, 1]} : vector<128x1536xf32> to vector<128x128xf32>
    %75 = vector.extract_strided_slice %6 {offsets = [0, 1408], sizes = [128, 128], strides = [1, 1]} : vector<128x1536xf32> to vector<128x128xf32>
    %cst_24 = arith.constant dense<0.000000e+00> : vector<128x128xf32>
    %76 = tpu.matmul %73, %75, %cst_24 {dimension_numbers = #tpu.dot_dimension_numbers<[1], [1], [0], [0], [0, 0, 1, 0], [], []>} : vector<128x128xf32>, vector<128x128xf32>, vector<128x128xf32> -> vector<128x128xf32>
    %cst_25 = arith.constant 0.0883883461 : f32
    %77 = vector.broadcast %cst_25 : f32 to vector<128x128xf32>
    %78 = arith.mulf %76, %77 : vector<128x128xf32>
    %79 = tpu.iota {dimensions = array<i32: 0>} : vector<128x128xi32>
    %80 = tpu.iota {dimensions = array<i32: 1>} : vector<128x128xi32>
    %81 = arith.cmpi sle, %80, %79 : vector<128x128xi32>
    %cst_26 = arith.constant -1.000000e+09 : f32
    %82 = vector.broadcast %cst_26 : f32 to vector<128x128xf32>
    %83 = arith.select %81, %78, %82 : vector<128x128xi1>, vector<128x128xf32>
    %cst_27 = arith.constant dense<0xFF800000> : vector<128xf32>
    %84 = vector.multi_reduction <maximumf>, %83, %cst_27 [1] : vector<128x128xf32> to vector<128xf32>
    %85 = vector.shape_cast %84 : vector<128xf32> to vector<128x1xf32>
    %86 = vector.broadcast %85 : vector<128x1xf32> to vector<128x128xf32>
    %87 = arith.subf %83, %86 : vector<128x128xf32>
    %88 = math.exp %87 : vector<128x128xf32>
    %cst_28 = arith.constant dense<0.000000e+00> : vector<128xf32>
    %89 = vector.multi_reduction <add>, %88, %cst_28 [1] : vector<128x128xf32> to vector<128xf32>
    %90 = vector.shape_cast %89 : vector<128xf32> to vector<128x1xf32>
    %91 = tpu.reciprocal %90 {approx = true} : vector<128x1xf32> -> vector<128x1xf32>
    %92 = vector.broadcast %91 : vector<128x1xf32> to vector<128x128xf32>
    %93 = arith.mulf %88, %92 : vector<128x128xf32>
    %cst_29 = arith.constant dense<0.000000e+00> : vector<128x128xf32>
    %94 = tpu.matmul %93, %74, %cst_29 {dimension_numbers = #tpu.dot_dimension_numbers<[1], [0], [0], [1], [0, 0, 1, 1], [], []>} : vector<128x128xf32>, vector<128x128xf32>, vector<128x128xf32> -> vector<128x128xf32>
    %95 = tpu.concatenate %28, %50, %72, %94 in 1 : vector<128x128xf32>, vector<128x128xf32>, vector<128x128xf32>, vector<128x128xf32> -> vector<128x512xf32>
    %96 = arith.addf %95, %1 : vector<128x512xf32>
    %c0_30 = arith.constant 0 : index
    %c0_31 = arith.constant 0 : index
    %97 = vector.load %arg4[%c0_30, %c0_31] : memref<1x512xf32, #tpu.memory_space<vmem>>, vector<1x512xf32>
    %c0_32 = arith.constant 0 : index
    %c0_33 = arith.constant 0 : index
    %98 = vector.load %arg5[%c0_32, %c0_33] : memref<1x512xf32, #tpu.memory_space<vmem>>, vector<1x512xf32>
    %cst_34 = arith.constant dense<0.000000e+00> : vector<128xf32>
    %99 = vector.multi_reduction <add>, %96, %cst_34 [1] : vector<128x512xf32> to vector<128xf32>
    %100 = vector.shape_cast %99 : vector<128xf32> to vector<128x1xf32>
    %cst_35 = arith.constant 5.120000e+02 : f32
    %101 = vector.broadcast %cst_35 : f32 to vector<128x1xf32>
    %102 = arith.divf %100, %101 : vector<128x1xf32>
    %103 = vector.broadcast %102 : vector<128x1xf32> to vector<128x512xf32>
    %104 = arith.subf %96, %103 : vector<128x512xf32>
    %105 = arith.mulf %104, %104 : vector<128x512xf32>
    %cst_36 = arith.constant dense<0.000000e+00> : vector<128xf32>
    %106 = vector.multi_reduction <add>, %105, %cst_36 [1] : vector<128x512xf32> to vector<128xf32>
    %107 = vector.shape_cast %106 : vector<128xf32> to vector<128x1xf32>
    %cst_37 = arith.constant 5.120000e+02 : f32
    %108 = vector.broadcast %cst_37 : f32 to vector<128x1xf32>
    %109 = arith.divf %107, %108 : vector<128x1xf32>
    %cst_38 = arith.constant 9.99999974E-6 : f32
    %110 = vector.broadcast %cst_38 : f32 to vector<128x1xf32>
    %111 = arith.addf %109, %110 : vector<128x1xf32>
    %112 = math.rsqrt %111 : vector<128x1xf32>
    %113 = vector.broadcast %112 : vector<128x1xf32> to vector<128x512xf32>
    %114 = arith.mulf %104, %113 : vector<128x512xf32>
    %115 = vector.broadcast %97 : vector<1x512xf32> to vector<128x512xf32>
    %116 = arith.mulf %114, %115 : vector<128x512xf32>
    %117 = vector.broadcast %98 : vector<1x512xf32> to vector<128x512xf32>
    %118 = arith.addf %116, %117 : vector<128x512xf32>
    %c0_39 = arith.constant 0 : index
    %c0_40 = arith.constant 0 : index
    %c0_41 = arith.constant 0 : index
    %119 = vector.load %arg6[%c0_39, %c0_40, %c0_41] : memref<1x128x512xf32, #tpu.memory_space<vmem>>, vector<1x128x512xf32>
    %120 = vector.shape_cast %119 : vector<1x128x512xf32> to vector<128x512xf32>
    %121 = vector.shape_cast %118 : vector<128x512xf32> to vector<1x128x512xf32>
    tpu.vector_store %arg6[%c0_39, %c0_40, %c0_41], %121 {strides = array<i32>} : memref<1x128x512xf32, #tpu.memory_space<vmem>>, vector<1x128x512xf32>,
    return
  }
  func.func @transform_0(%arg0: i32) -> (i32, i32, i32) {
    %c0_i32 = arith.constant 0 : i32
    %c0_i32_0 = arith.constant 0 : i32
    %c0_i32_1 = arith.constant 0 : i32
    return %arg0, %c0_i32, %c0_i32_0 : i32, i32, i32
  }
  func.func @transform_1(%arg0: i32) -> (i32, i32) {
    %c0_i32 = arith.constant 0 : i32
    %c0_i32_0 = arith.constant 0 : i32
    %c0_i32_1 = arith.constant 0 : i32
    return %c0_i32, %c0_i32_0 : i32, i32
  }
  func.func @transform_2(%arg0: i32) -> (i32, i32) {
    %c0_i32 = arith.constant 0 : i32
    %c0_i32_0 = arith.constant 0 : i32
    %c0_i32_1 = arith.constant 0 : i32
    return %c0_i32, %c0_i32_0 : i32, i32
  }
  func.func @transform_3(%arg0: i32) -> (i32, i32) {
    %c0_i32 = arith.constant 0 : i32
    %c0_i32_0 = arith.constant 0 : i32
    %c0_i32_1 = arith.constant 0 : i32
    return %c0_i32, %c0_i32_0 : i32, i32
  }
  func.func @transform_4(%arg0: i32) -> (i32, i32) {
    %c0_i32 = arith.constant 0 : i32
    %c0_i32_0 = arith.constant 0 : i32
    %c0_i32_1 = arith.constant 0 : i32
    return %c0_i32, %c0_i32_0 : i32, i32
  }
  func.func @transform_5(%arg0: i32) -> (i32, i32, i32) {
    %c0_i32 = arith.constant 0 : i32
    %c0_i32_0 = arith.constant 0 : i32
    %c0_i32_1 = arith.constant 0 : i32
    return %arg0, %c0_i32, %c0_i32_0 : i32, i32, i32
  }
}

</mosaic_0001>

<llo_original>
// kernel: tpu_custom_call.1
$region0: #{tpu_custom_call.1}
  #allocation0 [shape = 'u32[]', space=smem, size = 0x4, offset = 0x4, fixed_abs, tag = 'smem constant byte address 0x4 - core index']
  #allocation1 [shape = 'u32[72,128]{1,0:T(1,128)}', space=vmem, size = 0x9000, scoped, tag = 'internal scratch']
  %s0 = inlined_call_operand.hbm [shape: f32[2,128,512], index: 0, kind: input, shape index: {}]
  %s1 = inlined_call_operand.hbm [shape: f32[512,1536], index: 1, kind: input, shape index: {}]
  %s2 = inlined_call_operand.hbm [shape: f32[1,1536], index: 2, kind: input, shape index: {}]
  %s3 = inlined_call_operand.hbm [shape: f32[1,512], index: 3, kind: input, shape index: {}]
  %s4 = inlined_call_operand.hbm [shape: f32[1,512], index: 4, kind: input, shape index: {}]
  %s5 = inlined_call_operand.hbm [shape: f32[2,128,512], index: 5, kind: output, shape index: {}]
  %s6 = sld [smem:[#allocation0]]
  $region73: #{tpu_custom_call.1} parent=0
    _
  %s8 = ssub.s32 1, %s6
  %s9 = scalar_select 0, %s8, %s6
  $region1: #{tpu_custom_call.1} parent=0
    #allocation2 [shape = 'u8[524288]{0}', space=vmem, size = 0x80000, scoped, tag = 'input window, operand 0']
    #allocation3 [shape = 's32[2]{0}', space=sflag, size = 0x8, scoped, tag = 'scoped memory for tpu_custom_call.1']
    #allocation4 [shape = 's32[2]{0}', space=sflag, size = 0x8, scoped, tag = 'scoped memory for tpu_custom_call.1']
    #allocation5 [shape = 'u8[3145728]{0}', space=vmem, size = 0x300000, scoped, tag = 'input window, operand 1, single buffered']
    #allocation6 [shape = 's32[1]{0}', space=sflag, size = 0x4, scoped, tag = 'scoped memory for tpu_custom_call.1']
    #allocation7 [shape = 'u8[6144]{0}', space=vmem, size = 0x1800, scoped, tag = 'input window, operand 2, single buffered']
    #allocation8 [shape = 'u8[2048]{0}', space=vmem, size = 0x800, scoped, tag = 'input window, operand 3, single buffered']
    #allocation9 [shape = 's32[1]{0}', space=sflag, size = 0x4, scoped, tag = 'scoped memory for tpu_custom_call.1']
    #allocation10 [shape = 'u8[2048]{0}', space=vmem, size = 0x800, scoped, tag = 'input window, operand 4, single buffered']
    #allocation11 [shape = 'u8[524288]{0}', space=vmem, size = 0x80000, scoped, tag = 'output window, operand 0']
    %10 = vsyncpa [#allocation3], 0
    %s11 = scalar_lea.sflag [#allocation3], 1
    %12 = vsyncpa %s11, 0
    %13 = vsyncpa [#allocation6], 0
    %14 = vsyncpa [#allocation9], 0
    %15 = vsyncpa [#allocation4], 0
    %s16 = scalar_lea.sflag [#allocation4], 1
    %17 = vsyncpa %s16, 0
    loop: start=0, step=1, limit=4
    $region2: #{tpu_custom_call.1} parent=1 // loop_pre_header
      _
    $region3: #{tpu_custom_call.1} parent=1 // loop_header
      %s19 = sphi 0, %s23
      %p20 = scmp.ge.s32.totalorder %s19, 4
      %s29 = sphi 0, %s31
      %s32 = sphi 0, %s29
      %s33 = sphi 0, %s32
      %s49 = sphi 0, %s33
      %s53 = sphi 0, %s53
      %s55 = sphi 0, %s53
      %s56 = sphi 0, %s55
      %s70 = sphi 0, %s56
      %s74 = sphi 0, %s74
      %s76 = sphi 0, %s74
      %s77 = sphi 0, %s76
      %s91 = sphi 0, %s77
      %s95 = sphi 0, %s95
      %s97 = sphi 0, %s95
      %s98 = sphi 0, %s97
      %s112 = sphi 0, %s98
      %s116 = sphi 0, %s116
      %s118 = sphi 0, %s116
      %s119 = sphi 0, %s118
      %s133 = sphi 0, %s119
      %s139 = sphi 0, %s141
      %s142 = sphi 0, %s139
      %s143 = sphi 0, %s142
      %s159 = sphi 0, %s143
    $region4: #{tpu_custom_call.1} parent=1 // loop_header_branch
      %22 = sbr.rel (%p20) target = $region8
    $region5: #{tpu_custom_call.1} parent=1 // loop_body
      %s24 = ssub.s32 %s19, 1
      %s25 = ssub.s32 %s19, 2
      %s26 = sadd.s32 %s19, 1
      %s27 = ssub.s32 %s19, %s26
      %p28 = scmp.eq.s32.totalorder %s27, 0
      %s30 = sadd.s32 %s29, 1
      %s31 = scalar_select %p28, %s29, %s30
      %p34 = pneg %p28
      %p35 = scmp.eq.s32.totalorder %s19, 1
      %p36 = por %p34, %p35
      %p37 = scmp.ne.s32.totalorder %s29, %s32
      %p38 = scmp.eq.s32.totalorder %s19, 0
      %p39 = por %p37, %p38
      %p40 = scmp.ne.s32.totalorder %s29, %s32
      %p41 = scmp.eq.s32.totalorder %s24, 1
      %p42 = por %p40, %p41
      %p43 = scmp.ne.s32.totalorder %s32, %s33
      %p44 = scmp.eq.s32.totalorder %s24, 0
      %p45 = por %p43, %p44
      %p46 = scmp.ne.s32.totalorder %s32, %s33
      %p47 = scmp.eq.s32.totalorder %s25, 1
      %p48 = por %p46, %p47
      %p50 = scmp.ne.s32.totalorder %s33, %s49
      %p51 = scmp.eq.s32.totalorder %s25, 0
      %p52 = por %p50, %p51
      %s54 = sadd.s32 %s53, 1
      %p57 = scmp.eq.s32.totalorder %s19, 1
      %p58 = scmp.ne.s32.totalorder %s53, %s55
      %p59 = scmp.eq.s32.totalorder %s19, 0
      %p60 = por %p58, %p59
      %p61 = scmp.ne.s32.totalorder %s53, %s55
      %p62 = scmp.eq.s32.totalorder %s24, 1
      %p63 = por %p61, %p62
      %p64 = scmp.ne.s32.totalorder %s55, %s56
      %p65 = scmp.eq.s32.totalorder %s24, 0
      %p66 = por %p64, %p65
      %p67 = scmp.ne.s32.totalorder %s55, %s56
      %p68 = scmp.eq.s32.totalorder %s25, 1
      %p69 = por %p67, %p68
      %p71 = scmp.ne.s32.totalorder %s56, %s70
      %p72 = scmp.eq.s32.totalorder %s25, 0
      %p73 = por %p71, %p72
      %s75 = sadd.s32 %s74, 1
      %p78 = scmp.eq.s32.totalorder %s19, 1
      %p79 = scmp.ne.s32.totalorder %s74, %s76
      %p80 = scmp.eq.s32.totalorder %s19, 0
      %p81 = por %p79, %p80
      %p82 = scmp.ne.s32.totalorder %s74, %s76
      %p83 = scmp.eq.s32.totalorder %s24, 1
      %p84 = por %p82, %p83
      %p85 = scmp.ne.s32.totalorder %s76, %s77
      %p86 = scmp.eq.s32.totalorder %s24, 0
      %p87 = por %p85, %p86
      %p88 = scmp.ne.s32.totalorder %s76, %s77
      %p89 = scmp.eq.s32.totalorder %s25, 1
      %p90 = por %p88, %p89
      %p92 = scmp.ne.s32.totalorder %s77, %s91
      %p93 = scmp.eq.s32.totalorder %s25, 0
      %p94 = por %p92, %p93
      %s96 = sadd.s32 %s95, 1
      %p99 = scmp.eq.s32.totalorder %s19, 1
      %p100 = scmp.ne.s32.totalorder %s95, %s97
      %p101 = scmp.eq.s32.totalorder %s19, 0
      %p102 = por %p100, %p101
      %p103 = scmp.ne.s32.totalorder %s95, %s97
      %p104 = scmp.eq.s32.totalorder %s24, 1
      %p105 = por %p103, %p104
      %p106 = scmp.ne.s32.totalorder %s97, %s98
      %p107 = scmp.eq.s32.totalorder %s24, 0
      %p108 = por %p106, %p107
      %p109 = scmp.ne.s32.totalorder %s97, %s98
      %p110 = scmp.eq.s32.totalorder %s25, 1
      %p111 = por %p109, %p110
      %p113 = scmp.ne.s32.totalorder %s98, %s112
      %p114 = scmp.eq.s32.totalorder %s25, 0
      %p115 = por %p113, %p114
      %s117 = sadd.s32 %s116, 1
      %p120 = scmp.eq.s32.totalorder %s19, 1
      %p121 = scmp.ne.s32.totalorder %s116, %s118
      %p122 = scmp.eq.s32.totalorder %s19, 0
      %p123 = por %p121, %p122
      %p124 = scmp.ne.s32.totalorder %s116, %s118
      %p125 = scmp.eq.s32.totalorder %s24, 1
      %p126 = por %p124, %p125
      %p127 = scmp.ne.s32.totalorder %s118, %s119
      %p128 = scmp.eq.s32.totalorder %s24, 0
      %p129 = por %p127, %p128
      %p130 = scmp.ne.s32.totalorder %s118, %s119
      %p131 = scmp.eq.s32.totalorder %s25, 1
      %p132 = por %p130, %p131
      %p134 = scmp.ne.s32.totalorder %s119, %s133
      %p135 = scmp.eq.s32.totalorder %s25, 0
      %p136 = por %p134, %p135
      %s137 = ssub.s32 %s19, %s26
      %p138 = scmp.eq.s32.totalorder %s137, 0
      %s140 = sadd.s32 %s139, 1
      %s141 = scalar_select %p138, %s139, %s140
      %p144 = pneg %p138
      %p145 = scmp.eq.s32.totalorder %s19, 1
      %p146 = por %p144, %p145
      %p147 = scmp.ne.s32.totalorder %s139, %s142
      %p148 = scmp.eq.s32.totalorder %s19, 0
      %p149 = por %p147, %p148
      %p150 = scmp.ne.s32.totalorder %s139, %s142
      %p151 = scmp.eq.s32.totalorder %s24, 1
      %p152 = por %p150, %p151
      %p153 = scmp.ne.s32.totalorder %s142, %s143
      %p154 = scmp.eq.s32.totalorder %s24, 0
      %p155 = por %p153, %p154
      %p156 = scmp.ne.s32.totalorder %s142, %s143
      %p157 = scmp.eq.s32.totalorder %s25, 1
      %p158 = por %p156, %p157
      %p160 = scmp.ne.s32.totalorder %s143, %s159
      %p161 = scmp.eq.s32.totalorder %s25, 0
      %p162 = por %p160, %p161
      %p163 = scmp.le.s32.totalorder 1, %s19
      %p164 = scmp.lt.s32.totalorder %s19, 3
      %p165 = pnand %p163, %p164
      %p166 = pneg %p165
      // Predicated region
      $region9: #{tpu_custom_call.1} parent=5 // pred_check
        _
      $region10: #{tpu_custom_call.1} parent=5 // pred_check_branch
        %168 = sbr.rel (%p165) target = $region12
      $region11: #{tpu_custom_call.1} parent=5 // pred_region
        %s169 = ssub.s32 %s19, 1
        // Predicated region
        $region13: #{tpu_custom_call.1} parent=11 // pred_check
          %p170 = pneg %p66
        $region14: #{tpu_custom_call.1} parent=11 // pred_check_branch
          %172 = sbr.rel (%p170) target = $region16
        $region15: #{tpu_custom_call.1} parent=11 // pred_region
          %174 = vsyncadd [#allocation6], 0
          %s175 = sshll.u32 %s1, 4
          %s176 = int_to_ptr.hbm [resolvable:$true] %s175
          %s177 = sshll.u32 [#allocation5], 4
          %s178 = int_to_ptr.vmem [resolvable:$true] %s177
          %183 = dma.hbm_to_vmem [thread:$0]  %s176, 98304, %s178, [#allocation6], 1536, 1536, 96
        $region16: #{tpu_custom_call.1} parent=11 // pred_fallthru
          _
        // Predicated region
        $region17: #{tpu_custom_call.1} parent=11 // pred_check
          %p184 = pneg %p87
        $region18: #{tpu_custom_call.1} parent=11 // pred_check_branch
          %186 = sbr.rel (%p184) target = $region20
        $region19: #{tpu_custom_call.1} parent=11 // pred_region
          %188 = vsyncadd [#allocation6], 0
          %s190 = sshll.u32 %s2, 4
          %s191 = int_to_ptr.hbm [resolvable:$true] %s190
          %s192 = sshll.u32 [#allocation7], 4
          %s193 = int_to_ptr.vmem [resolvable:$true] %s192
          %195 = dma.hbm_to_vmem [thread:$0]  %s191, 192, %s193, [#allocation6]
        $region20: #{tpu_custom_call.1} parent=11 // pred_fallthru
          _
        // Predicated region
        $region21: #{tpu_custom_call.1} parent=11 // pred_check
          %p196 = pneg %p108
        $region22: #{tpu_custom_call.1} parent=11 // pred_check_branch
          %198 = sbr.rel (%p196) target = $region24
        $region23: #{tpu_custom_call.1} parent=11 // pred_region
          %200 = vsyncadd [#allocation9], 0
          %s202 = sshll.u32 %s3, 4
          %s203 = int_to_ptr.hbm [resolvable:$true] %s202
          %s204 = sshll.u32 [#allocation8], 4
          %s205 = int_to_ptr.vmem [resolvable:$true] %s204
          %207 = dma.hbm_to_vmem [thread:$0]  %s203, 64, %s205, [#allocation9]
        $region24: #{tpu_custom_call.1} parent=11 // pred_fallthru
          _
        // Predicated region
        $region25: #{tpu_custom_call.1} parent=11 // pred_check
          %p208 = pneg %p129
        $region26: #{tpu_custom_call.1} parent=11 // pred_check_branch
          %210 = sbr.rel (%p208) target = $region28
        $region27: #{tpu_custom_call.1} parent=11 // pred_region
          %212 = vsyncadd [#allocation9], 0
          %s214 = sshll.u32 %s4, 4
          %s215 = int_to_ptr.hbm [resolvable:$true] %s214
          %s216 = sshll.u32 [#allocation10], 4
          %s217 = int_to_ptr.vmem [resolvable:$true] %s216
          %219 = dma.hbm_to_vmem [thread:$0]  %s215, 64, %s217, [#allocation9]
        $region28: #{tpu_custom_call.1} parent=11 // pred_fallthru
          _
      $region12: #{tpu_custom_call.1} parent=5 // pred_fallthru
        _
      %p220 = scmp.lt.s32.totalorder %s19, 2
      // Predicated region
      $region29: #{tpu_custom_call.1} parent=5 // pred_check
        %p221 = pneg %p220
      $region30: #{tpu_custom_call.1} parent=5 // pred_check_branch
        %223 = sbr.rel (%p221) target = $region32
      $region31: #{tpu_custom_call.1} parent=5 // pred_region
        // Predicated region
        $region33: #{tpu_custom_call.1} parent=31 // pred_check
          %p224 = pneg %p39
        $region34: #{tpu_custom_call.1} parent=31 // pred_check_branch
          %226 = sbr.rel (%p224) target = $region36
        $region35: #{tpu_custom_call.1} parent=31 // pred_region
          %s227 = sand.u32 %s29, 1
          %s228 = scalar_lea.sflag [#allocation3], %s227
          %s229 = sand.u32 %s29, 1
          %s230 = smul.addr %s229, 512
          %s231 = scalar_lea.vmem [#allocation2], %s230
          %233 = vsyncadd %s228, 0
          %s234 = smul.addr %s19, 64
          %s235 = smul.addr %s234, 8
          %s236 = scalar_lea.hbm %s0, %s235
          %s237 = sshll.u32 %s236, 4
          %s238 = int_to_ptr.hbm [resolvable:$true] %s237
          %s239 = sshll.u32 %s231, 4
          %s240 = int_to_ptr.vmem [resolvable:$true] %s239
          %245 = dma.hbm_to_vmem [thread:$0]  %s238, 8192, %s240, %s228, 512, 512, 32
        $region36: #{tpu_custom_call.1} parent=31 // pred_fallthru
          _
      $region32: #{tpu_custom_call.1} parent=5 // pred_fallthru
        _
      %p246 = scmp.le.s32.totalorder 1, %s19
      %p247 = scmp.lt.s32.totalorder %s19, 3
      %p248 = pnand %p246, %p247
      %p249 = pneg %p248
      // Predicated region
      $region37: #{tpu_custom_call.1} parent=5 // pred_check
        _
      $region38: #{tpu_custom_call.1} parent=5 // pred_check_branch
        %251 = sbr.rel (%p248) target = $region40
      $region39: #{tpu_custom_call.1} parent=5 // pred_region
        %s252 = ssub.s32 %s19, 1
        %s253 = sand.u32 %s32, 1
        %s254 = scalar_lea.sflag [#allocation3], %s253
        %s255 = sand.u32 %s32, 1
        %s256 = smul.addr %s255, 512
        %s257 = scalar_lea.vmem [#allocation2], %s256
        // Predicated region
        $region41: #{tpu_custom_call.1} parent=39 // pred_check
          %p258 = pneg %p45
        $region42: #{tpu_custom_call.1} parent=39 // pred_check_branch
          %260 = sbr.rel (%p258) target = $region44
        $region43: #{tpu_custom_call.1} parent=39 // pred_region
          %262 = dma.done %s254, 8192
        $region44: #{tpu_custom_call.1} parent=39 // pred_fallthru
          _
        // Predicated region
        $region45: #{tpu_custom_call.1} parent=39 // pred_check
          %p263 = pneg %p66
        $region46: #{tpu_custom_call.1} parent=39 // pred_check_branch
          %265 = sbr.rel (%p263) target = $region48
        $region47: #{tpu_custom_call.1} parent=39 // pred_region
          %267 = dma.done [#allocation6], 98304
        $region48: #{tpu_custom_call.1} parent=39 // pred_fallthru
          _
        // Predicated region
        $region49: #{tpu_custom_call.1} parent=39 // pred_check
          %p268 = pneg %p87
        $region50: #{tpu_custom_call.1} parent=39 // pred_check_branch
          %270 = sbr.rel (%p268) target = $region52
        $region51: #{tpu_custom_call.1} parent=39 // pred_region
          %272 = dma.done [#allocation6], 192
        $region52: #{tpu_custom_call.1} parent=39 // pred_fallthru
          _
        // Predicated region
        $region53: #{tpu_custom_call.1} parent=39 // pred_check
          %p273 = pneg %p108
        $region54: #{tpu_custom_call.1} parent=39 // pred_check_branch
          %275 = sbr.rel (%p273) target = $region56
        $region55: #{tpu_custom_call.1} parent=39 // pred_region
          %277 = dma.done [#allocation9], 64
        $region56: #{tpu_custom_call.1} parent=39 // pred_fallthru
          _
        // Predicated region
        $region57: #{tpu_custom_call.1} parent=39 // pred_check
          %p278 = pneg %p129
        $region58: #{tpu_custom_call.1} parent=39 // pred_check_branch
          %280 = sbr.rel (%p278) target = $region60
        $region59: #{tpu_custom_call.1} parent=39 // pred_region
          %282 = dma.done [#allocation9], 64
        $region60: #{tpu_custom_call.1} parent=39 // pred_fallthru
          _
        %s283 = sand.u32 %s32, 1
        %s284 = scalar_lea.sflag [#allocation3], %s283
        %s285 = sand.u32 %s32, 1
        %s286 = smul.addr %s285, 512
        %s287 = scalar_lea.vmem [#allocation2], %s286
        %p288 = pneg %p45
        %p289 = pneg %p42
        %p290 = pneg %p66
        %p291 = pneg %p63
        %p292 = pneg %p87
        %p293 = pneg %p84
        %p294 = pneg %p108
        %p295 = pneg %p105
        %p296 = pneg %p129
        %p297 = pneg %p126
        %p298 = pneg %p155
        %p299 = pneg %p152
        %s300 = sand.u32 %s142, 1
        %s301 = scalar_lea.sflag [#allocation4], %s300
        %s302 = sand.u32 %s142, 1
        %s303 = smul.addr %s302, 512
        %s304 = scalar_lea.vmem [#allocation11], %s303
        %v305 = vld [vmem:[%s257] sm:$0xff]
        %v306 = vld [vmem:[%s257 + $0x8] sm:$0xff]
        %v307 = vld [vmem:[%s257 + $0x10] sm:$0xff]
        %v308 = vld [vmem:[%s257 + $0x18] sm:$0xff]
        %v309 = vld [vmem:[%s257 + $0x20] sm:$0xff]
        %v310 = vld [vmem:[%s257 + $0x28] sm:$0xff]
        %v311 = vld [vmem:[%s257 + $0x30] sm:$0xff]
        %v312 = vld [vmem:[%s257 + $0x38] sm:$0xff]
        %v313 = vld [vmem:[%s257 + $0x40] sm:$0xff]
        %v314 = vld [vmem:[%s257 + $0x48] sm:$0xff]
        %v315 = vld [vmem:[%s257 + $0x50] sm:$0xff]
        %v316 = vld [vmem:[%s257 + $0x58] sm:$0xff]
        %v317 = vld [vmem:[%s257 + $0x60] sm:$0xff]
        %v318 = vld [vmem:[%s257 + $0x68] sm:$0xff]
        %v319 = vld [vmem:[%s257 + $0x70] sm:$0xff]
        %v320 = vld [vmem:[%s257 + $0x78] sm:$0xff]
        %v321 = vld [vmem:[%s257 + $0x80] sm:$0xff]
        %v322 = vld [vmem:[%s257 + $0x88] sm:$0xff]
        %v323 = vld [vmem:[%s257 + $0x90] sm:$0xff]
        %v324 = vld [vmem:[%s257 + $0x98] sm:$0xff]
        %v325 = vld [vmem:[%s257 + $0xa0] sm:$0xff]
        %v326 = vld [vmem:[%s257 + $0xa8] sm:$0xff]
        %v327 = vld [vmem:[%s257 + $0xb0] sm:$0xff]
        %v328 = vld [vmem:[%s257 + $0xb8] sm:$0xff]
        %v329 = vld [vmem:[%s257 + $0xc0] sm:$0xff]
        %v330 = vld [vmem:[%s257 + $0xc8] sm:$0xff]
        %v331 = vld [vmem:[%s257 + $0xd0] sm:$0xff]
        %v332 = vld [vmem:[%s257 + $0xd8] sm:$0xff]
        %v333 = vld [vmem:[%s257 + $0xe0] sm:$0xff]
        %v334 = vld [vmem:[%s257 + $0xe8] sm:$0xff]
        %v335 = vld [vmem:[%s257 + $0xf0] sm:$0xff]
        %v336 = vld [vmem:[%s257 + $0xf8] sm:$0xff]
        %v337 = vld [vmem:[%s257 + $0x100] sm:$0xff]
        %v338 = vld [vmem:[%s257 + $0x108] sm:$0xff]
        %v339 = vld [vmem:[%s257 + $0x110] sm:$0xff]
        %v340 = vld [vmem:[%s257 + $0x118] sm:$0xff]
        %v341 = vld [vmem:[%s257 + $0x120] sm:$0xff]
        %v342 = vld [vmem:[%s257 + $0x128] sm:$0xff]
        %v343 = vld [vmem:[%s257 + $0x130] sm:$0xff]
        %v344 = vld [vmem:[%s257 + $0x138] sm:$0xff]
        %v345 = vld [vmem:[%s257 + $0x140] sm:$0xff]
        %v346 = vld [vmem:[%s257 + $0x148] sm:$0xff]
        %v347 = vld [vmem:[%s257 + $0x150] sm:$0xff]
        %v348 = vld [vmem:[%s257 + $0x158] sm:$0xff]
        %v349 = vld [vmem:[%s257 + $0x160] sm:$0xff]
        %v350 = vld [vmem:[%s257 + $0x168] sm:$0xff]
        %v351 = vld [vmem:[%s257 + $0x170] sm:$0xff]
        %v352 = vld [vmem:[%s257 + $0x178] sm:$0xff]
        %v353 = vld [vmem:[%s257 + $0x180] sm:$0xff]
        %v354 = vld [vmem:[%s257 + $0x188] sm:$0xff]
        %v355 = vld [vmem:[%s257 + $0x190] sm:$0xff]
        %v356 = vld [vmem:[%s257 + $0x198] sm:$0xff]
        %v357 = vld [vmem:[%s257 + $0x1a0] sm:$0xff]
        %v358 = vld [vmem:[%s257 + $0x1a8] sm:$0xff]
        %v359 = vld [vmem:[%s257 + $0x1b0] sm:$0xff]
        %v360 = vld [vmem:[%s257 + $0x1b8] sm:$0xff]
        %v361 = vld [vmem:[%s257 + $0x1c0] sm:$0xff]
        %v362 = vld [vmem:[%s257 + $0x1c8] sm:$0xff]
        %v363 = vld [vmem:[%s257 + $0x1d0] sm:$0xff]
        %v364 = vld [vmem:[%s257 + $0x1d8] sm:$0xff]
        %v365 = vld [vmem:[%s257 + $0x1e0] sm:$0xff]
        %v366 = vld [vmem:[%s257 + $0x1e8] sm:$0xff]
        %v367 = vld [vmem:[%s257 + $0x1f0] sm:$0xff]
        %v368 = vld [vmem:[%s257 + $0x1f8] sm:$0xff]
        %v369 = vld [vmem:[#allocation5] sm:$0xff]
        %v370 = vld [vmem:[#allocation5 + $0x8] sm:$0xff]
        %v371 = vld [vmem:[#allocation5 + $0x10] sm:$0xff]
        %v372 = vld [vmem:[#allocation5 + $0x18] sm:$0xff]
        %v373 = vld [vmem:[#allocation5 + $0x20] sm:$0xff]
        %v374 = vld [vmem:[#allocation5 + $0x28] sm:$0xff]
        %v375 = vld [vmem:[#allocation5 + $0x30] sm:$0xff]
        %v376 = vld [vmem:[#allocation5 + $0x38] sm:$0xff]
        %v377 = vld [vmem:[#allocation5 + $0x40] sm:$0xff]
        %v378 = vld [vmem:[#allocation5 + $0x48] sm:$0xff]
        %v379 = vld [vmem:[#allocation5 + $0x50] sm:$0xff]
        %v380 = vld [vmem:[#allocation5 + $0x58] sm:$0xff]
        %v381 = vld [vmem:[#allocation5 + $0x60] sm:$0xff]
        %v382 = vld [vmem:[#allocation5 + $0x68] sm:$0xff]
        %v383 = vld [vmem:[#allocation5 + $0x70] sm:$0xff]
        %v384 = vld [vmem:[#allocation5 + $0x78] sm:$0xff]
        %v385 = vld [vmem:[#allocation5 + $0x80] sm:$0xff]
        %v386 = vld [vmem:[#allocation5 + $0x88] sm:$0xff]
        %v387 = vld [vmem:[#allocation5 + $0x90] sm:$0xff]
        %v388 = vld [vmem:[#allocation5 + $0x98] sm:$0xff]
        %v389 = vld [vmem:[#allocation5 + $0xa0] sm:$0xff]
        %v390 = vld [vmem:[#allocation5 + $0xa8] sm:$0xff]
        %v391 = vld [vmem:[#allocation5 + $0xb0] sm:$0xff]
        %v392 = vld [vmem:[#allocation5 + $0xb8] sm:$0xff]
        %v393 = vld [vmem:[#allocation5 + $0xc0] sm:$0xff]
        %v394 = vld [vmem:[#allocation5 + $0xc8] sm:$0xff]
        %v395 = vld [vmem:[#allocation5 + $0xd0] sm:$0xff]
        %v396 = vld [vmem:[#allocation5 + $0xd8] sm:$0xff]
        %v397 = vld [vmem:[#allocation5 + $0xe0] sm:$0xff]
        %v398 = vld [vmem:[#allocation5 + $0xe8] sm:$0xff]
        %v399 = vld [vmem:[#allocation5 + $0xf0] sm:$0xff]
        %v400 = vld [vmem:[#allocation5 + $0xf8] sm:$0xff]
        %v401 = vld [vmem:[#allocation5 + $0x100] sm:$0xff]
        %v402 = vld [vmem:[#allocation5 + $0x108] sm:$0xff]
        %v403 = vld [vmem:[#allocation5 + $0x110] sm:$0xff]
        %v404 = vld [vmem:[#allocation5 + $0x118] sm:$0xff]
        %v405 = vld [vmem:[#allocation5 + $0x120] sm:$0xff]
        %v406 = vld [vmem:[#allocation5 + $0x128] sm:$0xff]
        %v407 = vld [vmem:[#allocation5 + $0x130] sm:$0xff]
        %v408 = vld [vmem:[#allocation5 + $0x138] sm:$0xff]
        %v409 = vld [vmem:[#allocation5 + $0x140] sm:$0xff]
        %v410 = vld [vmem:[#allocation5 + $0x148] sm:$0xff]
        %v411 = vld [vmem:[#allocation5 + $0x150] sm:$0xff]
        %v412 = vld [vmem:[#allocation5 + $0x158] sm:$0xff]
        %v413 = vld [vmem:[#allocation5 + $0x160] sm:$0xff]
        %v414 = vld [vmem:[#allocation5 + $0x168] sm:$0xff]
        %v415 = vld [vmem:[#allocation5 + $0x170] sm:$0xff]
        %v416 = vld [vmem:[#allocation5 + $0x178] sm:$0xff]
        %v417 = vld [vmem:[#allocation5 + $0x180] sm:$0xff]
        %v418 = vld [vmem:[#allocation5 + $0x188] sm:$0xff]
        %v419 = vld [vmem:[#allocation5 + $0x190] sm:$0xff]
        %v420 = vld [vmem:[#allocation5 + $0x198] sm:$0xff]
        %v421 = vld [vmem:[#allocation5 + $0x1a0] sm:$0xff]
        %v422 = vld [vmem:[#allocation5 + $0x1a8] sm:$0xff]
        %v423 = vld [vmem:[#allocation5 + $0x1b0] sm:$0xff]
        %v424 = vld [vmem:[#allocation5 + $0x1b8] sm:$0xff]
        %v425 = vld [vmem:[#allocation5 + $0x1c0] sm:$0xff]
        %v426 = vld [vmem:[#allocation5 + $0x1c8] sm:$0xff]
        %v427 = vld [vmem:[#allocation5 + $0x1d0] sm:$0xff]
        %v428 = vld [vmem:[#allocation5 + $0x1d8] sm:$0xff]
        %v429 = vld [vmem:[#allocation5 + $0x1e0] sm:$0xff]
        %v430 = vld [vmem:[#allocation5 + $0x1e8] sm:$0xff]
        %v431 = vld [vmem:[#allocation5 + $0x1f0] sm:$0xff]
        %v432 = vld [vmem:[#allocation5 + $0x1f8] sm:$0xff]
        %v433 = vld [vmem:[#allocation5 + $0x200] sm:$0xff]
        %v434 = vld [vmem:[#allocation5 + $0x208] sm:$0xff]
        %v435 = vld [vmem:[#allocation5 + $0x210] sm:$0xff]
        %v436 = vld [vmem:[#allocation5 + $0x218] sm:$0xff]
        %v437 = vld [vmem:[#allocation5 + $0x220] sm:$0xff]
        %v438 = vld [vmem:[#allocation5 + $0x228] sm:$0xff]
        %v439 = vld [vmem:[#allocation5 + $0x230] sm:$0xff]
        %v440 = vld [vmem:[#allocation5 + $0x238] sm:$0xff]
        %v441 = vld [vmem:[#allocation5 + $0x240] sm:$0xff]
        %v442 = vld [vmem:[#allocation5 + $0x248] sm:$0xff]
        %v443 = vld [vmem:[#allocation5 + $0x250] sm:$0xff]
        %v444 = vld [vmem:[#allocation5 + $0x258] sm:$0xff]
        %v445 = vld [vmem:[#allocation5 + $0x260] sm:$0xff]
        %v446 = vld [vmem:[#allocation5 + $0x268] sm:$0xff]
        %v447 = vld [vmem:[#allocation5 + $0x270] sm:$0xff]
        %v448 = vld [vmem:[#allocation5 + $0x278] sm:$0xff]
        %v449 = vld [vmem:[#allocation5 + $0x280] sm:$0xff]
        %v450 = vld [vmem:[#allocation5 + $0x288] sm:$0xff]
        %v451 = vld [vmem:[#allocation5 + $0x290] sm:$0xff]
        %v452 = vld [vmem:[#allocation5 + $0x298] sm:$0xff]
        %v453 = vld [vmem:[#allocation5 + $0x2a0] sm:$0xff]
        %v454 = vld [vmem:[#allocation5 + $0x2a8] sm:$0xff]
        %v455 = vld [vmem:[#allocation5 + $0x2b0] sm:$0xff]
        %v456 = vld [vmem:[#allocation5 + $0x2b8] sm:$0xff]
        %v457 = vld [vmem:[#allocation5 + $0x2c0] sm:$0xff]
        %v458 = vld [vmem:[#allocation5 + $0x2c8] sm:$0xff]
        %v459 = vld [vmem:[#allocation5 + $0x2d0] sm:$0xff]
        %v460 = vld [vmem:[#allocation5 + $0x2d8] sm:$0xff]
        %v461 = vld [vmem:[#allocation5 + $0x2e0] sm:$0xff]
        %v462 = vld [vmem:[#allocation5 + $0x2e8] sm:$0xff]
        %v463 = vld [vmem:[#allocation5 + $0x2f0] sm:$0xff]
        %v464 = vld [vmem:[#allocation5 + $0x2f8] sm:$0xff]
        %v465 = vld [vmem:[#allocation5 + $0x300] sm:$0xff]
        %v466 = vld [vmem:[#allocation5 + $0x308] sm:$0xff]
        %v467 = vld [vmem:[#allocation5 + $0x310] sm:$0xff]
        %v468 = vld [vmem:[#allocation5 + $0x318] sm:$0xff]
        %v469 = vld [vmem:[#allocation5 + $0x320] sm:$0xff]
        %v470 = vld [vmem:[#allocation5 + $0x328] sm:$0xff]
        %v471 = vld [vmem:[#allocation5 + $0x330] sm:$0xff]
        %v472 = vld [vmem:[#allocation5 + $0x338] sm:$0xff]
        %v473 = vld [vmem:[#allocation5 + $0x340] sm:$0xff]
        %v474 = vld [vmem:[#allocation5 + $0x348] sm:$0xff]
        %v475 = vld [vmem:[#allocation5 + $0x350] sm:$0xff]
        %v476 = vld [vmem:[#allocation5 + $0x358] sm:$0xff]
        %v477 = vld [vmem:[#allocation5 + $0x360] sm:$0xff]
        %v478 = vld [vmem:[#allocation5 + $0x368] sm:$0xff]
        %v479 = vld [vmem:[#allocation5 + $0x370] sm:$0xff]
        %v480 = vld [vmem:[#allocation5 + $0x378] sm:$0xff]
        %v481 = vld [vmem:[#allocation5 + $0x380] sm:$0xff]
        %v482 = vld [vmem:[#allocation5 + $0x388] sm:$0xff]
        %v483 = vld [vmem:[#allocation5 + $0x390] sm:$0xff]
        %v484 = vld [vmem:[#allocation5 + $0x398] sm:$0xff]
        %v485 = vld [vmem:[#allocation5 + $0x3a0] sm:$0xff]
        %v486 = vld [vmem:[#allocation5 + $0x3a8] sm:$0xff]
        %v487 = vld [vmem:[#allocation5 + $0x3b0] sm:$0xff]
        %v488 = vld [vmem:[#allocation5 + $0x3b8] sm:$0xff]
        %v489 = vld [vmem:[#allocation5 + $0x3c0] sm:$0xff]
        %v490 = vld [vmem:[#allocation5 + $0x3c8] sm:$0xff]
        %v491 = vld [vmem:[#allocation5 + $0x3d0] sm:$0xff]
        %v492 = vld [vmem:[#allocation5 + $0x3d8] sm:$0xff]
        %v493 = vld [vmem:[#allocation5 + $0x3e0] sm:$0xff]
        %v494 = vld [vmem:[#allocation5 + $0x3e8] sm:$0xff]
        %v495 = vld [vmem:[#allocation5 + $0x3f0] sm:$0xff]
        %v496 = vld [vmem:[#allocation5 + $0x3f8] sm:$0xff]
        %v497 = vld [vmem:[#allocation5 + $0x400] sm:$0xff]
        %v498 = vld [vmem:[#allocation5 + $0x408] sm:$0xff]
        %v499 = vld [vmem:[#allocation5 + $0x410] sm:$0xff]
        %v500 = vld [vmem:[#allocation5 + $0x418] sm:$0xff]
        %v501 = vld [vmem:[#allocation5 + $0x420] sm:$0xff]
        %v502 = vld [vmem:[#allocation5 + $0x428] sm:$0xff]
        %v503 = vld [vmem:[#allocation5 + $0x430] sm:$0xff]
        %v504 = vld [vmem:[#allocation5 + $0x438] sm:$0xff]
        %v505 = vld [vmem:[#allocation5 + $0x440] sm:$0xff]
        %v506 = vld [vmem:[#allocation5 + $0x448] sm:$0xff]
        %v507 = vld [vmem:[#allocation5 + $0x450] sm:$0xff]
        %v508 = vld [vmem:[#allocation5 + $0x458] sm:$0xff]
        %v509 = vld [vmem:[#allocation5 + $0x460] sm:$0xff]
        %v510 = vld [vmem:[#allocation5 + $0x468] sm:$0xff]
        %v511 = vld [vmem:[#allocation5 + $0x470] sm:$0xff]
        %v512 = vld [vmem:[#allocation5 + $0x478] sm:$0xff]
        %v513 = vld [vmem:[#allocation5 + $0x480] sm:$0xff]
        %v514 = vld [vmem:[#allocation5 + $0x488] sm:$0xff]
        %v515 = vld [vmem:[#allocation5 + $0x490] sm:$0xff]
        %v516 = vld [vmem:[#allocation5 + $0x498] sm:$0xff]
        %v517 = vld [vmem:[#allocation5 + $0x4a0] sm:$0xff]
        %v518 = vld [vmem:[#allocation5 + $0x4a8] sm:$0xff]
        %v519 = vld [vmem:[#allocation5 + $0x4b0] sm:$0xff]
        %v520 = vld [vmem:[#allocation5 + $0x4b8] sm:$0xff]
        %v521 = vld [vmem:[#allocation5 + $0x4c0] sm:$0xff]
        %v522 = vld [vmem:[#allocation5 + $0x4c8] sm:$0xff]
        %v523 = vld [vmem:[#allocation5 + $0x4d0] sm:$0xff]
        %v524 = vld [vmem:[#allocation5 + $0x4d8] sm:$0xff]
        %v525 = vld [vmem:[#allocation5 + $0x4e0] sm:$0xff]
        %v526 = vld [vmem:[#allocation5 + $0x4e8] sm:$0xff]
        %v527 = vld [vmem:[#allocation5 + $0x4f0] sm:$0xff]
        %v528 = vld [vmem:[#allocation5 + $0x4f8] sm:$0xff]
        %v529 = vld [vmem:[#allocation5 + $0x500] sm:$0xff]
        %v530 = vld [vmem:[#allocation5 + $0x508] sm:$0xff]
        %v531 = vld [vmem:[#allocation5 + $0x510] sm:$0xff]
        %v532 = vld [vmem:[#allocation5 + $0x518] sm:$0xff]
        %v533 = vld [vmem:[#allocation5 + $0x520] sm:$0xff]
        %v534 = vld [vmem:[#allocation5 + $0x528] sm:$0xff]
        %v535 = vld [vmem:[#allocation5 + $0x530] sm:$0xff]
        %v536 = vld [vmem:[#allocation5 + $0x538] sm:$0xff]
        %v537 = vld [vmem:[#allocation5 + $0x540] sm:$0xff]
        %v538 = vld [vmem:[#allocation5 + $0x548] sm:$0xff]
        %v539 = vld [vmem:[#allocation5 + $0x550] sm:$0xff]
        %v540 = vld [vmem:[#allocation5 + $0x558] sm:$0xff]
        %v541 = vld [vmem:[#allocation5 + $0x560] sm:$0xff]
        %v542 = vld [vmem:[#allocation5 + $0x568] sm:$0xff]
        %v543 = vld [vmem:[#allocation5 + $0x570] sm:$0xff]
        %v544 = vld [vmem:[#allocation5 + $0x578] sm:$0xff]
        %v545 = vld [vmem:[#allocation5 + $0x580] sm:$0xff]
        %v546 = vld [vmem:[#allocation5 + $0x588] sm:$0xff]
        %v547 = vld [vmem:[#allocation5 + $0x590] sm:$0xff]
        %v548 = vld [vmem:[#allocation5 + $0x598] sm:$0xff]
        %v549 = vld [vmem:[#allocation5 + $0x5a0] sm:$0xff]
        %v550 = vld [vmem:[#allocation5 + $0x5a8] sm:$0xff]
        %v551 = vld [vmem:[#allocation5 + $0x5b0] sm:$0xff]
        %v552 = vld [vmem:[#allocation5 + $0x5b8] sm:$0xff]
        %v553 = vld [vmem:[#allocation5 + $0x5c0] sm:$0xff]
        %v554 = vld [vmem:[#allocation5 + $0x5c8] sm:$0xff]
        %v555 = vld [vmem:[#allocation5 + $0x5d0] sm:$0xff]
        %v556 = vld [vmem:[#allocation5 + $0x5d8] sm:$0xff]
        %v557 = vld [vmem:[#allocation5 + $0x5e0] sm:$0xff]
        %v558 = vld [vmem:[#allocation5 + $0x5e8] sm:$0xff]
        %v559 = vld [vmem:[#allocation5 + $0x5f0] sm:$0xff]
        %v560 = vld [vmem:[#allocation5 + $0x5f8] sm:$0xff]
        %v561 = vld [vmem:[#allocation5 + $0x600] sm:$0xff]
        %v562 = vld [vmem:[#allocation5 + $0x608] sm:$0xff]
        %v563 = vld [vmem:[#allocation5 + $0x610] sm:$0xff]
        %v564 = vld [vmem:[#allocation5 + $0x618] sm:$0xff]
        %v565 = vld [vmem:[#allocation5 + $0x620] sm:$0xff]
        %v566 = vld [vmem:[#allocation5 + $0x628] sm:$0xff]
        %v567 = vld [vmem:[#allocation5 + $0x630] sm:$0xff]
        %v568 = vld [vmem:[#allocation5 + $0x638] sm:$0xff]
        %v569 = vld [vmem:[#allocation5 + $0x640] sm:$0xff]
        %v570 = vld [vmem:[#allocation5 + $0x648] sm:$0xff]
        %v571 = vld [vmem:[#allocation5 + $0x650] sm:$0xff]
        %v572 = vld [vmem:[#allocation5 + $0x658] sm:$0xff]
        %v573 = vld [vmem:[#allocation5 + $0x660] sm:$0xff]
        %v574 = vld [vmem:[#allocation5 + $0x668] sm:$0xff]
        %v575 = vld [vmem:[#allocation5 + $0x670] sm:$0xff]
        %v576 = vld [vmem:[#allocation5 + $0x678] sm:$0xff]
        %v577 = vld [vmem:[#allocation5 + $0x680] sm:$0xff]
        %v578 = vld [vmem:[#allocation5 + $0x688] sm:$0xff]
        %v579 = vld [vmem:[#allocation5 + $0x690] sm:$0xff]
        %v580 = vld [vmem:[#allocation5 + $0x698] sm:$0xff]
        %v581 = vld [vmem:[#allocation5 + $0x6a0] sm:$0xff]
        %v582 = vld [vmem:[#allocation5 + $0x6a8] sm:$0xff]
        %v583 = vld [vmem:[#allocation5 + $0x6b0] sm:$0xff]
        %v584 = vld [vmem:[#allocation5 + $0x6b8] sm:$0xff]
        %v585 = vld [vmem:[#allocation5 + $0x6c0] sm:$0xff]
        %v586 = vld [vmem:[#allocation5 + $0x6c8] sm:$0xff]
        %v587 = vld [vmem:[#allocation5 + $0x6d0] sm:$0xff]
        %v588 = vld [vmem:[#allocation5 + $0x6d8] sm:$0xff]
        %v589 = vld [vmem:[#allocation5 + $0x6e0] sm:$0xff]
        %v590 = vld [vmem:[#allocation5 + $0x6e8] sm:$0xff]
        %v591 = vld [vmem:[#allocation5 + $0x6f0] sm:$0xff]
        %v592 = vld [vmem:[#allocation5 + $0x6f8] sm:$0xff]
        %v593 = vld [vmem:[#allocation5 + $0x700] sm:$0xff]
        %v594 = vld [vmem:[#allocation5 + $0x708] sm:$0xff]
        %v595 = vld [vmem:[#allocation5 + $0x710] sm:$0xff]
        %v596 = vld [vmem:[#allocation5 + $0x718] sm:$0xff]
        %v597 = vld [vmem:[#allocation5 + $0x720] sm:$0xff]
        %v598 = vld [vmem:[#allocation5 + $0x728] sm:$0xff]
        %v599 = vld [vmem:[#allocation5 + $0x730] sm:$0xff]
        %v600 = vld [vmem:[#allocation5 + $0x738] sm:$0xff]
        %v601 = vld [vmem:[#allocation5 + $0x740] sm:$0xff]
        %v602 = vld [vmem:[#allocation5 + $0x748] sm:$0xff]
        %v603 = vld [vmem:[#allocation5 + $0x750] sm:$0xff]
        %v604 = vld [vmem:[#allocation5 + $0x758] sm:$0xff]
        %v605 = vld [vmem:[#allocation5 + $0x760] sm:$0xff]
        %v606 = vld [vmem:[#allocation5 + $0x768] sm:$0xff]
        %v607 = vld [vmem:[#allocation5 + $0x770] sm:$0xff]
        %v608 = vld [vmem:[#allocation5 + $0x778] sm:$0xff]
        %v609 = vld [vmem:[#allocation5 + $0x780] sm:$0xff]
        %v610 = vld [vmem:[#allocation5 + $0x788] sm:$0xff]
        %v611 = vld [vmem:[#allocation5 + $0x790] sm:$0xff]
        %v612 = vld [vmem:[#allocation5 + $0x798] sm:$0xff]
        %v613 = vld [vmem:[#allocation5 + $0x7a0] sm:$0xff]
        %v614 = vld [vmem:[#allocation5 + $0x7a8] sm:$0xff]
        %v615 = vld [vmem:[#allocation5 + $0x7b0] sm:$0xff]
        %v616 = vld [vmem:[#allocation5 + $0x7b8] sm:$0xff]
        %v617 = vld [vmem:[#allocation5 + $0x7c0] sm:$0xff]
        %v618 = vld [vmem:[#allocation5 + $0x7c8] sm:$0xff]
        %v619 = vld [vmem:[#allocation5 + $0x7d0] sm:$0xff]
        %v620 = vld [vmem:[#allocation5 + $0x7d8] sm:$0xff]
        %v621 = vld [vmem:[#allocation5 + $0x7e0] sm:$0xff]
        %v622 = vld [vmem:[#allocation5 + $0x7e8] sm:$0xff]
        %v623 = vld [vmem:[#allocation5 + $0x7f0] sm:$0xff]
        %v624 = vld [vmem:[#allocation5 + $0x7f8] sm:$0xff]
        %v625 = vld [vmem:[#allocation5 + $0x800] sm:$0xff]
        %v626 = vld [vmem:[#allocation5 + $0x808] sm:$0xff]
        %v627 = vld [vmem:[#allocation5 + $0x810] sm:$0xff]
        %v628 = vld [vmem:[#allocation5 + $0x818] sm:$0xff]
        %v629 = vld [vmem:[#allocation5 + $0x820] sm:$0xff]
        %v630 = vld [vmem:[#allocation5 + $0x828] sm:$0xff]
        %v631 = vld [vmem:[#allocation5 + $0x830] sm:$0xff]
        %v632 = vld [vmem:[#allocation5 + $0x838] sm:$0xff]
        %v633 = vld [vmem:[#allocation5 + $0x840] sm:$0xff]
        %v634 = vld [vmem:[#allocation5 + $0x848] sm:$0xff]
        %v635 = vld [vmem:[#allocation5 + $0x850] sm:$0xff]
        %v636 = vld [vmem:[#allocation5 + $0x858] sm:$0xff]
        %v637 = vld [vmem:[#allocation5 + $0x860] sm:$0xff]
        %v638 = vld [vmem:[#allocation5 + $0x868] sm:$0xff]
        %v639 = vld [vmem:[#allocation5 + $0x870] sm:$0xff]
        %v640 = vld [vmem:[#allocation5 + $0x878] sm:$0xff]
        %v641 = vld [vmem:[#allocation5 + $0x880] sm:$0xff]
        %v642 = vld [vmem:[#allocation5 + $0x888] sm:$0xff]
        %v643 = vld [vmem:[#allocation5 + $0x890] sm:$0xff]
        %v644 = vld [vmem:[#allocation5 + $0x898] sm:$0xff]
        %v645 = vld [vmem:[#allocation5 + $0x8a0] sm:$0xff]
        %v646 = vld [vmem:[#allocation5 + $0x8a8] sm:$0xff]
        %v647 = vld [vmem:[#allocation5 + $0x8b0] sm:$0xff]
        %v648 = vld [vmem:[#allocation5 + $0x8b8] sm:$0xff]
        %v649 = vld [vmem:[#allocation5 + $0x8c0] sm:$0xff]
        %v650 = vld [vmem:[#allocation5 + $0x8c8] sm:$0xff]
        %v651 = vld [vmem:[#allocation5 + $0x8d0] sm:$0xff]
        %v652 = vld [vmem:[#allocation5 + $0x8d8] sm:$0xff]
        %v653 = vld [vmem:[#allocation5 + $0x8e0] sm:$0xff]
        %v654 = vld [vmem:[#allocation5 + $0x8e8] sm:$0xff]
        %v655 = vld [vmem:[#allocation5 + $0x8f0] sm:$0xff]
        %v656 = vld [vmem:[#allocation5 + $0x8f8] sm:$0xff]
        %v657 = vld [vmem:[#allocation5 + $0x900] sm:$0xff]
        %v658 = vld [vmem:[#allocation5 + $0x908] sm:$0xff]
        %v659 = vld [vmem:[#allocation5 + $0x910] sm:$0xff]
        %v660 = vld [vmem:[#allocation5 + $0x918] sm:$0xff]
        %v661 = vld [vmem:[#allocation5 + $0x920] sm:$0xff]
        %v662 = vld [vmem:[#allocation5 + $0x928] sm:$0xff]
        %v663 = vld [vmem:[#allocation5 + $0x930] sm:$0xff]
        %v664 = vld [vmem:[#allocation5 + $0x938] sm:$0xff]
        %v665 = vld [vmem:[#allocation5 + $0x940] sm:$0xff]
        %v666 = vld [vmem:[#allocation5 + $0x948] sm:$0xff]
        %v667 = vld [vmem:[#allocation5 + $0x950] sm:$0xff]
        %v668 = vld [vmem:[#allocation5 + $0x958] sm:$0xff]
        %v669 = vld [vmem:[#allocation5 + $0x960] sm:$0xff]
        %v670 = vld [vmem:[#allocation5 + $0x968] sm:$0xff]
        %v671 = vld [vmem:[#allocation5 + $0x970] sm:$0xff]
        %v672 = vld [vmem:[#allocation5 + $0x978] sm:$0xff]
        %v673 = vld [vmem:[#allocation5 + $0x980] sm:$0xff]
        %v674 = vld [vmem:[#allocation5 + $0x988] sm:$0xff]
        %v675 = vld [vmem:[#allocation5 + $0x990] sm:$0xff]
        %v676 = vld [vmem:[#allocation5 + $0x998] sm:$0xff]
        %v677 = vld [vmem:[#allocation5 + $0x9a0] sm:$0xff]
        %v678 = vld [vmem:[#allocation5 + $0x9a8] sm:$0xff]
        %v679 = vld [vmem:[#allocation5 + $0x9b0] sm:$0xff]
        %v680 = vld [vmem:[#allocation5 + $0x9b8] sm:$0xff]
        %v681 = vld [vmem:[#allocation5 + $0x9c0] sm:$0xff]
        %v682 = vld [vmem:[#allocation5 + $0x9c8] sm:$0xff]
        %v683 = vld [vmem:[#allocation5 + $0x9d0] sm:$0xff]
        %v684 = vld [vmem:[#allocation5 + $0x9d8] sm:$0xff]
        %v685 = vld [vmem:[#allocation5 + $0x9e0] sm:$0xff]
        %v686 = vld [vmem:[#allocation5 + $0x9e8] sm:$0xff]
        %v687 = vld [vmem:[#allocation5 + $0x9f0] sm:$0xff]
        %v688 = vld [vmem:[#allocation5 + $0x9f8] sm:$0xff]
        %v689 = vld [vmem:[#allocation5 + $0xa00] sm:$0xff]
        %v690 = vld [vmem:[#allocation5 + $0xa08] sm:$0xff]
        %v691 = vld [vmem:[#allocation5 + $0xa10] sm:$0xff]
        %v692 = vld [vmem:[#allocation5 + $0xa18] sm:$0xff]
        %v693 = vld [vmem:[#allocation5 + $0xa20] sm:$0xff]
        %v694 = vld [vmem:[#allocation5 + $0xa28] sm:$0xff]
        %v695 = vld [vmem:[#allocation5 + $0xa30] sm:$0xff]
        %v696 = vld [vmem:[#allocation5 + $0xa38] sm:$0xff]
        %v697 = vld [vmem:[#allocation5 + $0xa40] sm:$0xff]
        %v698 = vld [vmem:[#allocation5 + $0xa48] sm:$0xff]
        %v699 = vld [vmem:[#allocation5 + $0xa50] sm:$0xff]
        %v700 = vld [vmem:[#allocation5 + $0xa58] sm:$0xff]
        %v701 = vld [vmem:[#allocation5 + $0xa60] sm:$0xff]
        %v702 = vld [vmem:[#allocation5 + $0xa68] sm:$0xff]
        %v703 = vld [vmem:[#allocation5 + $0xa70] sm:$0xff]
        %v704 = vld [vmem:[#allocation5 + $0xa78] sm:$0xff]
        %v705 = vld [vmem:[#allocation5 + $0xa80] sm:$0xff]
        %v706 = vld [vmem:[#allocation5 + $0xa88] sm:$0xff]
        %v707 = vld [vmem:[#allocation5 + $0xa90] sm:$0xff]
        %v708 = vld [vmem:[#allocation5 + $0xa98] sm:$0xff]
        %v709 = vld [vmem:[#allocation5 + $0xaa0] sm:$0xff]
        %v710 = vld [vmem:[#allocation5 + $0xaa8] sm:$0xff]
        %v711 = vld [vmem:[#allocation5 + $0xab0] sm:$0xff]
        %v712 = vld [vmem:[#allocation5 + $0xab8] sm:$0xff]
        %v713 = vld [vmem:[#allocation5 + $0xac0] sm:$0xff]
        %v714 = vld [vmem:[#allocation5 + $0xac8] sm:$0xff]
        %v715 = vld [vmem:[#allocation5 + $0xad0] sm:$0xff]
        %v716 = vld [vmem:[#allocation5 + $0xad8] sm:$0xff]
        %v717 = vld [vmem:[#allocation5 + $0xae0] sm:$0xff]
        %v718 = vld [vmem:[#allocation5 + $0xae8] sm:$0xff]
        %v719 = vld [vmem:[#allocation5 + $0xaf0] sm:$0xff]
        %v720 = vld [vmem:[#allocation5 + $0xaf8] sm:$0xff]
        %v721 = vld [vmem:[#allocation5 + $0xb00] sm:$0xff]
        %v722 = vld [vmem:[#allocation5 + $0xb08] sm:$0xff]
        %v723 = vld [vmem:[#allocation5 + $0xb10] sm:$0xff]
        %v724 = vld [vmem:[#allocation5 + $0xb18] sm:$0xff]
        %v725 = vld [vmem:[#allocation5 + $0xb20] sm:$0xff]
        %v726 = vld [vmem:[#allocation5 + $0xb28] sm:$0xff]
        %v727 = vld [vmem:[#allocation5 + $0xb30] sm:$0xff]
        %v728 = vld [vmem:[#allocation5 + $0xb38] sm:$0xff]
        %v729 = vld [vmem:[#allocation5 + $0xb40] sm:$0xff]
        %v730 = vld [vmem:[#allocation5 + $0xb48] sm:$0xff]
        %v731 = vld [vmem:[#allocation5 + $0xb50] sm:$0xff]
        %v732 = vld [vmem:[#allocation5 + $0xb58] sm:$0xff]
        %v733 = vld [vmem:[#allocation5 + $0xb60] sm:$0xff]
        %v734 = vld [vmem:[#allocation5 + $0xb68] sm:$0xff]
        %v735 = vld [vmem:[#allocation5 + $0xb70] sm:$0xff]
        %v736 = vld [vmem:[#allocation5 + $0xb78] sm:$0xff]
        %v737 = vld [vmem:[#allocation5 + $0xb80] sm:$0xff]
        %v738 = vld [vmem:[#allocation5 + $0xb88] sm:$0xff]
        %v739 = vld [vmem:[#allocation5 + $0xb90] sm:$0xff]
        %v740 = vld [vmem:[#allocation5 + $0xb98] sm:$0xff]
        %v741 = vld [vmem:[#allocation5 + $0xba0] sm:$0xff]
        %v742 = vld [vmem:[#allocation5 + $0xba8] sm:$0xff]
        %v743 = vld [vmem:[#allocation5 + $0xbb0] sm:$0xff]
        %v744 = vld [vmem:[#allocation5 + $0xbb8] sm:$0xff]
        %v745 = vld [vmem:[#allocation5 + $0xbc0] sm:$0xff]
        %v746 = vld [vmem:[#allocation5 + $0xbc8] sm:$0xff]
        %v747 = vld [vmem:[#allocation5 + $0xbd0] sm:$0xff]
        %v748 = vld [vmem:[#allocation5 + $0xbd8] sm:$0xff]
        %v749 = vld [vmem:[#allocation5 + $0xbe0] sm:$0xff]
        %v750 = vld [vmem:[#allocation5 + $0xbe8] sm:$0xff]
        %v751 = vld [vmem:[#allocation5 + $0xbf0] sm:$0xff]
        %v752 = vld [vmem:[#allocation5 + $0xbf8] sm:$0xff]
        %v753 = vld [vmem:[#allocation5 + $0xc00] sm:$0xff]
        %v754 = vld [vmem:[#allocation5 + $0xc08] sm:$0xff]
        %v755 = vld [vmem:[#allocation5 + $0xc10] sm:$0xff]
        %v756 = vld [vmem:[#allocation5 + $0xc18] sm:$0xff]
        %v757 = vld [vmem:[#allocation5 + $0xc20] sm:$0xff]
        %v758 = vld [vmem:[#allocation5 + $0xc28] sm:$0xff]
        %v759 = vld [vmem:[#allocation5 + $0xc30] sm:$0xff]
        %v760 = vld [vmem:[#allocation5 + $0xc38] sm:$0xff]
        %v761 = vld [vmem:[#allocation5 + $0xc40] sm:$0xff]
        %v762 = vld [vmem:[#allocation5 + $0xc48] sm:$0xff]
        %v763 = vld [vmem:[#allocation5 + $0xc50] sm:$0xff]
        %v764 = vld [vmem:[#allocation5 + $0xc58] sm:$0xff]
        %v765 = vld [vmem:[#allocation5 + $0xc60] sm:$0xff]
        %v766 = vld [vmem:[#allocation5 + $0xc68] sm:$0xff]
        %v767 = vld [vmem:[#allocation5 + $0xc70] sm:$0xff]
        %v768 = vld [vmem:[#allocation5 + $0xc78] sm:$0xff]
        %v769 = vld [vmem:[#allocation5 + $0xc80] sm:$0xff]
        %v770 = vld [vmem:[#allocation5 + $0xc88] sm:$0xff]
        %v771 = vld [vmem:[#allocation5 + $0xc90] sm:$0xff]
        %v772 = vld [vmem:[#allocation5 + $0xc98] sm:$0xff]
        %v773 = vld [vmem:[#allocation5 + $0xca0] sm:$0xff]
        %v774 = vld [vmem:[#allocation5 + $0xca8] sm:$0xff]
        %v775 = vld [vmem:[#allocation5 + $0xcb0] sm:$0xff]
        %v776 = vld [vmem:[#allocation5 + $0xcb8] sm:$0xff]
        %v777 = vld [vmem:[#allocation5 + $0xcc0] sm:$0xff]
        %v778 = vld [vmem:[#allocation5 + $0xcc8] sm:$0xff]
        %v779 = vld [vmem:[#allocation5 + $0xcd0] sm:$0xff]
        %v780 = vld [vmem:[#allocation5 + $0xcd8] sm:$0xff]
        %v781 = vld [vmem:[#allocation5 + $0xce0] sm:$0xff]
        %v782 = vld [vmem:[#allocation5 + $0xce8] sm:$0xff]
        %v783 = vld [vmem:[#allocation5 + $0xcf0] sm:$0xff]
        %v784 = vld [vmem:[#allocation5 + $0xcf8] sm:$0xff]
        %v785 = vld [vmem:[#allocation5 + $0xd00] sm:$0xff]
        %v786 = vld [vmem:[#allocation5 + $0xd08] sm:$0xff]
        %v787 = vld [vmem:[#allocation5 + $0xd10] sm:$0xff]
        %v788 = vld [vmem:[#allocation5 + $0xd18] sm:$0xff]
        %v789 = vld [vmem:[#allocation5 + $0xd20] sm:$0xff]
        %v790 = vld [vmem:[#allocation5 + $0xd28] sm:$0xff]
        %v791 = vld [vmem:[#allocation5 + $0xd30] sm:$0xff]
        %v792 = vld [vmem:[#allocation5 + $0xd38] sm:$0xff]
        %v793 = vld [vmem:[#allocation5 + $0xd40] sm:$0xff]
        %v794 = vld [vmem:[#allocation5 + $0xd48] sm:$0xff]
        %v795 = vld [vmem:[#allocation5 + $0xd50] sm:$0xff]
        %v796 = vld [vmem:[#allocation5 + $0xd58] sm:$0xff]
        %v797 = vld [vmem:[#allocation5 + $0xd60] sm:$0xff]
        %v798 = vld [vmem:[#allocation5 + $0xd68] sm:$0xff]
        %v799 = vld [vmem:[#allocation5 + $0xd70] sm:$0xff]
        %v800 = vld [vmem:[#allocation5 + $0xd78] sm:$0xff]
        %v801 = vld [vmem:[#allocation5 + $0xd80] sm:$0xff]
        %v802 = vld [vmem:[#allocation5 + $0xd88] sm:$0xff]
        %v803 = vld [vmem:[#allocation5 + $0xd90] sm:$0xff]
        %v804 = vld [vmem:[#allocation5 + $0xd98] sm:$0xff]
        %v805 = vld [vmem:[#allocation5 + $0xda0] sm:$0xff]
        %v806 = vld [vmem:[#allocation5 + $0xda8] sm:$0xff]
        %v807 = vld [vmem:[#allocation5 + $0xdb0] sm:$0xff]
        %v808 = vld [vmem:[#allocation5 + $0xdb8] sm:$0xff]
        %v809 = vld [vmem:[#allocation5 + $0xdc0] sm:$0xff]
        %v810 = vld [vmem:[#allocation5 + $0xdc8] sm:$0xff]
        %v811 = vld [vmem:[#allocation5 + $0xdd0] sm:$0xff]
        %v812 = vld [vmem:[#allocation5 + $0xdd8] sm:$0xff]
        %v813 = vld [vmem:[#allocation5 + $0xde0] sm:$0xff]
        %v814 = vld [vmem:[#allocation5 + $0xde8] sm:$0xff]
        %v815 = vld [vmem:[#allocation5 + $0xdf0] sm:$0xff]
        %v816 = vld [vmem:[#allocation5 + $0xdf8] sm:$0xff]
        %v817 = vld [vmem:[#allocation5 + $0xe00] sm:$0xff]
        %v818 = vld [vmem:[#allocation5 + $0xe08] sm:$0xff]
        %v819 = vld [vmem:[#allocation5 + $0xe10] sm:$0xff]
        %v820 = vld [vmem:[#allocation5 + $0xe18] sm:$0xff]
        %v821 = vld [vmem:[#allocation5 + $0xe20] sm:$0xff]
        %v822 = vld [vmem:[#allocation5 + $0xe28] sm:$0xff]
        %v823 = vld [vmem:[#allocation5 + $0xe30] sm:$0xff]
        %v824 = vld [vmem:[#allocation5 + $0xe38] sm:$0xff]
        %v825 = vld [vmem:[#allocation5 + $0xe40] sm:$0xff]
        %v826 = vld [vmem:[#allocation5 + $0xe48] sm:$0xff]
        %v827 = vld [vmem:[#allocation5 + $0xe50] sm:$0xff]
        %v828 = vld [vmem:[#allocation5 + $0xe58] sm:$0xff]
        %v829 = vld [vmem:[#allocation5 + $0xe60] sm:$0xff]
        %v830 = vld [vmem:[#allocation5 + $0xe68] sm:$0xff]
        %v831 = vld [vmem:[#allocation5 + $0xe70] sm:$0xff]
        %v832 = vld [vmem:[#allocation5 + $0xe78] sm:$0xff]
        %v833 = vld [vmem:[#allocation5 + $0xe80] sm:$0xff]
        %v834 = vld [vmem:[#allocation5 + $0xe88] sm:$0xff]
        %v835 = vld [vmem:[#allocation5 + $0xe90] sm:$0xff]
        %v836 = vld [vmem:[#allocation5 + $0xe98] sm:$0xff]
        %v837 = vld [vmem:[#allocation5 + $0xea0] sm:$0xff]
        %v838 = vld [vmem:[#allocation5 + $0xea8] sm:$0xff]
        %v839 = vld [vmem:[#allocation5 + $0xeb0] sm:$0xff]
        %v840 = vld [vmem:[#allocation5 + $0xeb8] sm:$0xff]
        %v841 = vld [vmem:[#allocation5 + $0xec0] sm:$0xff]
        %v842 = vld [vmem:[#allocation5 + $0xec8] sm:$0xff]
        %v843 = vld [vmem:[#allocation5 + $0xed0] sm:$0xff]
        %v844 = vld [vmem:[#allocation5 + $0xed8] sm:$0xff]
        %v845 = vld [vmem:[#allocation5 + $0xee0] sm:$0xff]
        %v846 = vld [vmem:[#allocation5 + $0xee8] sm:$0xff]
        %v847 = vld [vmem:[#allocation5 + $0xef0] sm:$0xff]
        %v848 = vld [vmem:[#allocation5 + $0xef8] sm:$0xff]
        %v849 = vld [vmem:[#allocation5 + $0xf00] sm:$0xff]
        %v850 = vld [vmem:[#allocation5 + $0xf08] sm:$0xff]
        %v851 = vld [vmem:[#allocation5 + $0xf10] sm:$0xff]
        %v852 = vld [vmem:[#allocation5 + $0xf18] sm:$0xff]
        %v853 = vld [vmem:[#allocation5 + $0xf20] sm:$0xff]
        %v854 = vld [vmem:[#allocation5 + $0xf28] sm:$0xff]
        %v855 = vld [vmem:[#allocation5 + $0xf30] sm:$0xff]
        %v856 = vld [vmem:[#allocation5 + $0xf38] sm:$0xff]
        %v857 = vld [vmem:[#allocation5 + $0xf40] sm:$0xff]
        %v858 = vld [vmem:[#allocation5 + $0xf48] sm:$0xff]
        %v859 = vld [vmem:[#allocation5 + $0xf50] sm:$0xff]
        %v860 = vld [vmem:[#allocation5 + $0xf58] sm:$0xff]
        %v861 = vld [vmem:[#allocation5 + $0xf60] sm:$0xff]
        %v862 = vld [vmem:[#allocation5 + $0xf68] sm:$0xff]
        %v863 = vld [vmem:[#allocation5 + $0xf70] sm:$0xff]
        %v864 = vld [vmem:[#allocation5 + $0xf78] sm:$0xff]
        %v865 = vld [vmem:[#allocation5 + $0xf80] sm:$0xff]
        %v866 = vld [vmem:[#allocation5 + $0xf88] sm:$0xff]
        %v867 = vld [vmem:[#allocation5 + $0xf90] sm:$0xff]
        %v868 = vld [vmem:[#allocation5 + $0xf98] sm:$0xff]
        %v869 = vld [vmem:[#allocation5 + $0xfa0] sm:$0xff]
        %v870 = vld [vmem:[#allocation5 + $0xfa8] sm:$0xff]
        %v871 = vld [vmem:[#allocation5 + $0xfb0] sm:$0xff]
        %v872 = vld [vmem:[#allocation5 + $0xfb8] sm:$0xff]
        %v873 = vld [vmem:[#allocation5 + $0xfc0] sm:$0xff]
        %v874 = vld [vmem:[#allocation5 + $0xfc8] sm:$0xff]
        %v875 = vld [vmem:[#allocation5 + $0xfd0] sm:$0xff]
        %v876 = vld [vmem:[#allocation5 + $0xfd8] sm:$0xff]
        %v877 = vld [vmem:[#allocation5 + $0xfe0] sm:$0xff]
        %v878 = vld [vmem:[#allocation5 + $0xfe8] sm:$0xff]
        %v879 = vld [vmem:[#allocation5 + $0xff0] sm:$0xff]
        %v880 = vld [vmem:[#allocation5 + $0xff8] sm:$0xff]
        %v881 = vld [vmem:[#allocation5 + $0x1000] sm:$0xff]
        %v882 = vld [vmem:[#allocation5 + $0x1008] sm:$0xff]
        %v883 = vld [vmem:[#allocation5 + $0x1010] sm:$0xff]
        %v884 = vld [vmem:[#allocation5 + $0x1018] sm:$0xff]
        %v885 = vld [vmem:[#allocation5 + $0x1020] sm:$0xff]
        %v886 = vld [vmem:[#allocation5 + $0x1028] sm:$0xff]
        %v887 = vld [vmem:[#allocation5 + $0x1030] sm:$0xff]
        %v888 = vld [vmem:[#allocation5 + $0x1038] sm:$0xff]
        %v889 = vld [vmem:[#allocation5 + $0x1040] sm:$0xff]
        %v890 = vld [vmem:[#allocation5 + $0x1048] sm:$0xff]
        %v891 = vld [vmem:[#allocation5 + $0x1050] sm:$0xff]
        %v892 = vld [vmem:[#allocation5 + $0x1058] sm:$0xff]
        %v893 = vld [vmem:[#allocation5 + $0x1060] sm:$0xff]
        %v894 = vld [vmem:[#allocation5 + $0x1068] sm:$0xff]
        %v895 = vld [vmem:[#allocation5 + $0x1070] sm:$0xff]
        %v896 = vld [vmem:[#allocation5 + $0x1078] sm:$0xff]
        %v897 = vld [vmem:[#allocation5 + $0x1080] sm:$0xff]
        %v898 = vld [vmem:[#allocation5 + $0x1088] sm:$0xff]
        %v899 = vld [vmem:[#allocation5 + $0x1090] sm:$0xff]
        %v900 = vld [vmem:[#allocation5 + $0x1098] sm:$0xff]
        %v901 = vld [vmem:[#allocation5 + $0x10a0] sm:$0xff]
        %v902 = vld [vmem:[#allocation5 + $0x10a8] sm:$0xff]
        %v903 = vld [vmem:[#allocation5 + $0x10b0] sm:$0xff]
        %v904 = vld [vmem:[#allocation5 + $0x10b8] sm:$0xff]
        %v905 = vld [vmem:[#allocation5 + $0x10c0] sm:$0xff]
        %v906 = vld [vmem:[#allocation5 + $0x10c8] sm:$0xff]
        %v907 = vld [vmem:[#allocation5 + $0x10d0] sm:$0xff]
        %v908 = vld [vmem:[#allocation5 + $0x10d8] sm:$0xff]
        %v909 = vld [vmem:[#allocation5 + $0x10e0] sm:$0xff]
        %v910 = vld [vmem:[#allocation5 + $0x10e8] sm:$0xff]
        %v911 = vld [vmem:[#allocation5 + $0x10f0] sm:$0xff]
        %v912 = vld [vmem:[#allocation5 + $0x10f8] sm:$0xff]
        %v913 = vld [vmem:[#allocation5 + $0x1100] sm:$0xff]
        %v914 = vld [vmem:[#allocation5 + $0x1108] sm:$0xff]
        %v915 = vld [vmem:[#allocation5 + $0x1110] sm:$0xff]
        %v916 = vld [vmem:[#allocation5 + $0x1118] sm:$0xff]
        %v917 = vld [vmem:[#allocation5 + $0x1120] sm:$0xff]
        %v918 = vld [vmem:[#allocation5 + $0x1128] sm:$0xff]
        %v919 = vld [vmem:[#allocation5 + $0x1130] sm:$0xff]
        %v920 = vld [vmem:[#allocation5 + $0x1138] sm:$0xff]
        %v921 = vld [vmem:[#allocation5 + $0x1140] sm:$0xff]
        %v922 = vld [vmem:[#allocation5 + $0x1148] sm:$0xff]
        %v923 = vld [vmem:[#allocation5 + $0x1150] sm:$0xff]
        %v924 = vld [vmem:[#allocation5 + $0x1158] sm:$0xff]
        %v925 = vld [vmem:[#allocation5 + $0x1160] sm:$0xff]
        %v926 = vld [vmem:[#allocation5 + $0x1168] sm:$0xff]
        %v927 = vld [vmem:[#allocation5 + $0x1170] sm:$0xff]
        %v928 = vld [vmem:[#allocation5 + $0x1178] sm:$0xff]
        %v929 = vld [vmem:[#allocation5 + $0x1180] sm:$0xff]
        %v930 = vld [vmem:[#allocation5 + $0x1188] sm:$0xff]
        %v931 = vld [vmem:[#allocation5 + $0x1190] sm:$0xff]
        %v932 = vld [vmem:[#allocation5 + $0x1198] sm:$0xff]
        %v933 = vld [vmem:[#allocation5 + $0x11a0] sm:$0xff]
        %v934 = vld [vmem:[#allocation5 + $0x11a8] sm:$0xff]
        %v935 = vld [vmem:[#allocation5 + $0x11b0] sm:$0xff]
        %v936 = vld [vmem:[#allocation5 + $0x11b8] sm:$0xff]
        %v937 = vld [vmem:[#allocation5 + $0x11c0] sm:$0xff]
        %v938 = vld [vmem:[#allocation5 + $0x11c8] sm:$0xff]
        %v939 = vld [vmem:[#allocation5 + $0x11d0] sm:$0xff]
        %v940 = vld [vmem:[#allocation5 + $0x11d8] sm:$0xff]
        %v941 = vld [vmem:[#allocation5 + $0x11e0] sm:$0xff]
        %v942 = vld [vmem:[#allocation5 + $0x11e8] sm:$0xff]
        %v943 = vld [vmem:[#allocation5 + $0x11f0] sm:$0xff]
        %v944 = vld [vmem:[#allocation5 + $0x11f8] sm:$0xff]
        %v945 = vld [vmem:[#allocation5 + $0x1200] sm:$0xff]
        %v946 = vld [vmem:[#allocation5 + $0x1208] sm:$0xff]
        %v947 = vld [vmem:[#allocation5 + $0x1210] sm:$0xff]
        %v948 = vld [vmem:[#allocation5 + $0x1218] sm:$0xff]
        %v949 = vld [vmem:[#allocation5 + $0x1220] sm:$0xff]
        %v950 = vld [vmem:[#allocation5 + $0x1228] sm:$0xff]
        %v951 = vld [vmem:[#allocation5 + $0x1230] sm:$0xff]
        %v952 = vld [vmem:[#allocation5 + $0x1238] sm:$0xff]
        %v953 = vld [vmem:[#allocation5 + $0x1240] sm:$0xff]
        %v954 = vld [vmem:[#allocation5 + $0x1248] sm:$0xff]
        %v955 = vld [vmem:[#allocation5 + $0x1250] sm:$0xff]
        %v956 = vld [vmem:[#allocation5 + $0x1258] sm:$0xff]
        %v957 = vld [vmem:[#allocation5 + $0x1260] sm:$0xff]
        %v958 = vld [vmem:[#allocation5 + $0x1268] sm:$0xff]
        %v959 = vld [vmem:[#allocation5 + $0x1270] sm:$0xff]
        %v960 = vld [vmem:[#allocation5 + $0x1278] sm:$0xff]
        %v961 = vld [vmem:[#allocation5 + $0x1280] sm:$0xff]
        %v962 = vld [vmem:[#allocation5 + $0x1288] sm:$0xff]
        %v963 = vld [vmem:[#allocation5 + $0x1290] sm:$0xff]
        %v964 = vld [vmem:[#allocation5 + $0x1298] sm:$0xff]
        %v965 = vld [vmem:[#allocation5 + $0x12a0] sm:$0xff]
        %v966 = vld [vmem:[#allocation5 + $0x12a8] sm:$0xff]
        %v967 = vld [vmem:[#allocation5 + $0x12b0] sm:$0xff]
        %v968 = vld [vmem:[#allocation5 + $0x12b8] sm:$0xff]
        %v969 = vld [vmem:[#allocation5 + $0x12c0] sm:$0xff]
        %v970 = vld [vmem:[#allocation5 + $0x12c8] sm:$0xff]
        %v971 = vld [vmem:[#allocation5 + $0x12d0] sm:$0xff]
        %v972 = vld [vmem:[#allocation5 + $0x12d8] sm:$0xff]
        %v973 = vld [vmem:[#allocation5 + $0x12e0] sm:$0xff]
        %v974 = vld [vmem:[#allocation5 + $0x12e8] sm:$0xff]
        %v975 = vld [vmem:[#allocation5 + $0x12f0] sm:$0xff]
        %v976 = vld [vmem:[#allocation5 + $0x12f8] sm:$0xff]
        %v977 = vld [vmem:[#allocation5 + $0x1300] sm:$0xff]
        %v978 = vld [vmem:[#allocation5 + $0x1308] sm:$0xff]
        %v979 = vld [vmem:[#allocation5 + $0x1310] sm:$0xff]
        %v980 = vld [vmem:[#allocation5 + $0x1318] sm:$0xff]
        %v981 = vld [vmem:[#allocation5 + $0x1320] sm:$0xff]
        %v982 = vld [vmem:[#allocation5 + $0x1328] sm:$0xff]
        %v983 = vld [vmem:[#allocation5 + $0x1330] sm:$0xff]
        %v984 = vld [vmem:[#allocation5 + $0x1338] sm:$0xff]
        %v985 = vld [vmem:[#allocation5 + $0x1340] sm:$0xff]
        %v986 = vld [vmem:[#allocation5 + $0x1348] sm:$0xff]
        %v987 = vld [vmem:[#allocation5 + $0x1350] sm:$0xff]
        %v988 = vld [vmem:[#allocation5 + $0x1358] sm:$0xff]
        %v989 = vld [vmem:[#allocation5 + $0x1360] sm:$0xff]
        %v990 = vld [vmem:[#allocation5 + $0x1368] sm:$0xff]
        %v991 = vld [vmem:[#allocation5 + $0x1370] sm:$0xff]
        %v992 = vld [vmem:[#allocation5 + $0x1378] sm:$0xff]
        %v993 = vld [vmem:[#allocation5 + $0x1380] sm:$0xff]
        %v994 = vld [vmem:[#allocation5 + $0x1388] sm:$0xff]
        %v995 = vld [vmem:[#allocation5 + $0x1390] sm:$0xff]
        %v996 = vld [vmem:[#allocation5 + $0x1398] sm:$0xff]
        %v997 = vld [vmem:[#allocation5 + $0x13a0] sm:$0xff]
        %v998 = vld [vmem:[#allocation5 + $0x13a8] sm:$0xff]
        %v999 = vld [vmem:[#allocation5 + $0x13b0] sm:$0xff]
        %v1000 = vld [vmem:[#allocation5 + $0x13b8] sm:$0xff]
        %v1001 = vld [vmem:[#allocation5 + $0x13c0] sm:$0xff]
        %v1002 = vld [vmem:[#allocation5 + $0x13c8] sm:$0xff]
        %v1003 = vld [vmem:[#allocation5 + $0x13d0] sm:$0xff]
        %v1004 = vld [vmem:[#allocation5 + $0x13d8] sm:$0xff]
        %v1005 = vld [vmem:[#allocation5 + $0x13e0] sm:$0xff]
        %v1006 = vld [vmem:[#allocation5 + $0x13e8] sm:$0xff]
        %v1007 = vld [vmem:[#allocation5 + $0x13f0] sm:$0xff]
        %v1008 = vld [vmem:[#allocation5 + $0x13f8] sm:$0xff]
        %v1009 = vld [vmem:[#allocation5 + $0x1400] sm:$0xff]
        %v1010 = vld [vmem:[#allocation5 + $0x1408] sm:$0xff]
        %v1011 = vld [vmem:[#allocation5 + $0x1410] sm:$0xff]
        %v1012 = vld [vmem:[#allocation5 + $0x1418] sm:$0xff]
        %v1013 = vld [vmem:[#allocation5 + $0x1420] sm:$0xff]
        %v1014 = vld [vmem:[#allocation5 + $0x1428] sm:$0xff]
        %v1015 = vld [vmem:[#allocation5 + $0x1430] sm:$0xff]
        %v1016 = vld [vmem:[#allocation5 + $0x1438] sm:$0xff]
        %v1017 = vld [vmem:[#allocation5 + $0x1440] sm:$0xff]
        %v1018 = vld [vmem:[#allocation5 + $0x1448] sm:$0xff]
        %v1019 = vld [vmem:[#allocation5 + $0x1450] sm:$0xff]
        %v1020 = vld [vmem:[#allocation5 + $0x1458] sm:$0xff]
        %v1021 = vld [vmem:[#allocation5 + $0x1460] sm:$0xff]
        %v1022 = vld [vmem:[#allocation5 + $0x1468] sm:$0xff]
        %v1023 = vld [vmem:[#allocation5 + $0x1470] sm:$0xff]
        %v1024 = vld [vmem:[#allocation5 + $0x1478] sm:$0xff]
        %v1025 = vld [vmem:[#allocation5 + $0x1480] sm:$0xff]
        %v1026 = vld [vmem:[#allocation5 + $0x1488] sm:$0xff]
        %v1027 = vld [vmem:[#allocation5 + $0x1490] sm:$0xff]
        %v1028 = vld [vmem:[#allocation5 + $0x1498] sm:$0xff]
        %v1029 = vld [vmem:[#allocation5 + $0x14a0] sm:$0xff]
        %v1030 = vld [vmem:[#allocation5 + $0x14a8] sm:$0xff]
        %v1031 = vld [vmem:[#allocation5 + $0x14b0] sm:$0xff]
        %v1032 = vld [vmem:[#allocation5 + $0x14b8] sm:$0xff]
        %v1033 = vld [vmem:[#allocation5 + $0x14c0] sm:$0xff]
        %v1034 = vld [vmem:[#allocation5 + $0x14c8] sm:$0xff]
        %v1035 = vld [vmem:[#allocation5 + $0x14d0] sm:$0xff]
        %v1036 = vld [vmem:[#allocation5 + $0x14d8] sm:$0xff]
        %v1037 = vld [vmem:[#allocation5 + $0x14e0] sm:$0xff]
        %v1038 = vld [vmem:[#allocation5 + $0x14e8] sm:$0xff]
        %v1039 = vld [vmem:[#allocation5 + $0x14f0] sm:$0xff]
        %v1040 = vld [vmem:[#allocation5 + $0x14f8] sm:$0xff]
        %v1041 = vld [vmem:[#allocation5 + $0x1500] sm:$0xff]
        %v1042 = vld [vmem:[#allocation5 + $0x1508] sm:$0xff]
        %v1043 = vld [vmem:[#allocation5 + $0x1510] sm:$0xff]
        %v1044 = vld [vmem:[#allocation5 + $0x1518] sm:$0xff]
        %v1045 = vld [vmem:[#allocation5 + $0x1520] sm:$0xff]
        %v1046 = vld [vmem:[#allocation5 + $0x1528] sm:$0xff]
        %v1047 = vld [vmem:[#allocation5 + $0x1530] sm:$0xff]
        %v1048 = vld [vmem:[#allocation5 + $0x1538] sm:$0xff]
        %v1049 = vld [vmem:[#allocation5 + $0x1540] sm:$0xff]
        %v1050 = vld [vmem:[#allocation5 + $0x1548] sm:$0xff]
        %v1051 = vld [vmem:[#allocation5 + $0x1550] sm:$0xff]
        %v1052 = vld [vmem:[#allocation5 + $0x1558] sm:$0xff]
        %v1053 = vld [vmem:[#allocation5 + $0x1560] sm:$0xff]
        %v1054 = vld [vmem:[#allocation5 + $0x1568] sm:$0xff]
        %v1055 = vld [vmem:[#allocation5 + $0x1570] sm:$0xff]
        %v1056 = vld [vmem:[#allocation5 + $0x1578] sm:$0xff]
        %v1057 = vld [vmem:[#allocation5 + $0x1580] sm:$0xff]
        %v1058 = vld [vmem:[#allocation5 + $0x1588] sm:$0xff]
        %v1059 = vld [vmem:[#allocation5 + $0x1590] sm:$0xff]
        %v1060 = vld [vmem:[#allocation5 + $0x1598] sm:$0xff]
        %v1061 = vld [vmem:[#allocation5 + $0x15a0] sm:$0xff]
        %v1062 = vld [vmem:[#allocation5 + $0x15a8] sm:$0xff]
        %v1063 = vld [vmem:[#allocation5 + $0x15b0] sm:$0xff]
        %v1064 = vld [vmem:[#allocation5 + $0x15b8] sm:$0xff]
        %v1065 = vld [vmem:[#allocation5 + $0x15c0] sm:$0xff]
        %v1066 = vld [vmem:[#allocation5 + $0x15c8] sm:$0xff]
        %v1067 = vld [vmem:[#allocation5 + $0x15d0] sm:$0xff]
        %v1068 = vld [vmem:[#allocation5 + $0x15d8] sm:$0xff]
        %v1069 = vld [vmem:[#allocation5 + $0x15e0] sm:$0xff]
        %v1070 = vld [vmem:[#allocation5 + $0x15e8] sm:$0xff]
        %v1071 = vld [vmem:[#allocation5 + $0x15f0] sm:$0xff]
        %v1072 = vld [vmem:[#allocation5 + $0x15f8] sm:$0xff]
        %v1073 = vld [vmem:[#allocation5 + $0x1600] sm:$0xff]
        %v1074 = vld [vmem:[#allocation5 + $0x1608] sm:$0xff]
        %v1075 = vld [vmem:[#allocation5 + $0x1610] sm:$0xff]
        %v1076 = vld [vmem:[#allocation5 + $0x1618] sm:$0xff]
        %v1077 = vld [vmem:[#allocation5 + $0x1620] sm:$0xff]
        %v1078 = vld [vmem:[#allocation5 + $0x1628] sm:$0xff]
        %v1079 = vld [vmem:[#allocation5 + $0x1630] sm:$0xff]
        %v1080 = vld [vmem:[#allocation5 + $0x1638] sm:$0xff]
        %v1081 = vld [vmem:[#allocation5 + $0x1640] sm:$0xff]
        %v1082 = vld [vmem:[#allocation5 + $0x1648] sm:$0xff]
        %v1083 = vld [vmem:[#allocation5 + $0x1650] sm:$0xff]
        %v1084 = vld [vmem:[#allocation5 + $0x1658] sm:$0xff]
        %v1085 = vld [vmem:[#allocation5 + $0x1660] sm:$0xff]
        %v1086 = vld [vmem:[#allocation5 + $0x1668] sm:$0xff]
        %v1087 = vld [vmem:[#allocation5 + $0x1670] sm:$0xff]
        %v1088 = vld [vmem:[#allocation5 + $0x1678] sm:$0xff]
        %v1089 = vld [vmem:[#allocation5 + $0x1680] sm:$0xff]
        %v1090 = vld [vmem:[#allocation5 + $0x1688] sm:$0xff]
        %v1091 = vld [vmem:[#allocation5 + $0x1690] sm:$0xff]
        %v1092 = vld [vmem:[#allocation5 + $0x1698] sm:$0xff]
        %v1093 = vld [vmem:[#allocation5 + $0x16a0] sm:$0xff]
        %v1094 = vld [vmem:[#allocation5 + $0x16a8] sm:$0xff]
        %v1095 = vld [vmem:[#allocation5 + $0x16b0] sm:$0xff]
        %v1096 = vld [vmem:[#allocation5 + $0x16b8] sm:$0xff]
        %v1097 = vld [vmem:[#allocation5 + $0x16c0] sm:$0xff]
        %v1098 = vld [vmem:[#allocation5 + $0x16c8] sm:$0xff]
        %v1099 = vld [vmem:[#allocation5 + $0x16d0] sm:$0xff]
        %v1100 = vld [vmem:[#allocation5 + $0x16d8] sm:$0xff]
        %v1101 = vld [vmem:[#allocation5 + $0x16e0] sm:$0xff]
        %v1102 = vld [vmem:[#allocation5 + $0x16e8] sm:$0xff]
        %v1103 = vld [vmem:[#allocation5 + $0x16f0] sm:$0xff]
        %v1104 = vld [vmem:[#allocation5 + $0x16f8] sm:$0xff]
        %v1105 = vld [vmem:[#allocation5 + $0x1700] sm:$0xff]
        %v1106 = vld [vmem:[#allocation5 + $0x1708] sm:$0xff]
        %v1107 = vld [vmem:[#allocation5 + $0x1710] sm:$0xff]
        %v1108 = vld [vmem:[#allocation5 + $0x1718] sm:$0xff]
        %v1109 = vld [vmem:[#allocation5 + $0x1720] sm:$0xff]
        %v1110 = vld [vmem:[#allocation5 + $0x1728] sm:$0xff]
        %v1111 = vld [vmem:[#allocation5 + $0x1730] sm:$0xff]
        %v1112 = vld [vmem:[#allocation5 + $0x1738] sm:$0xff]
        %v1113 = vld [vmem:[#allocation5 + $0x1740] sm:$0xff]
        %v1114 = vld [vmem:[#allocation5 + $0x1748] sm:$0xff]
        %v1115 = vld [vmem:[#allocation5 + $0x1750] sm:$0xff]
        %v1116 = vld [vmem:[#allocation5 + $0x1758] sm:$0xff]
        %v1117 = vld [vmem:[#allocation5 + $0x1760] sm:$0xff]
        %v1118 = vld [vmem:[#allocation5 + $0x1768] sm:$0xff]
        %v1119 = vld [vmem:[#allocation5 + $0x1770] sm:$0xff]
        %v1120 = vld [vmem:[#allocation5 + $0x1778] sm:$0xff]
        %v1121 = vld [vmem:[#allocation5 + $0x1780] sm:$0xff]
        %v1122 = vld [vmem:[#allocation5 + $0x1788] sm:$0xff]
        %v1123 = vld [vmem:[#allocation5 + $0x1790] sm:$0xff]
        %v1124 = vld [vmem:[#allocation5 + $0x1798] sm:$0xff]
        %v1125 = vld [vmem:[#allocation5 + $0x17a0] sm:$0xff]
        %v1126 = vld [vmem:[#allocation5 + $0x17a8] sm:$0xff]
        %v1127 = vld [vmem:[#allocation5 + $0x17b0] sm:$0xff]
        %v1128 = vld [vmem:[#allocation5 + $0x17b8] sm:$0xff]
        %v1129 = vld [vmem:[#allocation5 + $0x17c0] sm:$0xff]
        %v1130 = vld [vmem:[#allocation5 + $0x17c8] sm:$0xff]
        %v1131 = vld [vmem:[#allocation5 + $0x17d0] sm:$0xff]
        %v1132 = vld [vmem:[#allocation5 + $0x17d8] sm:$0xff]
        %v1133 = vld [vmem:[#allocation5 + $0x17e0] sm:$0xff]
        %v1134 = vld [vmem:[#allocation5 + $0x17e8] sm:$0xff]
        %v1135 = vld [vmem:[#allocation5 + $0x17f0] sm:$0xff]
        %v1136 = vld [vmem:[#allocation5 + $0x17f8] sm:$0xff]
        %v1137 = vld [vmem:[#allocation7] sm:$0xff]
        %v1138 = vld [vmem:[#allocation7 + $0x8] sm:$0xf]
        %v1141 = vperm.slane %v1137, 0
        %v1142 = vperm.slane %v1137, 1
        %v1143 = vperm.slane %v1137, 2
        %v1144 = vperm.slane %v1137, 3
        %v1145 = vperm.slane %v1137, 4
        %v1146 = vperm.slane %v1137, 5
        %v1147 = vperm.slane %v1137, 6
        %v1148 = vperm.slane %v1137, 7
        %v1149 = vperm.slane %v1138, 0
        %v1150 = vperm.slane %v1138, 1
        %v1151 = vperm.slane %v1138, 2
        %v1152 = vperm.slane %v1138, 3
        %1165 = vmatpush.msra.mxu0 %v549
        %1166 = vmatpush.msra.mxu0 %v537
        %1167 = vmatpush.msra.mxu0 %v525
        %1168 = vmatpush.msra.mxu0 %v513
        %1169 = vmatpush.msra.mxu0 %v501
        %1170 = vmatpush.msra.mxu0 %v489
        %1171 = vmatpush.msra.mxu0 %v477
        %1172 = vmatpush.msra.mxu0 %v465
        %1173 = vmatpush.msra.mxu0 %v453
        %1174 = vmatpush.msra.mxu0 %v441
        %1175 = vmatpush.msra.mxu0 %v429
        %1176 = vmatpush.msra.mxu0 %v417
        %1177 = vmatpush.msra.mxu0 %v405
        %1178 = vmatpush.msra.mxu0 %v393
        %1179 = vmatpush.msra.mxu0 %v381
        %1180 = vmatpush.msra.mxu0 %v369
        %1181 = vmatmul.f32.gmra.mxu0 %v305
        %v1182 = vpop.f32.mrf.mxu0
        %v1183 = vadd.f32 %v1141, %v1182
        %1184 = vmatmul.f32.gmra.mxu0 %v309
        %v1185 = vpop.f32.mrf.mxu0
        %v1186 = vadd.f32 %v1141, %v1185
        %1187 = vmatmul.f32.gmra.mxu0 %v313
        %v1188 = vpop.f32.mrf.mxu0
        %v1189 = vadd.f32 %v1141, %v1188
        %1190 = vmatmul.f32.gmra.mxu0 %v317
        %v1191 = vpop.f32.mrf.mxu0
        %v1192 = vadd.f32 %v1141, %v1191
        %1193 = vmatmul.f32.gmra.mxu0 %v321
        %v1194 = vpop.f32.mrf.mxu0
        %v1195 = vadd.f32 %v1141, %v1194
        %1196 = vmatmul.f32.gmra.mxu0 %v325
        %v1197 = vpop.f32.mrf.mxu0
        %v1198 = vadd.f32 %v1141, %v1197
        %1199 = vmatmul.f32.gmra.mxu0 %v329
        %v1200 = vpop.f32.mrf.mxu0
        %v1201 = vadd.f32 %v1141, %v1200
        %1202 = vmatmul.f32.gmra.mxu0 %v333
        %v1203 = vpop.f32.mrf.mxu0
        %v1204 = vadd.f32 %v1141, %v1203
        %1205 = vmatmul.f32.gmra.mxu0 %v337
        %v1206 = vpop.f32.mrf.mxu0
        %v1207 = vadd.f32 %v1141, %v1206
        %1208 = vmatmul.f32.gmra.mxu0 %v341
        %v1209 = vpop.f32.mrf.mxu0
        %v1210 = vadd.f32 %v1141, %v1209
        %1211 = vmatmul.f32.gmra.mxu0 %v345
        %v1212 = vpop.f32.mrf.mxu0
        %v1213 = vadd.f32 %v1141, %v1212
        %1214 = vmatmul.f32.gmra.mxu0 %v349
        %v1215 = vpop.f32.mrf.mxu0
        %v1216 = vadd.f32 %v1141, %v1215
        %1217 = vmatmul.f32.gmra.mxu0 %v353
        %v1218 = vpop.f32.mrf.mxu0
        %v1219 = vadd.f32 %v1141, %v1218
        %1220 = vmatmul.f32.gmra.mxu0 %v357
        %v1221 = vpop.f32.mrf.mxu0
        %v1222 = vadd.f32 %v1141, %v1221
        %1223 = vmatmul.f32.gmra.mxu0 %v361
        %v1224 = vpop.f32.mrf.mxu0
        %v1225 = vadd.f32 %v1141, %v1224
        %1226 = vmatmul.f32.gmra.mxu0 %v365
        %v1227 = vpop.f32.mrf.mxu0
        %v1228 = vadd.f32 %v1141, %v1227
        %1229 = vdwg.mxu0
        %1230 = vmatpush.msra.mxu0 %v741
        %1231 = vmatpush.msra.mxu0 %v729
        %1232 = vmatpush.msra.mxu0 %v717
        %1233 = vmatpush.msra.mxu0 %v705
        %1234 = vmatpush.msra.mxu0 %v693
        %1235 = vmatpush.msra.mxu0 %v681
        %1236 = vmatpush.msra.mxu0 %v669
        %1237 = vmatpush.msra.mxu0 %v657
        %1238 = vmatpush.msra.mxu0 %v645
        %1239 = vmatpush.msra.mxu0 %v633
        %1240 = vmatpush.msra.mxu0 %v621
        %1241 = vmatpush.msra.mxu0 %v609
        %1242 = vmatpush.msra.mxu0 %v597
        %1243 = vmatpush.msra.mxu0 %v585
        %1244 = vmatpush.msra.mxu0 %v573
        %1245 = vmatpush.msra.mxu0 %v561
        %1246 = vmatmul.f32.gmra.mxu0 %v306
        %v1247 = vpop.f32.mrf.mxu0
        %v1248 = vadd.f32 %v1183, %v1247
        %1249 = vmatmul.f32.gmra.mxu0 %v310
        %v1250 = vpop.f32.mrf.mxu0
        %v1251 = vadd.f32 %v1186, %v1250
        %1252 = vmatmul.f32.gmra.mxu0 %v314
        %v1253 = vpop.f32.mrf.mxu0
        %v1254 = vadd.f32 %v1189, %v1253
        %1255 = vmatmul.f32.gmra.mxu0 %v318
        %v1256 = vpop.f32.mrf.mxu0
        %v1257 = vadd.f32 %v1192, %v1256
        %1258 = vmatmul.f32.gmra.mxu0 %v322
        %v1259 = vpop.f32.mrf.mxu0
        %v1260 = vadd.f32 %v1195, %v1259
        %1261 = vmatmul.f32.gmra.mxu0 %v326
        %v1262 = vpop.f32.mrf.mxu0
        %v1263 = vadd.f32 %v1198, %v1262
        %1264 = vmatmul.f32.gmra.mxu0 %v330
        %v1265 = vpop.f32.mrf.mxu0
        %v1266 = vadd.f32 %v1201, %v1265
        %1267 = vmatmul.f32.gmra.mxu0 %v334
        %v1268 = vpop.f32.mrf.mxu0
        %v1269 = vadd.f32 %v1204, %v1268
        %1270 = vmatmul.f32.gmra.mxu0 %v338
        %v1271 = vpop.f32.mrf.mxu0
        %v1272 = vadd.f32 %v1207, %v1271
        %1273 = vmatmul.f32.gmra.mxu0 %v342
        %v1274 = vpop.f32.mrf.mxu0
        %v1275 = vadd.f32 %v1210, %v1274
        %1276 = vmatmul.f32.gmra.mxu0 %v346
        %v1277 = vpop.f32.mrf.mxu0
        %v1278 = vadd.f32 %v1213, %v1277
        %1279 = vmatmul.f32.gmra.mxu0 %v350
        %v1280 = vpop.f32.mrf.mxu0
        %v1281 = vadd.f32 %v1216, %v1280
        %1282 = vmatmul.f32.gmra.mxu0 %v354
        %v1283 = vpop.f32.mrf.mxu0
        %v1284 = vadd.f32 %v1219, %v1283
        %1285 = vmatmul.f32.gmra.mxu0 %v358
        %v1286 = vpop.f32.mrf.mxu0
        %v1287 = vadd.f32 %v1222, %v1286
        %1288 = vmatmul.f32.gmra.mxu0 %v362
        %v1289 = vpop.f32.mrf.mxu0
        %v1290 = vadd.f32 %v1225, %v1289
        %1291 = vmatmul.f32.gmra.mxu0 %v366
        %v1292 = vpop.f32.mrf.mxu0
        %v1293 = vadd.f32 %v1228, %v1292
        %1294 = vdwg.mxu0
        %1295 = vmatpush.msra.mxu0 %v933
        %1296 = vmatpush.msra.mxu0 %v921
        %1297 = vmatpush.msra.mxu0 %v909
        %1298 = vmatpush.msra.mxu0 %v897
        %1299 = vmatpush.msra.mxu0 %v885
        %1300 = vmatpush.msra.mxu0 %v873
        %1301 = vmatpush.msra.mxu0 %v861
        %1302 = vmatpush.msra.mxu0 %v849
        %1303 = vmatpush.msra.mxu0 %v837
        %1304 = vmatpush.msra.mxu0 %v825
        %1305 = vmatpush.msra.mxu0 %v813
        %1306 = vmatpush.msra.mxu0 %v801
        %1307 = vmatpush.msra.mxu0 %v789
        %1308 = vmatpush.msra.mxu0 %v777
        %1309 = vmatpush.msra.mxu0 %v765
        %1310 = vmatpush.msra.mxu0 %v753
        %1311 = vmatmul.f32.gmra.mxu0 %v307
        %v1312 = vpop.f32.mrf.mxu0
        %v1313 = vadd.f32 %v1248, %v1312
        %1314 = vmatmul.f32.gmra.mxu0 %v311
        %v1315 = vpop.f32.mrf.mxu0
        %v1316 = vadd.f32 %v1251, %v1315
        %1317 = vmatmul.f32.gmra.mxu0 %v315
        %v1318 = vpop.f32.mrf.mxu0
        %v1319 = vadd.f32 %v1254, %v1318
        %1320 = vmatmul.f32.gmra.mxu0 %v319
        %v1321 = vpop.f32.mrf.mxu0
        %v1322 = vadd.f32 %v1257, %v1321
        %1323 = vmatmul.f32.gmra.mxu0 %v323
        %v1324 = vpop.f32.mrf.mxu0
        %v1325 = vadd.f32 %v1260, %v1324
        %1326 = vmatmul.f32.gmra.mxu0 %v327
        %v1327 = vpop.f32.mrf.mxu0
        %v1328 = vadd.f32 %v1263, %v1327
        %1329 = vmatmul.f32.gmra.mxu0 %v331
        %v1330 = vpop.f32.mrf.mxu0
        %v1331 = vadd.f32 %v1266, %v1330
        %1332 = vmatmul.f32.gmra.mxu0 %v335
        %v1333 = vpop.f32.mrf.mxu0
        %v1334 = vadd.f32 %v1269, %v1333
        %1335 = vmatmul.f32.gmra.mxu0 %v339
        %v1336 = vpop.f32.mrf.mxu0
        %v1337 = vadd.f32 %v1272, %v1336
        %1338 = vmatmul.f32.gmra.mxu0 %v343
        %v1339 = vpop.f32.mrf.mxu0
        %v1340 = vadd.f32 %v1275, %v1339
        %1341 = vmatmul.f32.gmra.mxu0 %v347
        %v1342 = vpop.f32.mrf.mxu0
        %v1343 = vadd.f32 %v1278, %v1342
        %1344 = vmatmul.f32.gmra.mxu0 %v351
        %v1345 = vpop.f32.mrf.mxu0
        %v1346 = vadd.f32 %v1281, %v1345
        %1347 = vmatmul.f32.gmra.mxu0 %v355
        %v1348 = vpop.f32.mrf.mxu0
        %v1349 = vadd.f32 %v1284, %v1348
        %1350 = vmatmul.f32.gmra.mxu0 %v359
        %v1351 = vpop.f32.mrf.mxu0
        %v1352 = vadd.f32 %v1287, %v1351
        %1353 = vmatmul.f32.gmra.mxu0 %v363
        %v1354 = vpop.f32.mrf.mxu0
        %v1355 = vadd.f32 %v1290, %v1354
        %1356 = vmatmul.f32.gmra.mxu0 %v367
        %v1357 = vpop.f32.mrf.mxu0
        %v1358 = vadd.f32 %v1293, %v1357
        %1359 = vdwg.mxu0
        %1360 = vmatpush.msra.mxu0 %v1125
        %1361 = vmatpush.msra.mxu0 %v1113
        %1362 = vmatpush.msra.mxu0 %v1101
        %1363 = vmatpush.msra.mxu0 %v1089
        %1364 = vmatpush.msra.mxu0 %v1077
        %1365 = vmatpush.msra.mxu0 %v1065
        %1366 = vmatpush.msra.mxu0 %v1053
        %1367 = vmatpush.msra.mxu0 %v1041
        %1368 = vmatpush.msra.mxu0 %v1029
        %1369 = vmatpush.msra.mxu0 %v1017
        %1370 = vmatpush.msra.mxu0 %v1005
        %1371 = vmatpush.msra.mxu0 %v993
        %1372 = vmatpush.msra.mxu0 %v981
        %1373 = vmatpush.msra.mxu0 %v969
        %1374 = vmatpush.msra.mxu0 %v957
        %1375 = vmatpush.msra.mxu0 %v945
        %1376 = vmatmul.f32.gmra.mxu0 %v308
        %v1377 = vpop.f32.mrf.mxu0
        %v1378 = vadd.f32 %v1313, %v1377
        %1379 = vmatmul.f32.gmra.mxu0 %v312
        %v1380 = vpop.f32.mrf.mxu0
        %v1381 = vadd.f32 %v1316, %v1380
        %1382 = vmatmul.f32.gmra.mxu0 %v316
        %v1383 = vpop.f32.mrf.mxu0
        %v1384 = vadd.f32 %v1319, %v1383
        %1385 = vmatmul.f32.gmra.mxu0 %v320
        %v1386 = vpop.f32.mrf.mxu0
        %v1387 = vadd.f32 %v1322, %v1386
        %1388 = vmatmul.f32.gmra.mxu0 %v324
        %v1389 = vpop.f32.mrf.mxu0
        %v1390 = vadd.f32 %v1325, %v1389
        %1391 = vmatmul.f32.gmra.mxu0 %v328
        %v1392 = vpop.f32.mrf.mxu0
        %v1393 = vadd.f32 %v1328, %v1392
        %1394 = vmatmul.f32.gmra.mxu0 %v332
        %v1395 = vpop.f32.mrf.mxu0
        %v1396 = vadd.f32 %v1331, %v1395
        %1397 = vmatmul.f32.gmra.mxu0 %v336
        %v1398 = vpop.f32.mrf.mxu0
        %v1399 = vadd.f32 %v1334, %v1398
        %1400 = vmatmul.f32.gmra.mxu0 %v340
        %v1401 = vpop.f32.mrf.mxu0
        %v1402 = vadd.f32 %v1337, %v1401
        %1403 = vmatmul.f32.gmra.mxu0 %v344
        %v1404 = vpop.f32.mrf.mxu0
        %v1405 = vadd.f32 %v1340, %v1404
        %1406 = vmatmul.f32.gmra.mxu0 %v348
        %v1407 = vpop.f32.mrf.mxu0
        %v1408 = vadd.f32 %v1343, %v1407
        %1409 = vmatmul.f32.gmra.mxu0 %v352
        %v1410 = vpop.f32.mrf.mxu0
        %v1411 = vadd.f32 %v1346, %v1410
        %1412 = vmatmul.f32.gmra.mxu0 %v356
        %v1413 = vpop.f32.mrf.mxu0
        %v1414 = vadd.f32 %v1349, %v1413
        %1415 = vmatmul.f32.gmra.mxu0 %v360
        %v1416 = vpop.f32.mrf.mxu0
        %v1417 = vadd.f32 %v1352, %v1416
        %1418 = vmatmul.f32.gmra.mxu0 %v364
        %v1419 = vpop.f32.mrf.mxu0
        %v1420 = vadd.f32 %v1355, %v1419
        %1421 = vmatmul.f32.gmra.mxu0 %v368
        %v1422 = vpop.f32.mrf.mxu0
        %v1423 = vadd.f32 %v1358, %v1422
        %1424 = vdwg.mxu0
        %1425 = vmatpush.msra.mxu0 %v550
        %1426 = vmatpush.msra.mxu0 %v538
        %1427 = vmatpush.msra.mxu0 %v526
        %1428 = vmatpush.msra.mxu0 %v514
        %1429 = vmatpush.msra.mxu0 %v502
        %1430 = vmatpush.msra.mxu0 %v490
        %1431 = vmatpush.msra.mxu0 %v478
        %1432 = vmatpush.msra.mxu0 %v466
        %1433 = vmatpush.msra.mxu0 %v454
        %1434 = vmatpush.msra.mxu0 %v442
        %1435 = vmatpush.msra.mxu0 %v430
        %1436 = vmatpush.msra.mxu0 %v418
        %1437 = vmatpush.msra.mxu0 %v406
        %1438 = vmatpush.msra.mxu0 %v394
        %1439 = vmatpush.msra.mxu0 %v382
        %1440 = vmatpush.msra.mxu0 %v370
        %1441 = vmatmul.f32.gmra.mxu0 %v305
        %v1442 = vpop.f32.mrf.mxu0
        %v1443 = vadd.f32 %v1142, %v1442
        %1444 = vmatmul.f32.gmra.mxu0 %v309
        %v1445 = vpop.f32.mrf.mxu0
        %v1446 = vadd.f32 %v1142, %v1445
        %1447 = vmatmul.f32.gmra.mxu0 %v313
        %v1448 = vpop.f32.mrf.mxu0
        %v1449 = vadd.f32 %v1142, %v1448
        %1450 = vmatmul.f32.gmra.mxu0 %v317
        %v1451 = vpop.f32.mrf.mxu0
        %v1452 = vadd.f32 %v1142, %v1451
        %1453 = vmatmul.f32.gmra.mxu0 %v321
        %v1454 = vpop.f32.mrf.mxu0
        %v1455 = vadd.f32 %v1142, %v1454
        %1456 = vmatmul.f32.gmra.mxu0 %v325
        %v1457 = vpop.f32.mrf.mxu0
        %v1458 = vadd.f32 %v1142, %v1457
        %1459 = vmatmul.f32.gmra.mxu0 %v329
        %v1460 = vpop.f32.mrf.mxu0
        %v1461 = vadd.f32 %v1142, %v1460
        %1462 = vmatmul.f32.gmra.mxu0 %v333
        %v1463 = vpop.f32.mrf.mxu0
        %v1464 = vadd.f32 %v1142, %v1463
        %1465 = vmatmul.f32.gmra.mxu0 %v337
        %v1466 = vpop.f32.mrf.mxu0
        %v1467 = vadd.f32 %v1142, %v1466
        %1468 = vmatmul.f32.gmra.mxu0 %v341
        %v1469 = vpop.f32.mrf.mxu0
        %v1470 = vadd.f32 %v1142, %v1469
        %1471 = vmatmul.f32.gmra.mxu0 %v345
        %v1472 = vpop.f32.mrf.mxu0
        %v1473 = vadd.f32 %v1142, %v1472
        %1474 = vmatmul.f32.gmra.mxu0 %v349
        %v1475 = vpop.f32.mrf.mxu0
        %v1476 = vadd.f32 %v1142, %v1475
        %1477 = vmatmul.f32.gmra.mxu0 %v353
        %v1478 = vpop.f32.mrf.mxu0
        %v1479 = vadd.f32 %v1142, %v1478
        %1480 = vmatmul.f32.gmra.mxu0 %v357
        %v1481 = vpop.f32.mrf.mxu0
        %v1482 = vadd.f32 %v1142, %v1481
        %1483 = vmatmul.f32.gmra.mxu0 %v361
        %v1484 = vpop.f32.mrf.mxu0
        %v1485 = vadd.f32 %v1142, %v1484
        %1486 = vmatmul.f32.gmra.mxu0 %v365
        %v1487 = vpop.f32.mrf.mxu0
        %v1488 = vadd.f32 %v1142, %v1487
        %1489 = vdwg.mxu0
        %1490 = vmatpush.msra.mxu0 %v742
        %1491 = vmatpush.msra.mxu0 %v730
        %1492 = vmatpush.msra.mxu0 %v718
        %1493 = vmatpush.msra.mxu0 %v706
        %1494 = vmatpush.msra.mxu0 %v694
        %1495 = vmatpush.msra.mxu0 %v682
        %1496 = vmatpush.msra.mxu0 %v670
        %1497 = vmatpush.msra.mxu0 %v658
        %1498 = vmatpush.msra.mxu0 %v646
        %1499 = vmatpush.msra.mxu0 %v634
        %1500 = vmatpush.msra.mxu0 %v622
        %1501 = vmatpush.msra.mxu0 %v610
        %1502 = vmatpush.msra.mxu0 %v598
        %1503 = vmatpush.msra.mxu0 %v586
        %1504 = vmatpush.msra.mxu0 %v574
        %1505 = vmatpush.msra.mxu0 %v562
        %1506 = vmatmul.f32.gmra.mxu0 %v306
        %v1507 = vpop.f32.mrf.mxu0
        %v1508 = vadd.f32 %v1443, %v1507
        %1509 = vmatmul.f32.gmra.mxu0 %v310
        %v1510 = vpop.f32.mrf.mxu0
        %v1511 = vadd.f32 %v1446, %v1510
        %1512 = vmatmul.f32.gmra.mxu0 %v314
        %v1513 = vpop.f32.mrf.mxu0
        %v1514 = vadd.f32 %v1449, %v1513
        %1515 = vmatmul.f32.gmra.mxu0 %v318
        %v1516 = vpop.f32.mrf.mxu0
        %v1517 = vadd.f32 %v1452, %v1516
        %1518 = vmatmul.f32.gmra.mxu0 %v322
        %v1519 = vpop.f32.mrf.mxu0
        %v1520 = vadd.f32 %v1455, %v1519
        %1521 = vmatmul.f32.gmra.mxu0 %v326
        %v1522 = vpop.f32.mrf.mxu0
        %v1523 = vadd.f32 %v1458, %v1522
        %1524 = vmatmul.f32.gmra.mxu0 %v330
        %v1525 = vpop.f32.mrf.mxu0
        %v1526 = vadd.f32 %v1461, %v1525
        %1527 = vmatmul.f32.gmra.mxu0 %v334
        %v1528 = vpop.f32.mrf.mxu0
        %v1529 = vadd.f32 %v1464, %v1528
        %1530 = vmatmul.f32.gmra.mxu0 %v338
        %v1531 = vpop.f32.mrf.mxu0
        %v1532 = vadd.f32 %v1467, %v1531
        %1533 = vmatmul.f32.gmra.mxu0 %v342
        %v1534 = vpop.f32.mrf.mxu0
        %v1535 = vadd.f32 %v1470, %v1534
        %1536 = vmatmul.f32.gmra.mxu0 %v346
        %v1537 = vpop.f32.mrf.mxu0
        %v1538 = vadd.f32 %v1473, %v1537
        %1539 = vmatmul.f32.gmra.mxu0 %v350
        %v1540 = vpop.f32.mrf.mxu0
        %v1541 = vadd.f32 %v1476, %v1540
        %1542 = vmatmul.f32.gmra.mxu0 %v354
        %v1543 = vpop.f32.mrf.mxu0
        %v1544 = vadd.f32 %v1479, %v1543
        %1545 = vmatmul.f32.gmra.mxu0 %v358
        %v1546 = vpop.f32.mrf.mxu0
        %v1547 = vadd.f32 %v1482, %v1546
        %1548 = vmatmul.f32.gmra.mxu0 %v362
        %v1549 = vpop.f32.mrf.mxu0
        %v1550 = vadd.f32 %v1485, %v1549
        %1551 = vmatmul.f32.gmra.mxu0 %v366
        %v1552 = vpop.f32.mrf.mxu0
        %v1553 = vadd.f32 %v1488, %v1552
        %1554 = vdwg.mxu0
        %1555 = vmatpush.msra.mxu0 %v934
        %1556 = vmatpush.msra.mxu0 %v922
        %1557 = vmatpush.msra.mxu0 %v910
        %1558 = vmatpush.msra.mxu0 %v898
        %1559 = vmatpush.msra.mxu0 %v886
        %1560 = vmatpush.msra.mxu0 %v874
        %1561 = vmatpush.msra.mxu0 %v862
        %1562 = vmatpush.msra.mxu0 %v850
        %1563 = vmatpush.msra.mxu0 %v838
        %1564 = vmatpush.msra.mxu0 %v826
        %1565 = vmatpush.msra.mxu0 %v814
        %1566 = vmatpush.msra.mxu0 %v802
        %1567 = vmatpush.msra.mxu0 %v790
        %1568 = vmatpush.msra.mxu0 %v778
        %1569 = vmatpush.msra.mxu0 %v766
        %1570 = vmatpush.msra.mxu0 %v754
        %1571 = vmatmul.f32.gmra.mxu0 %v307
        %v1572 = vpop.f32.mrf.mxu0
        %v1573 = vadd.f32 %v1508, %v1572
        %1574 = vmatmul.f32.gmra.mxu0 %v311
        %v1575 = vpop.f32.mrf.mxu0
        %v1576 = vadd.f32 %v1511, %v1575
        %1577 = vmatmul.f32.gmra.mxu0 %v315
        %v1578 = vpop.f32.mrf.mxu0
        %v1579 = vadd.f32 %v1514, %v1578
        %1580 = vmatmul.f32.gmra.mxu0 %v319
        %v1581 = vpop.f32.mrf.mxu0
        %v1582 = vadd.f32 %v1517, %v1581
        %1583 = vmatmul.f32.gmra.mxu0 %v323
        %v1584 = vpop.f32.mrf.mxu0
        %v1585 = vadd.f32 %v1520, %v1584
        %1586 = vmatmul.f32.gmra.mxu0 %v327
        %v1587 = vpop.f32.mrf.mxu0
        %v1588 = vadd.f32 %v1523, %v1587
        %1589 = vmatmul.f32.gmra.mxu0 %v331
        %v1590 = vpop.f32.mrf.mxu0
        %v1591 = vadd.f32 %v1526, %v1590
        %1592 = vmatmul.f32.gmra.mxu0 %v335
        %v1593 = vpop.f32.mrf.mxu0
        %v1594 = vadd.f32 %v1529, %v1593
        %1595 = vmatmul.f32.gmra.mxu0 %v339
        %v1596 = vpop.f32.mrf.mxu0
        %v1597 = vadd.f32 %v1532, %v1596
        %1598 = vmatmul.f32.gmra.mxu0 %v343
        %v1599 = vpop.f32.mrf.mxu0
        %v1600 = vadd.f32 %v1535, %v1599
        %1601 = vmatmul.f32.gmra.mxu0 %v347
        %v1602 = vpop.f32.mrf.mxu0
        %v1603 = vadd.f32 %v1538, %v1602
        %1604 = vmatmul.f32.gmra.mxu0 %v351
        %v1605 = vpop.f32.mrf.mxu0
        %v1606 = vadd.f32 %v1541, %v1605
        %1607 = vmatmul.f32.gmra.mxu0 %v355
        %v1608 = vpop.f32.mrf.mxu0
        %v1609 = vadd.f32 %v1544, %v1608
        %1610 = vmatmul.f32.gmra.mxu0 %v359
        %v1611 = vpop.f32.mrf.mxu0
        %v1612 = vadd.f32 %v1547, %v1611
        %1613 = vmatmul.f32.gmra.mxu0 %v363
        %v1614 = vpop.f32.mrf.mxu0
        %v1615 = vadd.f32 %v1550, %v1614
        %1616 = vmatmul.f32.gmra.mxu0 %v367
        %v1617 = vpop.f32.mrf.mxu0
        %v1618 = vadd.f32 %v1553, %v1617
        %1619 = vdwg.mxu0
        %1620 = vmatpush.msra.mxu0 %v1126
        %1621 = vmatpush.msra.mxu0 %v1114
        %1622 = vmatpush.msra.mxu0 %v1102
        %1623 = vmatpush.msra.mxu0 %v1090
        %1624 = vmatpush.msra.mxu0 %v1078
        %1625 = vmatpush.msra.mxu0 %v1066
        %1626 = vmatpush.msra.mxu0 %v1054
        %1627 = vmatpush.msra.mxu0 %v1042
        %1628 = vmatpush.msra.mxu0 %v1030
        %1629 = vmatpush.msra.mxu0 %v1018
        %1630 = vmatpush.msra.mxu0 %v1006
        %1631 = vmatpush.msra.mxu0 %v994
        %1632 = vmatpush.msra.mxu0 %v982
        %1633 = vmatpush.msra.mxu0 %v970
        %1634 = vmatpush.msra.mxu0 %v958
        %1635 = vmatpush.msra.mxu0 %v946
        %1636 = vmatmul.f32.gmra.mxu0 %v308
        %v1637 = vpop.f32.mrf.mxu0
        %v1638 = vadd.f32 %v1573, %v1637
        %1639 = vmatmul.f32.gmra.mxu0 %v312
        %v1640 = vpop.f32.mrf.mxu0
        %v1641 = vadd.f32 %v1576, %v1640
        %1642 = vmatmul.f32.gmra.mxu0 %v316
        %v1643 = vpop.f32.mrf.mxu0
        %v1644 = vadd.f32 %v1579, %v1643
        %1645 = vmatmul.f32.gmra.mxu0 %v320
        %v1646 = vpop.f32.mrf.mxu0
        %v1647 = vadd.f32 %v1582, %v1646
        %1648 = vmatmul.f32.gmra.mxu0 %v324
        %v1649 = vpop.f32.mrf.mxu0
        %v1650 = vadd.f32 %v1585, %v1649
        %1651 = vmatmul.f32.gmra.mxu0 %v328
        %v1652 = vpop.f32.mrf.mxu0
        %v1653 = vadd.f32 %v1588, %v1652
        %1654 = vmatmul.f32.gmra.mxu0 %v332
        %v1655 = vpop.f32.mrf.mxu0
        %v1656 = vadd.f32 %v1591, %v1655
        %1657 = vmatmul.f32.gmra.mxu0 %v336
        %v1658 = vpop.f32.mrf.mxu0
        %v1659 = vadd.f32 %v1594, %v1658
        %1660 = vmatmul.f32.gmra.mxu0 %v340
        %v1661 = vpop.f32.mrf.mxu0
        %v1662 = vadd.f32 %v1597, %v1661
        %1663 = vmatmul.f32.gmra.mxu0 %v344
        %v1664 = vpop.f32.mrf.mxu0
        %v1665 = vadd.f32 %v1600, %v1664
        %1666 = vmatmul.f32.gmra.mxu0 %v348
        %v1667 = vpop.f32.mrf.mxu0
        %v1668 = vadd.f32 %v1603, %v1667
        %1669 = vmatmul.f32.gmra.mxu0 %v352
        %v1670 = vpop.f32.mrf.mxu0
        %v1671 = vadd.f32 %v1606, %v1670
        %1672 = vmatmul.f32.gmra.mxu0 %v356
        %v1673 = vpop.f32.mrf.mxu0
        %v1674 = vadd.f32 %v1609, %v1673
        %1675 = vmatmul.f32.gmra.mxu0 %v360
        %v1676 = vpop.f32.mrf.mxu0
        %v1677 = vadd.f32 %v1612, %v1676
        %1678 = vmatmul.f32.gmra.mxu0 %v364
        %v1679 = vpop.f32.mrf.mxu0
        %v1680 = vadd.f32 %v1615, %v1679
        %1681 = vmatmul.f32.gmra.mxu0 %v368
        %v1682 = vpop.f32.mrf.mxu0
        %v1683 = vadd.f32 %v1618, %v1682
        %1684 = vdwg.mxu0
        %1685 = vmatpush.msra.mxu0 %v551
        %1686 = vmatpush.msra.mxu0 %v539
        %1687 = vmatpush.msra.mxu0 %v527
        %1688 = vmatpush.msra.mxu0 %v515
        %1689 = vmatpush.msra.mxu0 %v503
        %1690 = vmatpush.msra.mxu0 %v491
        %1691 = vmatpush.msra.mxu0 %v479
        %1692 = vmatpush.msra.mxu0 %v467
        %1693 = vmatpush.msra.mxu0 %v455
        %1694 = vmatpush.msra.mxu0 %v443
        %1695 = vmatpush.msra.mxu0 %v431
        %1696 = vmatpush.msra.mxu0 %v419
        %1697 = vmatpush.msra.mxu0 %v407
        %1698 = vmatpush.msra.mxu0 %v395
        %1699 = vmatpush.msra.mxu0 %v383
        %1700 = vmatpush.msra.mxu0 %v371
        %1701 = vmatmul.f32.gmra.mxu0 %v305
        %v1702 = vpop.f32.mrf.mxu0
        %v1703 = vadd.f32 %v1143, %v1702
        %1704 = vmatmul.f32.gmra.mxu0 %v309
        %v1705 = vpop.f32.mrf.mxu0
        %v1706 = vadd.f32 %v1143, %v1705
        %1707 = vmatmul.f32.gmra.mxu0 %v313
        %v1708 = vpop.f32.mrf.mxu0
        %v1709 = vadd.f32 %v1143, %v1708
        %1710 = vmatmul.f32.gmra.mxu0 %v317
        %v1711 = vpop.f32.mrf.mxu0
        %v1712 = vadd.f32 %v1143, %v1711
        %1713 = vmatmul.f32.gmra.mxu0 %v321
        %v1714 = vpop.f32.mrf.mxu0
        %v1715 = vadd.f32 %v1143, %v1714
        %1716 = vmatmul.f32.gmra.mxu0 %v325
        %v1717 = vpop.f32.mrf.mxu0
        %v1718 = vadd.f32 %v1143, %v1717
        %1719 = vmatmul.f32.gmra.mxu0 %v329
        %v1720 = vpop.f32.mrf.mxu0
        %v1721 = vadd.f32 %v1143, %v1720
        %1722 = vmatmul.f32.gmra.mxu0 %v333
        %v1723 = vpop.f32.mrf.mxu0
        %v1724 = vadd.f32 %v1143, %v1723
        %1725 = vmatmul.f32.gmra.mxu0 %v337
        %v1726 = vpop.f32.mrf.mxu0
        %v1727 = vadd.f32 %v1143, %v1726
        %1728 = vmatmul.f32.gmra.mxu0 %v341
        %v1729 = vpop.f32.mrf.mxu0
        %v1730 = vadd.f32 %v1143, %v1729
        %1731 = vmatmul.f32.gmra.mxu0 %v345
        %v1732 = vpop.f32.mrf.mxu0
        %v1733 = vadd.f32 %v1143, %v1732
        %1734 = vmatmul.f32.gmra.mxu0 %v349
        %v1735 = vpop.f32.mrf.mxu0
        %v1736 = vadd.f32 %v1143, %v1735
        %1737 = vmatmul.f32.gmra.mxu0 %v353
        %v1738 = vpop.f32.mrf.mxu0
        %v1739 = vadd.f32 %v1143, %v1738
        %1740 = vmatmul.f32.gmra.mxu0 %v357
        %v1741 = vpop.f32.mrf.mxu0
        %v1742 = vadd.f32 %v1143, %v1741
        %1743 = vmatmul.f32.gmra.mxu0 %v361
        %v1744 = vpop.f32.mrf.mxu0
        %v1745 = vadd.f32 %v1143, %v1744
        %1746 = vmatmul.f32.gmra.mxu0 %v365
        %v1747 = vpop.f32.mrf.mxu0
        %v1748 = vadd.f32 %v1143, %v1747
        %1749 = vdwg.mxu0
        %1750 = vmatpush.msra.mxu0 %v743
        %1751 = vmatpush.msra.mxu0 %v731
        %1752 = vmatpush.msra.mxu0 %v719
        %1753 = vmatpush.msra.mxu0 %v707
        %1754 = vmatpush.msra.mxu0 %v695
        %1755 = vmatpush.msra.mxu0 %v683
        %1756 = vmatpush.msra.mxu0 %v671
        %1757 = vmatpush.msra.mxu0 %v659
        %1758 = vmatpush.msra.mxu0 %v647
        %1759 = vmatpush.msra.mxu0 %v635
        %1760 = vmatpush.msra.mxu0 %v623
        %1761 = vmatpush.msra.mxu0 %v611
        %1762 = vmatpush.msra.mxu0 %v599
        %1763 = vmatpush.msra.mxu0 %v587
        %1764 = vmatpush.msra.mxu0 %v575
        %1765 = vmatpush.msra.mxu0 %v563
        %1766 = vmatmul.f32.gmra.mxu0 %v306
        %v1767 = vpop.f32.mrf.mxu0
        %v1768 = vadd.f32 %v1703, %v1767
        %1769 = vmatmul.f32.gmra.mxu0 %v310
        %v1770 = vpop.f32.mrf.mxu0
        %v1771 = vadd.f32 %v1706, %v1770
        %1772 = vmatmul.f32.gmra.mxu0 %v314
        %v1773 = vpop.f32.mrf.mxu0
        %v1774 = vadd.f32 %v1709, %v1773
        %1775 = vmatmul.f32.gmra.mxu0 %v318
        %v1776 = vpop.f32.mrf.mxu0
        %v1777 = vadd.f32 %v1712, %v1776
        %1778 = vmatmul.f32.gmra.mxu0 %v322
        %v1779 = vpop.f32.mrf.mxu0
        %v1780 = vadd.f32 %v1715, %v1779
        %1781 = vmatmul.f32.gmra.mxu0 %v326
        %v1782 = vpop.f32.mrf.mxu0
        %v1783 = vadd.f32 %v1718, %v1782
        %1784 = vmatmul.f32.gmra.mxu0 %v330
        %v1785 = vpop.f32.mrf.mxu0
        %v1786 = vadd.f32 %v1721, %v1785
        %1787 = vmatmul.f32.gmra.mxu0 %v334
        %v1788 = vpop.f32.mrf.mxu0
        %v1789 = vadd.f32 %v1724, %v1788
        %1790 = vmatmul.f32.gmra.mxu0 %v338
        %v1791 = vpop.f32.mrf.mxu0
        %v1792 = vadd.f32 %v1727, %v1791
        %1793 = vmatmul.f32.gmra.mxu0 %v342
        %v1794 = vpop.f32.mrf.mxu0
        %v1795 = vadd.f32 %v1730, %v1794
        %1796 = vmatmul.f32.gmra.mxu0 %v346
        %v1797 = vpop.f32.mrf.mxu0
        %v1798 = vadd.f32 %v1733, %v1797
        %1799 = vmatmul.f32.gmra.mxu0 %v350
        %v1800 = vpop.f32.mrf.mxu0
        %v1801 = vadd.f32 %v1736, %v1800
        %1802 = vmatmul.f32.gmra.mxu0 %v354
        %v1803 = vpop.f32.mrf.mxu0
        %v1804 = vadd.f32 %v1739, %v1803
        %1805 = vmatmul.f32.gmra.mxu0 %v358
        %v1806 = vpop.f32.mrf.mxu0
        %v1807 = vadd.f32 %v1742, %v1806
        %1808 = vmatmul.f32.gmra.mxu0 %v362
        %v1809 = vpop.f32.mrf.mxu0
        %v1810 = vadd.f32 %v1745, %v1809
        %1811 = vmatmul.f32.gmra.mxu0 %v366
        %v1812 = vpop.f32.mrf.mxu0
        %v1813 = vadd.f32 %v1748, %v1812
        %1814 = vdwg.mxu0
        %1815 = vmatpush.msra.mxu0 %v935
        %1816 = vmatpush.msra.mxu0 %v923
        %1817 = vmatpush.msra.mxu0 %v911
        %1818 = vmatpush.msra.mxu0 %v899
        %1819 = vmatpush.msra.mxu0 %v887
        %1820 = vmatpush.msra.mxu0 %v875
        %1821 = vmatpush.msra.mxu0 %v863
        %1822 = vmatpush.msra.mxu0 %v851
        %1823 = vmatpush.msra.mxu0 %v839
        %1824 = vmatpush.msra.mxu0 %v827
        %1825 = vmatpush.msra.mxu0 %v815
        %1826 = vmatpush.msra.mxu0 %v803
        %1827 = vmatpush.msra.mxu0 %v791
        %1828 = vmatpush.msra.mxu0 %v779
        %1829 = vmatpush.msra.mxu0 %v767
        %1830 = vmatpush.msra.mxu0 %v755
        %1831 = vmatmul.f32.gmra.mxu0 %v307
        %v1832 = vpop.f32.mrf.mxu0
        %v1833 = vadd.f32 %v1768, %v1832
        %1834 = vmatmul.f32.gmra.mxu0 %v311
        %v1835 = vpop.f32.mrf.mxu0
        %v1836 = vadd.f32 %v1771, %v1835
        %1837 = vmatmul.f32.gmra.mxu0 %v315
        %v1838 = vpop.f32.mrf.mxu0
        %v1839 = vadd.f32 %v1774, %v1838
        %1840 = vmatmul.f32.gmra.mxu0 %v319
        %v1841 = vpop.f32.mrf.mxu0
        %v1842 = vadd.f32 %v1777, %v1841
        %1843 = vmatmul.f32.gmra.mxu0 %v323
        %v1844 = vpop.f32.mrf.mxu0
        %v1845 = vadd.f32 %v1780, %v1844
        %1846 = vmatmul.f32.gmra.mxu0 %v327
        %v1847 = vpop.f32.mrf.mxu0
        %v1848 = vadd.f32 %v1783, %v1847
        %1849 = vmatmul.f32.gmra.mxu0 %v331
        %v1850 = vpop.f32.mrf.mxu0
        %v1851 = vadd.f32 %v1786, %v1850
        %1852 = vmatmul.f32.gmra.mxu0 %v335
        %v1853 = vpop.f32.mrf.mxu0
        %v1854 = vadd.f32 %v1789, %v1853
        %1855 = vmatmul.f32.gmra.mxu0 %v339
        %v1856 = vpop.f32.mrf.mxu0
        %v1857 = vadd.f32 %v1792, %v1856
        %1858 = vmatmul.f32.gmra.mxu0 %v343
        %v1859 = vpop.f32.mrf.mxu0
        %v1860 = vadd.f32 %v1795, %v1859
        %1861 = vmatmul.f32.gmra.mxu0 %v347
        %v1862 = vpop.f32.mrf.mxu0
        %v1863 = vadd.f32 %v1798, %v1862
        %1864 = vmatmul.f32.gmra.mxu0 %v351
        %v1865 = vpop.f32.mrf.mxu0
        %v1866 = vadd.f32 %v1801, %v1865
        %1867 = vmatmul.f32.gmra.mxu0 %v355
        %v1868 = vpop.f32.mrf.mxu0
        %v1869 = vadd.f32 %v1804, %v1868
        %1870 = vmatmul.f32.gmra.mxu0 %v359
        %v1871 = vpop.f32.mrf.mxu0
        %v1872 = vadd.f32 %v1807, %v1871
        %1873 = vmatmul.f32.gmra.mxu0 %v363
        %v1874 = vpop.f32.mrf.mxu0
        %v1875 = vadd.f32 %v1810, %v1874
        %1876 = vmatmul.f32.gmra.mxu0 %v367
        %v1877 = vpop.f32.mrf.mxu0
        %v1878 = vadd.f32 %v1813, %v1877
        %1879 = vdwg.mxu0
        %1880 = vmatpush.msra.mxu0 %v1127
        %1881 = vmatpush.msra.mxu0 %v1115
        %1882 = vmatpush.msra.mxu0 %v1103
        %1883 = vmatpush.msra.mxu0 %v1091
        %1884 = vmatpush.msra.mxu0 %v1079
        %1885 = vmatpush.msra.mxu0 %v1067
        %1886 = vmatpush.msra.mxu0 %v1055
        %1887 = vmatpush.msra.mxu0 %v1043
        %1888 = vmatpush.msra.mxu0 %v1031
        %1889 = vmatpush.msra.mxu0 %v1019
        %1890 = vmatpush.msra.mxu0 %v1007
        %1891 = vmatpush.msra.mxu0 %v995
        %1892 = vmatpush.msra.mxu0 %v983
        %1893 = vmatpush.msra.mxu0 %v971
        %1894 = vmatpush.msra.mxu0 %v959
        %1895 = vmatpush.msra.mxu0 %v947
        %1896 = vmatmul.f32.gmra.mxu0 %v308
        %v1897 = vpop.f32.mrf.mxu0
        %v1898 = vadd.f32 %v1833, %v1897
        %1899 = vmatmul.f32.gmra.mxu0 %v312
        %v1900 = vpop.f32.mrf.mxu0
        %v1901 = vadd.f32 %v1836, %v1900
        %1902 = vmatmul.f32.gmra.mxu0 %v316
        %v1903 = vpop.f32.mrf.mxu0
        %v1904 = vadd.f32 %v1839, %v1903
        %1905 = vmatmul.f32.gmra.mxu0 %v320
        %v1906 = vpop.f32.mrf.mxu0
        %v1907 = vadd.f32 %v1842, %v1906
        %1908 = vmatmul.f32.gmra.mxu0 %v324
        %v1909 = vpop.f32.mrf.mxu0
        %v1910 = vadd.f32 %v1845, %v1909
        %1911 = vmatmul.f32.gmra.mxu0 %v328
        %v1912 = vpop.f32.mrf.mxu0
        %v1913 = vadd.f32 %v1848, %v1912
        %1914 = vmatmul.f32.gmra.mxu0 %v332
        %v1915 = vpop.f32.mrf.mxu0
        %v1916 = vadd.f32 %v1851, %v1915
        %1917 = vmatmul.f32.gmra.mxu0 %v336
        %v1918 = vpop.f32.mrf.mxu0
        %v1919 = vadd.f32 %v1854, %v1918
        %1920 = vmatmul.f32.gmra.mxu0 %v340
        %v1921 = vpop.f32.mrf.mxu0
        %v1922 = vadd.f32 %v1857, %v1921
        %1923 = vmatmul.f32.gmra.mxu0 %v344
        %v1924 = vpop.f32.mrf.mxu0
        %v1925 = vadd.f32 %v1860, %v1924
        %1926 = vmatmul.f32.gmra.mxu0 %v348
        %v1927 = vpop.f32.mrf.mxu0
        %v1928 = vadd.f32 %v1863, %v1927
        %1929 = vmatmul.f32.gmra.mxu0 %v352
        %v1930 = vpop.f32.mrf.mxu0
        %v1931 = vadd.f32 %v1866, %v1930
        %1932 = vmatmul.f32.gmra.mxu0 %v356
        %v1933 = vpop.f32.mrf.mxu0
        %v1934 = vadd.f32 %v1869, %v1933
        %1935 = vmatmul.f32.gmra.mxu0 %v360
        %v1936 = vpop.f32.mrf.mxu0
        %v1937 = vadd.f32 %v1872, %v1936
        %1938 = vmatmul.f32.gmra.mxu0 %v364
        %v1939 = vpop.f32.mrf.mxu0
        %v1940 = vadd.f32 %v1875, %v1939
        %1941 = vmatmul.f32.gmra.mxu0 %v368
        %v1942 = vpop.f32.mrf.mxu0
        %v1943 = vadd.f32 %v1878, %v1942
        %1944 = vdwg.mxu0
        %1945 = vmatpush.msra.mxu0 %v552
        %1946 = vmatpush.msra.mxu0 %v540
        %1947 = vmatpush.msra.mxu0 %v528
        %1948 = vmatpush.msra.mxu0 %v516
        %1949 = vmatpush.msra.mxu0 %v504
        %1950 = vmatpush.msra.mxu0 %v492
        %1951 = vmatpush.msra.mxu0 %v480
        %1952 = vmatpush.msra.mxu0 %v468
        %1953 = vmatpush.msra.mxu0 %v456
        %1954 = vmatpush.msra.mxu0 %v444
        %1955 = vmatpush.msra.mxu0 %v432
        %1956 = vmatpush.msra.mxu0 %v420
        %1957 = vmatpush.msra.mxu0 %v408
        %1958 = vmatpush.msra.mxu0 %v396
        %1959 = vmatpush.msra.mxu0 %v384
        %1960 = vmatpush.msra.mxu0 %v372
        %1961 = vmatmul.f32.gmra.mxu0 %v305
        %v1962 = vpop.f32.mrf.mxu0
        %v1963 = vadd.f32 %v1144, %v1962
        %1964 = vmatmul.f32.gmra.mxu0 %v309
        %v1965 = vpop.f32.mrf.mxu0
        %v1966 = vadd.f32 %v1144, %v1965
        %1967 = vmatmul.f32.gmra.mxu0 %v313
        %v1968 = vpop.f32.mrf.mxu0
        %v1969 = vadd.f32 %v1144, %v1968
        %1970 = vmatmul.f32.gmra.mxu0 %v317
        %v1971 = vpop.f32.mrf.mxu0
        %v1972 = vadd.f32 %v1144, %v1971
        %1973 = vmatmul.f32.gmra.mxu0 %v321
        %v1974 = vpop.f32.mrf.mxu0
        %v1975 = vadd.f32 %v1144, %v1974
        %1976 = vmatmul.f32.gmra.mxu0 %v325
        %v1977 = vpop.f32.mrf.mxu0
        %v1978 = vadd.f32 %v1144, %v1977
        %1979 = vmatmul.f32.gmra.mxu0 %v329
        %v1980 = vpop.f32.mrf.mxu0
        %v1981 = vadd.f32 %v1144, %v1980
        %1982 = vmatmul.f32.gmra.mxu0 %v333
        %v1983 = vpop.f32.mrf.mxu0
        %v1984 = vadd.f32 %v1144, %v1983
        %1985 = vmatmul.f32.gmra.mxu0 %v337
        %v1986 = vpop.f32.mrf.mxu0
        %v1987 = vadd.f32 %v1144, %v1986
        %1988 = vmatmul.f32.gmra.mxu0 %v341
        %v1989 = vpop.f32.mrf.mxu0
        %v1990 = vadd.f32 %v1144, %v1989
        %1991 = vmatmul.f32.gmra.mxu0 %v345
        %v1992 = vpop.f32.mrf.mxu0
        %v1993 = vadd.f32 %v1144, %v1992
        %1994 = vmatmul.f32.gmra.mxu0 %v349
        %v1995 = vpop.f32.mrf.mxu0
        %v1996 = vadd.f32 %v1144, %v1995
        %1997 = vmatmul.f32.gmra.mxu0 %v353
        %v1998 = vpop.f32.mrf.mxu0
        %v1999 = vadd.f32 %v1144, %v1998
        %2000 = vmatmul.f32.gmra.mxu0 %v357
        %v2001 = vpop.f32.mrf.mxu0
        %v2002 = vadd.f32 %v1144, %v2001
        %2003 = vmatmul.f32.gmra.mxu0 %v361
        %v2004 = vpop.f32.mrf.mxu0
        %v2005 = vadd.f32 %v1144, %v2004
        %2006 = vmatmul.f32.gmra.mxu0 %v365
        %v2007 = vpop.f32.mrf.mxu0
        %v2008 = vadd.f32 %v1144, %v2007
        %2009 = vdwg.mxu0
        %2010 = vmatpush.msra.mxu0 %v744
        %2011 = vmatpush.msra.mxu0 %v732
        %2012 = vmatpush.msra.mxu0 %v720
        %2013 = vmatpush.msra.mxu0 %v708
        %2014 = vmatpush.msra.mxu0 %v696
        %2015 = vmatpush.msra.mxu0 %v684
        %2016 = vmatpush.msra.mxu0 %v672
        %2017 = vmatpush.msra.mxu0 %v660
        %2018 = vmatpush.msra.mxu0 %v648
        %2019 = vmatpush.msra.mxu0 %v636
        %2020 = vmatpush.msra.mxu0 %v624
        %2021 = vmatpush.msra.mxu0 %v612
        %2022 = vmatpush.msra.mxu0 %v600
        %2023 = vmatpush.msra.mxu0 %v588
        %2024 = vmatpush.msra.mxu0 %v576
        %2025 = vmatpush.msra.mxu0 %v564
        %2026 = vmatmul.f32.gmra.mxu0 %v306
        %v2027 = vpop.f32.mrf.mxu0
        %v2028 = vadd.f32 %v1963, %v2027
        %2029 = vmatmul.f32.gmra.mxu0 %v310
        %v2030 = vpop.f32.mrf.mxu0
        %v2031 = vadd.f32 %v1966, %v2030
        %2032 = vmatmul.f32.gmra.mxu0 %v314
        %v2033 = vpop.f32.mrf.mxu0
        %v2034 = vadd.f32 %v1969, %v2033
        %2035 = vmatmul.f32.gmra.mxu0 %v318
        %v2036 = vpop.f32.mrf.mxu0
        %v2037 = vadd.f32 %v1972, %v2036
        %2038 = vmatmul.f32.gmra.mxu0 %v322
        %v2039 = vpop.f32.mrf.mxu0
        %v2040 = vadd.f32 %v1975, %v2039
        %2041 = vmatmul.f32.gmra.mxu0 %v326
        %v2042 = vpop.f32.mrf.mxu0
        %v2043 = vadd.f32 %v1978, %v2042
        %2044 = vmatmul.f32.gmra.mxu0 %v330
        %v2045 = vpop.f32.mrf.mxu0
        %v2046 = vadd.f32 %v1981, %v2045
        %2047 = vmatmul.f32.gmra.mxu0 %v334
        %v2048 = vpop.f32.mrf.mxu0
        %v2049 = vadd.f32 %v1984, %v2048
        %2050 = vmatmul.f32.gmra.mxu0 %v338
        %v2051 = vpop.f32.mrf.mxu0
        %v2052 = vadd.f32 %v1987, %v2051
        %2053 = vmatmul.f32.gmra.mxu0 %v342
        %v2054 = vpop.f32.mrf.mxu0
        %v2055 = vadd.f32 %v1990, %v2054
        %2056 = vmatmul.f32.gmra.mxu0 %v346
        %v2057 = vpop.f32.mrf.mxu0
        %v2058 = vadd.f32 %v1993, %v2057
        %2059 = vmatmul.f32.gmra.mxu0 %v350
        %v2060 = vpop.f32.mrf.mxu0
        %v2061 = vadd.f32 %v1996, %v2060
        %2062 = vmatmul.f32.gmra.mxu0 %v354
        %v2063 = vpop.f32.mrf.mxu0
        %v2064 = vadd.f32 %v1999, %v2063
        %2065 = vmatmul.f32.gmra.mxu0 %v358
        %v2066 = vpop.f32.mrf.mxu0
        %v2067 = vadd.f32 %v2002, %v2066
        %2068 = vmatmul.f32.gmra.mxu0 %v362
        %v2069 = vpop.f32.mrf.mxu0
        %v2070 = vadd.f32 %v2005, %v2069
        %2071 = vmatmul.f32.gmra.mxu0 %v366
        %v2072 = vpop.f32.mrf.mxu0
        %v2073 = vadd.f32 %v2008, %v2072
        %2074 = vdwg.mxu0
        %2075 = vmatpush.msra.mxu0 %v936
        %2076 = vmatpush.msra.mxu0 %v924
        %2077 = vmatpush.msra.mxu0 %v912
        %2078 = vmatpush.msra.mxu0 %v900
        %2079 = vmatpush.msra.mxu0 %v888
        %2080 = vmatpush.msra.mxu0 %v876
        %2081 = vmatpush.msra.mxu0 %v864
        %2082 = vmatpush.msra.mxu0 %v852
        %2083 = vmatpush.msra.mxu0 %v840
        %2084 = vmatpush.msra.mxu0 %v828
        %2085 = vmatpush.msra.mxu0 %v816
        %2086 = vmatpush.msra.mxu0 %v804
        %2087 = vmatpush.msra.mxu0 %v792
        %2088 = vmatpush.msra.mxu0 %v780
        %2089 = vmatpush.msra.mxu0 %v768
        %2090 = vmatpush.msra.mxu0 %v756
        %2091 = vmatmul.f32.gmra.mxu0 %v307
        %v2092 = vpop.f32.mrf.mxu0
        %v2093 = vadd.f32 %v2028, %v2092
        %2094 = vmatmul.f32.gmra.mxu0 %v311
        %v2095 = vpop.f32.mrf.mxu0
        %v2096 = vadd.f32 %v2031, %v2095
        %2097 = vmatmul.f32.gmra.mxu0 %v315
        %v2098 = vpop.f32.mrf.mxu0
        %v2099 = vadd.f32 %v2034, %v2098
        %2100 = vmatmul.f32.gmra.mxu0 %v319
        %v2101 = vpop.f32.mrf.mxu0
        %v2102 = vadd.f32 %v2037, %v2101
        %2103 = vmatmul.f32.gmra.mxu0 %v323
        %v2104 = vpop.f32.mrf.mxu0
        %v2105 = vadd.f32 %v2040, %v2104
        %2106 = vmatmul.f32.gmra.mxu0 %v327
        %v2107 = vpop.f32.mrf.mxu0
        %v2108 = vadd.f32 %v2043, %v2107
        %2109 = vmatmul.f32.gmra.mxu0 %v331
        %v2110 = vpop.f32.mrf.mxu0
        %v2111 = vadd.f32 %v2046, %v2110
        %2112 = vmatmul.f32.gmra.mxu0 %v335
        %v2113 = vpop.f32.mrf.mxu0
        %v2114 = vadd.f32 %v2049, %v2113
        %2115 = vmatmul.f32.gmra.mxu0 %v339
        %v2116 = vpop.f32.mrf.mxu0
        %v2117 = vadd.f32 %v2052, %v2116
        %2118 = vmatmul.f32.gmra.mxu0 %v343
        %v2119 = vpop.f32.mrf.mxu0
        %v2120 = vadd.f32 %v2055, %v2119
        %2121 = vmatmul.f32.gmra.mxu0 %v347
        %v2122 = vpop.f32.mrf.mxu0
        %v2123 = vadd.f32 %v2058, %v2122
        %2124 = vmatmul.f32.gmra.mxu0 %v351
        %v2125 = vpop.f32.mrf.mxu0
        %v2126 = vadd.f32 %v2061, %v2125
        %2127 = vmatmul.f32.gmra.mxu0 %v355
        %v2128 = vpop.f32.mrf.mxu0
        %v2129 = vadd.f32 %v2064, %v2128
        %2130 = vmatmul.f32.gmra.mxu0 %v359
        %v2131 = vpop.f32.mrf.mxu0
        %v2132 = vadd.f32 %v2067, %v2131
        %2133 = vmatmul.f32.gmra.mxu0 %v363
        %v2134 = vpop.f32.mrf.mxu0
        %v2135 = vadd.f32 %v2070, %v2134
        %2136 = vmatmul.f32.gmra.mxu0 %v367
        %v2137 = vpop.f32.mrf.mxu0
        %v2138 = vadd.f32 %v2073, %v2137
        %2139 = vdwg.mxu0
        %2140 = vmatpush.msra.mxu0 %v1128
        %2141 = vmatpush.msra.mxu0 %v1116
        %2142 = vmatpush.msra.mxu0 %v1104
        %2143 = vmatpush.msra.mxu0 %v1092
        %2144 = vmatpush.msra.mxu0 %v1080
        %2145 = vmatpush.msra.mxu0 %v1068
        %2146 = vmatpush.msra.mxu0 %v1056
        %2147 = vmatpush.msra.mxu0 %v1044
        %2148 = vmatpush.msra.mxu0 %v1032
        %2149 = vmatpush.msra.mxu0 %v1020
        %2150 = vmatpush.msra.mxu0 %v1008
        %2151 = vmatpush.msra.mxu0 %v996
        %2152 = vmatpush.msra.mxu0 %v984
        %2153 = vmatpush.msra.mxu0 %v972
        %2154 = vmatpush.msra.mxu0 %v960
        %2155 = vmatpush.msra.mxu0 %v948
        %2156 = vmatmul.f32.gmra.mxu0 %v308
        %v2157 = vpop.f32.mrf.mxu0
        %v2158 = vadd.f32 %v2093, %v2157
        %2159 = vmatmul.f32.gmra.mxu0 %v312
        %v2160 = vpop.f32.mrf.mxu0
        %v2161 = vadd.f32 %v2096, %v2160
        %2162 = vmatmul.f32.gmra.mxu0 %v316
        %v2163 = vpop.f32.mrf.mxu0
        %v2164 = vadd.f32 %v2099, %v2163
        %2165 = vmatmul.f32.gmra.mxu0 %v320
        %v2166 = vpop.f32.mrf.mxu0
        %v2167 = vadd.f32 %v2102, %v2166
        %2168 = vmatmul.f32.gmra.mxu0 %v324
        %v2169 = vpop.f32.mrf.mxu0
        %v2170 = vadd.f32 %v2105, %v2169
        %2171 = vmatmul.f32.gmra.mxu0 %v328
        %v2172 = vpop.f32.mrf.mxu0
        %v2173 = vadd.f32 %v2108, %v2172
        %2174 = vmatmul.f32.gmra.mxu0 %v332
        %v2175 = vpop.f32.mrf.mxu0
        %v2176 = vadd.f32 %v2111, %v2175
        %2177 = vmatmul.f32.gmra.mxu0 %v336
        %v2178 = vpop.f32.mrf.mxu0
        %v2179 = vadd.f32 %v2114, %v2178
        %2180 = vmatmul.f32.gmra.mxu0 %v340
        %v2181 = vpop.f32.mrf.mxu0
        %v2182 = vadd.f32 %v2117, %v2181
        %2183 = vmatmul.f32.gmra.mxu0 %v344
        %v2184 = vpop.f32.mrf.mxu0
        %v2185 = vadd.f32 %v2120, %v2184
        %2186 = vmatmul.f32.gmra.mxu0 %v348
        %v2187 = vpop.f32.mrf.mxu0
        %v2188 = vadd.f32 %v2123, %v2187
        %2189 = vmatmul.f32.gmra.mxu0 %v352
        %v2190 = vpop.f32.mrf.mxu0
        %v2191 = vadd.f32 %v2126, %v2190
        %2192 = vmatmul.f32.gmra.mxu0 %v356
        %v2193 = vpop.f32.mrf.mxu0
        %v2194 = vadd.f32 %v2129, %v2193
        %2195 = vmatmul.f32.gmra.mxu0 %v360
        %v2196 = vpop.f32.mrf.mxu0
        %v2197 = vadd.f32 %v2132, %v2196
        %2198 = vmatmul.f32.gmra.mxu0 %v364
        %v2199 = vpop.f32.mrf.mxu0
        %v2200 = vadd.f32 %v2135, %v2199
        %2201 = vmatmul.f32.gmra.mxu0 %v368
        %v2202 = vpop.f32.mrf.mxu0
        %v2203 = vadd.f32 %v2138, %v2202
        %2204 = vdwg.mxu0
        %2205 = vmatpush.msra.mxu0 %v553
        %2206 = vmatpush.msra.mxu0 %v541
        %2207 = vmatpush.msra.mxu0 %v529
        %2208 = vmatpush.msra.mxu0 %v517
        %2209 = vmatpush.msra.mxu0 %v505
        %2210 = vmatpush.msra.mxu0 %v493
        %2211 = vmatpush.msra.mxu0 %v481
        %2212 = vmatpush.msra.mxu0 %v469
        %2213 = vmatpush.msra.mxu0 %v457
        %2214 = vmatpush.msra.mxu0 %v445
        %2215 = vmatpush.msra.mxu0 %v433
        %2216 = vmatpush.msra.mxu0 %v421
        %2217 = vmatpush.msra.mxu0 %v409
        %2218 = vmatpush.msra.mxu0 %v397
        %2219 = vmatpush.msra.mxu0 %v385
        %2220 = vmatpush.msra.mxu0 %v373
        %2221 = vmatmul.f32.gmra.mxu0 %v305
        %v2222 = vpop.f32.mrf.mxu0
        %v2223 = vadd.f32 %v1145, %v2222
        %2224 = vmatmul.f32.gmra.mxu0 %v309
        %v2225 = vpop.f32.mrf.mxu0
        %v2226 = vadd.f32 %v1145, %v2225
        %2227 = vmatmul.f32.gmra.mxu0 %v313
        %v2228 = vpop.f32.mrf.mxu0
        %v2229 = vadd.f32 %v1145, %v2228
        %2230 = vmatmul.f32.gmra.mxu0 %v317
        %v2231 = vpop.f32.mrf.mxu0
        %v2232 = vadd.f32 %v1145, %v2231
        %2233 = vmatmul.f32.gmra.mxu0 %v321
        %v2234 = vpop.f32.mrf.mxu0
        %v2235 = vadd.f32 %v1145, %v2234
        %2236 = vmatmul.f32.gmra.mxu0 %v325
        %v2237 = vpop.f32.mrf.mxu0
        %v2238 = vadd.f32 %v1145, %v2237
        %2239 = vmatmul.f32.gmra.mxu0 %v329
        %v2240 = vpop.f32.mrf.mxu0
        %v2241 = vadd.f32 %v1145, %v2240
        %2242 = vmatmul.f32.gmra.mxu0 %v333
        %v2243 = vpop.f32.mrf.mxu0
        %v2244 = vadd.f32 %v1145, %v2243
        %2245 = vmatmul.f32.gmra.mxu0 %v337
        %v2246 = vpop.f32.mrf.mxu0
        %v2247 = vadd.f32 %v1145, %v2246
        %2248 = vmatmul.f32.gmra.mxu0 %v341
        %v2249 = vpop.f32.mrf.mxu0
        %v2250 = vadd.f32 %v1145, %v2249
        %2251 = vmatmul.f32.gmra.mxu0 %v345
        %v2252 = vpop.f32.mrf.mxu0
        %v2253 = vadd.f32 %v1145, %v2252
        %2254 = vmatmul.f32.gmra.mxu0 %v349
        %v2255 = vpop.f32.mrf.mxu0
        %v2256 = vadd.f32 %v1145, %v2255
        %2257 = vmatmul.f32.gmra.mxu0 %v353
        %v2258 = vpop.f32.mrf.mxu0
        %v2259 = vadd.f32 %v1145, %v2258
        %2260 = vmatmul.f32.gmra.mxu0 %v357
        %v2261 = vpop.f32.mrf.mxu0
        %v2262 = vadd.f32 %v1145, %v2261
        %2263 = vmatmul.f32.gmra.mxu0 %v361
        %v2264 = vpop.f32.mrf.mxu0
        %v2265 = vadd.f32 %v1145, %v2264
        %2266 = vmatmul.f32.gmra.mxu0 %v365
        %v2267 = vpop.f32.mrf.mxu0
        %v2268 = vadd.f32 %v1145, %v2267
        %2269 = vdwg.mxu0
        %2270 = vmatpush.msra.mxu0 %v745
        %2271 = vmatpush.msra.mxu0 %v733
        %2272 = vmatpush.msra.mxu0 %v721
        %2273 = vmatpush.msra.mxu0 %v709
        %2274 = vmatpush.msra.mxu0 %v697
        %2275 = vmatpush.msra.mxu0 %v685
        %2276 = vmatpush.msra.mxu0 %v673
        %2277 = vmatpush.msra.mxu0 %v661
        %2278 = vmatpush.msra.mxu0 %v649
        %2279 = vmatpush.msra.mxu0 %v637
        %2280 = vmatpush.msra.mxu0 %v625
        %2281 = vmatpush.msra.mxu0 %v613
        %2282 = vmatpush.msra.mxu0 %v601
        %2283 = vmatpush.msra.mxu0 %v589
        %2284 = vmatpush.msra.mxu0 %v577
        %2285 = vmatpush.msra.mxu0 %v565
        %2286 = vmatmul.f32.gmra.mxu0 %v306
        %v2287 = vpop.f32.mrf.mxu0
        %v2288 = vadd.f32 %v2223, %v2287
        %2289 = vmatmul.f32.gmra.mxu0 %v310
        %v2290 = vpop.f32.mrf.mxu0
        %v2291 = vadd.f32 %v2226, %v2290
        %2292 = vmatmul.f32.gmra.mxu0 %v314
        %v2293 = vpop.f32.mrf.mxu0
        %v2294 = vadd.f32 %v2229, %v2293
        %2295 = vmatmul.f32.gmra.mxu0 %v318
        %v2296 = vpop.f32.mrf.mxu0
        %v2297 = vadd.f32 %v2232, %v2296
        %2298 = vmatmul.f32.gmra.mxu0 %v322
        %v2299 = vpop.f32.mrf.mxu0
        %v2300 = vadd.f32 %v2235, %v2299
        %2301 = vmatmul.f32.gmra.mxu0 %v326
        %v2302 = vpop.f32.mrf.mxu0
        %v2303 = vadd.f32 %v2238, %v2302
        %2304 = vmatmul.f32.gmra.mxu0 %v330
        %v2305 = vpop.f32.mrf.mxu0
        %v2306 = vadd.f32 %v2241, %v2305
        %2307 = vmatmul.f32.gmra.mxu0 %v334
        %v2308 = vpop.f32.mrf.mxu0
        %v2309 = vadd.f32 %v2244, %v2308
        %2310 = vmatmul.f32.gmra.mxu0 %v338
        %v2311 = vpop.f32.mrf.mxu0
        %v2312 = vadd.f32 %v2247, %v2311
        %2313 = vmatmul.f32.gmra.mxu0 %v342
        %v2314 = vpop.f32.mrf.mxu0
        %v2315 = vadd.f32 %v2250, %v2314
        %2316 = vmatmul.f32.gmra.mxu0 %v346
        %v2317 = vpop.f32.mrf.mxu0
        %v2318 = vadd.f32 %v2253, %v2317
        %2319 = vmatmul.f32.gmra.mxu0 %v350
        %v2320 = vpop.f32.mrf.mxu0
        %v2321 = vadd.f32 %v2256, %v2320
        %2322 = vmatmul.f32.gmra.mxu0 %v354
        %v2323 = vpop.f32.mrf.mxu0
        %v2324 = vadd.f32 %v2259, %v2323
        %2325 = vmatmul.f32.gmra.mxu0 %v358
        %v2326 = vpop.f32.mrf.mxu0
        %v2327 = vadd.f32 %v2262, %v2326
        %2328 = vmatmul.f32.gmra.mxu0 %v362
        %v2329 = vpop.f32.mrf.mxu0
        %v2330 = vadd.f32 %v2265, %v2329
        %2331 = vmatmul.f32.gmra.mxu0 %v366
        %v2332 = vpop.f32.mrf.mxu0
        %v2333 = vadd.f32 %v2268, %v2332
        %2334 = vdwg.mxu0
        %2335 = vmatpush.msra.mxu0 %v937
        %2336 = vmatpush.msra.mxu0 %v925
        %2337 = vmatpush.msra.mxu0 %v913
        %2338 = vmatpush.msra.mxu0 %v901
        %2339 = vmatpush.msra.mxu0 %v889
        %2340 = vmatpush.msra.mxu0 %v877
        %2341 = vmatpush.msra.mxu0 %v865
        %2342 = vmatpush.msra.mxu0 %v853
        %2343 = vmatpush.msra.mxu0 %v841
        %2344 = vmatpush.msra.mxu0 %v829
        %2345 = vmatpush.msra.mxu0 %v817
        %2346 = vmatpush.msra.mxu0 %v805
        %2347 = vmatpush.msra.mxu0 %v793
        %2348 = vmatpush.msra.mxu0 %v781
        %2349 = vmatpush.msra.mxu0 %v769
        %2350 = vmatpush.msra.mxu0 %v757
        %2351 = vmatmul.f32.gmra.mxu0 %v307
        %v2352 = vpop.f32.mrf.mxu0
        %v2353 = vadd.f32 %v2288, %v2352
        %2354 = vmatmul.f32.gmra.mxu0 %v311
        %v2355 = vpop.f32.mrf.mxu0
        %v2356 = vadd.f32 %v2291, %v2355
        %2357 = vmatmul.f32.gmra.mxu0 %v315
        %v2358 = vpop.f32.mrf.mxu0
        %v2359 = vadd.f32 %v2294, %v2358
        %2360 = vmatmul.f32.gmra.mxu0 %v319
        %v2361 = vpop.f32.mrf.mxu0
        %v2362 = vadd.f32 %v2297, %v2361
        %2363 = vmatmul.f32.gmra.mxu0 %v323
        %v2364 = vpop.f32.mrf.mxu0
        %v2365 = vadd.f32 %v2300, %v2364
        %2366 = vmatmul.f32.gmra.mxu0 %v327
        %v2367 = vpop.f32.mrf.mxu0
        %v2368 = vadd.f32 %v2303, %v2367
        %2369 = vmatmul.f32.gmra.mxu0 %v331
        %v2370 = vpop.f32.mrf.mxu0
        %v2371 = vadd.f32 %v2306, %v2370
        %2372 = vmatmul.f32.gmra.mxu0 %v335
        %v2373 = vpop.f32.mrf.mxu0
        %v2374 = vadd.f32 %v2309, %v2373
        %2375 = vmatmul.f32.gmra.mxu0 %v339
        %v2376 = vpop.f32.mrf.mxu0
        %v2377 = vadd.f32 %v2312, %v2376
        %2378 = vmatmul.f32.gmra.mxu0 %v343
        %v2379 = vpop.f32.mrf.mxu0
        %v2380 = vadd.f32 %v2315, %v2379
        %2381 = vmatmul.f32.gmra.mxu0 %v347
        %v2382 = vpop.f32.mrf.mxu0
        %v2383 = vadd.f32 %v2318, %v2382
        %2384 = vmatmul.f32.gmra.mxu0 %v351
        %v2385 = vpop.f32.mrf.mxu0
        %v2386 = vadd.f32 %v2321, %v2385
        %2387 = vmatmul.f32.gmra.mxu0 %v355
        %v2388 = vpop.f32.mrf.mxu0
        %v2389 = vadd.f32 %v2324, %v2388
        %2390 = vmatmul.f32.gmra.mxu0 %v359
        %v2391 = vpop.f32.mrf.mxu0
        %v2392 = vadd.f32 %v2327, %v2391
        %2393 = vmatmul.f32.gmra.mxu0 %v363
        %v2394 = vpop.f32.mrf.mxu0
        %v2395 = vadd.f32 %v2330, %v2394
        %2396 = vmatmul.f32.gmra.mxu0 %v367
        %v2397 = vpop.f32.mrf.mxu0
        %v2398 = vadd.f32 %v2333, %v2397
        %2399 = vdwg.mxu0
        %2400 = vmatpush.msra.mxu0 %v1129
        %2401 = vmatpush.msra.mxu0 %v1117
        %2402 = vmatpush.msra.mxu0 %v1105
        %2403 = vmatpush.msra.mxu0 %v1093
        %2404 = vmatpush.msra.mxu0 %v1081
        %2405 = vmatpush.msra.mxu0 %v1069
        %2406 = vmatpush.msra.mxu0 %v1057
        %2407 = vmatpush.msra.mxu0 %v1045
        %2408 = vmatpush.msra.mxu0 %v1033
        %2409 = vmatpush.msra.mxu0 %v1021
        %2410 = vmatpush.msra.mxu0 %v1009
        %2411 = vmatpush.msra.mxu0 %v997
        %2412 = vmatpush.msra.mxu0 %v985
        %2413 = vmatpush.msra.mxu0 %v973
        %2414 = vmatpush.msra.mxu0 %v961
        %2415 = vmatpush.msra.mxu0 %v949
        %2416 = vmatmul.f32.gmra.mxu0 %v308
        %v2417 = vpop.f32.mrf.mxu0
        %v2418 = vadd.f32 %v2353, %v2417
        %2419 = vmatmul.f32.gmra.mxu0 %v312
        %v2420 = vpop.f32.mrf.mxu0
        %v2421 = vadd.f32 %v2356, %v2420
        %2422 = vmatmul.f32.gmra.mxu0 %v316
        %v2423 = vpop.f32.mrf.mxu0
        %v2424 = vadd.f32 %v2359, %v2423
        %2425 = vmatmul.f32.gmra.mxu0 %v320
        %v2426 = vpop.f32.mrf.mxu0
        %v2427 = vadd.f32 %v2362, %v2426
        %2428 = vmatmul.f32.gmra.mxu0 %v324
        %v2429 = vpop.f32.mrf.mxu0
        %v2430 = vadd.f32 %v2365, %v2429
        %2431 = vmatmul.f32.gmra.mxu0 %v328
        %v2432 = vpop.f32.mrf.mxu0
        %v2433 = vadd.f32 %v2368, %v2432
        %2434 = vmatmul.f32.gmra.mxu0 %v332
        %v2435 = vpop.f32.mrf.mxu0
        %v2436 = vadd.f32 %v2371, %v2435
        %2437 = vmatmul.f32.gmra.mxu0 %v336
        %v2438 = vpop.f32.mrf.mxu0
        %v2439 = vadd.f32 %v2374, %v2438
        %2440 = vmatmul.f32.gmra.mxu0 %v340
        %v2441 = vpop.f32.mrf.mxu0
        %v2442 = vadd.f32 %v2377, %v2441
        %2443 = vmatmul.f32.gmra.mxu0 %v344
        %v2444 = vpop.f32.mrf.mxu0
        %v2445 = vadd.f32 %v2380, %v2444
        %2446 = vmatmul.f32.gmra.mxu0 %v348
        %v2447 = vpop.f32.mrf.mxu0
        %v2448 = vadd.f32 %v2383, %v2447
        %2449 = vmatmul.f32.gmra.mxu0 %v352
        %v2450 = vpop.f32.mrf.mxu0
        %v2451 = vadd.f32 %v2386, %v2450
        %2452 = vmatmul.f32.gmra.mxu0 %v356
        %v2453 = vpop.f32.mrf.mxu0
        %v2454 = vadd.f32 %v2389, %v2453
        %2455 = vmatmul.f32.gmra.mxu0 %v360
        %v2456 = vpop.f32.mrf.mxu0
        %v2457 = vadd.f32 %v2392, %v2456
        %2458 = vmatmul.f32.gmra.mxu0 %v364
        %v2459 = vpop.f32.mrf.mxu0
        %v2460 = vadd.f32 %v2395, %v2459
        %2461 = vmatmul.f32.gmra.mxu0 %v368
        %v2462 = vpop.f32.mrf.mxu0
        %v2463 = vadd.f32 %v2398, %v2462
        %2464 = vdwg.mxu0
        %2465 = vmatpush.msra.mxu0 %v554
        %2466 = vmatpush.msra.mxu0 %v542
        %2467 = vmatpush.msra.mxu0 %v530
        %2468 = vmatpush.msra.mxu0 %v518
        %2469 = vmatpush.msra.mxu0 %v506
        %2470 = vmatpush.msra.mxu0 %v494
        %2471 = vmatpush.msra.mxu0 %v482
        %2472 = vmatpush.msra.mxu0 %v470
        %2473 = vmatpush.msra.mxu0 %v458
        %2474 = vmatpush.msra.mxu0 %v446
        %2475 = vmatpush.msra.mxu0 %v434
        %2476 = vmatpush.msra.mxu0 %v422
        %2477 = vmatpush.msra.mxu0 %v410
        %2478 = vmatpush.msra.mxu0 %v398
        %2479 = vmatpush.msra.mxu0 %v386
        %2480 = vmatpush.msra.mxu0 %v374
        %2481 = vmatmul.f32.gmra.mxu0 %v305
        %v2482 = vpop.f32.mrf.mxu0
        %v2483 = vadd.f32 %v1146, %v2482
        %2484 = vmatmul.f32.gmra.mxu0 %v309
        %v2485 = vpop.f32.mrf.mxu0
        %v2486 = vadd.f32 %v1146, %v2485
        %2487 = vmatmul.f32.gmra.mxu0 %v313
        %v2488 = vpop.f32.mrf.mxu0
        %v2489 = vadd.f32 %v1146, %v2488
        %2490 = vmatmul.f32.gmra.mxu0 %v317
        %v2491 = vpop.f32.mrf.mxu0
        %v2492 = vadd.f32 %v1146, %v2491
        %2493 = vmatmul.f32.gmra.mxu0 %v321
        %v2494 = vpop.f32.mrf.mxu0
        %v2495 = vadd.f32 %v1146, %v2494
        %2496 = vmatmul.f32.gmra.mxu0 %v325
        %v2497 = vpop.f32.mrf.mxu0
        %v2498 = vadd.f32 %v1146, %v2497
        %2499 = vmatmul.f32.gmra.mxu0 %v329
        %v2500 = vpop.f32.mrf.mxu0
        %v2501 = vadd.f32 %v1146, %v2500
        %2502 = vmatmul.f32.gmra.mxu0 %v333
        %v2503 = vpop.f32.mrf.mxu0
        %v2504 = vadd.f32 %v1146, %v2503
        %2505 = vmatmul.f32.gmra.mxu0 %v337
        %v2506 = vpop.f32.mrf.mxu0
        %v2507 = vadd.f32 %v1146, %v2506
        %2508 = vmatmul.f32.gmra.mxu0 %v341
        %v2509 = vpop.f32.mrf.mxu0
        %v2510 = vadd.f32 %v1146, %v2509
        %2511 = vmatmul.f32.gmra.mxu0 %v345
        %v2512 = vpop.f32.mrf.mxu0
        %v2513 = vadd.f32 %v1146, %v2512
        %2514 = vmatmul.f32.gmra.mxu0 %v349
        %v2515 = vpop.f32.mrf.mxu0
        %v2516 = vadd.f32 %v1146, %v2515
        %2517 = vmatmul.f32.gmra.mxu0 %v353
        %v2518 = vpop.f32.mrf.mxu0
        %v2519 = vadd.f32 %v1146, %v2518
        %2520 = vmatmul.f32.gmra.mxu0 %v357
        %v2521 = vpop.f32.mrf.mxu0
        %v2522 = vadd.f32 %v1146, %v2521
        %2523 = vmatmul.f32.gmra.mxu0 %v361
        %v2524 = vpop.f32.mrf.mxu0
        %v2525 = vadd.f32 %v1146, %v2524
        %2526 = vmatmul.f32.gmra.mxu0 %v365
        %v2527 = vpop.f32.mrf.mxu0
        %v2528 = vadd.f32 %v1146, %v2527
        %2529 = vdwg.mxu0
        %2530 = vmatpush.msra.mxu0 %v746
        %2531 = vmatpush.msra.mxu0 %v734
        %2532 = vmatpush.msra.mxu0 %v722
        %2533 = vmatpush.msra.mxu0 %v710
        %2534 = vmatpush.msra.mxu0 %v698
        %2535 = vmatpush.msra.mxu0 %v686
        %2536 = vmatpush.msra.mxu0 %v674
        %2537 = vmatpush.msra.mxu0 %v662
        %2538 = vmatpush.msra.mxu0 %v650
        %2539 = vmatpush.msra.mxu0 %v638
        %2540 = vmatpush.msra.mxu0 %v626
        %2541 = vmatpush.msra.mxu0 %v614
        %2542 = vmatpush.msra.mxu0 %v602
        %2543 = vmatpush.msra.mxu0 %v590
        %2544 = vmatpush.msra.mxu0 %v578
        %2545 = vmatpush.msra.mxu0 %v566
        %2546 = vmatmul.f32.gmra.mxu0 %v306
        %v2547 = vpop.f32.mrf.mxu0
        %v2548 = vadd.f32 %v2483, %v2547
        %2549 = vmatmul.f32.gmra.mxu0 %v310
        %v2550 = vpop.f32.mrf.mxu0
        %v2551 = vadd.f32 %v2486, %v2550
        %2552 = vmatmul.f32.gmra.mxu0 %v314
        %v2553 = vpop.f32.mrf.mxu0
        %v2554 = vadd.f32 %v2489, %v2553
        %2555 = vmatmul.f32.gmra.mxu0 %v318
        %v2556 = vpop.f32.mrf.mxu0
        %v2557 = vadd.f32 %v2492, %v2556
        %2558 = vmatmul.f32.gmra.mxu0 %v322
        %v2559 = vpop.f32.mrf.mxu0
        %v2560 = vadd.f32 %v2495, %v2559
        %2561 = vmatmul.f32.gmra.mxu0 %v326
        %v2562 = vpop.f32.mrf.mxu0
        %v2563 = vadd.f32 %v2498, %v2562
        %2564 = vmatmul.f32.gmra.mxu0 %v330
        %v2565 = vpop.f32.mrf.mxu0
        %v2566 = vadd.f32 %v2501, %v2565
        %2567 = vmatmul.f32.gmra.mxu0 %v334
        %v2568 = vpop.f32.mrf.mxu0
        %v2569 = vadd.f32 %v2504, %v2568
        %2570 = vmatmul.f32.gmra.mxu0 %v338
        %v2571 = vpop.f32.mrf.mxu0
        %v2572 = vadd.f32 %v2507, %v2571
        %2573 = vmatmul.f32.gmra.mxu0 %v342
        %v2574 = vpop.f32.mrf.mxu0
        %v2575 = vadd.f32 %v2510, %v2574
        %2576 = vmatmul.f32.gmra.mxu0 %v346
        %v2577 = vpop.f32.mrf.mxu0
        %v2578 = vadd.f32 %v2513, %v2577
        %2579 = vmatmul.f32.gmra.mxu0 %v350
        %v2580 = vpop.f32.mrf.mxu0
        %v2581 = vadd.f32 %v2516, %v2580
        %2582 = vmatmul.f32.gmra.mxu0 %v354
        %v2583 = vpop.f32.mrf.mxu0
        %v2584 = vadd.f32 %v2519, %v2583
        %2585 = vmatmul.f32.gmra.mxu0 %v358
        %v2586 = vpop.f32.mrf.mxu0
        %v2587 = vadd.f32 %v2522, %v2586
        %2588 = vmatmul.f32.gmra.mxu0 %v362
        %v2589 = vpop.f32.mrf.mxu0
        %v2590 = vadd.f32 %v2525, %v2589
        %2591 = vmatmul.f32.gmra.mxu0 %v366
        %v2592 = vpop.f32.mrf.mxu0
        %v2593 = vadd.f32 %v2528, %v2592
        %2594 = vdwg.mxu0
        %2595 = vmatpush.msra.mxu0 %v938
        %2596 = vmatpush.msra.mxu0 %v926
        %2597 = vmatpush.msra.mxu0 %v914
        %2598 = vmatpush.msra.mxu0 %v902
        %2599 = vmatpush.msra.mxu0 %v890
        %2600 = vmatpush.msra.mxu0 %v878
        %2601 = vmatpush.msra.mxu0 %v866
        %2602 = vmatpush.msra.mxu0 %v854
        %2603 = vmatpush.msra.mxu0 %v842
        %2604 = vmatpush.msra.mxu0 %v830
        %2605 = vmatpush.msra.mxu0 %v818
        %2606 = vmatpush.msra.mxu0 %v806
        %2607 = vmatpush.msra.mxu0 %v794
        %2608 = vmatpush.msra.mxu0 %v782
        %2609 = vmatpush.msra.mxu0 %v770
        %2610 = vmatpush.msra.mxu0 %v758
        %2611 = vmatmul.f32.gmra.mxu0 %v307
        %v2612 = vpop.f32.mrf.mxu0
        %v2613 = vadd.f32 %v2548, %v2612
        %2614 = vmatmul.f32.gmra.mxu0 %v311
        %v2615 = vpop.f32.mrf.mxu0
        %v2616 = vadd.f32 %v2551, %v2615
        %2617 = vmatmul.f32.gmra.mxu0 %v315
        %v2618 = vpop.f32.mrf.mxu0
        %v2619 = vadd.f32 %v2554, %v2618
        %2620 = vmatmul.f32.gmra.mxu0 %v319
        %v2621 = vpop.f32.mrf.mxu0
        %v2622 = vadd.f32 %v2557, %v2621
        %2623 = vmatmul.f32.gmra.mxu0 %v323
        %v2624 = vpop.f32.mrf.mxu0
        %v2625 = vadd.f32 %v2560, %v2624
        %2626 = vmatmul.f32.gmra.mxu0 %v327
        %v2627 = vpop.f32.mrf.mxu0
        %v2628 = vadd.f32 %v2563, %v2627
        %2629 = vmatmul.f32.gmra.mxu0 %v331
        %v2630 = vpop.f32.mrf.mxu0
        %v2631 = vadd.f32 %v2566, %v2630
        %2632 = vmatmul.f32.gmra.mxu0 %v335
        %v2633 = vpop.f32.mrf.mxu0
        %v2634 = vadd.f32 %v2569, %v2633
        %2635 = vmatmul.f32.gmra.mxu0 %v339
        %v2636 = vpop.f32.mrf.mxu0
        %v2637 = vadd.f32 %v2572, %v2636
        %2638 = vmatmul.f32.gmra.mxu0 %v343
        %v2639 = vpop.f32.mrf.mxu0
        %v2640 = vadd.f32 %v2575, %v2639
        %2641 = vmatmul.f32.gmra.mxu0 %v347
        %v2642 = vpop.f32.mrf.mxu0
        %v2643 = vadd.f32 %v2578, %v2642
        %2644 = vmatmul.f32.gmra.mxu0 %v351
        %v2645 = vpop.f32.mrf.mxu0
        %v2646 = vadd.f32 %v2581, %v2645
        %2647 = vmatmul.f32.gmra.mxu0 %v355
        %v2648 = vpop.f32.mrf.mxu0
        %v2649 = vadd.f32 %v2584, %v2648
        %2650 = vmatmul.f32.gmra.mxu0 %v359
        %v2651 = vpop.f32.mrf.mxu0
        %v2652 = vadd.f32 %v2587, %v2651
        %2653 = vmatmul.f32.gmra.mxu0 %v363
        %v2654 = vpop.f32.mrf.mxu0
        %v2655 = vadd.f32 %v2590, %v2654
        %2656 = vmatmul.f32.gmra.mxu0 %v367
        %v2657 = vpop.f32.mrf.mxu0
        %v2658 = vadd.f32 %v2593, %v2657
        %2659 = vdwg.mxu0
        %2660 = vmatpush.msra.mxu0 %v1130
        %2661 = vmatpush.msra.mxu0 %v1118
        %2662 = vmatpush.msra.mxu0 %v1106
        %2663 = vmatpush.msra.mxu0 %v1094
        %2664 = vmatpush.msra.mxu0 %v1082
        %2665 = vmatpush.msra.mxu0 %v1070
        %2666 = vmatpush.msra.mxu0 %v1058
        %2667 = vmatpush.msra.mxu0 %v1046
        %2668 = vmatpush.msra.mxu0 %v1034
        %2669 = vmatpush.msra.mxu0 %v1022
        %2670 = vmatpush.msra.mxu0 %v1010
        %2671 = vmatpush.msra.mxu0 %v998
        %2672 = vmatpush.msra.mxu0 %v986
        %2673 = vmatpush.msra.mxu0 %v974
        %2674 = vmatpush.msra.mxu0 %v962
        %2675 = vmatpush.msra.mxu0 %v950
        %2676 = vmatmul.f32.gmra.mxu0 %v308
        %v2677 = vpop.f32.mrf.mxu0
        %v2678 = vadd.f32 %v2613, %v2677
        %2679 = vmatmul.f32.gmra.mxu0 %v312
        %v2680 = vpop.f32.mrf.mxu0
        %v2681 = vadd.f32 %v2616, %v2680
        %2682 = vmatmul.f32.gmra.mxu0 %v316
        %v2683 = vpop.f32.mrf.mxu0
        %v2684 = vadd.f32 %v2619, %v2683
        %2685 = vmatmul.f32.gmra.mxu0 %v320
        %v2686 = vpop.f32.mrf.mxu0
        %v2687 = vadd.f32 %v2622, %v2686
        %2688 = vmatmul.f32.gmra.mxu0 %v324
        %v2689 = vpop.f32.mrf.mxu0
        %v2690 = vadd.f32 %v2625, %v2689
        %2691 = vmatmul.f32.gmra.mxu0 %v328
        %v2692 = vpop.f32.mrf.mxu0
        %v2693 = vadd.f32 %v2628, %v2692
        %2694 = vmatmul.f32.gmra.mxu0 %v332
        %v2695 = vpop.f32.mrf.mxu0
        %v2696 = vadd.f32 %v2631, %v2695
        %2697 = vmatmul.f32.gmra.mxu0 %v336
        %v2698 = vpop.f32.mrf.mxu0
        %v2699 = vadd.f32 %v2634, %v2698
        %2700 = vmatmul.f32.gmra.mxu0 %v340
        %v2701 = vpop.f32.mrf.mxu0
        %v2702 = vadd.f32 %v2637, %v2701
        %2703 = vmatmul.f32.gmra.mxu0 %v344
        %v2704 = vpop.f32.mrf.mxu0
        %v2705 = vadd.f32 %v2640, %v2704
        %2706 = vmatmul.f32.gmra.mxu0 %v348
        %v2707 = vpop.f32.mrf.mxu0
        %v2708 = vadd.f32 %v2643, %v2707
        %2709 = vmatmul.f32.gmra.mxu0 %v352
        %v2710 = vpop.f32.mrf.mxu0
        %v2711 = vadd.f32 %v2646, %v2710
        %2712 = vmatmul.f32.gmra.mxu0 %v356
        %v2713 = vpop.f32.mrf.mxu0
        %v2714 = vadd.f32 %v2649, %v2713
        %2715 = vmatmul.f32.gmra.mxu0 %v360
        %v2716 = vpop.f32.mrf.mxu0
        %v2717 = vadd.f32 %v2652, %v2716
        %2718 = vmatmul.f32.gmra.mxu0 %v364
        %v2719 = vpop.f32.mrf.mxu0
        %v2720 = vadd.f32 %v2655, %v2719
        %2721 = vmatmul.f32.gmra.mxu0 %v368
        %v2722 = vpop.f32.mrf.mxu0
        %v2723 = vadd.f32 %v2658, %v2722
        %2724 = vdwg.mxu0
        %2725 = vmatpush.msra.mxu0 %v555
        %2726 = vmatpush.msra.mxu0 %v543
        %2727 = vmatpush.msra.mxu0 %v531
        %2728 = vmatpush.msra.mxu0 %v519
        %2729 = vmatpush.msra.mxu0 %v507
        %2730 = vmatpush.msra.mxu0 %v495
        %2731 = vmatpush.msra.mxu0 %v483
        %2732 = vmatpush.msra.mxu0 %v471
        %2733 = vmatpush.msra.mxu0 %v459
        %2734 = vmatpush.msra.mxu0 %v447
        %2735 = vmatpush.msra.mxu0 %v435
        %2736 = vmatpush.msra.mxu0 %v423
        %2737 = vmatpush.msra.mxu0 %v411
        %2738 = vmatpush.msra.mxu0 %v399
        %2739 = vmatpush.msra.mxu0 %v387
        %2740 = vmatpush.msra.mxu0 %v375
        %2741 = vmatmul.f32.gmra.mxu0 %v305
        %v2742 = vpop.f32.mrf.mxu0
        %v2743 = vadd.f32 %v1147, %v2742
        %2744 = vmatmul.f32.gmra.mxu0 %v309
        %v2745 = vpop.f32.mrf.mxu0
        %v2746 = vadd.f32 %v1147, %v2745
        %2747 = vmatmul.f32.gmra.mxu0 %v313
        %v2748 = vpop.f32.mrf.mxu0
        %v2749 = vadd.f32 %v1147, %v2748
        %2750 = vmatmul.f32.gmra.mxu0 %v317
        %v2751 = vpop.f32.mrf.mxu0
        %v2752 = vadd.f32 %v1147, %v2751
        %2753 = vmatmul.f32.gmra.mxu0 %v321
        %v2754 = vpop.f32.mrf.mxu0
        %v2755 = vadd.f32 %v1147, %v2754
        %2756 = vmatmul.f32.gmra.mxu0 %v325
        %v2757 = vpop.f32.mrf.mxu0
        %v2758 = vadd.f32 %v1147, %v2757
        %2759 = vmatmul.f32.gmra.mxu0 %v329
        %v2760 = vpop.f32.mrf.mxu0
        %v2761 = vadd.f32 %v1147, %v2760
        %2762 = vmatmul.f32.gmra.mxu0 %v333
        %v2763 = vpop.f32.mrf.mxu0
        %v2764 = vadd.f32 %v1147, %v2763
        %2765 = vmatmul.f32.gmra.mxu0 %v337
        %v2766 = vpop.f32.mrf.mxu0
        %v2767 = vadd.f32 %v1147, %v2766
        %2768 = vmatmul.f32.gmra.mxu0 %v341
        %v2769 = vpop.f32.mrf.mxu0
        %v2770 = vadd.f32 %v1147, %v2769
        %2771 = vmatmul.f32.gmra.mxu0 %v345
        %v2772 = vpop.f32.mrf.mxu0
        %v2773 = vadd.f32 %v1147, %v2772
        %2774 = vmatmul.f32.gmra.mxu0 %v349
        %v2775 = vpop.f32.mrf.mxu0
        %v2776 = vadd.f32 %v1147, %v2775
        %2777 = vmatmul.f32.gmra.mxu0 %v353
        %v2778 = vpop.f32.mrf.mxu0
        %v2779 = vadd.f32 %v1147, %v2778
        %2780 = vmatmul.f32.gmra.mxu0 %v357
        %v2781 = vpop.f32.mrf.mxu0
        %v2782 = vadd.f32 %v1147, %v2781
        %2783 = vmatmul.f32.gmra.mxu0 %v361
        %v2784 = vpop.f32.mrf.mxu0
        %v2785 = vadd.f32 %v1147, %v2784
        %2786 = vmatmul.f32.gmra.mxu0 %v365
        %v2787 = vpop.f32.mrf.mxu0
        %v2788 = vadd.f32 %v1147, %v2787
        %2789 = vdwg.mxu0
        %2790 = vmatpush.msra.mxu0 %v747
        %2791 = vmatpush.msra.mxu0 %v735
        %2792 = vmatpush.msra.mxu0 %v723
        %2793 = vmatpush.msra.mxu0 %v711
        %2794 = vmatpush.msra.mxu0 %v699
        %2795 = vmatpush.msra.mxu0 %v687
        %2796 = vmatpush.msra.mxu0 %v675
        %2797 = vmatpush.msra.mxu0 %v663
        %2798 = vmatpush.msra.mxu0 %v651
        %2799 = vmatpush.msra.mxu0 %v639
        %2800 = vmatpush.msra.mxu0 %v627
        %2801 = vmatpush.msra.mxu0 %v615
        %2802 = vmatpush.msra.mxu0 %v603
        %2803 = vmatpush.msra.mxu0 %v591
        %2804 = vmatpush.msra.mxu0 %v579
        %2805 = vmatpush.msra.mxu0 %v567
        %2806 = vmatmul.f32.gmra.mxu0 %v306
        %v2807 = vpop.f32.mrf.mxu0
        %v2808 = vadd.f32 %v2743, %v2807
        %2809 = vmatmul.f32.gmra.mxu0 %v310
        %v2810 = vpop.f32.mrf.mxu0
        %v2811 = vadd.f32 %v2746, %v2810
        %2812 = vmatmul.f32.gmra.mxu0 %v314
        %v2813 = vpop.f32.mrf.mxu0
        %v2814 = vadd.f32 %v2749, %v2813
        %2815 = vmatmul.f32.gmra.mxu0 %v318
        %v2816 = vpop.f32.mrf.mxu0
        %v2817 = vadd.f32 %v2752, %v2816
        %2818 = vmatmul.f32.gmra.mxu0 %v322
        %v2819 = vpop.f32.mrf.mxu0
        %v2820 = vadd.f32 %v2755, %v2819
        %2821 = vmatmul.f32.gmra.mxu0 %v326
        %v2822 = vpop.f32.mrf.mxu0
        %v2823 = vadd.f32 %v2758, %v2822
        %2824 = vmatmul.f32.gmra.mxu0 %v330
        %v2825 = vpop.f32.mrf.mxu0
        %v2826 = vadd.f32 %v2761, %v2825
        %2827 = vmatmul.f32.gmra.mxu0 %v334
        %v2828 = vpop.f32.mrf.mxu0
        %v2829 = vadd.f32 %v2764, %v2828
        %2830 = vmatmul.f32.gmra.mxu0 %v338
        %v2831 = vpop.f32.mrf.mxu0
        %v2832 = vadd.f32 %v2767, %v2831
        %2833 = vmatmul.f32.gmra.mxu0 %v342
        %v2834 = vpop.f32.mrf.mxu0
        %v2835 = vadd.f32 %v2770, %v2834
        %2836 = vmatmul.f32.gmra.mxu0 %v346
        %v2837 = vpop.f32.mrf.mxu0
        %v2838 = vadd.f32 %v2773, %v2837
        %2839 = vmatmul.f32.gmra.mxu0 %v350
        %v2840 = vpop.f32.mrf.mxu0
        %v2841 = vadd.f32 %v2776, %v2840
        %2842 = vmatmul.f32.gmra.mxu0 %v354
        %v2843 = vpop.f32.mrf.mxu0
        %v2844 = vadd.f32 %v2779, %v2843
        %2845 = vmatmul.f32.gmra.mxu0 %v358
        %v2846 = vpop.f32.mrf.mxu0
        %v2847 = vadd.f32 %v2782, %v2846
        %2848 = vmatmul.f32.gmra.mxu0 %v362
        %v2849 = vpop.f32.mrf.mxu0
        %v2850 = vadd.f32 %v2785, %v2849
        %2851 = vmatmul.f32.gmra.mxu0 %v366
        %v2852 = vpop.f32.mrf.mxu0
        %v2853 = vadd.f32 %v2788, %v2852
        %2854 = vdwg.mxu0
        %2855 = vmatpush.msra.mxu0 %v939
        %2856 = vmatpush.msra.mxu0 %v927
        %2857 = vmatpush.msra.mxu0 %v915
        %2858 = vmatpush.msra.mxu0 %v903
        %2859 = vmatpush.msra.mxu0 %v891
        %2860 = vmatpush.msra.mxu0 %v879
        %2861 = vmatpush.msra.mxu0 %v867
        %2862 = vmatpush.msra.mxu0 %v855
        %2863 = vmatpush.msra.mxu0 %v843
        %2864 = vmatpush.msra.mxu0 %v831
        %2865 = vmatpush.msra.mxu0 %v819
        %2866 = vmatpush.msra.mxu0 %v807
        %2867 = vmatpush.msra.mxu0 %v795
        %2868 = vmatpush.msra.mxu0 %v783
        %2869 = vmatpush.msra.mxu0 %v771
        %2870 = vmatpush.msra.mxu0 %v759
        %2871 = vmatmul.f32.gmra.mxu0 %v307
        %v2872 = vpop.f32.mrf.mxu0
        %v2873 = vadd.f32 %v2808, %v2872
        %2874 = vmatmul.f32.gmra.mxu0 %v311
        %v2875 = vpop.f32.mrf.mxu0
        %v2876 = vadd.f32 %v2811, %v2875
        %2877 = vmatmul.f32.gmra.mxu0 %v315
        %v2878 = vpop.f32.mrf.mxu0
        %v2879 = vadd.f32 %v2814, %v2878
        %2880 = vmatmul.f32.gmra.mxu0 %v319
        %v2881 = vpop.f32.mrf.mxu0
        %v2882 = vadd.f32 %v2817, %v2881
        %2883 = vmatmul.f32.gmra.mxu0 %v323
        %v2884 = vpop.f32.mrf.mxu0
        %v2885 = vadd.f32 %v2820, %v2884
        %2886 = vmatmul.f32.gmra.mxu0 %v327
        %v2887 = vpop.f32.mrf.mxu0
        %v2888 = vadd.f32 %v2823, %v2887
        %2889 = vmatmul.f32.gmra.mxu0 %v331
        %v2890 = vpop.f32.mrf.mxu0
        %v2891 = vadd.f32 %v2826, %v2890
        %2892 = vmatmul.f32.gmra.mxu0 %v335
        %v2893 = vpop.f32.mrf.mxu0
        %v2894 = vadd.f32 %v2829, %v2893
        %2895 = vmatmul.f32.gmra.mxu0 %v339
        %v2896 = vpop.f32.mrf.mxu0
        %v2897 = vadd.f32 %v2832, %v2896
        %2898 = vmatmul.f32.gmra.mxu0 %v343
        %v2899 = vpop.f32.mrf.mxu0
        %v2900 = vadd.f32 %v2835, %v2899
        %2901 = vmatmul.f32.gmra.mxu0 %v347
        %v2902 = vpop.f32.mrf.mxu0
        %v2903 = vadd.f32 %v2838, %v2902
        %2904 = vmatmul.f32.gmra.mxu0 %v351
        %v2905 = vpop.f32.mrf.mxu0
        %v2906 = vadd.f32 %v2841, %v2905
        %2907 = vmatmul.f32.gmra.mxu0 %v355
        %v2908 = vpop.f32.mrf.mxu0
        %v2909 = vadd.f32 %v2844, %v2908
        %2910 = vmatmul.f32.gmra.mxu0 %v359
        %v2911 = vpop.f32.mrf.mxu0
        %v2912 = vadd.f32 %v2847, %v2911
        %2913 = vmatmul.f32.gmra.mxu0 %v363
        %v2914 = vpop.f32.mrf.mxu0
        %v2915 = vadd.f32 %v2850, %v2914
        %2916 = vmatmul.f32.gmra.mxu0 %v367
        %v2917 = vpop.f32.mrf.mxu0
        %v2918 = vadd.f32 %v2853, %v2917
        %2919 = vdwg.mxu0
        %2920 = vmatpush.msra.mxu0 %v1131
        %2921 = vmatpush.msra.mxu0 %v1119
        %2922 = vmatpush.msra.mxu0 %v1107
        %2923 = vmatpush.msra.mxu0 %v1095
        %2924 = vmatpush.msra.mxu0 %v1083
        %2925 = vmatpush.msra.mxu0 %v1071
        %2926 = vmatpush.msra.mxu0 %v1059
        %2927 = vmatpush.msra.mxu0 %v1047
        %2928 = vmatpush.msra.mxu0 %v1035
        %2929 = vmatpush.msra.mxu0 %v1023
        %2930 = vmatpush.msra.mxu0 %v1011
        %2931 = vmatpush.msra.mxu0 %v999
        %2932 = vmatpush.msra.mxu0 %v987
        %2933 = vmatpush.msra.mxu0 %v975
        %2934 = vmatpush.msra.mxu0 %v963
        %2935 = vmatpush.msra.mxu0 %v951
        %2936 = vmatmul.f32.gmra.mxu0 %v308
        %v2937 = vpop.f32.mrf.mxu0
        %v2938 = vadd.f32 %v2873, %v2937
        %2939 = vmatmul.f32.gmra.mxu0 %v312
        %v2940 = vpop.f32.mrf.mxu0
        %v2941 = vadd.f32 %v2876, %v2940
        %2942 = vmatmul.f32.gmra.mxu0 %v316
        %v2943 = vpop.f32.mrf.mxu0
        %v2944 = vadd.f32 %v2879, %v2943
        %2945 = vmatmul.f32.gmra.mxu0 %v320
        %v2946 = vpop.f32.mrf.mxu0
        %v2947 = vadd.f32 %v2882, %v2946
        %2948 = vmatmul.f32.gmra.mxu0 %v324
        %v2949 = vpop.f32.mrf.mxu0
        %v2950 = vadd.f32 %v2885, %v2949
        %2951 = vmatmul.f32.gmra.mxu0 %v328
        %v2952 = vpop.f32.mrf.mxu0
        %v2953 = vadd.f32 %v2888, %v2952
        %2954 = vmatmul.f32.gmra.mxu0 %v332
        %v2955 = vpop.f32.mrf.mxu0
        %v2956 = vadd.f32 %v2891, %v2955
        %2957 = vmatmul.f32.gmra.mxu0 %v336
        %v2958 = vpop.f32.mrf.mxu0
        %v2959 = vadd.f32 %v2894, %v2958
        %2960 = vmatmul.f32.gmra.mxu0 %v340
        %v2961 = vpop.f32.mrf.mxu0
        %v2962 = vadd.f32 %v2897, %v2961
        %2963 = vmatmul.f32.gmra.mxu0 %v344
        %v2964 = vpop.f32.mrf.mxu0
        %v2965 = vadd.f32 %v2900, %v2964
        %2966 = vmatmul.f32.gmra.mxu0 %v348
        %v2967 = vpop.f32.mrf.mxu0
        %v2968 = vadd.f32 %v2903, %v2967
        %2969 = vmatmul.f32.gmra.mxu0 %v352
        %v2970 = vpop.f32.mrf.mxu0
        %v2971 = vadd.f32 %v2906, %v2970
        %2972 = vmatmul.f32.gmra.mxu0 %v356
        %v2973 = vpop.f32.mrf.mxu0
        %v2974 = vadd.f32 %v2909, %v2973
        %2975 = vmatmul.f32.gmra.mxu0 %v360
        %v2976 = vpop.f32.mrf.mxu0
        %v2977 = vadd.f32 %v2912, %v2976
        %2978 = vmatmul.f32.gmra.mxu0 %v364
        %v2979 = vpop.f32.mrf.mxu0
        %v2980 = vadd.f32 %v2915, %v2979
        %2981 = vmatmul.f32.gmra.mxu0 %v368
        %v2982 = vpop.f32.mrf.mxu0
        %v2983 = vadd.f32 %v2918, %v2982
        %2984 = vdwg.mxu0
        %2985 = vmatpush.msra.mxu0 %v556
        %2986 = vmatpush.msra.mxu0 %v544
        %2987 = vmatpush.msra.mxu0 %v532
        %2988 = vmatpush.msra.mxu0 %v520
        %2989 = vmatpush.msra.mxu0 %v508
        %2990 = vmatpush.msra.mxu0 %v496
        %2991 = vmatpush.msra.mxu0 %v484
        %2992 = vmatpush.msra.mxu0 %v472
        %2993 = vmatpush.msra.mxu0 %v460
        %2994 = vmatpush.msra.mxu0 %v448
        %2995 = vmatpush.msra.mxu0 %v436
        %2996 = vmatpush.msra.mxu0 %v424
        %2997 = vmatpush.msra.mxu0 %v412
        %2998 = vmatpush.msra.mxu0 %v400
        %2999 = vmatpush.msra.mxu0 %v388
        %3000 = vmatpush.msra.mxu0 %v376
        %3001 = vmatmul.f32.gmra.mxu0 %v305
        %v3002 = vpop.f32.mrf.mxu0
        %v3003 = vadd.f32 %v1148, %v3002
        %3004 = vmatmul.f32.gmra.mxu0 %v309
        %v3005 = vpop.f32.mrf.mxu0
        %v3006 = vadd.f32 %v1148, %v3005
        %3007 = vmatmul.f32.gmra.mxu0 %v313
        %v3008 = vpop.f32.mrf.mxu0
        %v3009 = vadd.f32 %v1148, %v3008
        %3010 = vmatmul.f32.gmra.mxu0 %v317
        %v3011 = vpop.f32.mrf.mxu0
        %v3012 = vadd.f32 %v1148, %v3011
        %3013 = vmatmul.f32.gmra.mxu0 %v321
        %v3014 = vpop.f32.mrf.mxu0
        %v3015 = vadd.f32 %v1148, %v3014
        %3016 = vmatmul.f32.gmra.mxu0 %v325
        %v3017 = vpop.f32.mrf.mxu0
        %v3018 = vadd.f32 %v1148, %v3017
        %3019 = vmatmul.f32.gmra.mxu0 %v329
        %v3020 = vpop.f32.mrf.mxu0
        %v3021 = vadd.f32 %v1148, %v3020
        %3022 = vmatmul.f32.gmra.mxu0 %v333
        %v3023 = vpop.f32.mrf.mxu0
        %v3024 = vadd.f32 %v1148, %v3023
        %3025 = vmatmul.f32.gmra.mxu0 %v337
        %v3026 = vpop.f32.mrf.mxu0
        %v3027 = vadd.f32 %v1148, %v3026
        %3028 = vmatmul.f32.gmra.mxu0 %v341
        %v3029 = vpop.f32.mrf.mxu0
        %v3030 = vadd.f32 %v1148, %v3029
        %3031 = vmatmul.f32.gmra.mxu0 %v345
        %v3032 = vpop.f32.mrf.mxu0
        %v3033 = vadd.f32 %v1148, %v3032
        %3034 = vmatmul.f32.gmra.mxu0 %v349
        %v3035 = vpop.f32.mrf.mxu0
        %v3036 = vadd.f32 %v1148, %v3035
        %3037 = vmatmul.f32.gmra.mxu0 %v353
        %v3038 = vpop.f32.mrf.mxu0
        %v3039 = vadd.f32 %v1148, %v3038
        %3040 = vmatmul.f32.gmra.mxu0 %v357
        %v3041 = vpop.f32.mrf.mxu0
        %v3042 = vadd.f32 %v1148, %v3041
        %3043 = vmatmul.f32.gmra.mxu0 %v361
        %v3044 = vpop.f32.mrf.mxu0
        %v3045 = vadd.f32 %v1148, %v3044
        %3046 = vmatmul.f32.gmra.mxu0 %v365
        %v3047 = vpop.f32.mrf.mxu0
        %v3048 = vadd.f32 %v1148, %v3047
        %3049 = vdwg.mxu0
        %3050 = vmatpush.msra.mxu0 %v748
        %3051 = vmatpush.msra.mxu0 %v736
        %3052 = vmatpush.msra.mxu0 %v724
        %3053 = vmatpush.msra.mxu0 %v712
        %3054 = vmatpush.msra.mxu0 %v700
        %3055 = vmatpush.msra.mxu0 %v688
        %3056 = vmatpush.msra.mxu0 %v676
        %3057 = vmatpush.msra.mxu0 %v664
        %3058 = vmatpush.msra.mxu0 %v652
        %3059 = vmatpush.msra.mxu0 %v640
        %3060 = vmatpush.msra.mxu0 %v628
        %3061 = vmatpush.msra.mxu0 %v616
        %3062 = vmatpush.msra.mxu0 %v604
        %3063 = vmatpush.msra.mxu0 %v592
        %3064 = vmatpush.msra.mxu0 %v580
        %3065 = vmatpush.msra.mxu0 %v568
        %3066 = vmatmul.f32.gmra.mxu0 %v306
        %v3067 = vpop.f32.mrf.mxu0
        %v3068 = vadd.f32 %v3003, %v3067
        %3069 = vmatmul.f32.gmra.mxu0 %v310
        %v3070 = vpop.f32.mrf.mxu0
        %v3071 = vadd.f32 %v3006, %v3070
        %3072 = vmatmul.f32.gmra.mxu0 %v314
        %v3073 = vpop.f32.mrf.mxu0
        %v3074 = vadd.f32 %v3009, %v3073
        %3075 = vmatmul.f32.gmra.mxu0 %v318
        %v3076 = vpop.f32.mrf.mxu0
        %v3077 = vadd.f32 %v3012, %v3076
        %3078 = vmatmul.f32.gmra.mxu0 %v322
        %v3079 = vpop.f32.mrf.mxu0
        %v3080 = vadd.f32 %v3015, %v3079
        %3081 = vmatmul.f32.gmra.mxu0 %v326
        %v3082 = vpop.f32.mrf.mxu0
        %v3083 = vadd.f32 %v3018, %v3082
        %3084 = vmatmul.f32.gmra.mxu0 %v330
        %v3085 = vpop.f32.mrf.mxu0
        %v3086 = vadd.f32 %v3021, %v3085
        %3087 = vmatmul.f32.gmra.mxu0 %v334
        %v3088 = vpop.f32.mrf.mxu0
        %v3089 = vadd.f32 %v3024, %v3088
        %3090 = vmatmul.f32.gmra.mxu0 %v338
        %v3091 = vpop.f32.mrf.mxu0
        %v3092 = vadd.f32 %v3027, %v3091
        %3093 = vmatmul.f32.gmra.mxu0 %v342
        %v3094 = vpop.f32.mrf.mxu0
        %v3095 = vadd.f32 %v3030, %v3094
        %3096 = vmatmul.f32.gmra.mxu0 %v346
        %v3097 = vpop.f32.mrf.mxu0
        %v3098 = vadd.f32 %v3033, %v3097
        %3099 = vmatmul.f32.gmra.mxu0 %v350
        %v3100 = vpop.f32.mrf.mxu0
        %v3101 = vadd.f32 %v3036, %v3100
        %3102 = vmatmul.f32.gmra.mxu0 %v354
        %v3103 = vpop.f32.mrf.mxu0
        %v3104 = vadd.f32 %v3039, %v3103
        %3105 = vmatmul.f32.gmra.mxu0 %v358
        %v3106 = vpop.f32.mrf.mxu0
        %v3107 = vadd.f32 %v3042, %v3106
        %3108 = vmatmul.f32.gmra.mxu0 %v362
        %v3109 = vpop.f32.mrf.mxu0
        %v3110 = vadd.f32 %v3045, %v3109
        %3111 = vmatmul.f32.gmra.mxu0 %v366
        %v3112 = vpop.f32.mrf.mxu0
        %v3113 = vadd.f32 %v3048, %v3112
        %3114 = vdwg.mxu0
        %3115 = vmatpush.msra.mxu0 %v940
        %3116 = vmatpush.msra.mxu0 %v928
        %3117 = vmatpush.msra.mxu0 %v916
        %3118 = vmatpush.msra.mxu0 %v904
        %3119 = vmatpush.msra.mxu0 %v892
        %3120 = vmatpush.msra.mxu0 %v880
        %3121 = vmatpush.msra.mxu0 %v868
        %3122 = vmatpush.msra.mxu0 %v856
        %3123 = vmatpush.msra.mxu0 %v844
        %3124 = vmatpush.msra.mxu0 %v832
        %3125 = vmatpush.msra.mxu0 %v820
        %3126 = vmatpush.msra.mxu0 %v808
        %3127 = vmatpush.msra.mxu0 %v796
        %3128 = vmatpush.msra.mxu0 %v784
        %3129 = vmatpush.msra.mxu0 %v772
        %3130 = vmatpush.msra.mxu0 %v760
        %3131 = vmatmul.f32.gmra.mxu0 %v307
        %v3132 = vpop.f32.mrf.mxu0
        %v3133 = vadd.f32 %v3068, %v3132
        %3134 = vmatmul.f32.gmra.mxu0 %v311
        %v3135 = vpop.f32.mrf.mxu0
        %v3136 = vadd.f32 %v3071, %v3135
        %3137 = vmatmul.f32.gmra.mxu0 %v315
        %v3138 = vpop.f32.mrf.mxu0
        %v3139 = vadd.f32 %v3074, %v3138
        %3140 = vmatmul.f32.gmra.mxu0 %v319
        %v3141 = vpop.f32.mrf.mxu0
        %v3142 = vadd.f32 %v3077, %v3141
        %3143 = vmatmul.f32.gmra.mxu0 %v323
        %v3144 = vpop.f32.mrf.mxu0
        %v3145 = vadd.f32 %v3080, %v3144
        %3146 = vmatmul.f32.gmra.mxu0 %v327
        %v3147 = vpop.f32.mrf.mxu0
        %v3148 = vadd.f32 %v3083, %v3147
        %3149 = vmatmul.f32.gmra.mxu0 %v331
        %v3150 = vpop.f32.mrf.mxu0
        %v3151 = vadd.f32 %v3086, %v3150
        %3152 = vmatmul.f32.gmra.mxu0 %v335
        %v3153 = vpop.f32.mrf.mxu0
        %v3154 = vadd.f32 %v3089, %v3153
        %3155 = vmatmul.f32.gmra.mxu0 %v339
        %v3156 = vpop.f32.mrf.mxu0
        %v3157 = vadd.f32 %v3092, %v3156
        %3158 = vmatmul.f32.gmra.mxu0 %v343
        %v3159 = vpop.f32.mrf.mxu0
        %v3160 = vadd.f32 %v3095, %v3159
        %3161 = vmatmul.f32.gmra.mxu0 %v347
        %v3162 = vpop.f32.mrf.mxu0
        %v3163 = vadd.f32 %v3098, %v3162
        %3164 = vmatmul.f32.gmra.mxu0 %v351
        %v3165 = vpop.f32.mrf.mxu0
        %v3166 = vadd.f32 %v3101, %v3165
        %3167 = vmatmul.f32.gmra.mxu0 %v355
        %v3168 = vpop.f32.mrf.mxu0
        %v3169 = vadd.f32 %v3104, %v3168
        %3170 = vmatmul.f32.gmra.mxu0 %v359
        %v3171 = vpop.f32.mrf.mxu0
        %v3172 = vadd.f32 %v3107, %v3171
        %3173 = vmatmul.f32.gmra.mxu0 %v363
        %v3174 = vpop.f32.mrf.mxu0
        %v3175 = vadd.f32 %v3110, %v3174
        %3176 = vmatmul.f32.gmra.mxu0 %v367
        %v3177 = vpop.f32.mrf.mxu0
        %v3178 = vadd.f32 %v3113, %v3177
        %3179 = vdwg.mxu0
        %3180 = vmatpush.msra.mxu0 %v1132
        %3181 = vmatpush.msra.mxu0 %v1120
        %3182 = vmatpush.msra.mxu0 %v1108
        %3183 = vmatpush.msra.mxu0 %v1096
        %3184 = vmatpush.msra.mxu0 %v1084
        %3185 = vmatpush.msra.mxu0 %v1072
        %3186 = vmatpush.msra.mxu0 %v1060
        %3187 = vmatpush.msra.mxu0 %v1048
        %3188 = vmatpush.msra.mxu0 %v1036
        %3189 = vmatpush.msra.mxu0 %v1024
        %3190 = vmatpush.msra.mxu0 %v1012
        %3191 = vmatpush.msra.mxu0 %v1000
        %3192 = vmatpush.msra.mxu0 %v988
        %3193 = vmatpush.msra.mxu0 %v976
        %3194 = vmatpush.msra.mxu0 %v964
        %3195 = vmatpush.msra.mxu0 %v952
        %3196 = vmatmul.f32.gmra.mxu0 %v308
        %v3197 = vpop.f32.mrf.mxu0
        %v3198 = vadd.f32 %v3133, %v3197
        %3199 = vmatmul.f32.gmra.mxu0 %v312
        %v3200 = vpop.f32.mrf.mxu0
        %v3201 = vadd.f32 %v3136, %v3200
        %3202 = vmatmul.f32.gmra.mxu0 %v316
        %v3203 = vpop.f32.mrf.mxu0
        %v3204 = vadd.f32 %v3139, %v3203
        %3205 = vmatmul.f32.gmra.mxu0 %v320
        %v3206 = vpop.f32.mrf.mxu0
        %v3207 = vadd.f32 %v3142, %v3206
        %3208 = vmatmul.f32.gmra.mxu0 %v324
        %v3209 = vpop.f32.mrf.mxu0
        %v3210 = vadd.f32 %v3145, %v3209
        %3211 = vmatmul.f32.gmra.mxu0 %v328
        %v3212 = vpop.f32.mrf.mxu0
        %v3213 = vadd.f32 %v3148, %v3212
        %3214 = vmatmul.f32.gmra.mxu0 %v332
        %v3215 = vpop.f32.mrf.mxu0
        %v3216 = vadd.f32 %v3151, %v3215
        %3217 = vmatmul.f32.gmra.mxu0 %v336
        %v3218 = vpop.f32.mrf.mxu0
        %v3219 = vadd.f32 %v3154, %v3218
        %3220 = vmatmul.f32.gmra.mxu0 %v340
        %v3221 = vpop.f32.mrf.mxu0
        %v3222 = vadd.f32 %v3157, %v3221
        %3223 = vmatmul.f32.gmra.mxu0 %v344
        %v3224 = vpop.f32.mrf.mxu0
        %v3225 = vadd.f32 %v3160, %v3224
        %3226 = vmatmul.f32.gmra.mxu0 %v348
        %v3227 = vpop.f32.mrf.mxu0
        %v3228 = vadd.f32 %v3163, %v3227
        %3229 = vmatmul.f32.gmra.mxu0 %v352
        %v3230 = vpop.f32.mrf.mxu0
        %v3231 = vadd.f32 %v3166, %v3230
        %3232 = vmatmul.f32.gmra.mxu0 %v356
        %v3233 = vpop.f32.mrf.mxu0
        %v3234 = vadd.f32 %v3169, %v3233
        %3235 = vmatmul.f32.gmra.mxu0 %v360
        %v3236 = vpop.f32.mrf.mxu0
        %v3237 = vadd.f32 %v3172, %v3236
        %3238 = vmatmul.f32.gmra.mxu0 %v364
        %v3239 = vpop.f32.mrf.mxu0
        %v3240 = vadd.f32 %v3175, %v3239
        %3241 = vmatmul.f32.gmra.mxu0 %v368
        %v3242 = vpop.f32.mrf.mxu0
        %v3243 = vadd.f32 %v3178, %v3242
        %3244 = vdwg.mxu0
        %3245 = vmatpush.msra.mxu0 %v557
        %3246 = vmatpush.msra.mxu0 %v545
        %3247 = vmatpush.msra.mxu0 %v533
        %3248 = vmatpush.msra.mxu0 %v521
        %3249 = vmatpush.msra.mxu0 %v509
        %3250 = vmatpush.msra.mxu0 %v497
        %3251 = vmatpush.msra.mxu0 %v485
        %3252 = vmatpush.msra.mxu0 %v473
        %3253 = vmatpush.msra.mxu0 %v461
        %3254 = vmatpush.msra.mxu0 %v449
        %3255 = vmatpush.msra.mxu0 %v437
        %3256 = vmatpush.msra.mxu0 %v425
        %3257 = vmatpush.msra.mxu0 %v413
        %3258 = vmatpush.msra.mxu0 %v401
        %3259 = vmatpush.msra.mxu0 %v389
        %3260 = vmatpush.msra.mxu0 %v377
        %3261 = vmatmul.f32.gmra.mxu0 %v305
        %v3262 = vpop.f32.mrf.mxu0
        %v3263 = vadd.f32 %v1149, %v3262
        %3264 = vmatmul.f32.gmra.mxu0 %v309
        %v3265 = vpop.f32.mrf.mxu0
        %v3266 = vadd.f32 %v1149, %v3265
        %3267 = vmatmul.f32.gmra.mxu0 %v313
        %v3268 = vpop.f32.mrf.mxu0
        %v3269 = vadd.f32 %v1149, %v3268
        %3270 = vmatmul.f32.gmra.mxu0 %v317
        %v3271 = vpop.f32.mrf.mxu0
        %v3272 = vadd.f32 %v1149, %v3271
        %3273 = vmatmul.f32.gmra.mxu0 %v321
        %v3274 = vpop.f32.mrf.mxu0
        %v3275 = vadd.f32 %v1149, %v3274
        %3276 = vmatmul.f32.gmra.mxu0 %v325
        %v3277 = vpop.f32.mrf.mxu0
        %v3278 = vadd.f32 %v1149, %v3277
        %3279 = vmatmul.f32.gmra.mxu0 %v329
        %v3280 = vpop.f32.mrf.mxu0
        %v3281 = vadd.f32 %v1149, %v3280
        %3282 = vmatmul.f32.gmra.mxu0 %v333
        %v3283 = vpop.f32.mrf.mxu0
        %v3284 = vadd.f32 %v1149, %v3283
        %3285 = vmatmul.f32.gmra.mxu0 %v337
        %v3286 = vpop.f32.mrf.mxu0
        %v3287 = vadd.f32 %v1149, %v3286
        %3288 = vmatmul.f32.gmra.mxu0 %v341
        %v3289 = vpop.f32.mrf.mxu0
        %v3290 = vadd.f32 %v1149, %v3289
        %3291 = vmatmul.f32.gmra.mxu0 %v345
        %v3292 = vpop.f32.mrf.mxu0
        %v3293 = vadd.f32 %v1149, %v3292
        %3294 = vmatmul.f32.gmra.mxu0 %v349
        %v3295 = vpop.f32.mrf.mxu0
        %v3296 = vadd.f32 %v1149, %v3295
        %3297 = vmatmul.f32.gmra.mxu0 %v353
        %v3298 = vpop.f32.mrf.mxu0
        %v3299 = vadd.f32 %v1149, %v3298
        %3300 = vmatmul.f32.gmra.mxu0 %v357
        %v3301 = vpop.f32.mrf.mxu0
        %v3302 = vadd.f32 %v1149, %v3301
        %3303 = vmatmul.f32.gmra.mxu0 %v361
        %v3304 = vpop.f32.mrf.mxu0
        %v3305 = vadd.f32 %v1149, %v3304
        %3306 = vmatmul.f32.gmra.mxu0 %v365
        %v3307 = vpop.f32.mrf.mxu0
        %v3308 = vadd.f32 %v1149, %v3307
        %3309 = vdwg.mxu0
        %3310 = vmatpush.msra.mxu0 %v749
        %3311 = vmatpush.msra.mxu0 %v737
        %3312 = vmatpush.msra.mxu0 %v725
        %3313 = vmatpush.msra.mxu0 %v713
        %3314 = vmatpush.msra.mxu0 %v701
        %3315 = vmatpush.msra.mxu0 %v689
        %3316 = vmatpush.msra.mxu0 %v677
        %3317 = vmatpush.msra.mxu0 %v665
        %3318 = vmatpush.msra.mxu0 %v653
        %3319 = vmatpush.msra.mxu0 %v641
        %3320 = vmatpush.msra.mxu0 %v629
        %3321 = vmatpush.msra.mxu0 %v617
        %3322 = vmatpush.msra.mxu0 %v605
        %3323 = vmatpush.msra.mxu0 %v593
        %3324 = vmatpush.msra.mxu0 %v581
        %3325 = vmatpush.msra.mxu0 %v569
        %3326 = vmatmul.f32.gmra.mxu0 %v306
        %v3327 = vpop.f32.mrf.mxu0
        %v3328 = vadd.f32 %v3263, %v3327
        %3329 = vmatmul.f32.gmra.mxu0 %v310
        %v3330 = vpop.f32.mrf.mxu0
        %v3331 = vadd.f32 %v3266, %v3330
        %3332 = vmatmul.f32.gmra.mxu0 %v314
        %v3333 = vpop.f32.mrf.mxu0
        %v3334 = vadd.f32 %v3269, %v3333
        %3335 = vmatmul.f32.gmra.mxu0 %v318
        %v3336 = vpop.f32.mrf.mxu0
        %v3337 = vadd.f32 %v3272, %v3336
        %3338 = vmatmul.f32.gmra.mxu0 %v322
        %v3339 = vpop.f32.mrf.mxu0
        %v3340 = vadd.f32 %v3275, %v3339
        %3341 = vmatmul.f32.gmra.mxu0 %v326
        %v3342 = vpop.f32.mrf.mxu0
        %v3343 = vadd.f32 %v3278, %v3342
        %3344 = vmatmul.f32.gmra.mxu0 %v330
        %v3345 = vpop.f32.mrf.mxu0
        %v3346 = vadd.f32 %v3281, %v3345
        %3347 = vmatmul.f32.gmra.mxu0 %v334
        %v3348 = vpop.f32.mrf.mxu0
        %v3349 = vadd.f32 %v3284, %v3348
        %3350 = vmatmul.f32.gmra.mxu0 %v338
        %v3351 = vpop.f32.mrf.mxu0
        %v3352 = vadd.f32 %v3287, %v3351
        %3353 = vmatmul.f32.gmra.mxu0 %v342
        %v3354 = vpop.f32.mrf.mxu0
        %v3355 = vadd.f32 %v3290, %v3354
        %3356 = vmatmul.f32.gmra.mxu0 %v346
        %v3357 = vpop.f32.mrf.mxu0
        %v3358 = vadd.f32 %v3293, %v3357
        %3359 = vmatmul.f32.gmra.mxu0 %v350
        %v3360 = vpop.f32.mrf.mxu0
        %v3361 = vadd.f32 %v3296, %v3360
        %3362 = vmatmul.f32.gmra.mxu0 %v354
        %v3363 = vpop.f32.mrf.mxu0
        %v3364 = vadd.f32 %v3299, %v3363
        %3365 = vmatmul.f32.gmra.mxu0 %v358
        %v3366 = vpop.f32.mrf.mxu0
        %v3367 = vadd.f32 %v3302, %v3366
        %3368 = vmatmul.f32.gmra.mxu0 %v362
        %v3369 = vpop.f32.mrf.mxu0
        %v3370 = vadd.f32 %v3305, %v3369
        %3371 = vmatmul.f32.gmra.mxu0 %v366
        %v3372 = vpop.f32.mrf.mxu0
        %v3373 = vadd.f32 %v3308, %v3372
        %3374 = vdwg.mxu0
        %3375 = vmatpush.msra.mxu0 %v941
        %3376 = vmatpush.msra.mxu0 %v929
        %3377 = vmatpush.msra.mxu0 %v917
        %3378 = vmatpush.msra.mxu0 %v905
        %3379 = vmatpush.msra.mxu0 %v893
        %3380 = vmatpush.msra.mxu0 %v881
        %3381 = vmatpush.msra.mxu0 %v869
        %3382 = vmatpush.msra.mxu0 %v857
        %3383 = vmatpush.msra.mxu0 %v845
        %3384 = vmatpush.msra.mxu0 %v833
        %3385 = vmatpush.msra.mxu0 %v821
        %3386 = vmatpush.msra.mxu0 %v809
        %3387 = vmatpush.msra.mxu0 %v797
        %3388 = vmatpush.msra.mxu0 %v785
        %3389 = vmatpush.msra.mxu0 %v773
        %3390 = vmatpush.msra.mxu0 %v761
        %3391 = vmatmul.f32.gmra.mxu0 %v307
        %v3392 = vpop.f32.mrf.mxu0
        %v3393 = vadd.f32 %v3328, %v3392
        %3394 = vmatmul.f32.gmra.mxu0 %v311
        %v3395 = vpop.f32.mrf.mxu0
        %v3396 = vadd.f32 %v3331, %v3395
        %3397 = vmatmul.f32.gmra.mxu0 %v315
        %v3398 = vpop.f32.mrf.mxu0
        %v3399 = vadd.f32 %v3334, %v3398
        %3400 = vmatmul.f32.gmra.mxu0 %v319
        %v3401 = vpop.f32.mrf.mxu0
        %v3402 = vadd.f32 %v3337, %v3401
        %3403 = vmatmul.f32.gmra.mxu0 %v323
        %v3404 = vpop.f32.mrf.mxu0
        %v3405 = vadd.f32 %v3340, %v3404
        %3406 = vmatmul.f32.gmra.mxu0 %v327
        %v3407 = vpop.f32.mrf.mxu0
        %v3408 = vadd.f32 %v3343, %v3407
        %3409 = vmatmul.f32.gmra.mxu0 %v331
        %v3410 = vpop.f32.mrf.mxu0
        %v3411 = vadd.f32 %v3346, %v3410
        %3412 = vmatmul.f32.gmra.mxu0 %v335
        %v3413 = vpop.f32.mrf.mxu0
        %v3414 = vadd.f32 %v3349, %v3413
        %3415 = vmatmul.f32.gmra.mxu0 %v339
        %v3416 = vpop.f32.mrf.mxu0
        %v3417 = vadd.f32 %v3352, %v3416
        %3418 = vmatmul.f32.gmra.mxu0 %v343
        %v3419 = vpop.f32.mrf.mxu0
        %v3420 = vadd.f32 %v3355, %v3419
        %3421 = vmatmul.f32.gmra.mxu0 %v347
        %v3422 = vpop.f32.mrf.mxu0
        %v3423 = vadd.f32 %v3358, %v3422
        %3424 = vmatmul.f32.gmra.mxu0 %v351
        %v3425 = vpop.f32.mrf.mxu0
        %v3426 = vadd.f32 %v3361, %v3425
        %3427 = vmatmul.f32.gmra.mxu0 %v355
        %v3428 = vpop.f32.mrf.mxu0
        %v3429 = vadd.f32 %v3364, %v3428
        %3430 = vmatmul.f32.gmra.mxu0 %v359
        %v3431 = vpop.f32.mrf.mxu0
        %v3432 = vadd.f32 %v3367, %v3431
        %3433 = vmatmul.f32.gmra.mxu0 %v363
        %v3434 = vpop.f32.mrf.mxu0
        %v3435 = vadd.f32 %v3370, %v3434
        %3436 = vmatmul.f32.gmra.mxu0 %v367
        %v3437 = vpop.f32.mrf.mxu0
        %v3438 = vadd.f32 %v3373, %v3437
        %3439 = vdwg.mxu0
        %3440 = vmatpush.msra.mxu0 %v1133
        %3441 = vmatpush.msra.mxu0 %v1121
        %3442 = vmatpush.msra.mxu0 %v1109
        %3443 = vmatpush.msra.mxu0 %v1097
        %3444 = vmatpush.msra.mxu0 %v1085
        %3445 = vmatpush.msra.mxu0 %v1073
        %3446 = vmatpush.msra.mxu0 %v1061
        %3447 = vmatpush.msra.mxu0 %v1049
        %3448 = vmatpush.msra.mxu0 %v1037
        %3449 = vmatpush.msra.mxu0 %v1025
        %3450 = vmatpush.msra.mxu0 %v1013
        %3451 = vmatpush.msra.mxu0 %v1001
        %3452 = vmatpush.msra.mxu0 %v989
        %3453 = vmatpush.msra.mxu0 %v977
        %3454 = vmatpush.msra.mxu0 %v965
        %3455 = vmatpush.msra.mxu0 %v953
        %3456 = vmatmul.f32.gmra.mxu0 %v308
        %v3457 = vpop.f32.mrf.mxu0
        %v3458 = vadd.f32 %v3393, %v3457
        %3459 = vmatmul.f32.gmra.mxu0 %v312
        %v3460 = vpop.f32.mrf.mxu0
        %v3461 = vadd.f32 %v3396, %v3460
        %3462 = vmatmul.f32.gmra.mxu0 %v316
        %v3463 = vpop.f32.mrf.mxu0
        %v3464 = vadd.f32 %v3399, %v3463
        %3465 = vmatmul.f32.gmra.mxu0 %v320
        %v3466 = vpop.f32.mrf.mxu0
        %v3467 = vadd.f32 %v3402, %v3466
        %3468 = vmatmul.f32.gmra.mxu0 %v324
        %v3469 = vpop.f32.mrf.mxu0
        %v3470 = vadd.f32 %v3405, %v3469
        %3471 = vmatmul.f32.gmra.mxu0 %v328
        %v3472 = vpop.f32.mrf.mxu0
        %v3473 = vadd.f32 %v3408, %v3472
        %3474 = vmatmul.f32.gmra.mxu0 %v332
        %v3475 = vpop.f32.mrf.mxu0
        %v3476 = vadd.f32 %v3411, %v3475
        %3477 = vmatmul.f32.gmra.mxu0 %v336
        %v3478 = vpop.f32.mrf.mxu0
        %v3479 = vadd.f32 %v3414, %v3478
        %3480 = vmatmul.f32.gmra.mxu0 %v340
        %v3481 = vpop.f32.mrf.mxu0
        %v3482 = vadd.f32 %v3417, %v3481
        %3483 = vmatmul.f32.gmra.mxu0 %v344
        %v3484 = vpop.f32.mrf.mxu0
        %v3485 = vadd.f32 %v3420, %v3484
        %3486 = vmatmul.f32.gmra.mxu0 %v348
        %v3487 = vpop.f32.mrf.mxu0
        %v3488 = vadd.f32 %v3423, %v3487
        %3489 = vmatmul.f32.gmra.mxu0 %v352
        %v3490 = vpop.f32.mrf.mxu0
        %v3491 = vadd.f32 %v3426, %v3490
        %3492 = vmatmul.f32.gmra.mxu0 %v356
        %v3493 = vpop.f32.mrf.mxu0
        %v3494 = vadd.f32 %v3429, %v3493
        %3495 = vmatmul.f32.gmra.mxu0 %v360
        %v3496 = vpop.f32.mrf.mxu0
        %v3497 = vadd.f32 %v3432, %v3496
        %3498 = vmatmul.f32.gmra.mxu0 %v364
        %v3499 = vpop.f32.mrf.mxu0
        %v3500 = vadd.f32 %v3435, %v3499
        %3501 = vmatmul.f32.gmra.mxu0 %v368
        %v3502 = vpop.f32.mrf.mxu0
        %v3503 = vadd.f32 %v3438, %v3502
        %3504 = vdwg.mxu0
        %3505 = vmatpush.msra.mxu0 %v558
        %3506 = vmatpush.msra.mxu0 %v546
        %3507 = vmatpush.msra.mxu0 %v534
        %3508 = vmatpush.msra.mxu0 %v522
        %3509 = vmatpush.msra.mxu0 %v510
        %3510 = vmatpush.msra.mxu0 %v498
        %3511 = vmatpush.msra.mxu0 %v486
        %3512 = vmatpush.msra.mxu0 %v474
        %3513 = vmatpush.msra.mxu0 %v462
        %3514 = vmatpush.msra.mxu0 %v450
        %3515 = vmatpush.msra.mxu0 %v438
        %3516 = vmatpush.msra.mxu0 %v426
        %3517 = vmatpush.msra.mxu0 %v414
        %3518 = vmatpush.msra.mxu0 %v402
        %3519 = vmatpush.msra.mxu0 %v390
        %3520 = vmatpush.msra.mxu0 %v378
        %3521 = vmatmul.f32.gmra.mxu0 %v305
        %v3522 = vpop.f32.mrf.mxu0
        %v3523 = vadd.f32 %v1150, %v3522
        %3524 = vmatmul.f32.gmra.mxu0 %v309
        %v3525 = vpop.f32.mrf.mxu0
        %v3526 = vadd.f32 %v1150, %v3525
        %3527 = vmatmul.f32.gmra.mxu0 %v313
        %v3528 = vpop.f32.mrf.mxu0
        %v3529 = vadd.f32 %v1150, %v3528
        %3530 = vmatmul.f32.gmra.mxu0 %v317
        %v3531 = vpop.f32.mrf.mxu0
        %v3532 = vadd.f32 %v1150, %v3531
        %3533 = vmatmul.f32.gmra.mxu0 %v321
        %v3534 = vpop.f32.mrf.mxu0
        %v3535 = vadd.f32 %v1150, %v3534
        %3536 = vmatmul.f32.gmra.mxu0 %v325
        %v3537 = vpop.f32.mrf.mxu0
        %v3538 = vadd.f32 %v1150, %v3537
        %3539 = vmatmul.f32.gmra.mxu0 %v329
        %v3540 = vpop.f32.mrf.mxu0
        %v3541 = vadd.f32 %v1150, %v3540
        %3542 = vmatmul.f32.gmra.mxu0 %v333
        %v3543 = vpop.f32.mrf.mxu0
        %v3544 = vadd.f32 %v1150, %v3543
        %3545 = vmatmul.f32.gmra.mxu0 %v337
        %v3546 = vpop.f32.mrf.mxu0
        %v3547 = vadd.f32 %v1150, %v3546
        %3548 = vmatmul.f32.gmra.mxu0 %v341
        %v3549 = vpop.f32.mrf.mxu0
        %v3550 = vadd.f32 %v1150, %v3549
        %3551 = vmatmul.f32.gmra.mxu0 %v345
        %v3552 = vpop.f32.mrf.mxu0
        %v3553 = vadd.f32 %v1150, %v3552
        %3554 = vmatmul.f32.gmra.mxu0 %v349
        %v3555 = vpop.f32.mrf.mxu0
        %v3556 = vadd.f32 %v1150, %v3555
        %3557 = vmatmul.f32.gmra.mxu0 %v353
        %v3558 = vpop.f32.mrf.mxu0
        %v3559 = vadd.f32 %v1150, %v3558
        %3560 = vmatmul.f32.gmra.mxu0 %v357
        %v3561 = vpop.f32.mrf.mxu0
        %v3562 = vadd.f32 %v1150, %v3561
        %3563 = vmatmul.f32.gmra.mxu0 %v361
        %v3564 = vpop.f32.mrf.mxu0
        %v3565 = vadd.f32 %v1150, %v3564
        %3566 = vmatmul.f32.gmra.mxu0 %v365
        %v3567 = vpop.f32.mrf.mxu0
        %v3568 = vadd.f32 %v1150, %v3567
        %3569 = vdwg.mxu0
        %3570 = vmatpush.msra.mxu0 %v750
        %3571 = vmatpush.msra.mxu0 %v738
        %3572 = vmatpush.msra.mxu0 %v726
        %3573 = vmatpush.msra.mxu0 %v714
        %3574 = vmatpush.msra.mxu0 %v702
        %3575 = vmatpush.msra.mxu0 %v690
        %3576 = vmatpush.msra.mxu0 %v678
        %3577 = vmatpush.msra.mxu0 %v666
        %3578 = vmatpush.msra.mxu0 %v654
        %3579 = vmatpush.msra.mxu0 %v642
        %3580 = vmatpush.msra.mxu0 %v630
        %3581 = vmatpush.msra.mxu0 %v618
        %3582 = vmatpush.msra.mxu0 %v606
        %3583 = vmatpush.msra.mxu0 %v594
        %3584 = vmatpush.msra.mxu0 %v582
        %3585 = vmatpush.msra.mxu0 %v570
        %3586 = vmatmul.f32.gmra.mxu0 %v306
        %v3587 = vpop.f32.mrf.mxu0
        %v3588 = vadd.f32 %v3523, %v3587
        %3589 = vmatmul.f32.gmra.mxu0 %v310
        %v3590 = vpop.f32.mrf.mxu0
        %v3591 = vadd.f32 %v3526, %v3590
        %3592 = vmatmul.f32.gmra.mxu0 %v314
        %v3593 = vpop.f32.mrf.mxu0
        %v3594 = vadd.f32 %v3529, %v3593
        %3595 = vmatmul.f32.gmra.mxu0 %v318
        %v3596 = vpop.f32.mrf.mxu0
        %v3597 = vadd.f32 %v3532, %v3596
        %3598 = vmatmul.f32.gmra.mxu0 %v322
        %v3599 = vpop.f32.mrf.mxu0
        %v3600 = vadd.f32 %v3535, %v3599
        %3601 = vmatmul.f32.gmra.mxu0 %v326
        %v3602 = vpop.f32.mrf.mxu0
        %v3603 = vadd.f32 %v3538, %v3602
        %3604 = vmatmul.f32.gmra.mxu0 %v330
        %v3605 = vpop.f32.mrf.mxu0
        %v3606 = vadd.f32 %v3541, %v3605
        %3607 = vmatmul.f32.gmra.mxu0 %v334
        %v3608 = vpop.f32.mrf.mxu0
        %v3609 = vadd.f32 %v3544, %v3608
        %3610 = vmatmul.f32.gmra.mxu0 %v338
        %v3611 = vpop.f32.mrf.mxu0
        %v3612 = vadd.f32 %v3547, %v3611
        %3613 = vmatmul.f32.gmra.mxu0 %v342
        %v3614 = vpop.f32.mrf.mxu0
        %v3615 = vadd.f32 %v3550, %v3614
        %3616 = vmatmul.f32.gmra.mxu0 %v346
        %v3617 = vpop.f32.mrf.mxu0
        %v3618 = vadd.f32 %v3553, %v3617
        %3619 = vmatmul.f32.gmra.mxu0 %v350
        %v3620 = vpop.f32.mrf.mxu0
        %v3621 = vadd.f32 %v3556, %v3620
        %3622 = vmatmul.f32.gmra.mxu0 %v354
        %v3623 = vpop.f32.mrf.mxu0
        %v3624 = vadd.f32 %v3559, %v3623
        %3625 = vmatmul.f32.gmra.mxu0 %v358
        %v3626 = vpop.f32.mrf.mxu0
        %v3627 = vadd.f32 %v3562, %v3626
        %3628 = vmatmul.f32.gmra.mxu0 %v362
        %v3629 = vpop.f32.mrf.mxu0
        %v3630 = vadd.f32 %v3565, %v3629
        %3631 = vmatmul.f32.gmra.mxu0 %v366
        %v3632 = vpop.f32.mrf.mxu0
        %v3633 = vadd.f32 %v3568, %v3632
        %3634 = vdwg.mxu0
        %3635 = vmatpush.msra.mxu0 %v942
        %3636 = vmatpush.msra.mxu0 %v930
        %3637 = vmatpush.msra.mxu0 %v918
        %3638 = vmatpush.msra.mxu0 %v906
        %3639 = vmatpush.msra.mxu0 %v894
        %3640 = vmatpush.msra.mxu0 %v882
        %3641 = vmatpush.msra.mxu0 %v870
        %3642 = vmatpush.msra.mxu0 %v858
        %3643 = vmatpush.msra.mxu0 %v846
        %3644 = vmatpush.msra.mxu0 %v834
        %3645 = vmatpush.msra.mxu0 %v822
        %3646 = vmatpush.msra.mxu0 %v810
        %3647 = vmatpush.msra.mxu0 %v798
        %3648 = vmatpush.msra.mxu0 %v786
        %3649 = vmatpush.msra.mxu0 %v774
        %3650 = vmatpush.msra.mxu0 %v762
        %3651 = vmatmul.f32.gmra.mxu0 %v307
        %v3652 = vpop.f32.mrf.mxu0
        %v3653 = vadd.f32 %v3588, %v3652
        %3654 = vmatmul.f32.gmra.mxu0 %v311
        %v3655 = vpop.f32.mrf.mxu0
        %v3656 = vadd.f32 %v3591, %v3655
        %3657 = vmatmul.f32.gmra.mxu0 %v315
        %v3658 = vpop.f32.mrf.mxu0
        %v3659 = vadd.f32 %v3594, %v3658
        %3660 = vmatmul.f32.gmra.mxu0 %v319
        %v3661 = vpop.f32.mrf.mxu0
        %v3662 = vadd.f32 %v3597, %v3661
        %3663 = vmatmul.f32.gmra.mxu0 %v323
        %v3664 = vpop.f32.mrf.mxu0
        %v3665 = vadd.f32 %v3600, %v3664
        %3666 = vmatmul.f32.gmra.mxu0 %v327
        %v3667 = vpop.f32.mrf.mxu0
        %v3668 = vadd.f32 %v3603, %v3667
        %3669 = vmatmul.f32.gmra.mxu0 %v331
        %v3670 = vpop.f32.mrf.mxu0
        %v3671 = vadd.f32 %v3606, %v3670
        %3672 = vmatmul.f32.gmra.mxu0 %v335
        %v3673 = vpop.f32.mrf.mxu0
        %v3674 = vadd.f32 %v3609, %v3673
        %3675 = vmatmul.f32.gmra.mxu0 %v339
        %v3676 = vpop.f32.mrf.mxu0
        %v3677 = vadd.f32 %v3612, %v3676
        %3678 = vmatmul.f32.gmra.mxu0 %v343
        %v3679 = vpop.f32.mrf.mxu0
        %v3680 = vadd.f32 %v3615, %v3679
        %3681 = vmatmul.f32.gmra.mxu0 %v347
        %v3682 = vpop.f32.mrf.mxu0
        %v3683 = vadd.f32 %v3618, %v3682
        %3684 = vmatmul.f32.gmra.mxu0 %v351
        %v3685 = vpop.f32.mrf.mxu0
        %v3686 = vadd.f32 %v3621, %v3685
        %3687 = vmatmul.f32.gmra.mxu0 %v355
        %v3688 = vpop.f32.mrf.mxu0
        %v3689 = vadd.f32 %v3624, %v3688
        %3690 = vmatmul.f32.gmra.mxu0 %v359
        %v3691 = vpop.f32.mrf.mxu0
        %v3692 = vadd.f32 %v3627, %v3691
        %3693 = vmatmul.f32.gmra.mxu0 %v363
        %v3694 = vpop.f32.mrf.mxu0
        %v3695 = vadd.f32 %v3630, %v3694
        %3696 = vmatmul.f32.gmra.mxu0 %v367
        %v3697 = vpop.f32.mrf.mxu0
        %v3698 = vadd.f32 %v3633, %v3697
        %3699 = vdwg.mxu0
        %3700 = vmatpush.msra.mxu0 %v1134
        %3701 = vmatpush.msra.mxu0 %v1122
        %3702 = vmatpush.msra.mxu0 %v1110
        %3703 = vmatpush.msra.mxu0 %v1098
        %3704 = vmatpush.msra.mxu0 %v1086
        %3705 = vmatpush.msra.mxu0 %v1074
        %3706 = vmatpush.msra.mxu0 %v1062
        %3707 = vmatpush.msra.mxu0 %v1050
        %3708 = vmatpush.msra.mxu0 %v1038
        %3709 = vmatpush.msra.mxu0 %v1026
        %3710 = vmatpush.msra.mxu0 %v1014
        %3711 = vmatpush.msra.mxu0 %v1002
        %3712 = vmatpush.msra.mxu0 %v990
        %3713 = vmatpush.msra.mxu0 %v978
        %3714 = vmatpush.msra.mxu0 %v966
        %3715 = vmatpush.msra.mxu0 %v954
        %3716 = vmatmul.f32.gmra.mxu0 %v308
        %v3717 = vpop.f32.mrf.mxu0
        %v3718 = vadd.f32 %v3653, %v3717
        %3719 = vmatmul.f32.gmra.mxu0 %v312
        %v3720 = vpop.f32.mrf.mxu0
        %v3721 = vadd.f32 %v3656, %v3720
        %3722 = vmatmul.f32.gmra.mxu0 %v316
        %v3723 = vpop.f32.mrf.mxu0
        %v3724 = vadd.f32 %v3659, %v3723
        %3725 = vmatmul.f32.gmra.mxu0 %v320
        %v3726 = vpop.f32.mrf.mxu0
        %v3727 = vadd.f32 %v3662, %v3726
        %3728 = vmatmul.f32.gmra.mxu0 %v324
        %v3729 = vpop.f32.mrf.mxu0
        %v3730 = vadd.f32 %v3665, %v3729
        %3731 = vmatmul.f32.gmra.mxu0 %v328
        %v3732 = vpop.f32.mrf.mxu0
        %v3733 = vadd.f32 %v3668, %v3732
        %3734 = vmatmul.f32.gmra.mxu0 %v332
        %v3735 = vpop.f32.mrf.mxu0
        %v3736 = vadd.f32 %v3671, %v3735
        %3737 = vmatmul.f32.gmra.mxu0 %v336
        %v3738 = vpop.f32.mrf.mxu0
        %v3739 = vadd.f32 %v3674, %v3738
        %3740 = vmatmul.f32.gmra.mxu0 %v340
        %v3741 = vpop.f32.mrf.mxu0
        %v3742 = vadd.f32 %v3677, %v3741
        %3743 = vmatmul.f32.gmra.mxu0 %v344
        %v3744 = vpop.f32.mrf.mxu0
        %v3745 = vadd.f32 %v3680, %v3744
        %3746 = vmatmul.f32.gmra.mxu0 %v348
        %v3747 = vpop.f32.mrf.mxu0
        %v3748 = vadd.f32 %v3683, %v3747
        %3749 = vmatmul.f32.gmra.mxu0 %v352
        %v3750 = vpop.f32.mrf.mxu0
        %v3751 = vadd.f32 %v3686, %v3750
        %3752 = vmatmul.f32.gmra.mxu0 %v356
        %v3753 = vpop.f32.mrf.mxu0
        %v3754 = vadd.f32 %v3689, %v3753
        %3755 = vmatmul.f32.gmra.mxu0 %v360
        %v3756 = vpop.f32.mrf.mxu0
        %v3757 = vadd.f32 %v3692, %v3756
        %3758 = vmatmul.f32.gmra.mxu0 %v364
        %v3759 = vpop.f32.mrf.mxu0
        %v3760 = vadd.f32 %v3695, %v3759
        %3761 = vmatmul.f32.gmra.mxu0 %v368
        %v3762 = vpop.f32.mrf.mxu0
        %v3763 = vadd.f32 %v3698, %v3762
        %3764 = vdwg.mxu0
        %3765 = vmatpush.msra.mxu0 %v559
        %3766 = vmatpush.msra.mxu0 %v547
        %3767 = vmatpush.msra.mxu0 %v535
        %3768 = vmatpush.msra.mxu0 %v523
        %3769 = vmatpush.msra.mxu0 %v511
        %3770 = vmatpush.msra.mxu0 %v499
        %3771 = vmatpush.msra.mxu0 %v487
        %3772 = vmatpush.msra.mxu0 %v475
        %3773 = vmatpush.msra.mxu0 %v463
        %3774 = vmatpush.msra.mxu0 %v451
        %3775 = vmatpush.msra.mxu0 %v439
        %3776 = vmatpush.msra.mxu0 %v427
        %3777 = vmatpush.msra.mxu0 %v415
        %3778 = vmatpush.msra.mxu0 %v403
        %3779 = vmatpush.msra.mxu0 %v391
        %3780 = vmatpush.msra.mxu0 %v379
        %3781 = vmatmul.f32.gmra.mxu0 %v305
        %v3782 = vpop.f32.mrf.mxu0
        %v3783 = vadd.f32 %v1151, %v3782
        %3784 = vmatmul.f32.gmra.mxu0 %v309
        %v3785 = vpop.f32.mrf.mxu0
        %v3786 = vadd.f32 %v1151, %v3785
        %3787 = vmatmul.f32.gmra.mxu0 %v313
        %v3788 = vpop.f32.mrf.mxu0
        %v3789 = vadd.f32 %v1151, %v3788
        %3790 = vmatmul.f32.gmra.mxu0 %v317
        %v3791 = vpop.f32.mrf.mxu0
        %v3792 = vadd.f32 %v1151, %v3791
        %3793 = vmatmul.f32.gmra.mxu0 %v321
        %v3794 = vpop.f32.mrf.mxu0
        %v3795 = vadd.f32 %v1151, %v3794
        %3796 = vmatmul.f32.gmra.mxu0 %v325
        %v3797 = vpop.f32.mrf.mxu0
        %v3798 = vadd.f32 %v1151, %v3797
        %3799 = vmatmul.f32.gmra.mxu0 %v329
        %v3800 = vpop.f32.mrf.mxu0
        %v3801 = vadd.f32 %v1151, %v3800
        %3802 = vmatmul.f32.gmra.mxu0 %v333
        %v3803 = vpop.f32.mrf.mxu0
        %v3804 = vadd.f32 %v1151, %v3803
        %3805 = vmatmul.f32.gmra.mxu0 %v337
        %v3806 = vpop.f32.mrf.mxu0
        %v3807 = vadd.f32 %v1151, %v3806
        %3808 = vmatmul.f32.gmra.mxu0 %v341
        %v3809 = vpop.f32.mrf.mxu0
        %v3810 = vadd.f32 %v1151, %v3809
        %3811 = vmatmul.f32.gmra.mxu0 %v345
        %v3812 = vpop.f32.mrf.mxu0
        %v3813 = vadd.f32 %v1151, %v3812
        %3814 = vmatmul.f32.gmra.mxu0 %v349
        %v3815 = vpop.f32.mrf.mxu0
        %v3816 = vadd.f32 %v1151, %v3815
        %3817 = vmatmul.f32.gmra.mxu0 %v353
        %v3818 = vpop.f32.mrf.mxu0
        %v3819 = vadd.f32 %v1151, %v3818
        %3820 = vmatmul.f32.gmra.mxu0 %v357
        %v3821 = vpop.f32.mrf.mxu0
        %v3822 = vadd.f32 %v1151, %v3821
        %3823 = vmatmul.f32.gmra.mxu0 %v361
        %v3824 = vpop.f32.mrf.mxu0
        %v3825 = vadd.f32 %v1151, %v3824
        %3826 = vmatmul.f32.gmra.mxu0 %v365
        %v3827 = vpop.f32.mrf.mxu0
        %v3828 = vadd.f32 %v1151, %v3827
        %3829 = vdwg.mxu0
        %3830 = vmatpush.msra.mxu0 %v751
        %3831 = vmatpush.msra.mxu0 %v739
        %3832 = vmatpush.msra.mxu0 %v727
        %3833 = vmatpush.msra.mxu0 %v715
        %3834 = vmatpush.msra.mxu0 %v703
        %3835 = vmatpush.msra.mxu0 %v691
        %3836 = vmatpush.msra.mxu0 %v679
        %3837 = vmatpush.msra.mxu0 %v667
        %3838 = vmatpush.msra.mxu0 %v655
        %3839 = vmatpush.msra.mxu0 %v643
        %3840 = vmatpush.msra.mxu0 %v631
        %3841 = vmatpush.msra.mxu0 %v619
        %3842 = vmatpush.msra.mxu0 %v607
        %3843 = vmatpush.msra.mxu0 %v595
        %3844 = vmatpush.msra.mxu0 %v583
        %3845 = vmatpush.msra.mxu0 %v571
        %3846 = vmatmul.f32.gmra.mxu0 %v306
        %v3847 = vpop.f32.mrf.mxu0
        %v3848 = vadd.f32 %v3783, %v3847
        %3849 = vmatmul.f32.gmra.mxu0 %v310
        %v3850 = vpop.f32.mrf.mxu0
        %v3851 = vadd.f32 %v3786, %v3850
        %3852 = vmatmul.f32.gmra.mxu0 %v314
        %v3853 = vpop.f32.mrf.mxu0
        %v3854 = vadd.f32 %v3789, %v3853
        %3855 = vmatmul.f32.gmra.mxu0 %v318
        %v3856 = vpop.f32.mrf.mxu0
        %v3857 = vadd.f32 %v3792, %v3856
        %3858 = vmatmul.f32.gmra.mxu0 %v322
        %v3859 = vpop.f32.mrf.mxu0
        %v3860 = vadd.f32 %v3795, %v3859
        %3861 = vmatmul.f32.gmra.mxu0 %v326
        %v3862 = vpop.f32.mrf.mxu0
        %v3863 = vadd.f32 %v3798, %v3862
        %3864 = vmatmul.f32.gmra.mxu0 %v330
        %v3865 = vpop.f32.mrf.mxu0
        %v3866 = vadd.f32 %v3801, %v3865
        %3867 = vmatmul.f32.gmra.mxu0 %v334
        %v3868 = vpop.f32.mrf.mxu0
        %v3869 = vadd.f32 %v3804, %v3868
        %3870 = vmatmul.f32.gmra.mxu0 %v338
        %v3871 = vpop.f32.mrf.mxu0
        %v3872 = vadd.f32 %v3807, %v3871
        %3873 = vmatmul.f32.gmra.mxu0 %v342
        %v3874 = vpop.f32.mrf.mxu0
        %v3875 = vadd.f32 %v3810, %v3874
        %3876 = vmatmul.f32.gmra.mxu0 %v346
        %v3877 = vpop.f32.mrf.mxu0
        %v3878 = vadd.f32 %v3813, %v3877
        %3879 = vmatmul.f32.gmra.mxu0 %v350
        %v3880 = vpop.f32.mrf.mxu0
        %v3881 = vadd.f32 %v3816, %v3880
        %3882 = vmatmul.f32.gmra.mxu0 %v354
        %v3883 = vpop.f32.mrf.mxu0
        %v3884 = vadd.f32 %v3819, %v3883
        %3885 = vmatmul.f32.gmra.mxu0 %v358
        %v3886 = vpop.f32.mrf.mxu0
        %v3887 = vadd.f32 %v3822, %v3886
        %3888 = vmatmul.f32.gmra.mxu0 %v362
        %v3889 = vpop.f32.mrf.mxu0
        %v3890 = vadd.f32 %v3825, %v3889
        %3891 = vmatmul.f32.gmra.mxu0 %v366
        %v3892 = vpop.f32.mrf.mxu0
        %v3893 = vadd.f32 %v3828, %v3892
        %3894 = vdwg.mxu0
        %3895 = vmatpush.msra.mxu0 %v943
        %3896 = vmatpush.msra.mxu0 %v931
        %3897 = vmatpush.msra.mxu0 %v919
        %3898 = vmatpush.msra.mxu0 %v907
        %3899 = vmatpush.msra.mxu0 %v895
        %3900 = vmatpush.msra.mxu0 %v883
        %3901 = vmatpush.msra.mxu0 %v871
        %3902 = vmatpush.msra.mxu0 %v859
        %3903 = vmatpush.msra.mxu0 %v847
        %3904 = vmatpush.msra.mxu0 %v835
        %3905 = vmatpush.msra.mxu0 %v823
        %3906 = vmatpush.msra.mxu0 %v811
        %3907 = vmatpush.msra.mxu0 %v799
        %3908 = vmatpush.msra.mxu0 %v787
        %3909 = vmatpush.msra.mxu0 %v775
        %3910 = vmatpush.msra.mxu0 %v763
        %3911 = vmatmul.f32.gmra.mxu0 %v307
        %v3912 = vpop.f32.mrf.mxu0
        %v3913 = vadd.f32 %v3848, %v3912
        %3914 = vmatmul.f32.gmra.mxu0 %v311
        %v3915 = vpop.f32.mrf.mxu0
        %v3916 = vadd.f32 %v3851, %v3915
        %3917 = vmatmul.f32.gmra.mxu0 %v315
        %v3918 = vpop.f32.mrf.mxu0
        %v3919 = vadd.f32 %v3854, %v3918
        %3920 = vmatmul.f32.gmra.mxu0 %v319
        %v3921 = vpop.f32.mrf.mxu0
        %v3922 = vadd.f32 %v3857, %v3921
        %3923 = vmatmul.f32.gmra.mxu0 %v323
        %v3924 = vpop.f32.mrf.mxu0
        %v3925 = vadd.f32 %v3860, %v3924
        %3926 = vmatmul.f32.gmra.mxu0 %v327
        %v3927 = vpop.f32.mrf.mxu0
        %v3928 = vadd.f32 %v3863, %v3927
        %3929 = vmatmul.f32.gmra.mxu0 %v331
        %v3930 = vpop.f32.mrf.mxu0
        %v3931 = vadd.f32 %v3866, %v3930
        %3932 = vmatmul.f32.gmra.mxu0 %v335
        %v3933 = vpop.f32.mrf.mxu0
        %v3934 = vadd.f32 %v3869, %v3933
        %3935 = vmatmul.f32.gmra.mxu0 %v339
        %v3936 = vpop.f32.mrf.mxu0
        %v3937 = vadd.f32 %v3872, %v3936
        %3938 = vmatmul.f32.gmra.mxu0 %v343
        %v3939 = vpop.f32.mrf.mxu0
        %v3940 = vadd.f32 %v3875, %v3939
        %3941 = vmatmul.f32.gmra.mxu0 %v347
        %v3942 = vpop.f32.mrf.mxu0
        %v3943 = vadd.f32 %v3878, %v3942
        %3944 = vmatmul.f32.gmra.mxu0 %v351
        %v3945 = vpop.f32.mrf.mxu0
        %v3946 = vadd.f32 %v3881, %v3945
        %3947 = vmatmul.f32.gmra.mxu0 %v355
        %v3948 = vpop.f32.mrf.mxu0
        %v3949 = vadd.f32 %v3884, %v3948
        %3950 = vmatmul.f32.gmra.mxu0 %v359
        %v3951 = vpop.f32.mrf.mxu0
        %v3952 = vadd.f32 %v3887, %v3951
        %3953 = vmatmul.f32.gmra.mxu0 %v363
        %v3954 = vpop.f32.mrf.mxu0
        %v3955 = vadd.f32 %v3890, %v3954
        %3956 = vmatmul.f32.gmra.mxu0 %v367
        %v3957 = vpop.f32.mrf.mxu0
        %v3958 = vadd.f32 %v3893, %v3957
        %3959 = vdwg.mxu0
        %3960 = vmatpush.msra.mxu0 %v1135
        %3961 = vmatpush.msra.mxu0 %v1123
        %3962 = vmatpush.msra.mxu0 %v1111
        %3963 = vmatpush.msra.mxu0 %v1099
        %3964 = vmatpush.msra.mxu0 %v1087
        %3965 = vmatpush.msra.mxu0 %v1075
        %3966 = vmatpush.msra.mxu0 %v1063
        %3967 = vmatpush.msra.mxu0 %v1051
        %3968 = vmatpush.msra.mxu0 %v1039
        %3969 = vmatpush.msra.mxu0 %v1027
        %3970 = vmatpush.msra.mxu0 %v1015
        %3971 = vmatpush.msra.mxu0 %v1003
        %3972 = vmatpush.msra.mxu0 %v991
        %3973 = vmatpush.msra.mxu0 %v979
        %3974 = vmatpush.msra.mxu0 %v967
        %3975 = vmatpush.msra.mxu0 %v955
        %3976 = vmatmul.f32.gmra.mxu0 %v308
        %v3977 = vpop.f32.mrf.mxu0
        %v3978 = vadd.f32 %v3913, %v3977
        %3979 = vmatmul.f32.gmra.mxu0 %v312
        %v3980 = vpop.f32.mrf.mxu0
        %v3981 = vadd.f32 %v3916, %v3980
        %3982 = vmatmul.f32.gmra.mxu0 %v316
        %v3983 = vpop.f32.mrf.mxu0
        %v3984 = vadd.f32 %v3919, %v3983
        %3985 = vmatmul.f32.gmra.mxu0 %v320
        %v3986 = vpop.f32.mrf.mxu0
        %v3987 = vadd.f32 %v3922, %v3986
        %3988 = vmatmul.f32.gmra.mxu0 %v324
        %v3989 = vpop.f32.mrf.mxu0
        %v3990 = vadd.f32 %v3925, %v3989
        %3991 = vmatmul.f32.gmra.mxu0 %v328
        %v3992 = vpop.f32.mrf.mxu0
        %v3993 = vadd.f32 %v3928, %v3992
        %3994 = vmatmul.f32.gmra.mxu0 %v332
        %v3995 = vpop.f32.mrf.mxu0
        %v3996 = vadd.f32 %v3931, %v3995
        %3997 = vmatmul.f32.gmra.mxu0 %v336
        %v3998 = vpop.f32.mrf.mxu0
        %v3999 = vadd.f32 %v3934, %v3998
        %4000 = vmatmul.f32.gmra.mxu0 %v340
        %v4001 = vpop.f32.mrf.mxu0
        %v4002 = vadd.f32 %v3937, %v4001
        %4003 = vmatmul.f32.gmra.mxu0 %v344
        %v4004 = vpop.f32.mrf.mxu0
        %v4005 = vadd.f32 %v3940, %v4004
        %4006 = vmatmul.f32.gmra.mxu0 %v348
        %v4007 = vpop.f32.mrf.mxu0
        %v4008 = vadd.f32 %v3943, %v4007
        %4009 = vmatmul.f32.gmra.mxu0 %v352
        %v4010 = vpop.f32.mrf.mxu0
        %v4011 = vadd.f32 %v3946, %v4010
        %4012 = vmatmul.f32.gmra.mxu0 %v356
        %v4013 = vpop.f32.mrf.mxu0
        %v4014 = vadd.f32 %v3949, %v4013
        %4015 = vmatmul.f32.gmra.mxu0 %v360
        %v4016 = vpop.f32.mrf.mxu0
        %v4017 = vadd.f32 %v3952, %v4016
        %4018 = vmatmul.f32.gmra.mxu0 %v364
        %v4019 = vpop.f32.mrf.mxu0
        %v4020 = vadd.f32 %v3955, %v4019
        %4021 = vmatmul.f32.gmra.mxu0 %v368
        %v4022 = vpop.f32.mrf.mxu0
        %v4023 = vadd.f32 %v3958, %v4022
        %4024 = vdwg.mxu0
        %4025 = vmatpush.msra.mxu0 %v560
        %4026 = vmatpush.msra.mxu0 %v548
        %4027 = vmatpush.msra.mxu0 %v536
        %4028 = vmatpush.msra.mxu0 %v524
        %4029 = vmatpush.msra.mxu0 %v512
        %4030 = vmatpush.msra.mxu0 %v500
        %4031 = vmatpush.msra.mxu0 %v488
        %4032 = vmatpush.msra.mxu0 %v476
        %4033 = vmatpush.msra.mxu0 %v464
        %4034 = vmatpush.msra.mxu0 %v452
        %4035 = vmatpush.msra.mxu0 %v440
        %4036 = vmatpush.msra.mxu0 %v428
        %4037 = vmatpush.msra.mxu0 %v416
        %4038 = vmatpush.msra.mxu0 %v404
        %4039 = vmatpush.msra.mxu0 %v392
        %4040 = vmatpush.msra.mxu0 %v380
        %4041 = vmatmul.f32.gmra.mxu0 %v305
        %v4042 = vpop.f32.mrf.mxu0
        %v4043 = vadd.f32 %v1152, %v4042
        %4044 = vmatmul.f32.gmra.mxu0 %v309
        %v4045 = vpop.f32.mrf.mxu0
        %v4046 = vadd.f32 %v1152, %v4045
        %4047 = vmatmul.f32.gmra.mxu0 %v313
        %v4048 = vpop.f32.mrf.mxu0
        %v4049 = vadd.f32 %v1152, %v4048
        %4050 = vmatmul.f32.gmra.mxu0 %v317
        %v4051 = vpop.f32.mrf.mxu0
        %v4052 = vadd.f32 %v1152, %v4051
        %4053 = vmatmul.f32.gmra.mxu0 %v321
        %v4054 = vpop.f32.mrf.mxu0
        %v4055 = vadd.f32 %v1152, %v4054
        %4056 = vmatmul.f32.gmra.mxu0 %v325
        %v4057 = vpop.f32.mrf.mxu0
        %v4058 = vadd.f32 %v1152, %v4057
        %4059 = vmatmul.f32.gmra.mxu0 %v329
        %v4060 = vpop.f32.mrf.mxu0
        %v4061 = vadd.f32 %v1152, %v4060
        %4062 = vmatmul.f32.gmra.mxu0 %v333
        %v4063 = vpop.f32.mrf.mxu0
        %v4064 = vadd.f32 %v1152, %v4063
        %4065 = vmatmul.f32.gmra.mxu0 %v337
        %v4066 = vpop.f32.mrf.mxu0
        %v4067 = vadd.f32 %v1152, %v4066
        %4068 = vmatmul.f32.gmra.mxu0 %v341
        %v4069 = vpop.f32.mrf.mxu0
        %v4070 = vadd.f32 %v1152, %v4069
        %4071 = vmatmul.f32.gmra.mxu0 %v345
        %v4072 = vpop.f32.mrf.mxu0
        %v4073 = vadd.f32 %v1152, %v4072
        %4074 = vmatmul.f32.gmra.mxu0 %v349
        %v4075 = vpop.f32.mrf.mxu0
        %v4076 = vadd.f32 %v1152, %v4075
        %4077 = vmatmul.f32.gmra.mxu0 %v353
        %v4078 = vpop.f32.mrf.mxu0
        %v4079 = vadd.f32 %v1152, %v4078
        %4080 = vmatmul.f32.gmra.mxu0 %v357
        %v4081 = vpop.f32.mrf.mxu0
        %v4082 = vadd.f32 %v1152, %v4081
        %4083 = vmatmul.f32.gmra.mxu0 %v361
        %v4084 = vpop.f32.mrf.mxu0
        %v4085 = vadd.f32 %v1152, %v4084
        %4086 = vmatmul.f32.gmra.mxu0 %v365
        %v4087 = vpop.f32.mrf.mxu0
        %v4088 = vadd.f32 %v1152, %v4087
        %4089 = vdwg.mxu0
        %4090 = vmatpush.msra.mxu0 %v752
        %4091 = vmatpush.msra.mxu0 %v740
        %4092 = vmatpush.msra.mxu0 %v728
        %4093 = vmatpush.msra.mxu0 %v716
        %4094 = vmatpush.msra.mxu0 %v704
        %4095 = vmatpush.msra.mxu0 %v692
        %4096 = vmatpush.msra.mxu0 %v680
        %4097 = vmatpush.msra.mxu0 %v668
        %4098 = vmatpush.msra.mxu0 %v656
        %4099 = vmatpush.msra.mxu0 %v644
        %4100 = vmatpush.msra.mxu0 %v632
        %4101 = vmatpush.msra.mxu0 %v620
        %4102 = vmatpush.msra.mxu0 %v608
        %4103 = vmatpush.msra.mxu0 %v596
        %4104 = vmatpush.msra.mxu0 %v584
        %4105 = vmatpush.msra.mxu0 %v572
        %4106 = vmatmul.f32.gmra.mxu0 %v306
        %v4107 = vpop.f32.mrf.mxu0
        %v4108 = vadd.f32 %v4043, %v4107
        %4109 = vmatmul.f32.gmra.mxu0 %v310
        %v4110 = vpop.f32.mrf.mxu0
        %v4111 = vadd.f32 %v4046, %v4110
        %4112 = vmatmul.f32.gmra.mxu0 %v314
        %v4113 = vpop.f32.mrf.mxu0
        %v4114 = vadd.f32 %v4049, %v4113
        %4115 = vmatmul.f32.gmra.mxu0 %v318
        %v4116 = vpop.f32.mrf.mxu0
        %v4117 = vadd.f32 %v4052, %v4116
        %4118 = vmatmul.f32.gmra.mxu0 %v322
        %v4119 = vpop.f32.mrf.mxu0
        %v4120 = vadd.f32 %v4055, %v4119
        %4121 = vmatmul.f32.gmra.mxu0 %v326
        %v4122 = vpop.f32.mrf.mxu0
        %v4123 = vadd.f32 %v4058, %v4122
        %4124 = vmatmul.f32.gmra.mxu0 %v330
        %v4125 = vpop.f32.mrf.mxu0
        %v4126 = vadd.f32 %v4061, %v4125
        %4127 = vmatmul.f32.gmra.mxu0 %v334
        %v4128 = vpop.f32.mrf.mxu0
        %v4129 = vadd.f32 %v4064, %v4128
        %4130 = vmatmul.f32.gmra.mxu0 %v338
        %v4131 = vpop.f32.mrf.mxu0
        %v4132 = vadd.f32 %v4067, %v4131
        %4133 = vmatmul.f32.gmra.mxu0 %v342
        %v4134 = vpop.f32.mrf.mxu0
        %v4135 = vadd.f32 %v4070, %v4134
        %4136 = vmatmul.f32.gmra.mxu0 %v346
        %v4137 = vpop.f32.mrf.mxu0
        %v4138 = vadd.f32 %v4073, %v4137
        %4139 = vmatmul.f32.gmra.mxu0 %v350
        %v4140 = vpop.f32.mrf.mxu0
        %v4141 = vadd.f32 %v4076, %v4140
        %4142 = vmatmul.f32.gmra.mxu0 %v354
        %v4143 = vpop.f32.mrf.mxu0
        %v4144 = vadd.f32 %v4079, %v4143
        %4145 = vmatmul.f32.gmra.mxu0 %v358
        %v4146 = vpop.f32.mrf.mxu0
        %v4147 = vadd.f32 %v4082, %v4146
        %4148 = vmatmul.f32.gmra.mxu0 %v362
        %v4149 = vpop.f32.mrf.mxu0
        %v4150 = vadd.f32 %v4085, %v4149
        %4151 = vmatmul.f32.gmra.mxu0 %v366
        %v4152 = vpop.f32.mrf.mxu0
        %v4153 = vadd.f32 %v4088, %v4152
        %4154 = vdwg.mxu0
        %4155 = vmatpush.msra.mxu0 %v944
        %4156 = vmatpush.msra.mxu0 %v932
        %4157 = vmatpush.msra.mxu0 %v920
        %4158 = vmatpush.msra.mxu0 %v908
        %4159 = vmatpush.msra.mxu0 %v896
        %4160 = vmatpush.msra.mxu0 %v884
        %4161 = vmatpush.msra.mxu0 %v872
        %4162 = vmatpush.msra.mxu0 %v860
        %4163 = vmatpush.msra.mxu0 %v848
        %4164 = vmatpush.msra.mxu0 %v836
        %4165 = vmatpush.msra.mxu0 %v824
        %4166 = vmatpush.msra.mxu0 %v812
        %4167 = vmatpush.msra.mxu0 %v800
        %4168 = vmatpush.msra.mxu0 %v788
        %4169 = vmatpush.msra.mxu0 %v776
        %4170 = vmatpush.msra.mxu0 %v764
        %4171 = vmatmul.f32.gmra.mxu0 %v307
        %v4172 = vpop.f32.mrf.mxu0
        %v4173 = vadd.f32 %v4108, %v4172
        %4174 = vmatmul.f32.gmra.mxu0 %v311
        %v4175 = vpop.f32.mrf.mxu0
        %v4176 = vadd.f32 %v4111, %v4175
        %4177 = vmatmul.f32.gmra.mxu0 %v315
        %v4178 = vpop.f32.mrf.mxu0
        %v4179 = vadd.f32 %v4114, %v4178
        %4180 = vmatmul.f32.gmra.mxu0 %v319
        %v4181 = vpop.f32.mrf.mxu0
        %v4182 = vadd.f32 %v4117, %v4181
        %4183 = vmatmul.f32.gmra.mxu0 %v323
        %v4184 = vpop.f32.mrf.mxu0
        %v4185 = vadd.f32 %v4120, %v4184
        %4186 = vmatmul.f32.gmra.mxu0 %v327
        %v4187 = vpop.f32.mrf.mxu0
        %v4188 = vadd.f32 %v4123, %v4187
        %4189 = vmatmul.f32.gmra.mxu0 %v331
        %v4190 = vpop.f32.mrf.mxu0
        %v4191 = vadd.f32 %v4126, %v4190
        %4192 = vmatmul.f32.gmra.mxu0 %v335
        %v4193 = vpop.f32.mrf.mxu0
        %v4194 = vadd.f32 %v4129, %v4193
        %4195 = vmatmul.f32.gmra.mxu0 %v339
        %v4196 = vpop.f32.mrf.mxu0
        %v4197 = vadd.f32 %v4132, %v4196
        %4198 = vmatmul.f32.gmra.mxu0 %v343
        %v4199 = vpop.f32.mrf.mxu0
        %v4200 = vadd.f32 %v4135, %v4199
        %4201 = vmatmul.f32.gmra.mxu0 %v347
        %v4202 = vpop.f32.mrf.mxu0
        %v4203 = vadd.f32 %v4138, %v4202
        %4204 = vmatmul.f32.gmra.mxu0 %v351
        %v4205 = vpop.f32.mrf.mxu0
        %v4206 = vadd.f32 %v4141, %v4205
        %4207 = vmatmul.f32.gmra.mxu0 %v355
        %v4208 = vpop.f32.mrf.mxu0
        %v4209 = vadd.f32 %v4144, %v4208
        %4210 = vmatmul.f32.gmra.mxu0 %v359
        %v4211 = vpop.f32.mrf.mxu0
        %v4212 = vadd.f32 %v4147, %v4211
        %4213 = vmatmul.f32.gmra.mxu0 %v363
        %v4214 = vpop.f32.mrf.mxu0
        %v4215 = vadd.f32 %v4150, %v4214
        %4216 = vmatmul.f32.gmra.mxu0 %v367
        %v4217 = vpop.f32.mrf.mxu0
        %v4218 = vadd.f32 %v4153, %v4217
        %4219 = vdwg.mxu0
        %4220 = vmatpush.msra.mxu0 %v1136
        %4221 = vmatpush.msra.mxu0 %v1124
        %4222 = vmatpush.msra.mxu0 %v1112
        %4223 = vmatpush.msra.mxu0 %v1100
        %4224 = vmatpush.msra.mxu0 %v1088
        %4225 = vmatpush.msra.mxu0 %v1076
        %4226 = vmatpush.msra.mxu0 %v1064
        %4227 = vmatpush.msra.mxu0 %v1052
        %4228 = vmatpush.msra.mxu0 %v1040
        %4229 = vmatpush.msra.mxu0 %v1028
        %4230 = vmatpush.msra.mxu0 %v1016
        %4231 = vmatpush.msra.mxu0 %v1004
        %4232 = vmatpush.msra.mxu0 %v992
        %4233 = vmatpush.msra.mxu0 %v980
        %4234 = vmatpush.msra.mxu0 %v968
        %4235 = vmatpush.msra.mxu0 %v956
        %4236 = vmatmul.f32.gmra.mxu0 %v308
        %v4237 = vpop.f32.mrf.mxu0
        %v4238 = vadd.f32 %v4173, %v4237
        %4239 = vmatmul.f32.gmra.mxu0 %v312
        %v4240 = vpop.f32.mrf.mxu0
        %v4241 = vadd.f32 %v4176, %v4240
        %4242 = vmatmul.f32.gmra.mxu0 %v316
        %v4243 = vpop.f32.mrf.mxu0
        %v4244 = vadd.f32 %v4179, %v4243
        %4245 = vmatmul.f32.gmra.mxu0 %v320
        %v4246 = vpop.f32.mrf.mxu0
        %v4247 = vadd.f32 %v4182, %v4246
        %4248 = vmatmul.f32.gmra.mxu0 %v324
        %v4249 = vpop.f32.mrf.mxu0
        %v4250 = vadd.f32 %v4185, %v4249
        %4251 = vmatmul.f32.gmra.mxu0 %v328
        %v4252 = vpop.f32.mrf.mxu0
        %v4253 = vadd.f32 %v4188, %v4252
        %4254 = vmatmul.f32.gmra.mxu0 %v332
        %v4255 = vpop.f32.mrf.mxu0
        %v4256 = vadd.f32 %v4191, %v4255
        %4257 = vmatmul.f32.gmra.mxu0 %v336
        %v4258 = vpop.f32.mrf.mxu0
        %v4259 = vadd.f32 %v4194, %v4258
        %4260 = vmatmul.f32.gmra.mxu0 %v340
        %v4261 = vpop.f32.mrf.mxu0
        %v4262 = vadd.f32 %v4197, %v4261
        %4263 = vmatmul.f32.gmra.mxu0 %v344
        %v4264 = vpop.f32.mrf.mxu0
        %v4265 = vadd.f32 %v4200, %v4264
        %4266 = vmatmul.f32.gmra.mxu0 %v348
        %v4267 = vpop.f32.mrf.mxu0
        %v4268 = vadd.f32 %v4203, %v4267
        %4269 = vmatmul.f32.gmra.mxu0 %v352
        %v4270 = vpop.f32.mrf.mxu0
        %v4271 = vadd.f32 %v4206, %v4270
        %4272 = vmatmul.f32.gmra.mxu0 %v356
        %v4273 = vpop.f32.mrf.mxu0
        %v4274 = vadd.f32 %v4209, %v4273
        %4275 = vmatmul.f32.gmra.mxu0 %v360
        %v4276 = vpop.f32.mrf.mxu0
        %v4277 = vadd.f32 %v4212, %v4276
        %4278 = vmatmul.f32.gmra.mxu0 %v364
        %v4279 = vpop.f32.mrf.mxu0
        %v4280 = vadd.f32 %v4215, %v4279
        %4281 = vmatmul.f32.gmra.mxu0 %v368
        %v4282 = vpop.f32.mrf.mxu0
        %v4283 = vadd.f32 %v4218, %v4282
        %4284 = vdwg.mxu0
        %4285 = vmatpush.xpose.msra.mxu0 %v3503
        %4286 = vmatpush.xpose.msra.mxu0 %v3500
        %4287 = vmatpush.xpose.msra.mxu0 %v3497
        %4288 = vmatpush.xpose.msra.mxu0 %v3494
        %4289 = vmatpush.xpose.msra.mxu0 %v3491
        %4290 = vmatpush.xpose.msra.mxu0 %v3488
        %4291 = vmatpush.xpose.msra.mxu0 %v3485
        %4292 = vmatpush.xpose.msra.mxu0 %v3482
        %4293 = vmatpush.xpose.msra.mxu0 %v3479
        %4294 = vmatpush.xpose.msra.mxu0 %v3476
        %4295 = vmatpush.xpose.msra.mxu0 %v3473
        %4296 = vmatpush.xpose.msra.mxu0 %v3470
        %4297 = vmatpush.xpose.msra.mxu0 %v3467
        %4298 = vmatpush.xpose.msra.mxu0 %v3464
        %4299 = vmatpush.xpose.msra.mxu0 %v3461
        %4300 = vmatpush.xpose.msra.mxu0 %v3458
        %4301 = vmatmul.f32.gmra.mxu0 %v1378
        %v4302 = vpop.f32.mrf.mxu0
        %v4303 = vadd.f32 0.0, %v4302
        %4304 = vmatmul.f32.gmra.mxu0 %v1381
        %v4305 = vpop.f32.mrf.mxu0
        %v4306 = vadd.f32 0.0, %v4305
        %4307 = vmatmul.f32.gmra.mxu0 %v1384
        %v4308 = vpop.f32.mrf.mxu0
        %v4309 = vadd.f32 0.0, %v4308
        %4310 = vmatmul.f32.gmra.mxu0 %v1387
        %v4311 = vpop.f32.mrf.mxu0
        %v4312 = vadd.f32 0.0, %v4311
        %4313 = vmatmul.f32.gmra.mxu0 %v1390
        %v4314 = vpop.f32.mrf.mxu0
        %v4315 = vadd.f32 0.0, %v4314
        %4316 = vmatmul.f32.gmra.mxu0 %v1393
        %v4317 = vpop.f32.mrf.mxu0
        %v4318 = vadd.f32 0.0, %v4317
        %4319 = vmatmul.f32.gmra.mxu0 %v1396
        %v4320 = vpop.f32.mrf.mxu0
        %v4321 = vadd.f32 0.0, %v4320
        %4322 = vmatmul.f32.gmra.mxu0 %v1399
        %v4323 = vpop.f32.mrf.mxu0
        %v4324 = vadd.f32 0.0, %v4323
        %4325 = vmatmul.f32.gmra.mxu0 %v1402
        %v4326 = vpop.f32.mrf.mxu0
        %v4327 = vadd.f32 0.0, %v4326
        %4328 = vmatmul.f32.gmra.mxu0 %v1405
        %v4329 = vpop.f32.mrf.mxu0
        %v4330 = vadd.f32 0.0, %v4329
        %4331 = vmatmul.f32.gmra.mxu0 %v1408
        %v4332 = vpop.f32.mrf.mxu0
        %v4333 = vadd.f32 0.0, %v4332
        %4334 = vmatmul.f32.gmra.mxu0 %v1411
        %v4335 = vpop.f32.mrf.mxu0
        %v4336 = vadd.f32 0.0, %v4335
        %4337 = vmatmul.f32.gmra.mxu0 %v1414
        %v4338 = vpop.f32.mrf.mxu0
        %v4339 = vadd.f32 0.0, %v4338
        %4340 = vmatmul.f32.gmra.mxu0 %v1417
        %v4341 = vpop.f32.mrf.mxu0
        %v4342 = vadd.f32 0.0, %v4341
        %4343 = vmatmul.f32.gmra.mxu0 %v1420
        %v4344 = vpop.f32.mrf.mxu0
        %v4345 = vadd.f32 0.0, %v4344
        %4346 = vmatmul.f32.gmra.mxu0 %v1423
        %v4347 = vpop.f32.mrf.mxu0
        %v4348 = vadd.f32 0.0, %v4347
        %4349 = vdwg.mxu0
        %v4350 = vmul.f32 %v4303, 0.088388346
        %v4351 = vmul.f32 %v4306, 0.088388346
        %v4352 = vmul.f32 %v4309, 0.088388346
        %v4353 = vmul.f32 %v4312, 0.088388346
        %v4354 = vmul.f32 %v4315, 0.088388346
        %v4355 = vmul.f32 %v4318, 0.088388346
        %v4356 = vmul.f32 %v4321, 0.088388346
        %v4357 = vmul.f32 %v4324, 0.088388346
        %v4358 = vmul.f32 %v4327, 0.088388346
        %v4359 = vmul.f32 %v4330, 0.088388346
        %v4360 = vmul.f32 %v4333, 0.088388346
        %v4361 = vmul.f32 %v4336, 0.088388346
        %v4362 = vmul.f32 %v4339, 0.088388346
        %v4363 = vmul.f32 %v4342, 0.088388346
        %v4364 = vmul.f32 %v4345, 0.088388346
        %v4365 = vmul.f32 %v4348, 0.088388346
        %v4366 = vlaneseq
        %v4367 = vshrl.u32 %v4366, 7
        %v4368 = vadd.s32 %v4367, 8
        %v4369 = vadd.s32 %v4367, 16
        %v4370 = vadd.s32 %v4367, 24
        %v4371 = vadd.s32 %v4367, 32
        %v4372 = vadd.s32 %v4367, 40
        %v4373 = vadd.s32 %v4367, 48
        %v4374 = vadd.s32 %v4367, 56
        %v4375 = vadd.s32 %v4367, 64
        %v4376 = vadd.s32 %v4367, 72
        %v4377 = vadd.s32 %v4367, 80
        %v4378 = vadd.s32 %v4367, 88
        %v4379 = vadd.s32 %v4367, 96
        %v4380 = vadd.s32 %v4367, 104
        %v4381 = vadd.s32 %v4367, 112
        %v4382 = vadd.s32 %v4367, 120
        %v4383 = vlaneseq
        %v4384 = vand.u32 %v4383, 127
        %vm4385 = vcmp.le.s32.totalorder %v4384, %v4367
        %vm4386 = vcmp.le.s32.totalorder %v4384, %v4368
        %vm4387 = vcmp.le.s32.totalorder %v4384, %v4369
        %vm4388 = vcmp.le.s32.totalorder %v4384, %v4370
        %vm4389 = vcmp.le.s32.totalorder %v4384, %v4371
        %vm4390 = vcmp.le.s32.totalorder %v4384, %v4372
        %vm4391 = vcmp.le.s32.totalorder %v4384, %v4373
        %vm4392 = vcmp.le.s32.totalorder %v4384, %v4374
        %vm4393 = vcmp.le.s32.totalorder %v4384, %v4375
        %vm4394 = vcmp.le.s32.totalorder %v4384, %v4376
        %vm4395 = vcmp.le.s32.totalorder %v4384, %v4377
        %vm4396 = vcmp.le.s32.totalorder %v4384, %v4378
        %vm4397 = vcmp.le.s32.totalorder %v4384, %v4379
        %vm4398 = vcmp.le.s32.totalorder %v4384, %v4380
        %vm4399 = vcmp.le.s32.totalorder %v4384, %v4381
        %vm4400 = vcmp.le.s32.totalorder %v4384, %v4382
        %v4401 = vsel %vm4385, %v4350, -1e+09
        %v4402 = vsel %vm4386, %v4351, -1e+09
        %v4403 = vsel %vm4387, %v4352, -1e+09
        %v4404 = vsel %vm4388, %v4353, -1e+09
        %v4405 = vsel %vm4389, %v4354, -1e+09
        %v4406 = vsel %vm4390, %v4355, -1e+09
        %v4407 = vsel %vm4391, %v4356, -1e+09
        %v4408 = vsel %vm4392, %v4357, -1e+09
        %v4409 = vsel %vm4393, %v4358, -1e+09
        %v4410 = vsel %vm4394, %v4359, -1e+09
        %v4411 = vsel %vm4395, %v4360, -1e+09
        %v4412 = vsel %vm4396, %v4361, -1e+09
        %v4413 = vsel %vm4397, %v4362, -1e+09
        %v4414 = vsel %vm4398, %v4363, -1e+09
        %v4415 = vsel %vm4399, %v4364, -1e+09
        %v4416 = vsel %vm4400, %v4365, -1e+09
        %4417 = vmax.xlane.f32.xlu0 %v4401
        %v4418 = vpop.xlane.xlu0 %4417
        %4419 = vmax.xlane.f32.xlu0 %v4402
        %v4420 = vpop.xlane.xlu0 %4419
        %4421 = vmax.xlane.f32.xlu0 %v4403
        %v4422 = vpop.xlane.xlu0 %4421
        %4423 = vmax.xlane.f32.xlu0 %v4404
        %v4424 = vpop.xlane.xlu0 %4423
        %4425 = vmax.xlane.f32.xlu0 %v4405
        %v4426 = vpop.xlane.xlu0 %4425
        %4427 = vmax.xlane.f32.xlu0 %v4406
        %v4428 = vpop.xlane.xlu0 %4427
        %4429 = vmax.xlane.f32.xlu0 %v4407
        %v4430 = vpop.xlane.xlu0 %4429
        %4431 = vmax.xlane.f32.xlu0 %v4408
        %v4432 = vpop.xlane.xlu0 %4431
        %4433 = vmax.xlane.f32.xlu0 %v4409
        %v4434 = vpop.xlane.xlu0 %4433
        %4435 = vmax.xlane.f32.xlu0 %v4410
        %v4436 = vpop.xlane.xlu0 %4435
        %4437 = vmax.xlane.f32.xlu0 %v4411
        %v4438 = vpop.xlane.xlu0 %4437
        %4439 = vmax.xlane.f32.xlu0 %v4412
        %v4440 = vpop.xlane.xlu0 %4439
        %4441 = vmax.xlane.f32.xlu0 %v4413
        %v4442 = vpop.xlane.xlu0 %4441
        %4443 = vmax.xlane.f32.xlu0 %v4414
        %v4444 = vpop.xlane.xlu0 %4443
        %4445 = vmax.xlane.f32.xlu0 %v4415
        %v4446 = vpop.xlane.xlu0 %4445
        %4447 = vmax.xlane.f32.xlu0 %v4416
        %v4448 = vpop.xlane.xlu0 %4447
        %v4449 = vsub.f32 %v4401, %v4418
        %v4450 = vsub.f32 %v4402, %v4420
        %v4451 = vsub.f32 %v4403, %v4422
        %v4452 = vsub.f32 %v4404, %v4424
        %v4453 = vsub.f32 %v4405, %v4426
        %v4454 = vsub.f32 %v4406, %v4428
        %v4455 = vsub.f32 %v4407, %v4430
        %v4456 = vsub.f32 %v4408, %v4432
        %v4457 = vsub.f32 %v4409, %v4434
        %v4458 = vsub.f32 %v4410, %v4436
        %v4459 = vsub.f32 %v4411, %v4438
        %v4460 = vsub.f32 %v4412, %v4440
        %v4461 = vsub.f32 %v4413, %v4442
        %v4462 = vsub.f32 %v4414, %v4444
        %v4463 = vsub.f32 %v4415, %v4446
        %v4464 = vsub.f32 %v4416, %v4448
        %v4465 = vmul.f32 %v4449, 1.442695
        %v4466 = vpow.pop %v4465
        %v4467 = vmul.f32 %v4450, 1.442695
        %v4468 = vpow.pop %v4467
        %v4469 = vmul.f32 %v4451, 1.442695
        %v4470 = vpow.pop %v4469
        %v4471 = vmul.f32 %v4452, 1.442695
        %v4472 = vpow.pop %v4471
        %v4473 = vmul.f32 %v4453, 1.442695
        %v4474 = vpow.pop %v4473
        %v4475 = vmul.f32 %v4454, 1.442695
        %v4476 = vpow.pop %v4475
        %v4477 = vmul.f32 %v4455, 1.442695
        %v4478 = vpow.pop %v4477
        %v4479 = vmul.f32 %v4456, 1.442695
        %v4480 = vpow.pop %v4479
        %v4481 = vmul.f32 %v4457, 1.442695
        %v4482 = vpow.pop %v4481
        %v4483 = vmul.f32 %v4458, 1.442695
        %v4484 = vpow.pop %v4483
        %v4485 = vmul.f32 %v4459, 1.442695
        %v4486 = vpow.pop %v4485
        %v4487 = vmul.f32 %v4460, 1.442695
        %v4488 = vpow.pop %v4487
        %v4489 = vmul.f32 %v4461, 1.442695
        %v4490 = vpow.pop %v4489
        %v4491 = vmul.f32 %v4462, 1.442695
        %v4492 = vpow.pop %v4491
        %v4493 = vmul.f32 %v4463, 1.442695
        %v4494 = vpow.pop %v4493
        %v4495 = vmul.f32 %v4464, 1.442695
        %v4496 = vpow.pop %v4495
        %4497 = vadd.xlane.f32.xlu0 %v4466
        %v4498 = vpop.xlane.xlu0 %4497
        %4499 = vadd.xlane.f32.xlu0 %v4468
        %v4500 = vpop.xlane.xlu0 %4499
        %4501 = vadd.xlane.f32.xlu0 %v4470
        %v4502 = vpop.xlane.xlu0 %4501
        %4503 = vadd.xlane.f32.xlu0 %v4472
        %v4504 = vpop.xlane.xlu0 %4503
        %4505 = vadd.xlane.f32.xlu0 %v4474
        %v4506 = vpop.xlane.xlu0 %4505
        %4507 = vadd.xlane.f32.xlu0 %v4476
        %v4508 = vpop.xlane.xlu0 %4507
        %4509 = vadd.xlane.f32.xlu0 %v4478
        %v4510 = vpop.xlane.xlu0 %4509
        %4511 = vadd.xlane.f32.xlu0 %v4480
        %v4512 = vpop.xlane.xlu0 %4511
        %4513 = vadd.xlane.f32.xlu0 %v4482
        %v4514 = vpop.xlane.xlu0 %4513
        %4515 = vadd.xlane.f32.xlu0 %v4484
        %v4516 = vpop.xlane.xlu0 %4515
        %4517 = vadd.xlane.f32.xlu0 %v4486
        %v4518 = vpop.xlane.xlu0 %4517
        %4519 = vadd.xlane.f32.xlu0 %v4488
        %v4520 = vpop.xlane.xlu0 %4519
        %4521 = vadd.xlane.f32.xlu0 %v4490
        %v4522 = vpop.xlane.xlu0 %4521
        %4523 = vadd.xlane.f32.xlu0 %v4492
        %v4524 = vpop.xlane.xlu0 %4523
        %4525 = vadd.xlane.f32.xlu0 %v4494
        %v4526 = vpop.xlane.xlu0 %4525
        %4527 = vadd.xlane.f32.xlu0 %v4496
        %v4528 = vpop.xlane.xlu0 %4527
        %v4529 = vrcp.pop %v4498
        %v4530 = vrcp.pop %v4500
        %v4531 = vrcp.pop %v4502
        %v4532 = vrcp.pop %v4504
        %v4533 = vrcp.pop %v4506
        %v4534 = vrcp.pop %v4508
        %v4535 = vrcp.pop %v4510
        %v4536 = vrcp.pop %v4512
        %v4537 = vrcp.pop %v4514
        %v4538 = vrcp.pop %v4516
        %v4539 = vrcp.pop %v4518
        %v4540 = vrcp.pop %v4520
        %v4541 = vrcp.pop %v4522
        %v4542 = vrcp.pop %v4524
        %v4543 = vrcp.pop %v4526
        %v4544 = vrcp.pop %v4528
        %v4545 = vmul.f32 %v4466, %v4529
        %v4546 = vmul.f32 %v4468, %v4530
        %v4547 = vmul.f32 %v4470, %v4531
        %v4548 = vmul.f32 %v4472, %v4532
        %v4549 = vmul.f32 %v4474, %v4533
        %v4550 = vmul.f32 %v4476, %v4534
        %v4551 = vmul.f32 %v4478, %v4535
        %v4552 = vmul.f32 %v4480, %v4536
        %v4553 = vmul.f32 %v4482, %v4537
        %v4554 = vmul.f32 %v4484, %v4538
        %v4555 = vmul.f32 %v4486, %v4539
        %v4556 = vmul.f32 %v4488, %v4540
        %v4557 = vmul.f32 %v4490, %v4541
        %v4558 = vmul.f32 %v4492, %v4542
        %v4559 = vmul.f32 %v4494, %v4543
        %v4560 = vmul.f32 %v4496, %v4544
        %4561 = vmatpush.msra.mxu0 %v2463
        %4562 = vmatpush.msra.mxu0 %v2460
        %4563 = vmatpush.msra.mxu0 %v2457
        %4564 = vmatpush.msra.mxu0 %v2454
        %4565 = vmatpush.msra.mxu0 %v2451
        %4566 = vmatpush.msra.mxu0 %v2448
        %4567 = vmatpush.msra.mxu0 %v2445
        %4568 = vmatpush.msra.mxu0 %v2442
        %4569 = vmatpush.msra.mxu0 %v2439
        %4570 = vmatpush.msra.mxu0 %v2436
        %4571 = vmatpush.msra.mxu0 %v2433
        %4572 = vmatpush.msra.mxu0 %v2430
        %4573 = vmatpush.msra.mxu0 %v2427
        %4574 = vmatpush.msra.mxu0 %v2424
        %4575 = vmatpush.msra.mxu0 %v2421
        %4576 = vmatpush.msra.mxu0 %v2418
        %4577 = vmatmul.f32.gmra.mxu0 %v4545
        %v4578 = vpop.f32.mrf.mxu0
        %v4579 = vadd.f32 0.0, %v4578
        %4580 = vmatmul.f32.gmra.mxu0 %v4546
        %v4581 = vpop.f32.mrf.mxu0
        %v4582 = vadd.f32 0.0, %v4581
        %4583 = vmatmul.f32.gmra.mxu0 %v4547
        %v4584 = vpop.f32.mrf.mxu0
        %v4585 = vadd.f32 0.0, %v4584
        %4586 = vmatmul.f32.gmra.mxu0 %v4548
        %v4587 = vpop.f32.mrf.mxu0
        %v4588 = vadd.f32 0.0, %v4587
        %4589 = vmatmul.f32.gmra.mxu0 %v4549
        %v4590 = vpop.f32.mrf.mxu0
        %v4591 = vadd.f32 0.0, %v4590
        %4592 = vmatmul.f32.gmra.mxu0 %v4550
        %v4593 = vpop.f32.mrf.mxu0
        %v4594 = vadd.f32 0.0, %v4593
        %4595 = vmatmul.f32.gmra.mxu0 %v4551
        %v4596 = vpop.f32.mrf.mxu0
        %v4597 = vadd.f32 0.0, %v4596
        %4598 = vmatmul.f32.gmra.mxu0 %v4552
        %v4599 = vpop.f32.mrf.mxu0
        %v4600 = vadd.f32 0.0, %v4599
        %4601 = vmatmul.f32.gmra.mxu0 %v4553
        %v4602 = vpop.f32.mrf.mxu0
        %v4603 = vadd.f32 0.0, %v4602
        %4604 = vmatmul.f32.gmra.mxu0 %v4554
        %v4605 = vpop.f32.mrf.mxu0
        %v4606 = vadd.f32 0.0, %v4605
        %4607 = vmatmul.f32.gmra.mxu0 %v4555
        %v4608 = vpop.f32.mrf.mxu0
        %v4609 = vadd.f32 0.0, %v4608
        %4610 = vmatmul.f32.gmra.mxu0 %v4556
        %v4611 = vpop.f32.mrf.mxu0
        %v4612 = vadd.f32 0.0, %v4611
        %4613 = vmatmul.f32.gmra.mxu0 %v4557
        %v4614 = vpop.f32.mrf.mxu0
        %v4615 = vadd.f32 0.0, %v4614
        %4616 = vmatmul.f32.gmra.mxu0 %v4558
        %v4617 = vpop.f32.mrf.mxu0
        %v4618 = vadd.f32 0.0, %v4617
        %4619 = vmatmul.f32.gmra.mxu0 %v4559
        %v4620 = vpop.f32.mrf.mxu0
        %v4621 = vadd.f32 0.0, %v4620
        %4622 = vmatmul.f32.gmra.mxu0 %v4560
        %v4623 = vpop.f32.mrf.mxu0
        %v4624 = vadd.f32 0.0, %v4623
        %4625 = vdwg.mxu0
        %4626 = vmatpush.xpose.msra.mxu0 %v3763
        %4627 = vmatpush.xpose.msra.mxu0 %v3760
        %4628 = vmatpush.xpose.msra.mxu0 %v3757
        %4629 = vmatpush.xpose.msra.mxu0 %v3754
        %4630 = vmatpush.xpose.msra.mxu0 %v3751
        %4631 = vmatpush.xpose.msra.mxu0 %v3748
        %4632 = vmatpush.xpose.msra.mxu0 %v3745
        %4633 = vmatpush.xpose.msra.mxu0 %v3742
        %4634 = vmatpush.xpose.msra.mxu0 %v3739
        %4635 = vmatpush.xpose.msra.mxu0 %v3736
        %4636 = vmatpush.xpose.msra.mxu0 %v3733
        %4637 = vmatpush.xpose.msra.mxu0 %v3730
        %4638 = vmatpush.xpose.msra.mxu0 %v3727
        %4639 = vmatpush.xpose.msra.mxu0 %v3724
        %4640 = vmatpush.xpose.msra.mxu0 %v3721
        %4641 = vmatpush.xpose.msra.mxu0 %v3718
        %4642 = vmatmul.f32.gmra.mxu0 %v1638
        %v4643 = vpop.f32.mrf.mxu0
        %v4644 = vadd.f32 0.0, %v4643
        %4645 = vmatmul.f32.gmra.mxu0 %v1641
        %v4646 = vpop.f32.mrf.mxu0
        %v4647 = vadd.f32 0.0, %v4646
        %4648 = vmatmul.f32.gmra.mxu0 %v1644
        %v4649 = vpop.f32.mrf.mxu0
        %v4650 = vadd.f32 0.0, %v4649
        %4651 = vmatmul.f32.gmra.mxu0 %v1647
        %v4652 = vpop.f32.mrf.mxu0
        %v4653 = vadd.f32 0.0, %v4652
        %4654 = vmatmul.f32.gmra.mxu0 %v1650
        %v4655 = vpop.f32.mrf.mxu0
        %v4656 = vadd.f32 0.0, %v4655
        %4657 = vmatmul.f32.gmra.mxu0 %v1653
        %v4658 = vpop.f32.mrf.mxu0
        %v4659 = vadd.f32 0.0, %v4658
        %4660 = vmatmul.f32.gmra.mxu0 %v1656
        %v4661 = vpop.f32.mrf.mxu0
        %v4662 = vadd.f32 0.0, %v4661
        %4663 = vmatmul.f32.gmra.mxu0 %v1659
        %v4664 = vpop.f32.mrf.mxu0
        %v4665 = vadd.f32 0.0, %v4664
        %4666 = vmatmul.f32.gmra.mxu0 %v1662
        %v4667 = vpop.f32.mrf.mxu0
        %v4668 = vadd.f32 0.0, %v4667
        %4669 = vmatmul.f32.gmra.mxu0 %v1665
        %v4670 = vpop.f32.mrf.mxu0
        %v4671 = vadd.f32 0.0, %v4670
        %4672 = vmatmul.f32.gmra.mxu0 %v1668
        %v4673 = vpop.f32.mrf.mxu0
        %v4674 = vadd.f32 0.0, %v4673
        %4675 = vmatmul.f32.gmra.mxu0 %v1671
        %v4676 = vpop.f32.mrf.mxu0
        %v4677 = vadd.f32 0.0, %v4676
        %4678 = vmatmul.f32.gmra.mxu0 %v1674
        %v4679 = vpop.f32.mrf.mxu0
        %v4680 = vadd.f32 0.0, %v4679
        %4681 = vmatmul.f32.gmra.mxu0 %v1677
        %v4682 = vpop.f32.mrf.mxu0
        %v4683 = vadd.f32 0.0, %v4682
        %4684 = vmatmul.f32.gmra.mxu0 %v1680
        %v4685 = vpop.f32.mrf.mxu0
        %v4686 = vadd.f32 0.0, %v4685
        %4687 = vmatmul.f32.gmra.mxu0 %v1683
        %v4688 = vpop.f32.mrf.mxu0
        %v4689 = vadd.f32 0.0, %v4688
        %4690 = vdwg.mxu0
        %v4691 = vmul.f32 %v4644, 0.088388346
        %v4692 = vmul.f32 %v4647, 0.088388346
        %v4693 = vmul.f32 %v4650, 0.088388346
        %v4694 = vmul.f32 %v4653, 0.088388346
        %v4695 = vmul.f32 %v4656, 0.088388346
        %v4696 = vmul.f32 %v4659, 0.088388346
        %v4697 = vmul.f32 %v4662, 0.088388346
        %v4698 = vmul.f32 %v4665, 0.088388346
        %v4699 = vmul.f32 %v4668, 0.088388346
        %v4700 = vmul.f32 %v4671, 0.088388346
        %v4701 = vmul.f32 %v4674, 0.088388346
        %v4702 = vmul.f32 %v4677, 0.088388346
        %v4703 = vmul.f32 %v4680, 0.088388346
        %v4704 = vmul.f32 %v4683, 0.088388346
        %v4705 = vmul.f32 %v4686, 0.088388346
        %v4706 = vmul.f32 %v4689, 0.088388346
        %v4707 = vsel %vm4385, %v4691, -1e+09
        %v4708 = vsel %vm4386, %v4692, -1e+09
        %v4709 = vsel %vm4387, %v4693, -1e+09
        %v4710 = vsel %vm4388, %v4694, -1e+09
        %v4711 = vsel %vm4389, %v4695, -1e+09
        %v4712 = vsel %vm4390, %v4696, -1e+09
        %v4713 = vsel %vm4391, %v4697, -1e+09
        %v4714 = vsel %vm4392, %v4698, -1e+09
        %v4715 = vsel %vm4393, %v4699, -1e+09
        %v4716 = vsel %vm4394, %v4700, -1e+09
        %v4717 = vsel %vm4395, %v4701, -1e+09
        %v4718 = vsel %vm4396, %v4702, -1e+09
        %v4719 = vsel %vm4397, %v4703, -1e+09
        %v4720 = vsel %vm4398, %v4704, -1e+09
        %v4721 = vsel %vm4399, %v4705, -1e+09
        %v4722 = vsel %vm4400, %v4706, -1e+09
        %4723 = vmax.xlane.f32.xlu0 %v4707
        %v4724 = vpop.xlane.xlu0 %4723
        %4725 = vmax.xlane.f32.xlu0 %v4708
        %v4726 = vpop.xlane.xlu0 %4725
        %4727 = vmax.xlane.f32.xlu0 %v4709
        %v4728 = vpop.xlane.xlu0 %4727
        %4729 = vmax.xlane.f32.xlu0 %v4710
        %v4730 = vpop.xlane.xlu0 %4729
        %4731 = vmax.xlane.f32.xlu0 %v4711
        %v4732 = vpop.xlane.xlu0 %4731
        %4733 = vmax.xlane.f32.xlu0 %v4712
        %v4734 = vpop.xlane.xlu0 %4733
        %4735 = vmax.xlane.f32.xlu0 %v4713
        %v4736 = vpop.xlane.xlu0 %4735
        %4737 = vmax.xlane.f32.xlu0 %v4714
        %v4738 = vpop.xlane.xlu0 %4737
        %4739 = vmax.xlane.f32.xlu0 %v4715
        %v4740 = vpop.xlane.xlu0 %4739
        %4741 = vmax.xlane.f32.xlu0 %v4716
        %v4742 = vpop.xlane.xlu0 %4741
        %4743 = vmax.xlane.f32.xlu0 %v4717
        %v4744 = vpop.xlane.xlu0 %4743
        %4745 = vmax.xlane.f32.xlu0 %v4718
        %v4746 = vpop.xlane.xlu0 %4745
        %4747 = vmax.xlane.f32.xlu0 %v4719
        %v4748 = vpop.xlane.xlu0 %4747
        %4749 = vmax.xlane.f32.xlu0 %v4720
        %v4750 = vpop.xlane.xlu0 %4749
        %4751 = vmax.xlane.f32.xlu0 %v4721
        %v4752 = vpop.xlane.xlu0 %4751
        %4753 = vmax.xlane.f32.xlu0 %v4722
        %v4754 = vpop.xlane.xlu0 %4753
        %v4755 = vsub.f32 %v4707, %v4724
        %v4756 = vsub.f32 %v4708, %v4726
        %v4757 = vsub.f32 %v4709, %v4728
        %v4758 = vsub.f32 %v4710, %v4730
        %v4759 = vsub.f32 %v4711, %v4732
        %v4760 = vsub.f32 %v4712, %v4734
        %v4761 = vsub.f32 %v4713, %v4736
        %v4762 = vsub.f32 %v4714, %v4738
        %v4763 = vsub.f32 %v4715, %v4740
        %v4764 = vsub.f32 %v4716, %v4742
        %v4765 = vsub.f32 %v4717, %v4744
        %v4766 = vsub.f32 %v4718, %v4746
        %v4767 = vsub.f32 %v4719, %v4748
        %v4768 = vsub.f32 %v4720, %v4750
        %v4769 = vsub.f32 %v4721, %v4752
        %v4770 = vsub.f32 %v4722, %v4754
        %v4771 = vmul.f32 %v4755, 1.442695
        %v4772 = vpow.pop %v4771
        %v4773 = vmul.f32 %v4756, 1.442695
        %v4774 = vpow.pop %v4773
        %v4775 = vmul.f32 %v4757, 1.442695
        %v4776 = vpow.pop %v4775
        %v4777 = vmul.f32 %v4758, 1.442695
        %v4778 = vpow.pop %v4777
        %v4779 = vmul.f32 %v4759, 1.442695
        %v4780 = vpow.pop %v4779
        %v4781 = vmul.f32 %v4760, 1.442695
        %v4782 = vpow.pop %v4781
        %v4783 = vmul.f32 %v4761, 1.442695
        %v4784 = vpow.pop %v4783
        %v4785 = vmul.f32 %v4762, 1.442695
        %v4786 = vpow.pop %v4785
        %v4787 = vmul.f32 %v4763, 1.442695
        %v4788 = vpow.pop %v4787
        %v4789 = vmul.f32 %v4764, 1.442695
        %v4790 = vpow.pop %v4789
        %v4791 = vmul.f32 %v4765, 1.442695
        %v4792 = vpow.pop %v4791
        %v4793 = vmul.f32 %v4766, 1.442695
        %v4794 = vpow.pop %v4793
        %v4795 = vmul.f32 %v4767, 1.442695
        %v4796 = vpow.pop %v4795
        %v4797 = vmul.f32 %v4768, 1.442695
        %v4798 = vpow.pop %v4797
        %v4799 = vmul.f32 %v4769, 1.442695
        %v4800 = vpow.pop %v4799
        %v4801 = vmul.f32 %v4770, 1.442695
        %v4802 = vpow.pop %v4801
        %4803 = vadd.xlane.f32.xlu0 %v4772
        %v4804 = vpop.xlane.xlu0 %4803
        %4805 = vadd.xlane.f32.xlu0 %v4774
        %v4806 = vpop.xlane.xlu0 %4805
        %4807 = vadd.xlane.f32.xlu0 %v4776
        %v4808 = vpop.xlane.xlu0 %4807
        %4809 = vadd.xlane.f32.xlu0 %v4778
        %v4810 = vpop.xlane.xlu0 %4809
        %4811 = vadd.xlane.f32.xlu0 %v4780
        %v4812 = vpop.xlane.xlu0 %4811
        %4813 = vadd.xlane.f32.xlu0 %v4782
        %v4814 = vpop.xlane.xlu0 %4813
        %4815 = vadd.xlane.f32.xlu0 %v4784
        %v4816 = vpop.xlane.xlu0 %4815
        %4817 = vadd.xlane.f32.xlu0 %v4786
        %v4818 = vpop.xlane.xlu0 %4817
        %4819 = vadd.xlane.f32.xlu0 %v4788
        %v4820 = vpop.xlane.xlu0 %4819
        %4821 = vadd.xlane.f32.xlu0 %v4790
        %v4822 = vpop.xlane.xlu0 %4821
        %4823 = vadd.xlane.f32.xlu0 %v4792
        %v4824 = vpop.xlane.xlu0 %4823
        %4825 = vadd.xlane.f32.xlu0 %v4794
        %v4826 = vpop.xlane.xlu0 %4825
        %4827 = vadd.xlane.f32.xlu0 %v4796
        %v4828 = vpop.xlane.xlu0 %4827
        %4829 = vadd.xlane.f32.xlu0 %v4798
        %v4830 = vpop.xlane.xlu0 %4829
        %4831 = vadd.xlane.f32.xlu0 %v4800
        %v4832 = vpop.xlane.xlu0 %4831
        %4833 = vadd.xlane.f32.xlu0 %v4802
        %v4834 = vpop.xlane.xlu0 %4833
        %v4835 = vrcp.pop %v4804
        %v4836 = vrcp.pop %v4806
        %v4837 = vrcp.pop %v4808
        %v4838 = vrcp.pop %v4810
        %v4839 = vrcp.pop %v4812
        %v4840 = vrcp.pop %v4814
        %v4841 = vrcp.pop %v4816
        %v4842 = vrcp.pop %v4818
        %v4843 = vrcp.pop %v4820
        %v4844 = vrcp.pop %v4822
        %v4845 = vrcp.pop %v4824
        %v4846 = vrcp.pop %v4826
        %v4847 = vrcp.pop %v4828
        %v4848 = vrcp.pop %v4830
        %v4849 = vrcp.pop %v4832
        %v4850 = vrcp.pop %v4834
        %v4851 = vmul.f32 %v4772, %v4835
        %v4852 = vmul.f32 %v4774, %v4836
        %v4853 = vmul.f32 %v4776, %v4837
        %v4854 = vmul.f32 %v4778, %v4838
        %v4855 = vmul.f32 %v4780, %v4839
        %v4856 = vmul.f32 %v4782, %v4840
        %v4857 = vmul.f32 %v4784, %v4841
        %v4858 = vmul.f32 %v4786, %v4842
        %v4859 = vmul.f32 %v4788, %v4843
        %v4860 = vmul.f32 %v4790, %v4844
        %v4861 = vmul.f32 %v4792, %v4845
        %v4862 = vmul.f32 %v4794, %v4846
        %v4863 = vmul.f32 %v4796, %v4847
        %v4864 = vmul.f32 %v4798, %v4848
        %v4865 = vmul.f32 %v4800, %v4849
        %v4866 = vmul.f32 %v4802, %v4850
        %4867 = vmatpush.msra.mxu0 %v2723
        %4868 = vmatpush.msra.mxu0 %v2720
        %4869 = vmatpush.msra.mxu0 %v2717
        %4870 = vmatpush.msra.mxu0 %v2714
        %4871 = vmatpush.msra.mxu0 %v2711
        %4872 = vmatpush.msra.mxu0 %v2708
        %4873 = vmatpush.msra.mxu0 %v2705
        %4874 = vmatpush.msra.mxu0 %v2702
        %4875 = vmatpush.msra.mxu0 %v2699
        %4876 = vmatpush.msra.mxu0 %v2696
        %4877 = vmatpush.msra.mxu0 %v2693
        %4878 = vmatpush.msra.mxu0 %v2690
        %4879 = vmatpush.msra.mxu0 %v2687
        %4880 = vmatpush.msra.mxu0 %v2684
        %4881 = vmatpush.msra.mxu0 %v2681
        %4882 = vmatpush.msra.mxu0 %v2678
        %4883 = vmatmul.f32.gmra.mxu0 %v4851
        %v4884 = vpop.f32.mrf.mxu0
        %v4885 = vadd.f32 0.0, %v4884
        %4886 = vmatmul.f32.gmra.mxu0 %v4852
        %v4887 = vpop.f32.mrf.mxu0
        %v4888 = vadd.f32 0.0, %v4887
        %4889 = vmatmul.f32.gmra.mxu0 %v4853
        %v4890 = vpop.f32.mrf.mxu0
        %v4891 = vadd.f32 0.0, %v4890
        %4892 = vmatmul.f32.gmra.mxu0 %v4854
        %v4893 = vpop.f32.mrf.mxu0
        %v4894 = vadd.f32 0.0, %v4893
        %4895 = vmatmul.f32.gmra.mxu0 %v4855
        %v4896 = vpop.f32.mrf.mxu0
        %v4897 = vadd.f32 0.0, %v4896
        %4898 = vmatmul.f32.gmra.mxu0 %v4856
        %v4899 = vpop.f32.mrf.mxu0
        %v4900 = vadd.f32 0.0, %v4899
        %4901 = vmatmul.f32.gmra.mxu0 %v4857
        %v4902 = vpop.f32.mrf.mxu0
        %v4903 = vadd.f32 0.0, %v4902
        %4904 = vmatmul.f32.gmra.mxu0 %v4858
        %v4905 = vpop.f32.mrf.mxu0
        %v4906 = vadd.f32 0.0, %v4905
        %4907 = vmatmul.f32.gmra.mxu0 %v4859
        %v4908 = vpop.f32.mrf.mxu0
        %v4909 = vadd.f32 0.0, %v4908
        %4910 = vmatmul.f32.gmra.mxu0 %v4860
        %v4911 = vpop.f32.mrf.mxu0
        %v4912 = vadd.f32 0.0, %v4911
        %4913 = vmatmul.f32.gmra.mxu0 %v4861
        %v4914 = vpop.f32.mrf.mxu0
        %v4915 = vadd.f32 0.0, %v4914
        %4916 = vmatmul.f32.gmra.mxu0 %v4862
        %v4917 = vpop.f32.mrf.mxu0
        %v4918 = vadd.f32 0.0, %v4917
        %4919 = vmatmul.f32.gmra.mxu0 %v4863
        %v4920 = vpop.f32.mrf.mxu0
        %v4921 = vadd.f32 0.0, %v4920
        %4922 = vmatmul.f32.gmra.mxu0 %v4864
        %v4923 = vpop.f32.mrf.mxu0
        %v4924 = vadd.f32 0.0, %v4923
        %4925 = vmatmul.f32.gmra.mxu0 %v4865
        %v4926 = vpop.f32.mrf.mxu0
        %v4927 = vadd.f32 0.0, %v4926
        %4928 = vmatmul.f32.gmra.mxu0 %v4866
        %v4929 = vpop.f32.mrf.mxu0
        %v4930 = vadd.f32 0.0, %v4929
        %4931 = vdwg.mxu0
        %4932 = vmatpush.xpose.msra.mxu0 %v4023
        %4933 = vmatpush.xpose.msra.mxu0 %v4020
        %4934 = vmatpush.xpose.msra.mxu0 %v4017
        %4935 = vmatpush.xpose.msra.mxu0 %v4014
        %4936 = vmatpush.xpose.msra.mxu0 %v4011
        %4937 = vmatpush.xpose.msra.mxu0 %v4008
        %4938 = vmatpush.xpose.msra.mxu0 %v4005
        %4939 = vmatpush.xpose.msra.mxu0 %v4002
        %4940 = vmatpush.xpose.msra.mxu0 %v3999
        %4941 = vmatpush.xpose.msra.mxu0 %v3996
        %4942 = vmatpush.xpose.msra.mxu0 %v3993
        %4943 = vmatpush.xpose.msra.mxu0 %v3990
        %4944 = vmatpush.xpose.msra.mxu0 %v3987
        %4945 = vmatpush.xpose.msra.mxu0 %v3984
        %4946 = vmatpush.xpose.msra.mxu0 %v3981
        %4947 = vmatpush.xpose.msra.mxu0 %v3978
        %4948 = vmatmul.f32.gmra.mxu0 %v1898
        %v4949 = vpop.f32.mrf.mxu0
        %v4950 = vadd.f32 0.0, %v4949
        %4951 = vmatmul.f32.gmra.mxu0 %v1901
        %v4952 = vpop.f32.mrf.mxu0
        %v4953 = vadd.f32 0.0, %v4952
        %4954 = vmatmul.f32.gmra.mxu0 %v1904
        %v4955 = vpop.f32.mrf.mxu0
        %v4956 = vadd.f32 0.0, %v4955
        %4957 = vmatmul.f32.gmra.mxu0 %v1907
        %v4958 = vpop.f32.mrf.mxu0
        %v4959 = vadd.f32 0.0, %v4958
        %4960 = vmatmul.f32.gmra.mxu0 %v1910
        %v4961 = vpop.f32.mrf.mxu0
        %v4962 = vadd.f32 0.0, %v4961
        %4963 = vmatmul.f32.gmra.mxu0 %v1913
        %v4964 = vpop.f32.mrf.mxu0
        %v4965 = vadd.f32 0.0, %v4964
        %4966 = vmatmul.f32.gmra.mxu0 %v1916
        %v4967 = vpop.f32.mrf.mxu0
        %v4968 = vadd.f32 0.0, %v4967
        %4969 = vmatmul.f32.gmra.mxu0 %v1919
        %v4970 = vpop.f32.mrf.mxu0
        %v4971 = vadd.f32 0.0, %v4970
        %4972 = vmatmul.f32.gmra.mxu0 %v1922
        %v4973 = vpop.f32.mrf.mxu0
        %v4974 = vadd.f32 0.0, %v4973
        %4975 = vmatmul.f32.gmra.mxu0 %v1925
        %v4976 = vpop.f32.mrf.mxu0
        %v4977 = vadd.f32 0.0, %v4976
        %4978 = vmatmul.f32.gmra.mxu0 %v1928
        %v4979 = vpop.f32.mrf.mxu0
        %v4980 = vadd.f32 0.0, %v4979
        %4981 = vmatmul.f32.gmra.mxu0 %v1931
        %v4982 = vpop.f32.mrf.mxu0
        %v4983 = vadd.f32 0.0, %v4982
        %4984 = vmatmul.f32.gmra.mxu0 %v1934
        %v4985 = vpop.f32.mrf.mxu0
        %v4986 = vadd.f32 0.0, %v4985
        %4987 = vmatmul.f32.gmra.mxu0 %v1937
        %v4988 = vpop.f32.mrf.mxu0
        %v4989 = vadd.f32 0.0, %v4988
        %4990 = vmatmul.f32.gmra.mxu0 %v1940
        %v4991 = vpop.f32.mrf.mxu0
        %v4992 = vadd.f32 0.0, %v4991
        %4993 = vmatmul.f32.gmra.mxu0 %v1943
        %v4994 = vpop.f32.mrf.mxu0
        %v4995 = vadd.f32 0.0, %v4994
        %4996 = vdwg.mxu0
        %v4997 = vmul.f32 %v4950, 0.088388346
        %v4998 = vmul.f32 %v4953, 0.088388346
        %v4999 = vmul.f32 %v4956, 0.088388346
        %v5000 = vmul.f32 %v4959, 0.088388346
        %v5001 = vmul.f32 %v4962, 0.088388346
        %v5002 = vmul.f32 %v4965, 0.088388346
        %v5003 = vmul.f32 %v4968, 0.088388346
        %v5004 = vmul.f32 %v4971, 0.088388346
        %v5005 = vmul.f32 %v4974, 0.088388346
        %v5006 = vmul.f32 %v4977, 0.088388346
        %v5007 = vmul.f32 %v4980, 0.088388346
        %v5008 = vmul.f32 %v4983, 0.088388346
        %v5009 = vmul.f32 %v4986, 0.088388346
        %v5010 = vmul.f32 %v4989, 0.088388346
        %v5011 = vmul.f32 %v4992, 0.088388346
        %v5012 = vmul.f32 %v4995, 0.088388346
        %v5013 = vsel %vm4385, %v4997, -1e+09
        %v5014 = vsel %vm4386, %v4998, -1e+09
        %v5015 = vsel %vm4387, %v4999, -1e+09
        %v5016 = vsel %vm4388, %v5000, -1e+09
        %v5017 = vsel %vm4389, %v5001, -1e+09
        %v5018 = vsel %vm4390, %v5002, -1e+09
        %v5019 = vsel %vm4391, %v5003, -1e+09
        %v5020 = vsel %vm4392, %v5004, -1e+09
        %v5021 = vsel %vm4393, %v5005, -1e+09
        %v5022 = vsel %vm4394, %v5006, -1e+09
        %v5023 = vsel %vm4395, %v5007, -1e+09
        %v5024 = vsel %vm4396, %v5008, -1e+09
        %v5025 = vsel %vm4397, %v5009, -1e+09
        %v5026 = vsel %vm4398, %v5010, -1e+09
        %v5027 = vsel %vm4399, %v5011, -1e+09
        %v5028 = vsel %vm4400, %v5012, -1e+09
        %5029 = vmax.xlane.f32.xlu0 %v5013
        %v5030 = vpop.xlane.xlu0 %5029
        %5031 = vmax.xlane.f32.xlu0 %v5014
        %v5032 = vpop.xlane.xlu0 %5031
        %5033 = vmax.xlane.f32.xlu0 %v5015
        %v5034 = vpop.xlane.xlu0 %5033
        %5035 = vmax.xlane.f32.xlu0 %v5016
        %v5036 = vpop.xlane.xlu0 %5035
        %5037 = vmax.xlane.f32.xlu0 %v5017
        %v5038 = vpop.xlane.xlu0 %5037
        %5039 = vmax.xlane.f32.xlu0 %v5018
        %v5040 = vpop.xlane.xlu0 %5039
        %5041 = vmax.xlane.f32.xlu0 %v5019
        %v5042 = vpop.xlane.xlu0 %5041
        %5043 = vmax.xlane.f32.xlu0 %v5020
        %v5044 = vpop.xlane.xlu0 %5043
        %5045 = vmax.xlane.f32.xlu0 %v5021
        %v5046 = vpop.xlane.xlu0 %5045
        %5047 = vmax.xlane.f32.xlu0 %v5022
        %v5048 = vpop.xlane.xlu0 %5047
        %5049 = vmax.xlane.f32.xlu0 %v5023
        %v5050 = vpop.xlane.xlu0 %5049
        %5051 = vmax.xlane.f32.xlu0 %v5024
        %v5052 = vpop.xlane.xlu0 %5051
        %5053 = vmax.xlane.f32.xlu0 %v5025
        %v5054 = vpop.xlane.xlu0 %5053
        %5055 = vmax.xlane.f32.xlu0 %v5026
        %v5056 = vpop.xlane.xlu0 %5055
        %5057 = vmax.xlane.f32.xlu0 %v5027
        %v5058 = vpop.xlane.xlu0 %5057
        %5059 = vmax.xlane.f32.xlu0 %v5028
        %v5060 = vpop.xlane.xlu0 %5059
        %v5061 = vsub.f32 %v5013, %v5030
        %v5062 = vsub.f32 %v5014, %v5032
        %v5063 = vsub.f32 %v5015, %v5034
        %v5064 = vsub.f32 %v5016, %v5036
        %v5065 = vsub.f32 %v5017, %v5038
        %v5066 = vsub.f32 %v5018, %v5040
        %v5067 = vsub.f32 %v5019, %v5042
        %v5068 = vsub.f32 %v5020, %v5044
        %v5069 = vsub.f32 %v5021, %v5046
        %v5070 = vsub.f32 %v5022, %v5048
        %v5071 = vsub.f32 %v5023, %v5050
        %v5072 = vsub.f32 %v5024, %v5052
        %v5073 = vsub.f32 %v5025, %v5054
        %v5074 = vsub.f32 %v5026, %v5056
        %v5075 = vsub.f32 %v5027, %v5058
        %v5076 = vsub.f32 %v5028, %v5060
        %v5077 = vmul.f32 %v5061, 1.442695
        %v5078 = vpow.pop %v5077
        %v5079 = vmul.f32 %v5062, 1.442695
        %v5080 = vpow.pop %v5079
        %v5081 = vmul.f32 %v5063, 1.442695
        %v5082 = vpow.pop %v5081
        %v5083 = vmul.f32 %v5064, 1.442695
        %v5084 = vpow.pop %v5083
        %v5085 = vmul.f32 %v5065, 1.442695
        %v5086 = vpow.pop %v5085
        %v5087 = vmul.f32 %v5066, 1.442695
        %v5088 = vpow.pop %v5087
        %v5089 = vmul.f32 %v5067, 1.442695
        %v5090 = vpow.pop %v5089
        %v5091 = vmul.f32 %v5068, 1.442695
        %v5092 = vpow.pop %v5091
        %v5093 = vmul.f32 %v5069, 1.442695
        %v5094 = vpow.pop %v5093
        %v5095 = vmul.f32 %v5070, 1.442695
        %v5096 = vpow.pop %v5095
        %v5097 = vmul.f32 %v5071, 1.442695
        %v5098 = vpow.pop %v5097
        %v5099 = vmul.f32 %v5072, 1.442695
        %v5100 = vpow.pop %v5099
        %v5101 = vmul.f32 %v5073, 1.442695
        %v5102 = vpow.pop %v5101
        %v5103 = vmul.f32 %v5074, 1.442695
        %v5104 = vpow.pop %v5103
        %v5105 = vmul.f32 %v5075, 1.442695
        %v5106 = vpow.pop %v5105
        %v5107 = vmul.f32 %v5076, 1.442695
        %v5108 = vpow.pop %v5107
        %5109 = vadd.xlane.f32.xlu0 %v5078
        %v5110 = vpop.xlane.xlu0 %5109
        %5111 = vadd.xlane.f32.xlu0 %v5080
        %v5112 = vpop.xlane.xlu0 %5111
        %5113 = vadd.xlane.f32.xlu0 %v5082
        %v5114 = vpop.xlane.xlu0 %5113
        %5115 = vadd.xlane.f32.xlu0 %v5084
        %v5116 = vpop.xlane.xlu0 %5115
        %5117 = vadd.xlane.f32.xlu0 %v5086
        %v5118 = vpop.xlane.xlu0 %5117
        %5119 = vadd.xlane.f32.xlu0 %v5088
        %v5120 = vpop.xlane.xlu0 %5119
        %5121 = vadd.xlane.f32.xlu0 %v5090
        %v5122 = vpop.xlane.xlu0 %5121
        %5123 = vadd.xlane.f32.xlu0 %v5092
        %v5124 = vpop.xlane.xlu0 %5123
        %5125 = vadd.xlane.f32.xlu0 %v5094
        %v5126 = vpop.xlane.xlu0 %5125
        %5127 = vadd.xlane.f32.xlu0 %v5096
        %v5128 = vpop.xlane.xlu0 %5127
        %5129 = vadd.xlane.f32.xlu0 %v5098
        %v5130 = vpop.xlane.xlu0 %5129
        %5131 = vadd.xlane.f32.xlu0 %v5100
        %v5132 = vpop.xlane.xlu0 %5131
        %5133 = vadd.xlane.f32.xlu0 %v5102
        %v5134 = vpop.xlane.xlu0 %5133
        %5135 = vadd.xlane.f32.xlu0 %v5104
        %v5136 = vpop.xlane.xlu0 %5135
        %5137 = vadd.xlane.f32.xlu0 %v5106
        %v5138 = vpop.xlane.xlu0 %5137
        %5139 = vadd.xlane.f32.xlu0 %v5108
        %v5140 = vpop.xlane.xlu0 %5139
        %v5141 = vrcp.pop %v5110
        %v5142 = vrcp.pop %v5112
        %v5143 = vrcp.pop %v5114
        %v5144 = vrcp.pop %v5116
        %v5145 = vrcp.pop %v5118
        %v5146 = vrcp.pop %v5120
        %v5147 = vrcp.pop %v5122
        %v5148 = vrcp.pop %v5124
        %v5149 = vrcp.pop %v5126
        %v5150 = vrcp.pop %v5128
        %v5151 = vrcp.pop %v5130
        %v5152 = vrcp.pop %v5132
        %v5153 = vrcp.pop %v5134
        %v5154 = vrcp.pop %v5136
        %v5155 = vrcp.pop %v5138
        %v5156 = vrcp.pop %v5140
        %v5157 = vmul.f32 %v5078, %v5141
        %v5158 = vmul.f32 %v5080, %v5142
        %v5159 = vmul.f32 %v5082, %v5143
        %v5160 = vmul.f32 %v5084, %v5144
        %v5161 = vmul.f32 %v5086, %v5145
        %v5162 = vmul.f32 %v5088, %v5146
        %v5163 = vmul.f32 %v5090, %v5147
        %v5164 = vmul.f32 %v5092, %v5148
        %v5165 = vmul.f32 %v5094, %v5149
        %v5166 = vmul.f32 %v5096, %v5150
        %v5167 = vmul.f32 %v5098, %v5151
        %v5168 = vmul.f32 %v5100, %v5152
        %v5169 = vmul.f32 %v5102, %v5153
        %v5170 = vmul.f32 %v5104, %v5154
        %v5171 = vmul.f32 %v5106, %v5155
        %v5172 = vmul.f32 %v5108, %v5156
        %5173 = vmatpush.msra.mxu0 %v2983
        %5174 = vmatpush.msra.mxu0 %v2980
        %5175 = vmatpush.msra.mxu0 %v2977
        %5176 = vmatpush.msra.mxu0 %v2974
        %5177 = vmatpush.msra.mxu0 %v2971
        %5178 = vmatpush.msra.mxu0 %v2968
        %5179 = vmatpush.msra.mxu0 %v2965
        %5180 = vmatpush.msra.mxu0 %v2962
        %5181 = vmatpush.msra.mxu0 %v2959
        %5182 = vmatpush.msra.mxu0 %v2956
        %5183 = vmatpush.msra.mxu0 %v2953
        %5184 = vmatpush.msra.mxu0 %v2950
        %5185 = vmatpush.msra.mxu0 %v2947
        %5186 = vmatpush.msra.mxu0 %v2944
        %5187 = vmatpush.msra.mxu0 %v2941
        %5188 = vmatpush.msra.mxu0 %v2938
        %5189 = vmatmul.f32.gmra.mxu0 %v5157
        %v5190 = vpop.f32.mrf.mxu0
        %v5191 = vadd.f32 0.0, %v5190
        %5192 = vmatmul.f32.gmra.mxu0 %v5158
        %v5193 = vpop.f32.mrf.mxu0
        %v5194 = vadd.f32 0.0, %v5193
        %5195 = vmatmul.f32.gmra.mxu0 %v5159
        %v5196 = vpop.f32.mrf.mxu0
        %v5197 = vadd.f32 0.0, %v5196
        %5198 = vmatmul.f32.gmra.mxu0 %v5160
        %v5199 = vpop.f32.mrf.mxu0
        %v5200 = vadd.f32 0.0, %v5199
        %5201 = vmatmul.f32.gmra.mxu0 %v5161
        %v5202 = vpop.f32.mrf.mxu0
        %v5203 = vadd.f32 0.0, %v5202
        %5204 = vmatmul.f32.gmra.mxu0 %v5162
        %v5205 = vpop.f32.mrf.mxu0
        %v5206 = vadd.f32 0.0, %v5205
        %5207 = vmatmul.f32.gmra.mxu0 %v5163
        %v5208 = vpop.f32.mrf.mxu0
        %v5209 = vadd.f32 0.0, %v5208
        %5210 = vmatmul.f32.gmra.mxu0 %v5164
        %v5211 = vpop.f32.mrf.mxu0
        %v5212 = vadd.f32 0.0, %v5211
        %5213 = vmatmul.f32.gmra.mxu0 %v5165
        %v5214 = vpop.f32.mrf.mxu0
        %v5215 = vadd.f32 0.0, %v5214
        %5216 = vmatmul.f32.gmra.mxu0 %v5166
        %v5217 = vpop.f32.mrf.mxu0
        %v5218 = vadd.f32 0.0, %v5217
        %5219 = vmatmul.f32.gmra.mxu0 %v5167
        %v5220 = vpop.f32.mrf.mxu0
        %v5221 = vadd.f32 0.0, %v5220
        %5222 = vmatmul.f32.gmra.mxu0 %v5168
        %v5223 = vpop.f32.mrf.mxu0
        %v5224 = vadd.f32 0.0, %v5223
        %5225 = vmatmul.f32.gmra.mxu0 %v5169
        %v5226 = vpop.f32.mrf.mxu0
        %v5227 = vadd.f32 0.0, %v5226
        %5228 = vmatmul.f32.gmra.mxu0 %v5170
        %v5229 = vpop.f32.mrf.mxu0
        %v5230 = vadd.f32 0.0, %v5229
        %5231 = vmatmul.f32.gmra.mxu0 %v5171
        %v5232 = vpop.f32.mrf.mxu0
        %v5233 = vadd.f32 0.0, %v5232
        %5234 = vmatmul.f32.gmra.mxu0 %v5172
        %v5235 = vpop.f32.mrf.mxu0
        %v5236 = vadd.f32 0.0, %v5235
        %5237 = vdwg.mxu0
        %5238 = vmatpush.xpose.msra.mxu0 %v4283
        %5239 = vmatpush.xpose.msra.mxu0 %v4280
        %5240 = vmatpush.xpose.msra.mxu0 %v4277
        %5241 = vmatpush.xpose.msra.mxu0 %v4274
        %5242 = vmatpush.xpose.msra.mxu0 %v4271
        %5243 = vmatpush.xpose.msra.mxu0 %v4268
        %5244 = vmatpush.xpose.msra.mxu0 %v4265
        %5245 = vmatpush.xpose.msra.mxu0 %v4262
        %5246 = vmatpush.xpose.msra.mxu0 %v4259
        %5247 = vmatpush.xpose.msra.mxu0 %v4256
        %5248 = vmatpush.xpose.msra.mxu0 %v4253
        %5249 = vmatpush.xpose.msra.mxu0 %v4250
        %5250 = vmatpush.xpose.msra.mxu0 %v4247
        %5251 = vmatpush.xpose.msra.mxu0 %v4244
        %5252 = vmatpush.xpose.msra.mxu0 %v4241
        %5253 = vmatpush.xpose.msra.mxu0 %v4238
        %5254 = vmatmul.f32.gmra.mxu0 %v2158
        %v5255 = vpop.f32.mrf.mxu0
        %v5256 = vadd.f32 0.0, %v5255
        %5257 = vmatmul.f32.gmra.mxu0 %v2161
        %v5258 = vpop.f32.mrf.mxu0
        %v5259 = vadd.f32 0.0, %v5258
        %5260 = vmatmul.f32.gmra.mxu0 %v2164
        %v5261 = vpop.f32.mrf.mxu0
        %v5262 = vadd.f32 0.0, %v5261
        %5263 = vmatmul.f32.gmra.mxu0 %v2167
        %v5264 = vpop.f32.mrf.mxu0
        %v5265 = vadd.f32 0.0, %v5264
        %5266 = vmatmul.f32.gmra.mxu0 %v2170
        %v5267 = vpop.f32.mrf.mxu0
        %v5268 = vadd.f32 0.0, %v5267
        %5269 = vmatmul.f32.gmra.mxu0 %v2173
        %v5270 = vpop.f32.mrf.mxu0
        %v5271 = vadd.f32 0.0, %v5270
        %5272 = vmatmul.f32.gmra.mxu0 %v2176
        %v5273 = vpop.f32.mrf.mxu0
        %v5274 = vadd.f32 0.0, %v5273
        %5275 = vmatmul.f32.gmra.mxu0 %v2179
        %v5276 = vpop.f32.mrf.mxu0
        %v5277 = vadd.f32 0.0, %v5276
        %5278 = vmatmul.f32.gmra.mxu0 %v2182
        %v5279 = vpop.f32.mrf.mxu0
        %v5280 = vadd.f32 0.0, %v5279
        %5281 = vmatmul.f32.gmra.mxu0 %v2185
        %v5282 = vpop.f32.mrf.mxu0
        %v5283 = vadd.f32 0.0, %v5282
        %5284 = vmatmul.f32.gmra.mxu0 %v2188
        %v5285 = vpop.f32.mrf.mxu0
        %v5286 = vadd.f32 0.0, %v5285
        %5287 = vmatmul.f32.gmra.mxu0 %v2191
        %v5288 = vpop.f32.mrf.mxu0
        %v5289 = vadd.f32 0.0, %v5288
        %5290 = vmatmul.f32.gmra.mxu0 %v2194
        %v5291 = vpop.f32.mrf.mxu0
        %v5292 = vadd.f32 0.0, %v5291
        %5293 = vmatmul.f32.gmra.mxu0 %v2197
        %v5294 = vpop.f32.mrf.mxu0
        %v5295 = vadd.f32 0.0, %v5294
        %5296 = vmatmul.f32.gmra.mxu0 %v2200
        %v5297 = vpop.f32.mrf.mxu0
        %v5298 = vadd.f32 0.0, %v5297
        %5299 = vmatmul.f32.gmra.mxu0 %v2203
        %v5300 = vpop.f32.mrf.mxu0
        %v5301 = vadd.f32 0.0, %v5300
        %5302 = vdwg.mxu0
        %v5303 = vmul.f32 %v5256, 0.088388346
        %v5304 = vmul.f32 %v5259, 0.088388346
        %v5305 = vmul.f32 %v5262, 0.088388346
        %v5306 = vmul.f32 %v5265, 0.088388346
        %v5307 = vmul.f32 %v5268, 0.088388346
        %v5308 = vmul.f32 %v5271, 0.088388346
        %v5309 = vmul.f32 %v5274, 0.088388346
        %v5310 = vmul.f32 %v5277, 0.088388346
        %v5311 = vmul.f32 %v5280, 0.088388346
        %v5312 = vmul.f32 %v5283, 0.088388346
        %v5313 = vmul.f32 %v5286, 0.088388346
        %v5314 = vmul.f32 %v5289, 0.088388346
        %v5315 = vmul.f32 %v5292, 0.088388346
        %v5316 = vmul.f32 %v5295, 0.088388346
        %v5317 = vmul.f32 %v5298, 0.088388346
        %v5318 = vmul.f32 %v5301, 0.088388346
        %v5319 = vsel %vm4385, %v5303, -1e+09
        %v5320 = vsel %vm4386, %v5304, -1e+09
        %v5321 = vsel %vm4387, %v5305, -1e+09
        %v5322 = vsel %vm4388, %v5306, -1e+09
        %v5323 = vsel %vm4389, %v5307, -1e+09
        %v5324 = vsel %vm4390, %v5308, -1e+09
        %v5325 = vsel %vm4391, %v5309, -1e+09
        %v5326 = vsel %vm4392, %v5310, -1e+09
        %v5327 = vsel %vm4393, %v5311, -1e+09
        %v5328 = vsel %vm4394, %v5312, -1e+09
        %v5329 = vsel %vm4395, %v5313, -1e+09
        %v5330 = vsel %vm4396, %v5314, -1e+09
        %v5331 = vsel %vm4397, %v5315, -1e+09
        %v5332 = vsel %vm4398, %v5316, -1e+09
        %v5333 = vsel %vm4399, %v5317, -1e+09
        %v5334 = vsel %vm4400, %v5318, -1e+09
        %5335 = vmax.xlane.f32.xlu0 %v5319
        %v5336 = vpop.xlane.xlu0 %5335
        %5337 = vmax.xlane.f32.xlu0 %v5320
        %v5338 = vpop.xlane.xlu0 %5337
        %5339 = vmax.xlane.f32.xlu0 %v5321
        %v5340 = vpop.xlane.xlu0 %5339
        %5341 = vmax.xlane.f32.xlu0 %v5322
        %v5342 = vpop.xlane.xlu0 %5341
        %5343 = vmax.xlane.f32.xlu0 %v5323
        %v5344 = vpop.xlane.xlu0 %5343
        %5345 = vmax.xlane.f32.xlu0 %v5324
        %v5346 = vpop.xlane.xlu0 %5345
        %5347 = vmax.xlane.f32.xlu0 %v5325
        %v5348 = vpop.xlane.xlu0 %5347
        %5349 = vmax.xlane.f32.xlu0 %v5326
        %v5350 = vpop.xlane.xlu0 %5349
        %5351 = vmax.xlane.f32.xlu0 %v5327
        %v5352 = vpop.xlane.xlu0 %5351
        %5353 = vmax.xlane.f32.xlu0 %v5328
        %v5354 = vpop.xlane.xlu0 %5353
        %5355 = vmax.xlane.f32.xlu0 %v5329
        %v5356 = vpop.xlane.xlu0 %5355
        %5357 = vmax.xlane.f32.xlu0 %v5330
        %v5358 = vpop.xlane.xlu0 %5357
        %5359 = vmax.xlane.f32.xlu0 %v5331
        %v5360 = vpop.xlane.xlu0 %5359
        %5361 = vmax.xlane.f32.xlu0 %v5332
        %v5362 = vpop.xlane.xlu0 %5361
        %5363 = vmax.xlane.f32.xlu0 %v5333
        %v5364 = vpop.xlane.xlu0 %5363
        %5365 = vmax.xlane.f32.xlu0 %v5334
        %v5366 = vpop.xlane.xlu0 %5365
        %v5367 = vsub.f32 %v5319, %v5336
        %v5368 = vsub.f32 %v5320, %v5338
        %v5369 = vsub.f32 %v5321, %v5340
        %v5370 = vsub.f32 %v5322, %v5342
        %v5371 = vsub.f32 %v5323, %v5344
        %v5372 = vsub.f32 %v5324, %v5346
        %v5373 = vsub.f32 %v5325, %v5348
        %v5374 = vsub.f32 %v5326, %v5350
        %v5375 = vsub.f32 %v5327, %v5352
        %v5376 = vsub.f32 %v5328, %v5354
        %v5377 = vsub.f32 %v5329, %v5356
        %v5378 = vsub.f32 %v5330, %v5358
        %v5379 = vsub.f32 %v5331, %v5360
        %v5380 = vsub.f32 %v5332, %v5362
        %v5381 = vsub.f32 %v5333, %v5364
        %v5382 = vsub.f32 %v5334, %v5366
        %v5383 = vmul.f32 %v5367, 1.442695
        %v5384 = vpow.pop %v5383
        %v5385 = vmul.f32 %v5368, 1.442695
        %v5386 = vpow.pop %v5385
        %v5387 = vmul.f32 %v5369, 1.442695
        %v5388 = vpow.pop %v5387
        %v5389 = vmul.f32 %v5370, 1.442695
        %v5390 = vpow.pop %v5389
        %v5391 = vmul.f32 %v5371, 1.442695
        %v5392 = vpow.pop %v5391
        %v5393 = vmul.f32 %v5372, 1.442695
        %v5394 = vpow.pop %v5393
        %v5395 = vmul.f32 %v5373, 1.442695
        %v5396 = vpow.pop %v5395
        %v5397 = vmul.f32 %v5374, 1.442695
        %v5398 = vpow.pop %v5397
        %v5399 = vmul.f32 %v5375, 1.442695
        %v5400 = vpow.pop %v5399
        %v5401 = vmul.f32 %v5376, 1.442695
        %v5402 = vpow.pop %v5401
        %v5403 = vmul.f32 %v5377, 1.442695
        %v5404 = vpow.pop %v5403
        %v5405 = vmul.f32 %v5378, 1.442695
        %v5406 = vpow.pop %v5405
        %v5407 = vmul.f32 %v5379, 1.442695
        %v5408 = vpow.pop %v5407
        %v5409 = vmul.f32 %v5380, 1.442695
        %v5410 = vpow.pop %v5409
        %v5411 = vmul.f32 %v5381, 1.442695
        %v5412 = vpow.pop %v5411
        %v5413 = vmul.f32 %v5382, 1.442695
        %v5414 = vpow.pop %v5413
        %5415 = vadd.xlane.f32.xlu0 %v5384
        %v5416 = vpop.xlane.xlu0 %5415
        %5417 = vadd.xlane.f32.xlu0 %v5386
        %v5418 = vpop.xlane.xlu0 %5417
        %5419 = vadd.xlane.f32.xlu0 %v5388
        %v5420 = vpop.xlane.xlu0 %5419
        %5421 = vadd.xlane.f32.xlu0 %v5390
        %v5422 = vpop.xlane.xlu0 %5421
        %5423 = vadd.xlane.f32.xlu0 %v5392
        %v5424 = vpop.xlane.xlu0 %5423
        %5425 = vadd.xlane.f32.xlu0 %v5394
        %v5426 = vpop.xlane.xlu0 %5425
        %5427 = vadd.xlane.f32.xlu0 %v5396
        %v5428 = vpop.xlane.xlu0 %5427
        %5429 = vadd.xlane.f32.xlu0 %v5398
        %v5430 = vpop.xlane.xlu0 %5429
        %5431 = vadd.xlane.f32.xlu0 %v5400
        %v5432 = vpop.xlane.xlu0 %5431
        %5433 = vadd.xlane.f32.xlu0 %v5402
        %v5434 = vpop.xlane.xlu0 %5433
        %5435 = vadd.xlane.f32.xlu0 %v5404
        %v5436 = vpop.xlane.xlu0 %5435
        %5437 = vadd.xlane.f32.xlu0 %v5406
        %v5438 = vpop.xlane.xlu0 %5437
        %5439 = vadd.xlane.f32.xlu0 %v5408
        %v5440 = vpop.xlane.xlu0 %5439
        %5441 = vadd.xlane.f32.xlu0 %v5410
        %v5442 = vpop.xlane.xlu0 %5441
        %5443 = vadd.xlane.f32.xlu0 %v5412
        %v5444 = vpop.xlane.xlu0 %5443
        %5445 = vadd.xlane.f32.xlu0 %v5414
        %v5446 = vpop.xlane.xlu0 %5445
        %v5447 = vrcp.pop %v5416
        %v5448 = vrcp.pop %v5418
        %v5449 = vrcp.pop %v5420
        %v5450 = vrcp.pop %v5422
        %v5451 = vrcp.pop %v5424
        %v5452 = vrcp.pop %v5426
        %v5453 = vrcp.pop %v5428
        %v5454 = vrcp.pop %v5430
        %v5455 = vrcp.pop %v5432
        %v5456 = vrcp.pop %v5434
        %v5457 = vrcp.pop %v5436
        %v5458 = vrcp.pop %v5438
        %v5459 = vrcp.pop %v5440
        %v5460 = vrcp.pop %v5442
        %v5461 = vrcp.pop %v5444
        %v5462 = vrcp.pop %v5446
        %v5463 = vmul.f32 %v5384, %v5447
        %v5464 = vmul.f32 %v5386, %v5448
        %v5465 = vmul.f32 %v5388, %v5449
        %v5466 = vmul.f32 %v5390, %v5450
        %v5467 = vmul.f32 %v5392, %v5451
        %v5468 = vmul.f32 %v5394, %v5452
        %v5469 = vmul.f32 %v5396, %v5453
        %v5470 = vmul.f32 %v5398, %v5454
        %v5471 = vmul.f32 %v5400, %v5455
        %v5472 = vmul.f32 %v5402, %v5456
        %v5473 = vmul.f32 %v5404, %v5457
        %v5474 = vmul.f32 %v5406, %v5458
        %v5475 = vmul.f32 %v5408, %v5459
        %v5476 = vmul.f32 %v5410, %v5460
        %v5477 = vmul.f32 %v5412, %v5461
        %v5478 = vmul.f32 %v5414, %v5462
        %5479 = vmatpush.msra.mxu0 %v3243
        %5480 = vmatpush.msra.mxu0 %v3240
        %5481 = vmatpush.msra.mxu0 %v3237
        %5482 = vmatpush.msra.mxu0 %v3234
        %5483 = vmatpush.msra.mxu0 %v3231
        %5484 = vmatpush.msra.mxu0 %v3228
        %5485 = vmatpush.msra.mxu0 %v3225
        %5486 = vmatpush.msra.mxu0 %v3222
        %5487 = vmatpush.msra.mxu0 %v3219
        %5488 = vmatpush.msra.mxu0 %v3216
        %5489 = vmatpush.msra.mxu0 %v3213
        %5490 = vmatpush.msra.mxu0 %v3210
        %5491 = vmatpush.msra.mxu0 %v3207
        %5492 = vmatpush.msra.mxu0 %v3204
        %5493 = vmatpush.msra.mxu0 %v3201
        %5494 = vmatpush.msra.mxu0 %v3198
        %5495 = vmatmul.f32.gmra.mxu0 %v5463
        %v5496 = vpop.f32.mrf.mxu0
        %v5497 = vadd.f32 0.0, %v5496
        %5498 = vmatmul.f32.gmra.mxu0 %v5464
        %v5499 = vpop.f32.mrf.mxu0
        %v5500 = vadd.f32 0.0, %v5499
        %5501 = vmatmul.f32.gmra.mxu0 %v5465
        %v5502 = vpop.f32.mrf.mxu0
        %v5503 = vadd.f32 0.0, %v5502
        %5504 = vmatmul.f32.gmra.mxu0 %v5466
        %v5505 = vpop.f32.mrf.mxu0
        %v5506 = vadd.f32 0.0, %v5505
        %5507 = vmatmul.f32.gmra.mxu0 %v5467
        %v5508 = vpop.f32.mrf.mxu0
        %v5509 = vadd.f32 0.0, %v5508
        %5510 = vmatmul.f32.gmra.mxu0 %v5468
        %v5511 = vpop.f32.mrf.mxu0
        %v5512 = vadd.f32 0.0, %v5511
        %5513 = vmatmul.f32.gmra.mxu0 %v5469
        %v5514 = vpop.f32.mrf.mxu0
        %v5515 = vadd.f32 0.0, %v5514
        %5516 = vmatmul.f32.gmra.mxu0 %v5470
        %v5517 = vpop.f32.mrf.mxu0
        %v5518 = vadd.f32 0.0, %v5517
        %5519 = vmatmul.f32.gmra.mxu0 %v5471
        %v5520 = vpop.f32.mrf.mxu0
        %v5521 = vadd.f32 0.0, %v5520
        %5522 = vmatmul.f32.gmra.mxu0 %v5472
        %v5523 = vpop.f32.mrf.mxu0
        %v5524 = vadd.f32 0.0, %v5523
        %5525 = vmatmul.f32.gmra.mxu0 %v5473
        %v5526 = vpop.f32.mrf.mxu0
        %v5527 = vadd.f32 0.0, %v5526
        %5528 = vmatmul.f32.gmra.mxu0 %v5474
        %v5529 = vpop.f32.mrf.mxu0
        %v5530 = vadd.f32 0.0, %v5529
        %5531 = vmatmul.f32.gmra.mxu0 %v5475
        %v5532 = vpop.f32.mrf.mxu0
        %v5533 = vadd.f32 0.0, %v5532
        %5534 = vmatmul.f32.gmra.mxu0 %v5476
        %v5535 = vpop.f32.mrf.mxu0
        %v5536 = vadd.f32 0.0, %v5535
        %5537 = vmatmul.f32.gmra.mxu0 %v5477
        %v5538 = vpop.f32.mrf.mxu0
        %v5539 = vadd.f32 0.0, %v5538
        %5540 = vmatmul.f32.gmra.mxu0 %v5478
        %v5541 = vpop.f32.mrf.mxu0
        %v5542 = vadd.f32 0.0, %v5541
        %5543 = vdwg.mxu0
        %v5544 = vadd.f32 %v4579, %v305
        %v5545 = vadd.f32 %v4885, %v306
        %v5546 = vadd.f32 %v5191, %v307
        %v5547 = vadd.f32 %v5497, %v308
        %v5548 = vadd.f32 %v4582, %v309
        %v5549 = vadd.f32 %v4888, %v310
        %v5550 = vadd.f32 %v5194, %v311
        %v5551 = vadd.f32 %v5500, %v312
        %v5552 = vadd.f32 %v4585, %v313
        %v5553 = vadd.f32 %v4891, %v314
        %v5554 = vadd.f32 %v5197, %v315
        %v5555 = vadd.f32 %v5503, %v316
        %v5556 = vadd.f32 %v4588, %v317
        %v5557 = vadd.f32 %v4894, %v318
        %v5558 = vadd.f32 %v5200, %v319
        %v5559 = vadd.f32 %v5506, %v320
        %v5560 = vadd.f32 %v4591, %v321
        %v5561 = vadd.f32 %v4897, %v322
        %v5562 = vadd.f32 %v5203, %v323
        %v5563 = vadd.f32 %v5509, %v324
        %v5564 = vadd.f32 %v4594, %v325
        %v5565 = vadd.f32 %v4900, %v326
        %v5566 = vadd.f32 %v5206, %v327
        %v5567 = vadd.f32 %v5512, %v328
        %v5568 = vadd.f32 %v4597, %v329
        %v5569 = vadd.f32 %v4903, %v330
        %v5570 = vadd.f32 %v5209, %v331
        %v5571 = vadd.f32 %v5515, %v332
        %v5572 = vadd.f32 %v4600, %v333
        %v5573 = vadd.f32 %v4906, %v334
        %v5574 = vadd.f32 %v5212, %v335
        %v5575 = vadd.f32 %v5518, %v336
        %v5576 = vadd.f32 %v4603, %v337
        %v5577 = vadd.f32 %v4909, %v338
        %v5578 = vadd.f32 %v5215, %v339
        %v5579 = vadd.f32 %v5521, %v340
        %v5580 = vadd.f32 %v4606, %v341
        %v5581 = vadd.f32 %v4912, %v342
        %v5582 = vadd.f32 %v5218, %v343
        %v5583 = vadd.f32 %v5524, %v344
        %v5584 = vadd.f32 %v4609, %v345
        %v5585 = vadd.f32 %v4915, %v346
        %v5586 = vadd.f32 %v5221, %v347
        %v5587 = vadd.f32 %v5527, %v348
        %v5588 = vadd.f32 %v4612, %v349
        %v5589 = vadd.f32 %v4918, %v350
        %v5590 = vadd.f32 %v5224, %v351
        %v5591 = vadd.f32 %v5530, %v352
        %v5592 = vadd.f32 %v4615, %v353
        %v5593 = vadd.f32 %v4921, %v354
        %v5594 = vadd.f32 %v5227, %v355
        %v5595 = vadd.f32 %v5533, %v356
        %v5596 = vadd.f32 %v4618, %v357
        %v5597 = vadd.f32 %v4924, %v358
        %v5598 = vadd.f32 %v5230, %v359
        %v5599 = vadd.f32 %v5536, %v360
        %v5600 = vadd.f32 %v4621, %v361
        %v5601 = vadd.f32 %v4927, %v362
        %v5602 = vadd.f32 %v5233, %v363
        %v5603 = vadd.f32 %v5539, %v364
        %v5604 = vadd.f32 %v4624, %v365
        %v5605 = vadd.f32 %v4930, %v366
        %v5606 = vadd.f32 %v5236, %v367
        %v5607 = vadd.f32 %v5542, %v368
        %v5608 = vld [vmem:[#allocation8] sm:$0xf]
        %v5609 = vld [vmem:[#allocation10] sm:$0xf]
        %v5610 = vadd.f32 %v5544, %v5545
        %v5611 = vadd.f32 %v5610, %v5546
        %v5612 = vadd.f32 %v5611, %v5547
        %5613 = vadd.xlane.f32.xlu0 %v5612
        %v5614 = vpop.xlane.xlu0 %5613
        %v5615 = vadd.f32 %v5548, %v5549
        %v5616 = vadd.f32 %v5615, %v5550
        %v5617 = vadd.f32 %v5616, %v5551
        %5618 = vadd.xlane.f32.xlu0 %v5617
        %v5619 = vpop.xlane.xlu0 %5618
        %v5620 = vadd.f32 %v5552, %v5553
        %v5621 = vadd.f32 %v5620, %v5554
        %v5622 = vadd.f32 %v5621, %v5555
        %5623 = vadd.xlane.f32.xlu0 %v5622
        %v5624 = vpop.xlane.xlu0 %5623
        %v5625 = vadd.f32 %v5556, %v5557
        %v5626 = vadd.f32 %v5625, %v5558
        %v5627 = vadd.f32 %v5626, %v5559
        %5628 = vadd.xlane.f32.xlu0 %v5627
        %v5629 = vpop.xlane.xlu0 %5628
        %v5630 = vadd.f32 %v5560, %v5561
        %v5631 = vadd.f32 %v5630, %v5562
        %v5632 = vadd.f32 %v5631, %v5563
        %5633 = vadd.xlane.f32.xlu0 %v5632
        %v5634 = vpop.xlane.xlu0 %5633
        %v5635 = vadd.f32 %v5564, %v5565
        %v5636 = vadd.f32 %v5635, %v5566
        %v5637 = vadd.f32 %v5636, %v5567
        %5638 = vadd.xlane.f32.xlu0 %v5637
        %v5639 = vpop.xlane.xlu0 %5638
        %v5640 = vadd.f32 %v5568, %v5569
        %v5641 = vadd.f32 %v5640, %v5570
        %v5642 = vadd.f32 %v5641, %v5571
        %5643 = vadd.xlane.f32.xlu0 %v5642
        %v5644 = vpop.xlane.xlu0 %5643
        %v5645 = vadd.f32 %v5572, %v5573
        %v5646 = vadd.f32 %v5645, %v5574
        %v5647 = vadd.f32 %v5646, %v5575
        %5648 = vadd.xlane.f32.xlu0 %v5647
        %v5649 = vpop.xlane.xlu0 %5648
        %v5650 = vadd.f32 %v5576, %v5577
        %v5651 = vadd.f32 %v5650, %v5578
        %v5652 = vadd.f32 %v5651, %v5579
        %5653 = vadd.xlane.f32.xlu0 %v5652
        %v5654 = vpop.xlane.xlu0 %5653
        %v5655 = vadd.f32 %v5580, %v5581
        %v5656 = vadd.f32 %v5655, %v5582
        %v5657 = vadd.f32 %v5656, %v5583
        %5658 = vadd.xlane.f32.xlu0 %v5657
        %v5659 = vpop.xlane.xlu0 %5658
        %v5660 = vadd.f32 %v5584, %v5585
        %v5661 = vadd.f32 %v5660, %v5586
        %v5662 = vadd.f32 %v5661, %v5587
        %5663 = vadd.xlane.f32.xlu0 %v5662
        %v5664 = vpop.xlane.xlu0 %5663
        %v5665 = vadd.f32 %v5588, %v5589
        %v5666 = vadd.f32 %v5665, %v5590
        %v5667 = vadd.f32 %v5666, %v5591
        %5668 = vadd.xlane.f32.xlu0 %v5667
        %v5669 = vpop.xlane.xlu0 %5668
        %v5670 = vadd.f32 %v5592, %v5593
        %v5671 = vadd.f32 %v5670, %v5594
        %v5672 = vadd.f32 %v5671, %v5595
        %5673 = vadd.xlane.f32.xlu0 %v5672
        %v5674 = vpop.xlane.xlu0 %5673
        %v5675 = vadd.f32 %v5596, %v5597
        %v5676 = vadd.f32 %v5675, %v5598
        %v5677 = vadd.f32 %v5676, %v5599
        %5678 = vadd.xlane.f32.xlu0 %v5677
        %v5679 = vpop.xlane.xlu0 %5678
        %v5680 = vadd.f32 %v5600, %v5601
        %v5681 = vadd.f32 %v5680, %v5602
        %v5682 = vadd.f32 %v5681, %v5603
        %5683 = vadd.xlane.f32.xlu0 %v5682
        %v5684 = vpop.xlane.xlu0 %5683
        %v5685 = vadd.f32 %v5604, %v5605
        %v5686 = vadd.f32 %v5685, %v5606
        %v5687 = vadd.f32 %v5686, %v5607
        %5688 = vadd.xlane.f32.xlu0 %v5687
        %v5689 = vpop.xlane.xlu0 %5688
        %v5690 = vrcp.pop 512.0
        %v5691 = vmul.f32 512.0, %v5690
        %v5692 = vsub.f32 1.0, %v5691
        %v5693 = vmul.f32 %v5690, %v5692
        %v5694 = vadd.f32 %v5690, %v5693
        %vm5695 = vweird.f32 %v5690
        %v5696 = vsel %vm5695, %v5690, %v5694
        %v5697 = vmul.f32 %v5614, %v5696
        %v5698 = vmul.f32 %v5619, %v5696
        %v5699 = vmul.f32 %v5624, %v5696
        %v5700 = vmul.f32 %v5629, %v5696
        %v5701 = vmul.f32 %v5634, %v5696
        %v5702 = vmul.f32 %v5639, %v5696
        %v5703 = vmul.f32 %v5644, %v5696
        %v5704 = vmul.f32 %v5649, %v5696
        %v5705 = vmul.f32 %v5654, %v5696
        %v5706 = vmul.f32 %v5659, %v5696
        %v5707 = vmul.f32 %v5664, %v5696
        %v5708 = vmul.f32 %v5669, %v5696
        %v5709 = vmul.f32 %v5674, %v5696
        %v5710 = vmul.f32 %v5679, %v5696
        %v5711 = vmul.f32 %v5684, %v5696
        %v5712 = vmul.f32 %v5689, %v5696
        %v5713 = vsub.f32 %v5544, %v5697
        %v5714 = vsub.f32 %v5545, %v5697
        %v5715 = vsub.f32 %v5546, %v5697
        %v5716 = vsub.f32 %v5547, %v5697
        %v5717 = vsub.f32 %v5548, %v5698
        %v5718 = vsub.f32 %v5549, %v5698
        %v5719 = vsub.f32 %v5550, %v5698
        %v5720 = vsub.f32 %v5551, %v5698
        %v5721 = vsub.f32 %v5552, %v5699
        %v5722 = vsub.f32 %v5553, %v5699
        %v5723 = vsub.f32 %v5554, %v5699
        %v5724 = vsub.f32 %v5555, %v5699
        %v5725 = vsub.f32 %v5556, %v5700
        %v5726 = vsub.f32 %v5557, %v5700
        %v5727 = vsub.f32 %v5558, %v5700
        %v5728 = vsub.f32 %v5559, %v5700
        %v5729 = vsub.f32 %v5560, %v5701
        %v5730 = vsub.f32 %v5561, %v5701
        %v5731 = vsub.f32 %v5562, %v5701
        %v5732 = vsub.f32 %v5563, %v5701
        %v5733 = vsub.f32 %v5564, %v5702
        %v5734 = vsub.f32 %v5565, %v5702
        %v5735 = vsub.f32 %v5566, %v5702
        %v5736 = vsub.f32 %v5567, %v5702
        %v5737 = vsub.f32 %v5568, %v5703
        %v5738 = vsub.f32 %v5569, %v5703
        %v5739 = vsub.f32 %v5570, %v5703
        %v5740 = vsub.f32 %v5571, %v5703
        %v5741 = vsub.f32 %v5572, %v5704
        %v5742 = vsub.f32 %v5573, %v5704
        %v5743 = vsub.f32 %v5574, %v5704
        %v5744 = vsub.f32 %v5575, %v5704
        %v5745 = vsub.f32 %v5576, %v5705
        %v5746 = vsub.f32 %v5577, %v5705
        %v5747 = vsub.f32 %v5578, %v5705
        %v5748 = vsub.f32 %v5579, %v5705
        %v5749 = vsub.f32 %v5580, %v5706
        %v5750 = vsub.f32 %v5581, %v5706
        %v5751 = vsub.f32 %v5582, %v5706
        %v5752 = vsub.f32 %v5583, %v5706
        %v5753 = vsub.f32 %v5584, %v5707
        %v5754 = vsub.f32 %v5585, %v5707
        %v5755 = vsub.f32 %v5586, %v5707
        %v5756 = vsub.f32 %v5587, %v5707
        %v5757 = vsub.f32 %v5588, %v5708
        %v5758 = vsub.f32 %v5589, %v5708
        %v5759 = vsub.f32 %v5590, %v5708
        %v5760 = vsub.f32 %v5591, %v5708
        %v5761 = vsub.f32 %v5592, %v5709
        %v5762 = vsub.f32 %v5593, %v5709
        %v5763 = vsub.f32 %v5594, %v5709
        %v5764 = vsub.f32 %v5595, %v5709
        %v5765 = vsub.f32 %v5596, %v5710
        %v5766 = vsub.f32 %v5597, %v5710
        %v5767 = vsub.f32 %v5598, %v5710
        %v5768 = vsub.f32 %v5599, %v5710
        %v5769 = vsub.f32 %v5600, %v5711
        %v5770 = vsub.f32 %v5601, %v5711
        %v5771 = vsub.f32 %v5602, %v5711
        %v5772 = vsub.f32 %v5603, %v5711
        %v5773 = vsub.f32 %v5604, %v5712
        %v5774 = vsub.f32 %v5605, %v5712
        %v5775 = vsub.f32 %v5606, %v5712
        %v5776 = vsub.f32 %v5607, %v5712
        %v5777 = vmul.f32 %v5713, %v5713
        %v5778 = vmul.f32 %v5714, %v5714
        %v5779 = vmul.f32 %v5715, %v5715
        %v5780 = vmul.f32 %v5716, %v5716
        %v5781 = vmul.f32 %v5717, %v5717
        %v5782 = vmul.f32 %v5718, %v5718
        %v5783 = vmul.f32 %v5719, %v5719
        %v5784 = vmul.f32 %v5720, %v5720
        %v5785 = vmul.f32 %v5721, %v5721
        %v5786 = vmul.f32 %v5722, %v5722
        %v5787 = vmul.f32 %v5723, %v5723
        %v5788 = vmul.f32 %v5724, %v5724
        %v5789 = vmul.f32 %v5725, %v5725
        %v5790 = vmul.f32 %v5726, %v5726
        %v5791 = vmul.f32 %v5727, %v5727
        %v5792 = vmul.f32 %v5728, %v5728
        %v5793 = vmul.f32 %v5729, %v5729
        %v5794 = vmul.f32 %v5730, %v5730
        %v5795 = vmul.f32 %v5731, %v5731
        %v5796 = vmul.f32 %v5732, %v5732
        %v5797 = vmul.f32 %v5733, %v5733
        %v5798 = vmul.f32 %v5734, %v5734
        %v5799 = vmul.f32 %v5735, %v5735
        %v5800 = vmul.f32 %v5736, %v5736
        %v5801 = vmul.f32 %v5737, %v5737
        %v5802 = vmul.f32 %v5738, %v5738
        %v5803 = vmul.f32 %v5739, %v5739
        %v5804 = vmul.f32 %v5740, %v5740
        %v5805 = vmul.f32 %v5741, %v5741
        %v5806 = vmul.f32 %v5742, %v5742
        %v5807 = vmul.f32 %v5743, %v5743
        %v5808 = vmul.f32 %v5744, %v5744
        %v5809 = vmul.f32 %v5745, %v5745
        %v5810 = vmul.f32 %v5746, %v5746
        %v5811 = vmul.f32 %v5747, %v5747
        %v5812 = vmul.f32 %v5748, %v5748
        %v5813 = vmul.f32 %v5749, %v5749
        %v5814 = vmul.f32 %v5750, %v5750
        %v5815 = vmul.f32 %v5751, %v5751
        %v5816 = vmul.f32 %v5752, %v5752
        %v5817 = vmul.f32 %v5753, %v5753
        %v5818 = vmul.f32 %v5754, %v5754
        %v5819 = vmul.f32 %v5755, %v5755
        %v5820 = vmul.f32 %v5756, %v5756
        %v5821 = vmul.f32 %v5757, %v5757
        %v5822 = vmul.f32 %v5758, %v5758
        %v5823 = vmul.f32 %v5759, %v5759
        %v5824 = vmul.f32 %v5760, %v5760
        %v5825 = vmul.f32 %v5761, %v5761
        %v5826 = vmul.f32 %v5762, %v5762
        %v5827 = vmul.f32 %v5763, %v5763
        %v5828 = vmul.f32 %v5764, %v5764
        %v5829 = vmul.f32 %v5765, %v5765
        %v5830 = vmul.f32 %v5766, %v5766
        %v5831 = vmul.f32 %v5767, %v5767
        %v5832 = vmul.f32 %v5768, %v5768
        %v5833 = vmul.f32 %v5769, %v5769
        %v5834 = vmul.f32 %v5770, %v5770
        %v5835 = vmul.f32 %v5771, %v5771
        %v5836 = vmul.f32 %v5772, %v5772
        %v5837 = vmul.f32 %v5773, %v5773
        %v5838 = vmul.f32 %v5774, %v5774
        %v5839 = vmul.f32 %v5775, %v5775
        %v5840 = vmul.f32 %v5776, %v5776
        %v5841 = vadd.f32 %v5777, %v5778
        %v5842 = vadd.f32 %v5841, %v5779
        %v5843 = vadd.f32 %v5842, %v5780
        %5844 = vadd.xlane.f32.xlu0 %v5843
        %v5845 = vpop.xlane.xlu0 %5844
        %v5846 = vadd.f32 %v5781, %v5782
        %v5847 = vadd.f32 %v5846, %v5783
        %v5848 = vadd.f32 %v5847, %v5784
        %5849 = vadd.xlane.f32.xlu0 %v5848
        %v5850 = vpop.xlane.xlu0 %5849
        %v5851 = vadd.f32 %v5785, %v5786
        %v5852 = vadd.f32 %v5851, %v5787
        %v5853 = vadd.f32 %v5852, %v5788
        %5854 = vadd.xlane.f32.xlu0 %v5853
        %v5855 = vpop.xlane.xlu0 %5854
        %v5856 = vadd.f32 %v5789, %v5790
        %v5857 = vadd.f32 %v5856, %v5791
        %v5858 = vadd.f32 %v5857, %v5792
        %5859 = vadd.xlane.f32.xlu0 %v5858
        %v5860 = vpop.xlane.xlu0 %5859
        %v5861 = vadd.f32 %v5793, %v5794
        %v5862 = vadd.f32 %v5861, %v5795
        %v5863 = vadd.f32 %v5862, %v5796
        %5864 = vadd.xlane.f32.xlu0 %v5863
        %v5865 = vpop.xlane.xlu0 %5864
        %v5866 = vadd.f32 %v5797, %v5798
        %v5867 = vadd.f32 %v5866, %v5799
        %v5868 = vadd.f32 %v5867, %v5800
        %5869 = vadd.xlane.f32.xlu0 %v5868
        %v5870 = vpop.xlane.xlu0 %5869
        %v5871 = vadd.f32 %v5801, %v5802
        %v5872 = vadd.f32 %v5871, %v5803
        %v5873 = vadd.f32 %v5872, %v5804
        %5874 = vadd.xlane.f32.xlu0 %v5873
        %v5875 = vpop.xlane.xlu0 %5874
        %v5876 = vadd.f32 %v5805, %v5806
        %v5877 = vadd.f32 %v5876, %v5807
        %v5878 = vadd.f32 %v5877, %v5808
        %5879 = vadd.xlane.f32.xlu0 %v5878
        %v5880 = vpop.xlane.xlu0 %5879
        %v5881 = vadd.f32 %v5809, %v5810
        %v5882 = vadd.f32 %v5881, %v5811
        %v5883 = vadd.f32 %v5882, %v5812
        %5884 = vadd.xlane.f32.xlu0 %v5883
        %v5885 = vpop.xlane.xlu0 %5884
        %v5886 = vadd.f32 %v5813, %v5814
        %v5887 = vadd.f32 %v5886, %v5815
        %v5888 = vadd.f32 %v5887, %v5816
        %5889 = vadd.xlane.f32.xlu0 %v5888
        %v5890 = vpop.xlane.xlu0 %5889
        %v5891 = vadd.f32 %v5817, %v5818
        %v5892 = vadd.f32 %v5891, %v5819
        %v5893 = vadd.f32 %v5892, %v5820
        %5894 = vadd.xlane.f32.xlu0 %v5893
        %v5895 = vpop.xlane.xlu0 %5894
        %v5896 = vadd.f32 %v5821, %v5822
        %v5897 = vadd.f32 %v5896, %v5823
        %v5898 = vadd.f32 %v5897, %v5824
        %5899 = vadd.xlane.f32.xlu0 %v5898
        %v5900 = vpop.xlane.xlu0 %5899
        %v5901 = vadd.f32 %v5825, %v5826
        %v5902 = vadd.f32 %v5901, %v5827
        %v5903 = vadd.f32 %v5902, %v5828
        %5904 = vadd.xlane.f32.xlu0 %v5903
        %v5905 = vpop.xlane.xlu0 %5904
        %v5906 = vadd.f32 %v5829, %v5830
        %v5907 = vadd.f32 %v5906, %v5831
        %v5908 = vadd.f32 %v5907, %v5832
        %5909 = vadd.xlane.f32.xlu0 %v5908
        %v5910 = vpop.xlane.xlu0 %5909
        %v5911 = vadd.f32 %v5833, %v5834
        %v5912 = vadd.f32 %v5911, %v5835
        %v5913 = vadd.f32 %v5912, %v5836
        %5914 = vadd.xlane.f32.xlu0 %v5913
        %v5915 = vpop.xlane.xlu0 %5914
        %v5916 = vadd.f32 %v5837, %v5838
        %v5917 = vadd.f32 %v5916, %v5839
        %v5918 = vadd.f32 %v5917, %v5840
        %5919 = vadd.xlane.f32.xlu0 %v5918
        %v5920 = vpop.xlane.xlu0 %5919
        %v5921 = vmul.f32 %v5845, %v5696
        %v5922 = vmul.f32 %v5850, %v5696
        %v5923 = vmul.f32 %v5855, %v5696
        %v5924 = vmul.f32 %v5860, %v5696
        %v5925 = vmul.f32 %v5865, %v5696
        %v5926 = vmul.f32 %v5870, %v5696
        %v5927 = vmul.f32 %v5875, %v5696
        %v5928 = vmul.f32 %v5880, %v5696
        %v5929 = vmul.f32 %v5885, %v5696
        %v5930 = vmul.f32 %v5890, %v5696
        %v5931 = vmul.f32 %v5895, %v5696
        %v5932 = vmul.f32 %v5900, %v5696
        %v5933 = vmul.f32 %v5905, %v5696
        %v5934 = vmul.f32 %v5910, %v5696
        %v5935 = vmul.f32 %v5915, %v5696
        %v5936 = vmul.f32 %v5920, %v5696
        %v5937 = vadd.f32 %v5921, 1e-05
        %v5938 = vadd.f32 %v5922, 1e-05
        %v5939 = vadd.f32 %v5923, 1e-05
        %v5940 = vadd.f32 %v5924, 1e-05
        %v5941 = vadd.f32 %v5925, 1e-05
        %v5942 = vadd.f32 %v5926, 1e-05
        %v5943 = vadd.f32 %v5927, 1e-05
        %v5944 = vadd.f32 %v5928, 1e-05
        %v5945 = vadd.f32 %v5929, 1e-05
        %v5946 = vadd.f32 %v5930, 1e-05
        %v5947 = vadd.f32 %v5931, 1e-05
        %v5948 = vadd.f32 %v5932, 1e-05
        %v5949 = vadd.f32 %v5933, 1e-05
        %v5950 = vadd.f32 %v5934, 1e-05
        %v5951 = vadd.f32 %v5935, 1e-05
        %v5952 = vadd.f32 %v5936, 1e-05
        %v5953 = vrsqrt.pop %v5937
        %v5954 = vmul.f32 %v5953, %v5937
        %v5955 = vmul.f32 %v5954, %v5953
        %v5956 = vmul.f32 0.5, %v5955
        %v5957 = vsub.f32 1.5, %v5956
        %v5958 = vmul.f32 %v5953, %v5957
        %vm5959 = vweird.f32 %v5937
        %vm5960 = vweird.f32 %v5953
        %vm5961 = vmor %vm5959, %vm5960
        %v5962 = vsel %vm5961, %v5953, %v5958
        %v5963 = vrsqrt.pop %v5938
        %v5964 = vmul.f32 %v5963, %v5938
        %v5965 = vmul.f32 %v5964, %v5963
        %v5966 = vmul.f32 0.5, %v5965
        %v5967 = vsub.f32 1.5, %v5966
        %v5968 = vmul.f32 %v5963, %v5967
        %vm5969 = vweird.f32 %v5938
        %vm5970 = vweird.f32 %v5963
        %vm5971 = vmor %vm5969, %vm5970
        %v5972 = vsel %vm5971, %v5963, %v5968
        %v5973 = vrsqrt.pop %v5939
        %v5974 = vmul.f32 %v5973, %v5939
        %v5975 = vmul.f32 %v5974, %v5973
        %v5976 = vmul.f32 0.5, %v5975
        %v5977 = vsub.f32 1.5, %v5976
        %v5978 = vmul.f32 %v5973, %v5977
        %vm5979 = vweird.f32 %v5939
        %vm5980 = vweird.f32 %v5973
        %vm5981 = vmor %vm5979, %vm5980
        %v5982 = vsel %vm5981, %v5973, %v5978
        %v5983 = vrsqrt.pop %v5940
        %v5984 = vmul.f32 %v5983, %v5940
        %v5985 = vmul.f32 %v5984, %v5983
        %v5986 = vmul.f32 0.5, %v5985
        %v5987 = vsub.f32 1.5, %v5986
        %v5988 = vmul.f32 %v5983, %v5987
        %vm5989 = vweird.f32 %v5940
        %vm5990 = vweird.f32 %v5983
        %vm5991 = vmor %vm5989, %vm5990
        %v5992 = vsel %vm5991, %v5983, %v5988
        %v5993 = vrsqrt.pop %v5941
        %v5994 = vmul.f32 %v5993, %v5941
        %v5995 = vmul.f32 %v5994, %v5993
        %v5996 = vmul.f32 0.5, %v5995
        %v5997 = vsub.f32 1.5, %v5996
        %v5998 = vmul.f32 %v5993, %v5997
        %vm5999 = vweird.f32 %v5941
        %vm6000 = vweird.f32 %v5993
        %vm6001 = vmor %vm5999, %vm6000
        %v6002 = vsel %vm6001, %v5993, %v5998
        %v6003 = vrsqrt.pop %v5942
        %v6004 = vmul.f32 %v6003, %v5942
        %v6005 = vmul.f32 %v6004, %v6003
        %v6006 = vmul.f32 0.5, %v6005
        %v6007 = vsub.f32 1.5, %v6006
        %v6008 = vmul.f32 %v6003, %v6007
        %vm6009 = vweird.f32 %v5942
        %vm6010 = vweird.f32 %v6003
        %vm6011 = vmor %vm6009, %vm6010
        %v6012 = vsel %vm6011, %v6003, %v6008
        %v6013 = vrsqrt.pop %v5943
        %v6014 = vmul.f32 %v6013, %v5943
        %v6015 = vmul.f32 %v6014, %v6013
        %v6016 = vmul.f32 0.5, %v6015
        %v6017 = vsub.f32 1.5, %v6016
        %v6018 = vmul.f32 %v6013, %v6017
        %vm6019 = vweird.f32 %v5943
        %vm6020 = vweird.f32 %v6013
        %vm6021 = vmor %vm6019, %vm6020
        %v6022 = vsel %vm6021, %v6013, %v6018
        %v6023 = vrsqrt.pop %v5944
        %v6024 = vmul.f32 %v6023, %v5944
        %v6025 = vmul.f32 %v6024, %v6023
        %v6026 = vmul.f32 0.5, %v6025
        %v6027 = vsub.f32 1.5, %v6026
        %v6028 = vmul.f32 %v6023, %v6027
        %vm6029 = vweird.f32 %v5944
        %vm6030 = vweird.f32 %v6023
        %vm6031 = vmor %vm6029, %vm6030
        %v6032 = vsel %vm6031, %v6023, %v6028
        %v6033 = vrsqrt.pop %v5945
        %v6034 = vmul.f32 %v6033, %v5945
        %v6035 = vmul.f32 %v6034, %v6033
        %v6036 = vmul.f32 0.5, %v6035
        %v6037 = vsub.f32 1.5, %v6036
        %v6038 = vmul.f32 %v6033, %v6037
        %vm6039 = vweird.f32 %v5945
        %vm6040 = vweird.f32 %v6033
        %vm6041 = vmor %vm6039, %vm6040
        %v6042 = vsel %vm6041, %v6033, %v6038
        %v6043 = vrsqrt.pop %v5946
        %v6044 = vmul.f32 %v6043, %v5946
        %v6045 = vmul.f32 %v6044, %v6043
        %v6046 = vmul.f32 0.5, %v6045
        %v6047 = vsub.f32 1.5, %v6046
        %v6048 = vmul.f32 %v6043, %v6047
        %vm6049 = vweird.f32 %v5946
        %vm6050 = vweird.f32 %v6043
        %vm6051 = vmor %vm6049, %vm6050
        %v6052 = vsel %vm6051, %v6043, %v6048
        %v6053 = vrsqrt.pop %v5947
        %v6054 = vmul.f32 %v6053, %v5947
        %v6055 = vmul.f32 %v6054, %v6053
        %v6056 = vmul.f32 0.5, %v6055
        %v6057 = vsub.f32 1.5, %v6056
        %v6058 = vmul.f32 %v6053, %v6057
        %vm6059 = vweird.f32 %v5947
        %vm6060 = vweird.f32 %v6053
        %vm6061 = vmor %vm6059, %vm6060
        %v6062 = vsel %vm6061, %v6053, %v6058
        %v6063 = vrsqrt.pop %v5948
        %v6064 = vmul.f32 %v6063, %v5948
        %v6065 = vmul.f32 %v6064, %v6063
        %v6066 = vmul.f32 0.5, %v6065
        %v6067 = vsub.f32 1.5, %v6066
        %v6068 = vmul.f32 %v6063, %v6067
        %vm6069 = vweird.f32 %v5948
        %vm6070 = vweird.f32 %v6063
        %vm6071 = vmor %vm6069, %vm6070
        %v6072 = vsel %vm6071, %v6063, %v6068
        %v6073 = vrsqrt.pop %v5949
        %v6074 = vmul.f32 %v6073, %v5949
        %v6075 = vmul.f32 %v6074, %v6073
        %v6076 = vmul.f32 0.5, %v6075
        %v6077 = vsub.f32 1.5, %v6076
        %v6078 = vmul.f32 %v6073, %v6077
        %vm6079 = vweird.f32 %v5949
        %vm6080 = vweird.f32 %v6073
        %vm6081 = vmor %vm6079, %vm6080
        %v6082 = vsel %vm6081, %v6073, %v6078
        %v6083 = vrsqrt.pop %v5950
        %v6084 = vmul.f32 %v6083, %v5950
        %v6085 = vmul.f32 %v6084, %v6083
        %v6086 = vmul.f32 0.5, %v6085
        %v6087 = vsub.f32 1.5, %v6086
        %v6088 = vmul.f32 %v6083, %v6087
        %vm6089 = vweird.f32 %v5950
        %vm6090 = vweird.f32 %v6083
        %vm6091 = vmor %vm6089, %vm6090
        %v6092 = vsel %vm6091, %v6083, %v6088
        %v6093 = vrsqrt.pop %v5951
        %v6094 = vmul.f32 %v6093, %v5951
        %v6095 = vmul.f32 %v6094, %v6093
        %v6096 = vmul.f32 0.5, %v6095
        %v6097 = vsub.f32 1.5, %v6096
        %v6098 = vmul.f32 %v6093, %v6097
        %vm6099 = vweird.f32 %v5951
        %vm6100 = vweird.f32 %v6093
        %vm6101 = vmor %vm6099, %vm6100
        %v6102 = vsel %vm6101, %v6093, %v6098
        %v6103 = vrsqrt.pop %v5952
        %v6104 = vmul.f32 %v6103, %v5952
        %v6105 = vmul.f32 %v6104, %v6103
        %v6106 = vmul.f32 0.5, %v6105
        %v6107 = vsub.f32 1.5, %v6106
        %v6108 = vmul.f32 %v6103, %v6107
        %vm6109 = vweird.f32 %v5952
        %vm6110 = vweird.f32 %v6103
        %vm6111 = vmor %vm6109, %vm6110
        %v6112 = vsel %vm6111, %v6103, %v6108
        %v6113 = vmul.f32 %v5713, %v5962
        %v6114 = vmul.f32 %v5714, %v5962
        %v6115 = vmul.f32 %v5715, %v5962
        %v6116 = vmul.f32 %v5716, %v5962
        %v6117 = vmul.f32 %v5717, %v5972
        %v6118 = vmul.f32 %v5718, %v5972
        %v6119 = vmul.f32 %v5719, %v5972
        %v6120 = vmul.f32 %v5720, %v5972
        %v6121 = vmul.f32 %v5721, %v5982
        %v6122 = vmul.f32 %v5722, %v5982
        %v6123 = vmul.f32 %v5723, %v5982
        %v6124 = vmul.f32 %v5724, %v5982
        %v6125 = vmul.f32 %v5725, %v5992
        %v6126 = vmul.f32 %v5726, %v5992
        %v6127 = vmul.f32 %v5727, %v5992
        %v6128 = vmul.f32 %v5728, %v5992
        %v6129 = vmul.f32 %v5729, %v6002
        %v6130 = vmul.f32 %v5730, %v6002
        %v6131 = vmul.f32 %v5731, %v6002
        %v6132 = vmul.f32 %v5732, %v6002
        %v6133 = vmul.f32 %v5733, %v6012
        %v6134 = vmul.f32 %v5734, %v6012
        %v6135 = vmul.f32 %v5735, %v6012
        %v6136 = vmul.f32 %v5736, %v6012
        %v6137 = vmul.f32 %v5737, %v6022
        %v6138 = vmul.f32 %v5738, %v6022
        %v6139 = vmul.f32 %v5739, %v6022
        %v6140 = vmul.f32 %v5740, %v6022
        %v6141 = vmul.f32 %v5741, %v6032
        %v6142 = vmul.f32 %v5742, %v6032
        %v6143 = vmul.f32 %v5743, %v6032
        %v6144 = vmul.f32 %v5744, %v6032
        %v6145 = vmul.f32 %v5745, %v6042
        %v6146 = vmul.f32 %v5746, %v6042
        %v6147 = vmul.f32 %v5747, %v6042
        %v6148 = vmul.f32 %v5748, %v6042
        %v6149 = vmul.f32 %v5749, %v6052
        %v6150 = vmul.f32 %v5750, %v6052
        %v6151 = vmul.f32 %v5751, %v6052
        %v6152 = vmul.f32 %v5752, %v6052
        %v6153 = vmul.f32 %v5753, %v6062
        %v6154 = vmul.f32 %v5754, %v6062
        %v6155 = vmul.f32 %v5755, %v6062
        %v6156 = vmul.f32 %v5756, %v6062
        %v6157 = vmul.f32 %v5757, %v6072
        %v6158 = vmul.f32 %v5758, %v6072
        %v6159 = vmul.f32 %v5759, %v6072
        %v6160 = vmul.f32 %v5760, %v6072
        %v6161 = vmul.f32 %v5761, %v6082
        %v6162 = vmul.f32 %v5762, %v6082
        %v6163 = vmul.f32 %v5763, %v6082
        %v6164 = vmul.f32 %v5764, %v6082
        %v6165 = vmul.f32 %v5765, %v6092
        %v6166 = vmul.f32 %v5766, %v6092
        %v6167 = vmul.f32 %v5767, %v6092
        %v6168 = vmul.f32 %v5768, %v6092
        %v6169 = vmul.f32 %v5769, %v6102
        %v6170 = vmul.f32 %v5770, %v6102
        %v6171 = vmul.f32 %v5771, %v6102
        %v6172 = vmul.f32 %v5772, %v6102
        %v6173 = vmul.f32 %v5773, %v6112
        %v6174 = vmul.f32 %v5774, %v6112
        %v6175 = vmul.f32 %v5775, %v6112
        %v6176 = vmul.f32 %v5776, %v6112
        %v6178 = vperm.slane %v5608, 0
        %v6179 = vperm.slane %v5608, 1
        %v6180 = vperm.slane %v5608, 2
        %v6181 = vperm.slane %v5608, 3
        %v6186 = vmul.f32 %v6113, %v6178
        %v6187 = vmul.f32 %v6114, %v6179
        %v6188 = vmul.f32 %v6115, %v6180
        %v6189 = vmul.f32 %v6116, %v6181
        %v6190 = vmul.f32 %v6117, %v6178
        %v6191 = vmul.f32 %v6118, %v6179
        %v6192 = vmul.f32 %v6119, %v6180
        %v6193 = vmul.f32 %v6120, %v6181
        %v6194 = vmul.f32 %v6121, %v6178
        %v6195 = vmul.f32 %v6122, %v6179
        %v6196 = vmul.f32 %v6123, %v6180
        %v6197 = vmul.f32 %v6124, %v6181
        %v6198 = vmul.f32 %v6125, %v6178
        %v6199 = vmul.f32 %v6126, %v6179
        %v6200 = vmul.f32 %v6127, %v6180
        %v6201 = vmul.f32 %v6128, %v6181
        %v6202 = vmul.f32 %v6129, %v6178
        %v6203 = vmul.f32 %v6130, %v6179
        %v6204 = vmul.f32 %v6131, %v6180
        %v6205 = vmul.f32 %v6132, %v6181
        %v6206 = vmul.f32 %v6133, %v6178
        %v6207 = vmul.f32 %v6134, %v6179
        %v6208 = vmul.f32 %v6135, %v6180
        %v6209 = vmul.f32 %v6136, %v6181
        %v6210 = vmul.f32 %v6137, %v6178
        %v6211 = vmul.f32 %v6138, %v6179
        %v6212 = vmul.f32 %v6139, %v6180
        %v6213 = vmul.f32 %v6140, %v6181
        %v6214 = vmul.f32 %v6141, %v6178
        %v6215 = vmul.f32 %v6142, %v6179
        %v6216 = vmul.f32 %v6143, %v6180
        %v6217 = vmul.f32 %v6144, %v6181
        %v6218 = vmul.f32 %v6145, %v6178
        %v6219 = vmul.f32 %v6146, %v6179
        %v6220 = vmul.f32 %v6147, %v6180
        %v6221 = vmul.f32 %v6148, %v6181
        %v6222 = vmul.f32 %v6149, %v6178
        %v6223 = vmul.f32 %v6150, %v6179
        %v6224 = vmul.f32 %v6151, %v6180
        %v6225 = vmul.f32 %v6152, %v6181
        %v6226 = vmul.f32 %v6153, %v6178
        %v6227 = vmul.f32 %v6154, %v6179
        %v6228 = vmul.f32 %v6155, %v6180
        %v6229 = vmul.f32 %v6156, %v6181
        %v6230 = vmul.f32 %v6157, %v6178
        %v6231 = vmul.f32 %v6158, %v6179
        %v6232 = vmul.f32 %v6159, %v6180
        %v6233 = vmul.f32 %v6160, %v6181
        %v6234 = vmul.f32 %v6161, %v6178
        %v6235 = vmul.f32 %v6162, %v6179
        %v6236 = vmul.f32 %v6163, %v6180
        %v6237 = vmul.f32 %v6164, %v6181
        %v6238 = vmul.f32 %v6165, %v6178
        %v6239 = vmul.f32 %v6166, %v6179
        %v6240 = vmul.f32 %v6167, %v6180
        %v6241 = vmul.f32 %v6168, %v6181
        %v6242 = vmul.f32 %v6169, %v6178
        %v6243 = vmul.f32 %v6170, %v6179
        %v6244 = vmul.f32 %v6171, %v6180
        %v6245 = vmul.f32 %v6172, %v6181
        %v6246 = vmul.f32 %v6173, %v6178
        %v6247 = vmul.f32 %v6174, %v6179
        %v6248 = vmul.f32 %v6175, %v6180
        %v6249 = vmul.f32 %v6176, %v6181
        %v6251 = vperm.slane %v5609, 0
        %v6252 = vperm.slane %v5609, 1
        %v6253 = vperm.slane %v5609, 2
        %v6254 = vperm.slane %v5609, 3
        %v6259 = vadd.f32 %v6186, %v6251
        %v6260 = vadd.f32 %v6187, %v6252
        %v6261 = vadd.f32 %v6188, %v6253
        %v6262 = vadd.f32 %v6189, %v6254
        %v6263 = vadd.f32 %v6190, %v6251
        %v6264 = vadd.f32 %v6191, %v6252
        %v6265 = vadd.f32 %v6192, %v6253
        %v6266 = vadd.f32 %v6193, %v6254
        %v6267 = vadd.f32 %v6194, %v6251
        %v6268 = vadd.f32 %v6195, %v6252
        %v6269 = vadd.f32 %v6196, %v6253
        %v6270 = vadd.f32 %v6197, %v6254
        %v6271 = vadd.f32 %v6198, %v6251
        %v6272 = vadd.f32 %v6199, %v6252
        %v6273 = vadd.f32 %v6200, %v6253
        %v6274 = vadd.f32 %v6201, %v6254
        %v6275 = vadd.f32 %v6202, %v6251
        %v6276 = vadd.f32 %v6203, %v6252
        %v6277 = vadd.f32 %v6204, %v6253
        %v6278 = vadd.f32 %v6205, %v6254
        %v6279 = vadd.f32 %v6206, %v6251
        %v6280 = vadd.f32 %v6207, %v6252
        %v6281 = vadd.f32 %v6208, %v6253
        %v6282 = vadd.f32 %v6209, %v6254
        %v6283 = vadd.f32 %v6210, %v6251
        %v6284 = vadd.f32 %v6211, %v6252
        %v6285 = vadd.f32 %v6212, %v6253
        %v6286 = vadd.f32 %v6213, %v6254
        %v6287 = vadd.f32 %v6214, %v6251
        %v6288 = vadd.f32 %v6215, %v6252
        %v6289 = vadd.f32 %v6216, %v6253
        %v6290 = vadd.f32 %v6217, %v6254
        %v6291 = vadd.f32 %v6218, %v6251
        %v6292 = vadd.f32 %v6219, %v6252
        %v6293 = vadd.f32 %v6220, %v6253
        %v6294 = vadd.f32 %v6221, %v6254
        %v6295 = vadd.f32 %v6222, %v6251
        %v6296 = vadd.f32 %v6223, %v6252
        %v6297 = vadd.f32 %v6224, %v6253
        %v6298 = vadd.f32 %v6225, %v6254
        %v6299 = vadd.f32 %v6226, %v6251
        %v6300 = vadd.f32 %v6227, %v6252
        %v6301 = vadd.f32 %v6228, %v6253
        %v6302 = vadd.f32 %v6229, %v6254
        %v6303 = vadd.f32 %v6230, %v6251
        %v6304 = vadd.f32 %v6231, %v6252
        %v6305 = vadd.f32 %v6232, %v6253
        %v6306 = vadd.f32 %v6233, %v6254
        %v6307 = vadd.f32 %v6234, %v6251
        %v6308 = vadd.f32 %v6235, %v6252
        %v6309 = vadd.f32 %v6236, %v6253
        %v6310 = vadd.f32 %v6237, %v6254
        %v6311 = vadd.f32 %v6238, %v6251
        %v6312 = vadd.f32 %v6239, %v6252
        %v6313 = vadd.f32 %v6240, %v6253
        %v6314 = vadd.f32 %v6241, %v6254
        %v6315 = vadd.f32 %v6242, %v6251
        %v6316 = vadd.f32 %v6243, %v6252
        %v6317 = vadd.f32 %v6244, %v6253
        %v6318 = vadd.f32 %v6245, %v6254
        %v6319 = vadd.f32 %v6246, %v6251
        %v6320 = vadd.f32 %v6247, %v6252
        %v6321 = vadd.f32 %v6248, %v6253
        %v6322 = vadd.f32 %v6249, %v6254
        %6323 = vst [vmem:[%s304] sm:$0xff] %v6259
        %6324 = vst [vmem:[%s304 + $0x8] sm:$0xff] %v6260
        %6325 = vst [vmem:[%s304 + $0x10] sm:$0xff] %v6261
        %6326 = vst [vmem:[%s304 + $0x18] sm:$0xff] %v6262
        %6327 = vst [vmem:[%s304 + $0x20] sm:$0xff] %v6263
        %6328 = vst [vmem:[%s304 + $0x28] sm:$0xff] %v6264
        %6329 = vst [vmem:[%s304 + $0x30] sm:$0xff] %v6265
        %6330 = vst [vmem:[%s304 + $0x38] sm:$0xff] %v6266
        %6331 = vst [vmem:[%s304 + $0x40] sm:$0xff] %v6267
        %6332 = vst [vmem:[%s304 + $0x48] sm:$0xff] %v6268
        %6333 = vst [vmem:[%s304 + $0x50] sm:$0xff] %v6269
        %6334 = vst [vmem:[%s304 + $0x58] sm:$0xff] %v6270
        %6335 = vst [vmem:[%s304 + $0x60] sm:$0xff] %v6271
        %6336 = vst [vmem:[%s304 + $0x68] sm:$0xff] %v6272
        %6337 = vst [vmem:[%s304 + $0x70] sm:$0xff] %v6273
        %6338 = vst [vmem:[%s304 + $0x78] sm:$0xff] %v6274
        %6339 = vst [vmem:[%s304 + $0x80] sm:$0xff] %v6275
        %6340 = vst [vmem:[%s304 + $0x88] sm:$0xff] %v6276
        %6341 = vst [vmem:[%s304 + $0x90] sm:$0xff] %v6277
        %6342 = vst [vmem:[%s304 + $0x98] sm:$0xff] %v6278
        %6343 = vst [vmem:[%s304 + $0xa0] sm:$0xff] %v6279
        %6344 = vst [vmem:[%s304 + $0xa8] sm:$0xff] %v6280
        %6345 = vst [vmem:[%s304 + $0xb0] sm:$0xff] %v6281
        %6346 = vst [vmem:[%s304 + $0xb8] sm:$0xff] %v6282
        %6347 = vst [vmem:[%s304 + $0xc0] sm:$0xff] %v6283
        %6348 = vst [vmem:[%s304 + $0xc8] sm:$0xff] %v6284
        %6349 = vst [vmem:[%s304 + $0xd0] sm:$0xff] %v6285
        %6350 = vst [vmem:[%s304 + $0xd8] sm:$0xff] %v6286
        %6351 = vst [vmem:[%s304 + $0xe0] sm:$0xff] %v6287
        %6352 = vst [vmem:[%s304 + $0xe8] sm:$0xff] %v6288
        %6353 = vst [vmem:[%s304 + $0xf0] sm:$0xff] %v6289
        %6354 = vst [vmem:[%s304 + $0xf8] sm:$0xff] %v6290
        %6355 = vst [vmem:[%s304 + $0x100] sm:$0xff] %v6291
        %6356 = vst [vmem:[%s304 + $0x108] sm:$0xff] %v6292
        %6357 = vst [vmem:[%s304 + $0x110] sm:$0xff] %v6293
        %6358 = vst [vmem:[%s304 + $0x118] sm:$0xff] %v6294
        %6359 = vst [vmem:[%s304 + $0x120] sm:$0xff] %v6295
        %6360 = vst [vmem:[%s304 + $0x128] sm:$0xff] %v6296
        %6361 = vst [vmem:[%s304 + $0x130] sm:$0xff] %v6297
        %6362 = vst [vmem:[%s304 + $0x138] sm:$0xff] %v6298
        %6363 = vst [vmem:[%s304 + $0x140] sm:$0xff] %v6299
        %6364 = vst [vmem:[%s304 + $0x148] sm:$0xff] %v6300
        %6365 = vst [vmem:[%s304 + $0x150] sm:$0xff] %v6301
        %6366 = vst [vmem:[%s304 + $0x158] sm:$0xff] %v6302
        %6367 = vst [vmem:[%s304 + $0x160] sm:$0xff] %v6303
        %6368 = vst [vmem:[%s304 + $0x168] sm:$0xff] %v6304
        %6369 = vst [vmem:[%s304 + $0x170] sm:$0xff] %v6305
        %6370 = vst [vmem:[%s304 + $0x178] sm:$0xff] %v6306
        %6371 = vst [vmem:[%s304 + $0x180] sm:$0xff] %v6307
        %6372 = vst [vmem:[%s304 + $0x188] sm:$0xff] %v6308
        %6373 = vst [vmem:[%s304 + $0x190] sm:$0xff] %v6309
        %6374 = vst [vmem:[%s304 + $0x198] sm:$0xff] %v6310
        %6375 = vst [vmem:[%s304 + $0x1a0] sm:$0xff] %v6311
        %6376 = vst [vmem:[%s304 + $0x1a8] sm:$0xff] %v6312
        %6377 = vst [vmem:[%s304 + $0x1b0] sm:$0xff] %v6313
        %6378 = vst [vmem:[%s304 + $0x1b8] sm:$0xff] %v6314
        %6379 = vst [vmem:[%s304 + $0x1c0] sm:$0xff] %v6315
        %6380 = vst [vmem:[%s304 + $0x1c8] sm:$0xff] %v6316
        %6381 = vst [vmem:[%s304 + $0x1d0] sm:$0xff] %v6317
        %6382 = vst [vmem:[%s304 + $0x1d8] sm:$0xff] %v6318
        %6383 = vst [vmem:[%s304 + $0x1e0] sm:$0xff] %v6319
        %6384 = vst [vmem:[%s304 + $0x1e8] sm:$0xff] %v6320
        %6385 = vst [vmem:[%s304 + $0x1f0] sm:$0xff] %v6321
        %6386 = vst [vmem:[%s304 + $0x1f8] sm:$0xff] %v6322
        %s6387 = sand.u32 %s142, 1
        %s6388 = scalar_lea.sflag [#allocation4], %s6387
        %s6389 = sand.u32 %s142, 1
        %s6390 = smul.addr %s6389, 512
        %s6391 = scalar_lea.vmem [#allocation11], %s6390
        // Predicated region
        $region61: #{tpu_custom_call.1} parent=39 // pred_check
          %p6392 = pneg %p152
        $region62: #{tpu_custom_call.1} parent=39 // pred_check_branch
          %6394 = sbr.rel (%p6392) target = $region64
        $region63: #{tpu_custom_call.1} parent=39 // pred_region
          %6396 = vsyncadd %s6388, 0
          %s6397 = smul.addr %s24, 64
          %s6398 = smul.addr %s6397, 8
          %s6399 = scalar_lea.hbm %s5, %s6398
          %s6400 = sshll.u32 %s6391, 4
          %s6401 = int_to_ptr.vmem [resolvable:$true] %s6400
          %s6402 = sshll.u32 %s6399, 4
          %s6403 = int_to_ptr.hbm [resolvable:$true] %s6402
          %6408 = dma.vmem_to_hbm [thread:$0]  %s6401, 8192, %s6403, %s6388, 512, 512, 32
        $region64: #{tpu_custom_call.1} parent=39 // pred_fallthru
          _
      $region40: #{tpu_custom_call.1} parent=5 // pred_fallthru
        _
      %p6409 = scmp.le.s32.totalorder 2, %s19
      // Predicated region
      $region65: #{tpu_custom_call.1} parent=5 // pred_check
        %p6410 = pneg %p6409
      $region66: #{tpu_custom_call.1} parent=5 // pred_check_branch
        %6412 = sbr.rel (%p6410) target = $region68
      $region67: #{tpu_custom_call.1} parent=5 // pred_region
        %s6413 = ssub.s32 %s19, 2
        // Predicated region
        $region69: #{tpu_custom_call.1} parent=67 // pred_check
          %p6414 = pneg %p158
        $region70: #{tpu_custom_call.1} parent=67 // pred_check_branch
          %6416 = sbr.rel (%p6414) target = $region72
        $region71: #{tpu_custom_call.1} parent=67 // pred_region
          %s6417 = sand.u32 %s143, 1
          %s6418 = scalar_lea.sflag [#allocation4], %s6417
          %s6419 = sand.u32 %s143, 1
          %s6420 = smul.addr %s6419, 512
          %s6421 = scalar_lea.vmem [#allocation11], %s6420
          %6423 = dma.done %s6418, 8192
        $region72: #{tpu_custom_call.1} parent=67 // pred_fallthru
          _
      $region68: #{tpu_custom_call.1} parent=5 // pred_fallthru
        _
    $region6: #{tpu_custom_call.1} parent=1 // loop_footer
      %s23 = sadd.s32 1, %s19
    $region7: #{tpu_custom_call.1} parent=1 // loop_footer_branch
      %18 = sbr.rel target = $region3
    $region8: #{tpu_custom_call.1} parent=1 // loop_exit
      _
    %6424 = vsyncpa [#allocation3], 1
    %s6425 = scalar_lea.sflag [#allocation3], 1
    %6426 = vsyncpa %s6425, 1
    %6427 = vsyncpa [#allocation6], 1
    %6428 = vsyncpa [#allocation9], 1
    %6429 = vsyncpa [#allocation4], 1
    %s6430 = scalar_lea.sflag [#allocation4], 1
    %6431 = vsyncpa %s6430, 1

</llo_original>
